<compile_context>
chip_gen: v7x
topology: tpu7x:2x2x1
jax: 0.10.0
libtpu: 0.0.40
codegen_flags: <defaults>
</compile_context>

<pallas_src>
import random

import jax
import jax.numpy as jnp
from jax import lax
from jax.experimental import pallas as pl
from jax.experimental.pallas import tpu as pltpu

# ----------------------------- sizes (small) -------------------------------
B = 8          # batch
S = 8          # source sequence length
T_LEN = 6      # target sequence length (max_len)
E = 64         # embedding dim
EP = 128       # lane-padded embedding width (for packed matmuls)
H = 128        # hidden dim (GRU)
A = 128        # attention dim
N_TRAITS = 8   # raw profile features
TD = 32        # trait-encoding dim
V = 64         # vocab / resp_decoder.output_dim
VP = 128       # lane-padded vocab width (lane-dense logits output)

HIDW = H + A + 3 * H   # 640: packed width of all hid-dependent projections


# --------------------------- fused forward kernel ---------------------------
def ptf_kernel(tf_ref,                                   # scalar prefetch (SMEM)
               src_ref, yemb_ref, prof_ref,
               enc_wih_ref, enc_whh_ref, enc_bih_ref, enc_bhh_ref,
               trait_w_ref, trait_b_ref,
               fus_wt_ref, fus_b_ref,
               att_wa_ref, att_va_ref,
               hid_w_ref, hid_b_ref,
               dec_win_ref, dec_bi_ref,
               out_w_ref, out_b_ref, emb_trg_ref,
               outs_ref,
               posts_scr, e_post_scr, gi_scr):
    f32 = jnp.float32
    bf16 = jnp.bfloat16

    def gru_gates(gi, gh, h_prev):
        i_r, i_z, i_n = gi[:, 0:H], gi[:, H:2 * H], gi[:, 2 * H:3 * H]
        h_r, h_z, h_n = gh[:, 0:H], gh[:, H:2 * H], gh[:, 2 * H:3 * H]
        r = jax.nn.sigmoid(i_r + h_r)
        z = jax.nn.sigmoid(i_z + h_z)
        n = jnp.tanh(i_n + r * h_n)
        return (1.0 - z) * n + z * h_prev

    # ---- encoder: input projection hoisted out of the serial recurrence ----
    src2d = src_ref[...].reshape(S * B, E)                           # bf16
    gi_all = (jnp.dot(src2d, enc_wih_ref[...], preferred_element_type=f32)
              + enc_bih_ref[...])                                    # (S*B, 3H)
    gi_scr[...] = gi_all.reshape(S, B, 3 * H)

    def enc_step(t, h):
        gh = (jnp.dot(h.astype(bf16), enc_whh_ref[...],
                      preferred_element_type=f32)
              + enc_bhh_ref[...])
        h_new = gru_gates(gi_scr[t], gh, h)
        posts_scr[t] = h_new
        return h_new

    post_hid = lax.fori_loop(0, S, enc_step, jnp.zeros((B, H), f32),
                             unroll=True)                            # (B, H)

    # ---- trait encoder + loop-invariant part of the trait fusion -----------
    trait_enc = jnp.tanh(
        jnp.dot(prof_ref[...], trait_w_ref[...], preferred_element_type=f32)
        + trait_b_ref[...])                                          # (B, TD)
    trait_term = (jnp.dot(trait_enc, fus_wt_ref[...],
                          preferred_element_type=f32)
                  + fus_b_ref[...])                                  # (B, H)

    # ---- attention: post-side projection computed once, kept in VMEM -------
    posts2d = posts_scr[...].reshape(S * B, H).astype(bf16)
    e_post_scr[...] = jnp.dot(posts2d, att_wa_ref[...],
                              preferred_element_type=f32).reshape(S, B, A)

    # only row 0 needs zeroing; rows 1..T-1 are unconditionally written below
    outs_ref[0] = jnp.zeros((B, VP), f32)

    col = lax.broadcasted_iota(jnp.int32, (B, VP), 1)

    # ---- decoder loop, fully in-kernel --------------------------------------
    def dec_step(t, carry):
        hid, emb = carry                                  # (B, H), (B, EP) f32

        # re-load loop-invariant VMEM blocks inside the body (short live ranges;
        # vlds are hidden under the MXU)
        posts = posts_scr[...]                                       # (S, B, H)
        e_post = e_post_scr[...]                                     # (S, B, A)

        # ONE packed MXU call for ALL hid-dependent projections:
        #   columns [0:H) -> trait-fusion pre-act, [H:H+A) -> attention query,
        #   [H+A:H+A+3H) -> recurrent GRU gates.
        hid_all = (jnp.dot(hid.astype(bf16), hid_w_ref[...],
                           preferred_element_type=f32)
                   + hid_b_ref[...])                                 # (B, 640)
        fus = jnp.tanh(hid_all[:, 0:H] + trait_term)                 # (B, H)
        e_hid = hid_all[:, H:H + A]                                  # (B, A)
        gh = hid_all[:, H + A:H + A + 3 * H]                         # (B, 3H)

        # Bahdanau attention over encoder outputs (keepdims end-to-end)
        energy = jnp.tanh(e_post + e_hid[None, :, :])                # (S, B, A)
        scores = jnp.sum(energy * att_va_ref[...], axis=-1,
                         keepdims=True)                              # (S, B, 1)
        m = jnp.max(scores, axis=0, keepdims=True)
        ex = jnp.exp(scores - m)
        alpha = ex * pl.reciprocal(jnp.sum(ex, axis=0, keepdims=True),
                                   approx=True)                      # (S, B, 1)
        ctx = jnp.sum(alpha * posts, axis=0)                         # (B, H)

        # decoder GRU cell: [emb_pad ; ctx ; fus] packed into one MXU call
        xin = jnp.concatenate([emb, ctx, fus], axis=1).astype(bf16)  # (B, 384)
        gi = (jnp.dot(xin, dec_win_ref[...], preferred_element_type=f32)
              + dec_bi_ref[...])
        h_new = gru_gates(gi, gh, hid)                               # (B, H)

        # output projection: [h_new ; ctx ; emb_pad] packed, lane-dense VP=128
        xout = jnp.concatenate([h_new, ctx, emb], axis=1).astype(bf16)
        logits = (jnp.dot(xout, out_w_ref[...], preferred_element_type=f32)
                  + out_b_ref[...])                                  # (B, VP)
        outs_ref[t] = logits

        # greedy path: first-argmax one-hot -> embedding (one tiny matmul)
        mmax = jnp.max(logits, axis=1, keepdims=True)
        first = jnp.min(jnp.where(logits >= mmax, col, VP),
                        axis=1, keepdims=True)
        top1_oh = (col == first).astype(bf16)                        # (B, VP)
        top1_emb = jnp.dot(top1_oh, emb_trg_ref[...],
                           preferred_element_type=f32)               # (B, EP)

        # teacher forcing select (scalar-prefetch flag, read from SMEM)
        tf = (tf_ref[t] > 0).astype(f32)
        next_emb = tf * yemb_ref[t] + (1.0 - tf) * top1_emb
        return (h_new, next_emb)

    lax.fori_loop(1, T_LEN, dec_step, (post_hid, yemb_ref[0]), unroll=True)


def _full_spec(shape):
    n = len(shape)
    return pl.BlockSpec(shape, lambda i, tf, n=n: (0,) * n)


def ptf_fused(tf_flags, src_emb, y_emb, profiles, p):
    in_arrays = [
        src_emb, y_emb, profiles,
        p["enc_wih"], p["enc_whh"], p["enc_bih"], p["enc_bhh"],
        p["trait_w"], p["trait_b"],
        p["fus_wt"], p["fus_b"],
        p["att_wa"], p["att_va"],
        p["hid_w"], p["hid_b"],
        p["dec_win"], p["dec_bi"],
        p["out_w"], p["out_b"], p["emb_trg_p"],
    ]
    grid_spec = pltpu.PrefetchScalarGridSpec(
        num_scalar_prefetch=1,
        grid=(1,),
        in_specs=[_full_spec(a.shape) for a in in_arrays],
        out_specs=_full_spec((T_LEN, B, VP)),
        scratch_shapes=[pltpu.VMEM((S, B, H), jnp.float32),      # encoder outs
                        pltpu.VMEM((S, B, A), jnp.float32),      # e_post
                        pltpu.VMEM((S, B, 3 * H), jnp.float32)],  # hoisted GI
    )
    return pl.pallas_call(
        ptf_kernel,
        out_shape=jax.ShapeDtypeStruct((T_LEN, B, VP), jnp.float32),
        grid_spec=grid_spec,
        # single serial kernel: keep it on one TensorCore (no megacore split)
        compiler_params=pltpu.CompilerParams(
            dimension_semantics=("arbitrary",)),
    )(tf_flags, *in_arrays)


@jax.jit
def _ptf_jax(X_tok, y_tok, profiles, tf_flags, params):
    src_emb = params["emb_src"][X_tok]                       # (S, B, E) bf16
    y_emb = params["emb_trg_p"][y_tok].astype(jnp.float32)   # (T, B, EP) f32
    outs_p = ptf_fused(tf_flags, src_emb, y_emb, profiles, params)
    return outs_p[:, :, :V]                                  # drop lane padding


# ------------------------------- PTF forward --------------------------------
def ptf_forward(X_tok, y_tok, profiles, params, teacher_forcing_ratio=0.5,
                seed=0):
    max_len = y_tok.shape[0]
    rng = random.Random(seed)                   # deterministic teacher forcing
    tf_list = [0] + [1 if rng.random() < teacher_forcing_ratio else 0
                     for _ in range(1, max_len)]
    tf_flags = jnp.asarray(tf_list, dtype=jnp.int32)
    return _ptf_jax(X_tok, y_tok, profiles, tf_flags, params)


# ------------------------------ parameter init ------------------------------
def init_params(key):
    ks = jax.random.split(key, 17)
    sc = 0.1
    rnd = lambda i, shp: jax.random.normal(ks[i], shp, jnp.float32) * sc
    bf16 = jnp.bfloat16

    emb_src = rnd(0, (V, E))
    emb_trg = rnd(1, (V, E))
    enc_wih = rnd(2, (E, 3 * H))
    enc_whh = rnd(3, (H, 3 * H))
    trait_w = rnd(4, (N_TRAITS, TD))
    fus_wh = rnd(5, (H, H))
    fus_wt = rnd(6, (TD, H))
    att_wa = rnd(7, (H, A))
    att_ua = rnd(8, (H, A))
    att_va = rnd(9, (1, A))
    dec_we = rnd(10, (E, 3 * H))
    dec_wc = rnd(11, (H, 3 * H))
    dec_wf = rnd(12, (H, 3 * H))
    dec_whh = rnd(13, (H, 3 * H))
    out_wh = rnd(14, (H, V))
    out_wc = rnd(15, (H, V))
    out_we = rnd(16, (E, V))
    out_bo = jnp.zeros((1, V), jnp.float32)

    # ---- packed / padded weights (done once at init, not in-kernel) --------
    # target embedding table padded to lane-dense (VP, EP)
    emb_trg_p = jnp.zeros((VP, EP), jnp.float32).at[:V, :E].set(emb_trg)
    # decoder GRU input block: rows [emb_pad(128) ; ctx(128) ; fus(128)]
    dec_win = (jnp.zeros((3 * 128, 3 * H), jnp.float32)
               .at[0:E].set(dec_we)
               .at[128:128 + H].set(dec_wc)
               .at[256:256 + H].set(dec_wf))
    # output projection block: rows [h_new(128) ; ctx(128) ; emb_pad(128)],
    # columns padded 64 -> 128 (lane-dense logits)
    out_w = (jnp.zeros((3 * 128, VP), jnp.float32)
             .at[0:H, :V].set(out_wh)
             .at[128:128 + H, :V].set(out_wc)
             .at[256:256 + E, :V].set(out_we))
    # padded vocab columns get -1e9 bias so in-kernel argmax never picks them
    out_b = jnp.full((1, VP), -1e9, jnp.float32).at[:, :V].set(out_bo)

    # ALL hid-dependent decoder projections packed column-wise into ONE matrix:
    #   [ fus_wh (H) | att_ua (A) | dec_whh (3H) ]  -> (H, 640)
    hid_w = (jnp.zeros((H, HIDW), jnp.float32)
             .at[:, 0:H].set(fus_wh)
             .at[:, H:H + A].set(att_ua)
             .at[:, H + A:H + A + 3 * H].set(dec_whh))
    # packed biases: fusion bias lives in trait_term (fus_b); att_ba / dec_bh
    # are zero-initialised here but kept for generality.
    hid_b = jnp.zeros((1, HIDW), jnp.float32)

    return {
        # embeddings (bf16: halves DMA, MXU ingests bf16 natively)
        "emb_src": emb_src.astype(bf16),
        "emb_trg_p": emb_trg_p.astype(bf16),
        # encoder GRU
        "enc_wih": enc_wih.astype(bf16),
        "enc_whh": enc_whh.astype(bf16),
        "enc_bih": jnp.zeros((1, 3 * H), jnp.float32),
        "enc_bhh": jnp.zeros((1, 3 * H), jnp.float32),
        # trait encoder (tiny, keep f32)
        "trait_w": trait_w,
        "trait_b": jnp.zeros((1, TD), jnp.float32),
        # trait fusion (trait-side term; hid-side is inside hid_w)
        "fus_wt": fus_wt,
        "fus_b": jnp.zeros((1, H), jnp.float32),
        # attention (post-side proj + score vector)
        "att_wa": att_wa.astype(bf16),
        "att_va": att_va,
        # packed hid-dependent projections (fusion / attn query / GRU gates)
        "hid_w": hid_w.astype(bf16),
        "hid_b": hid_b,
        # decoder GRU (packed input block)
        "dec_win": dec_win.astype(bf16),
        "dec_bi": jnp.zeros((1, 3 * H), jnp.float32),
        # output projection (packed, lane-dense)
        "out_w": out_w.astype(bf16),
        "out_b": out_b,
    }


if __name__ == "__main__":
    key = jax.random.PRNGKey(0)
    k1, k2, k3, k4 = jax.random.split(key, 4)
    params = init_params(k1)

    X_tok = jax.random.randint(k2, (S, B), 0, V, dtype=jnp.int32)      # source tokens
    y_tok = jax.random.randint(k3, (T_LEN, B), 0, V, dtype=jnp.int32)  # target tokens
    profiles = jax.random.normal(k4, (B, N_TRAITS), jnp.float32)       # trait profiles

    outs = ptf_forward(X_tok, y_tok, profiles, params, teacher_forcing_ratio=0.5)
    outs = jax.block_until_ready(outs)
    assert outs.shape == (T_LEN, B, V)
    assert bool(jnp.all(jnp.isfinite(outs)))
    print("KERNEL_OK")
</pallas_src>

<mosaic_0001>
module attributes {stable_mosaic.version = 11 : i64} {
  func.func @ptf_kernel(%arg0: i32, %arg1: memref<6xi32, #tpu.memory_space<smem>>, %arg2: memref<8x8x64xbf16, #tpu.memory_space<vmem>>, %arg3: memref<6x8x128xf32, #tpu.memory_space<vmem>>, %arg4: memref<8x8xf32, #tpu.memory_space<vmem>>, %arg5: memref<64x384xbf16, #tpu.memory_space<vmem>>, %arg6: memref<128x384xbf16, #tpu.memory_space<vmem>>, %arg7: memref<1x384xf32, #tpu.memory_space<vmem>>, %arg8: memref<1x384xf32, #tpu.memory_space<vmem>>, %arg9: memref<8x32xf32, #tpu.memory_space<vmem>>, %arg10: memref<1x32xf32, #tpu.memory_space<vmem>>, %arg11: memref<32x128xf32, #tpu.memory_space<vmem>>, %arg12: memref<1x128xf32, #tpu.memory_space<vmem>>, %arg13: memref<128x128xbf16, #tpu.memory_space<vmem>>, %arg14: memref<1x128xf32, #tpu.memory_space<vmem>>, %arg15: memref<128x640xbf16, #tpu.memory_space<vmem>>, %arg16: memref<1x640xf32, #tpu.memory_space<vmem>>, %arg17: memref<384x384xbf16, #tpu.memory_space<vmem>>, %arg18: memref<1x384xf32, #tpu.memory_space<vmem>>, %arg19: memref<384x128xbf16, #tpu.memory_space<vmem>>, %arg20: memref<1x128xf32, #tpu.memory_space<vmem>>, %arg21: memref<128x128xbf16, #tpu.memory_space<vmem>>, %arg22: memref<6x8x128xf32, #tpu.memory_space<vmem>>, %arg23: memref<8x8x128xf32, #tpu.memory_space<vmem>>, %arg24: memref<8x8x128xf32, #tpu.memory_space<vmem>>, %arg25: memref<8x8x384xf32, #tpu.memory_space<vmem>>) attributes {dimension_semantics = [#tpu.dimension_semantics<arbitrary>], iteration_bounds = array<i64: 1>, scalar_prefetch = 1 : i64, scratch_operands = 3 : i64, tpu.core_type = #tpu.core_type<tc>, window_params = [{pipeline_mode = #tpu.pipeline_mode<synchronous>, transform_indices = @transform_0, window_bounds = array<i64: 8, 8, 64>}, {pipeline_mode = #tpu.pipeline_mode<synchronous>, transform_indices = @transform_1, window_bounds = array<i64: 6, 8, 128>}, {pipeline_mode = #tpu.pipeline_mode<synchronous>, transform_indices = @transform_2, window_bounds = array<i64: 8, 8>}, {pipeline_mode = #tpu.pipeline_mode<synchronous>, transform_indices = @transform_3, window_bounds = array<i64: 64, 384>}, {pipeline_mode = #tpu.pipeline_mode<synchronous>, transform_indices = @transform_4, window_bounds = array<i64: 128, 384>}, {pipeline_mode = #tpu.pipeline_mode<synchronous>, transform_indices = @transform_5, window_bounds = array<i64: 1, 384>}, {pipeline_mode = #tpu.pipeline_mode<synchronous>, transform_indices = @transform_6, window_bounds = array<i64: 1, 384>}, {pipeline_mode = #tpu.pipeline_mode<synchronous>, transform_indices = @transform_7, window_bounds = array<i64: 8, 32>}, {pipeline_mode = #tpu.pipeline_mode<synchronous>, transform_indices = @transform_8, window_bounds = array<i64: 1, 32>}, {pipeline_mode = #tpu.pipeline_mode<synchronous>, transform_indices = @transform_9, window_bounds = array<i64: 32, 128>}, {pipeline_mode = #tpu.pipeline_mode<synchronous>, transform_indices = @transform_10, window_bounds = array<i64: 1, 128>}, {pipeline_mode = #tpu.pipeline_mode<synchronous>, transform_indices = @transform_11, window_bounds = array<i64: 128, 128>}, {pipeline_mode = #tpu.pipeline_mode<synchronous>, transform_indices = @transform_12, window_bounds = array<i64: 1, 128>}, {pipeline_mode = #tpu.pipeline_mode<synchronous>, transform_indices = @transform_13, window_bounds = array<i64: 128, 640>}, {pipeline_mode = #tpu.pipeline_mode<synchronous>, transform_indices = @transform_14, window_bounds = array<i64: 1, 640>}, {pipeline_mode = #tpu.pipeline_mode<synchronous>, transform_indices = @transform_15, window_bounds = array<i64: 384, 384>}, {pipeline_mode = #tpu.pipeline_mode<synchronous>, transform_indices = @transform_16, window_bounds = array<i64: 1, 384>}, {pipeline_mode = #tpu.pipeline_mode<synchronous>, transform_indices = @transform_17, window_bounds = array<i64: 384, 128>}, {pipeline_mode = #tpu.pipeline_mode<synchronous>, transform_indices = @transform_18, window_bounds = array<i64: 1, 128>}, {pipeline_mode = #tpu.pipeline_mode<synchronous>, transform_indices = @transform_19, window_bounds = array<i64: 128, 128>}, {pipeline_mode = #tpu.pipeline_mode<synchronous>, transform_indices = @transform_20, window_bounds = array<i64: 6, 8, 128>}]} {
    %c0 = arith.constant 0 : index
    %c0_0 = arith.constant 0 : index
    %c0_1 = arith.constant 0 : index
    %0 = vector.load %arg2[%c0, %c0_0, %c0_1] : memref<8x8x64xbf16, #tpu.memory_space<vmem>>, vector<8x8x64xbf16>
    %1 = vector.shape_cast %0 : vector<8x8x64xbf16> to vector<64x64xbf16>
    %c0_2 = arith.constant 0 : index
    %c0_3 = arith.constant 0 : index
    %2 = vector.load %arg5[%c0_2, %c0_3] : memref<64x384xbf16, #tpu.memory_space<vmem>>, vector<64x384xbf16>
    %cst = arith.constant dense<0.000000e+00> : vector<64x384xf32>
    %3 = tpu.matmul %1, %2, %cst {dimension_numbers = #tpu.dot_dimension_numbers<[1], [0], [0], [1], [0, 0, 1, 1], [], []>} : vector<64x64xbf16>, vector<64x384xbf16>, vector<64x384xf32> -> vector<64x384xf32>
    %c0_4 = arith.constant 0 : index
    %c0_5 = arith.constant 0 : index
    %4 = vector.load %arg7[%c0_4, %c0_5] : memref<1x384xf32, #tpu.memory_space<vmem>>, vector<1x384xf32>
    %5 = vector.broadcast %4 : vector<1x384xf32> to vector<64x384xf32>
    %6 = arith.addf %3, %5 : vector<64x384xf32>
    %7 = vector.shape_cast %6 : vector<64x384xf32> to vector<8x8x384xf32>
    %c0_6 = arith.constant 0 : index
    %c0_7 = arith.constant 0 : index
    %c0_8 = arith.constant 0 : index
    %8 = vector.load %arg25[%c0_6, %c0_7, %c0_8] : memref<8x8x384xf32, #tpu.memory_space<vmem>>, vector<8x8x384xf32>
    tpu.vector_store %arg25[%c0_6, %c0_7, %c0_8], %7 {strides = array<i32>} : memref<8x8x384xf32, #tpu.memory_space<vmem>>, vector<8x8x384xf32>,
    %cst_9 = arith.constant 0.000000e+00 : f32
    %9 = vector.broadcast %cst_9 : f32 to vector<8x128xf32>
    %c0_i32 = arith.constant 0 : i32
    %10 = arith.truncf %9 : vector<8x128xf32> to vector<8x128xbf16>
    %c0_10 = arith.constant 0 : index
    %c0_11 = arith.constant 0 : index
    %11 = vector.load %arg6[%c0_10, %c0_11] : memref<128x384xbf16, #tpu.memory_space<vmem>>, vector<128x384xbf16>
    %cst_12 = arith.constant dense<0.000000e+00> : vector<8x384xf32>
    %12 = tpu.matmul %10, %11, %cst_12 {dimension_numbers = #tpu.dot_dimension_numbers<[1], [0], [0], [1], [0, 0, 1, 1], [], []>} : vector<8x128xbf16>, vector<128x384xbf16>, vector<8x384xf32> -> vector<8x384xf32>
    %c0_13 = arith.constant 0 : index
    %c0_14 = arith.constant 0 : index
    %13 = vector.load %arg8[%c0_13, %c0_14] : memref<1x384xf32, #tpu.memory_space<vmem>>, vector<1x384xf32>
    %14 = vector.broadcast %13 : vector<1x384xf32> to vector<8x384xf32>
    %15 = arith.addf %12, %14 : vector<8x384xf32>
    %16 = arith.index_cast %c0_i32 : i32 to index
    %c0_15 = arith.constant 0 : index
    %c0_16 = arith.constant 0 : index
    %17 = vector.load %arg25[%16, %c0_15, %c0_16] : memref<8x8x384xf32, #tpu.memory_space<vmem>>, vector<1x8x384xf32>
    %18 = vector.shape_cast %17 : vector<1x8x384xf32> to vector<8x384xf32>
    %19 = vector.extract_strided_slice %18 {offsets = [0, 0], sizes = [8, 128], strides = [1, 1]} : vector<8x384xf32> to vector<8x128xf32>
    %20 = vector.extract_strided_slice %18 {offsets = [0, 128], sizes = [8, 128], strides = [1, 1]} : vector<8x384xf32> to vector<8x128xf32>
    %21 = vector.extract_strided_slice %18 {offsets = [0, 256], sizes = [8, 128], strides = [1, 1]} : vector<8x384xf32> to vector<8x128xf32>
    %22 = vector.extract_strided_slice %15 {offsets = [0, 0], sizes = [8, 128], strides = [1, 1]} : vector<8x384xf32> to vector<8x128xf32>
    %23 = vector.extract_strided_slice %15 {offsets = [0, 128], sizes = [8, 128], strides = [1, 1]} : vector<8x384xf32> to vector<8x128xf32>
    %24 = vector.extract_strided_slice %15 {offsets = [0, 256], sizes = [8, 128], strides = [1, 1]} : vector<8x384xf32> to vector<8x128xf32>
    %25 = arith.addf %19, %22 : vector<8x128xf32>
    %26 = arith.negf %25 : vector<8x128xf32>
    %27 = math.exp %26 : vector<8x128xf32>
    %cst_17 = arith.constant 1.000000e+00 : f32
    %28 = vector.broadcast %cst_17 : f32 to vector<8x128xf32>
    %29 = arith.addf %28, %27 : vector<8x128xf32>
    %30 = arith.divf %28, %29 : vector<8x128xf32>
    %31 = arith.addf %20, %23 : vector<8x128xf32>
    %32 = arith.negf %31 : vector<8x128xf32>
    %33 = math.exp %32 : vector<8x128xf32>
    %cst_18 = arith.constant 1.000000e+00 : f32
    %34 = vector.broadcast %cst_18 : f32 to vector<8x128xf32>
    %35 = arith.addf %34, %33 : vector<8x128xf32>
    %36 = arith.divf %34, %35 : vector<8x128xf32>
    %37 = arith.mulf %30, %24 : vector<8x128xf32>
    %38 = arith.addf %21, %37 : vector<8x128xf32>
    %39 = math.tanh %38 : vector<8x128xf32>
    %cst_19 = arith.constant 1.000000e+00 : f32
    %40 = vector.broadcast %cst_19 : f32 to vector<8x128xf32>
    %41 = arith.subf %40, %36 : vector<8x128xf32>
    %42 = arith.mulf %41, %39 : vector<8x128xf32>
    %43 = arith.mulf %36, %9 : vector<8x128xf32>
    %44 = arith.addf %42, %43 : vector<8x128xf32>
    %45 = arith.index_cast %c0_i32 : i32 to index
    %c0_20 = arith.constant 0 : index
    %c0_21 = arith.constant 0 : index
    %46 = vector.load %arg23[%45, %c0_20, %c0_21] : memref<8x8x128xf32, #tpu.memory_space<vmem>>, vector<1x8x128xf32>
    %47 = vector.shape_cast %46 : vector<1x8x128xf32> to vector<8x128xf32>
    %48 = vector.shape_cast %44 : vector<8x128xf32> to vector<1x8x128xf32>
    tpu.vector_store %arg23[%45, %c0_20, %c0_21], %48 {strides = array<i32>} : memref<8x8x128xf32, #tpu.memory_space<vmem>>, vector<1x8x128xf32>,
    %c1_i32 = arith.constant 1 : i32
    %49 = arith.truncf %44 : vector<8x128xf32> to vector<8x128xbf16>
    %c0_22 = arith.constant 0 : index
    %c0_23 = arith.constant 0 : index
    %50 = vector.load %arg6[%c0_22, %c0_23] : memref<128x384xbf16, #tpu.memory_space<vmem>>, vector<128x384xbf16>
    %cst_24 = arith.constant dense<0.000000e+00> : vector<8x384xf32>
    %51 = tpu.matmul %49, %50, %cst_24 {dimension_numbers = #tpu.dot_dimension_numbers<[1], [0], [0], [1], [0, 0, 1, 1], [], []>} : vector<8x128xbf16>, vector<128x384xbf16>, vector<8x384xf32> -> vector<8x384xf32>
    %c0_25 = arith.constant 0 : index
    %c0_26 = arith.constant 0 : index
    %52 = vector.load %arg8[%c0_25, %c0_26] : memref<1x384xf32, #tpu.memory_space<vmem>>, vector<1x384xf32>
    %53 = vector.broadcast %52 : vector<1x384xf32> to vector<8x384xf32>
    %54 = arith.addf %51, %53 : vector<8x384xf32>
    %55 = arith.index_cast %c1_i32 : i32 to index
    %c0_27 = arith.constant 0 : index
    %c0_28 = arith.constant 0 : index
    %56 = vector.load %arg25[%55, %c0_27, %c0_28] : memref<8x8x384xf32, #tpu.memory_space<vmem>>, vector<1x8x384xf32>
    %57 = vector.shape_cast %56 : vector<1x8x384xf32> to vector<8x384xf32>
    %58 = vector.extract_strided_slice %57 {offsets = [0, 0], sizes = [8, 128], strides = [1, 1]} : vector<8x384xf32> to vector<8x128xf32>
    %59 = vector.extract_strided_slice %57 {offsets = [0, 128], sizes = [8, 128], strides = [1, 1]} : vector<8x384xf32> to vector<8x128xf32>
    %60 = vector.extract_strided_slice %57 {offsets = [0, 256], sizes = [8, 128], strides = [1, 1]} : vector<8x384xf32> to vector<8x128xf32>
    %61 = vector.extract_strided_slice %54 {offsets = [0, 0], sizes = [8, 128], strides = [1, 1]} : vector<8x384xf32> to vector<8x128xf32>
    %62 = vector.extract_strided_slice %54 {offsets = [0, 128], sizes = [8, 128], strides = [1, 1]} : vector<8x384xf32> to vector<8x128xf32>
    %63 = vector.extract_strided_slice %54 {offsets = [0, 256], sizes = [8, 128], strides = [1, 1]} : vector<8x384xf32> to vector<8x128xf32>
    %64 = arith.addf %58, %61 : vector<8x128xf32>
    %65 = arith.negf %64 : vector<8x128xf32>
    %66 = math.exp %65 : vector<8x128xf32>
    %cst_29 = arith.constant 1.000000e+00 : f32
    %67 = vector.broadcast %cst_29 : f32 to vector<8x128xf32>
    %68 = arith.addf %67, %66 : vector<8x128xf32>
    %69 = arith.divf %67, %68 : vector<8x128xf32>
    %70 = arith.addf %59, %62 : vector<8x128xf32>
    %71 = arith.negf %70 : vector<8x128xf32>
    %72 = math.exp %71 : vector<8x128xf32>
    %cst_30 = arith.constant 1.000000e+00 : f32
    %73 = vector.broadcast %cst_30 : f32 to vector<8x128xf32>
    %74 = arith.addf %73, %72 : vector<8x128xf32>
    %75 = arith.divf %73, %74 : vector<8x128xf32>
    %76 = arith.mulf %69, %63 : vector<8x128xf32>
    %77 = arith.addf %60, %76 : vector<8x128xf32>
    %78 = math.tanh %77 : vector<8x128xf32>
    %cst_31 = arith.constant 1.000000e+00 : f32
    %79 = vector.broadcast %cst_31 : f32 to vector<8x128xf32>
    %80 = arith.subf %79, %75 : vector<8x128xf32>
    %81 = arith.mulf %80, %78 : vector<8x128xf32>
    %82 = arith.mulf %75, %44 : vector<8x128xf32>
    %83 = arith.addf %81, %82 : vector<8x128xf32>
    %84 = arith.index_cast %c1_i32 : i32 to index
    %c0_32 = arith.constant 0 : index
    %c0_33 = arith.constant 0 : index
    %85 = vector.load %arg23[%84, %c0_32, %c0_33] : memref<8x8x128xf32, #tpu.memory_space<vmem>>, vector<1x8x128xf32>
    %86 = vector.shape_cast %85 : vector<1x8x128xf32> to vector<8x128xf32>
    %87 = vector.shape_cast %83 : vector<8x128xf32> to vector<1x8x128xf32>
    tpu.vector_store %arg23[%84, %c0_32, %c0_33], %87 {strides = array<i32>} : memref<8x8x128xf32, #tpu.memory_space<vmem>>, vector<1x8x128xf32>,
    %c2_i32 = arith.constant 2 : i32
    %88 = arith.truncf %83 : vector<8x128xf32> to vector<8x128xbf16>
    %c0_34 = arith.constant 0 : index
    %c0_35 = arith.constant 0 : index
    %89 = vector.load %arg6[%c0_34, %c0_35] : memref<128x384xbf16, #tpu.memory_space<vmem>>, vector<128x384xbf16>
    %cst_36 = arith.constant dense<0.000000e+00> : vector<8x384xf32>
    %90 = tpu.matmul %88, %89, %cst_36 {dimension_numbers = #tpu.dot_dimension_numbers<[1], [0], [0], [1], [0, 0, 1, 1], [], []>} : vector<8x128xbf16>, vector<128x384xbf16>, vector<8x384xf32> -> vector<8x384xf32>
    %c0_37 = arith.constant 0 : index
    %c0_38 = arith.constant 0 : index
    %91 = vector.load %arg8[%c0_37, %c0_38] : memref<1x384xf32, #tpu.memory_space<vmem>>, vector<1x384xf32>
    %92 = vector.broadcast %91 : vector<1x384xf32> to vector<8x384xf32>
    %93 = arith.addf %90, %92 : vector<8x384xf32>
    %94 = arith.index_cast %c2_i32 : i32 to index
    %c0_39 = arith.constant 0 : index
    %c0_40 = arith.constant 0 : index
    %95 = vector.load %arg25[%94, %c0_39, %c0_40] : memref<8x8x384xf32, #tpu.memory_space<vmem>>, vector<1x8x384xf32>
    %96 = vector.shape_cast %95 : vector<1x8x384xf32> to vector<8x384xf32>
    %97 = vector.extract_strided_slice %96 {offsets = [0, 0], sizes = [8, 128], strides = [1, 1]} : vector<8x384xf32> to vector<8x128xf32>
    %98 = vector.extract_strided_slice %96 {offsets = [0, 128], sizes = [8, 128], strides = [1, 1]} : vector<8x384xf32> to vector<8x128xf32>
    %99 = vector.extract_strided_slice %96 {offsets = [0, 256], sizes = [8, 128], strides = [1, 1]} : vector<8x384xf32> to vector<8x128xf32>
    %100 = vector.extract_strided_slice %93 {offsets = [0, 0], sizes = [8, 128], strides = [1, 1]} : vector<8x384xf32> to vector<8x128xf32>
    %101 = vector.extract_strided_slice %93 {offsets = [0, 128], sizes = [8, 128], strides = [1, 1]} : vector<8x384xf32> to vector<8x128xf32>
    %102 = vector.extract_strided_slice %93 {offsets = [0, 256], sizes = [8, 128], strides = [1, 1]} : vector<8x384xf32> to vector<8x128xf32>
    %103 = arith.addf %97, %100 : vector<8x128xf32>
    %104 = arith.negf %103 : vector<8x128xf32>
    %105 = math.exp %104 : vector<8x128xf32>
    %cst_41 = arith.constant 1.000000e+00 : f32
    %106 = vector.broadcast %cst_41 : f32 to vector<8x128xf32>
    %107 = arith.addf %106, %105 : vector<8x128xf32>
    %108 = arith.divf %106, %107 : vector<8x128xf32>
    %109 = arith.addf %98, %101 : vector<8x128xf32>
    %110 = arith.negf %109 : vector<8x128xf32>
    %111 = math.exp %110 : vector<8x128xf32>
    %cst_42 = arith.constant 1.000000e+00 : f32
    %112 = vector.broadcast %cst_42 : f32 to vector<8x128xf32>
    %113 = arith.addf %112, %111 : vector<8x128xf32>
    %114 = arith.divf %112, %113 : vector<8x128xf32>
    %115 = arith.mulf %108, %102 : vector<8x128xf32>
    %116 = arith.addf %99, %115 : vector<8x128xf32>
    %117 = math.tanh %116 : vector<8x128xf32>
    %cst_43 = arith.constant 1.000000e+00 : f32
    %118 = vector.broadcast %cst_43 : f32 to vector<8x128xf32>
    %119 = arith.subf %118, %114 : vector<8x128xf32>
    %120 = arith.mulf %119, %117 : vector<8x128xf32>
    %121 = arith.mulf %114, %83 : vector<8x128xf32>
    %122 = arith.addf %120, %121 : vector<8x128xf32>
    %123 = arith.index_cast %c2_i32 : i32 to index
    %c0_44 = arith.constant 0 : index
    %c0_45 = arith.constant 0 : index
    %124 = vector.load %arg23[%123, %c0_44, %c0_45] : memref<8x8x128xf32, #tpu.memory_space<vmem>>, vector<1x8x128xf32>
    %125 = vector.shape_cast %124 : vector<1x8x128xf32> to vector<8x128xf32>
    %126 = vector.shape_cast %122 : vector<8x128xf32> to vector<1x8x128xf32>
    tpu.vector_store %arg23[%123, %c0_44, %c0_45], %126 {strides = array<i32>} : memref<8x8x128xf32, #tpu.memory_space<vmem>>, vector<1x8x128xf32>,
    %c3_i32 = arith.constant 3 : i32
    %127 = arith.truncf %122 : vector<8x128xf32> to vector<8x128xbf16>
    %c0_46 = arith.constant 0 : index
    %c0_47 = arith.constant 0 : index
    %128 = vector.load %arg6[%c0_46, %c0_47] : memref<128x384xbf16, #tpu.memory_space<vmem>>, vector<128x384xbf16>
    %cst_48 = arith.constant dense<0.000000e+00> : vector<8x384xf32>
    %129 = tpu.matmul %127, %128, %cst_48 {dimension_numbers = #tpu.dot_dimension_numbers<[1], [0], [0], [1], [0, 0, 1, 1], [], []>} : vector<8x128xbf16>, vector<128x384xbf16>, vector<8x384xf32> -> vector<8x384xf32>
    %c0_49 = arith.constant 0 : index
    %c0_50 = arith.constant 0 : index
    %130 = vector.load %arg8[%c0_49, %c0_50] : memref<1x384xf32, #tpu.memory_space<vmem>>, vector<1x384xf32>
    %131 = vector.broadcast %130 : vector<1x384xf32> to vector<8x384xf32>
    %132 = arith.addf %129, %131 : vector<8x384xf32>
    %133 = arith.index_cast %c3_i32 : i32 to index
    %c0_51 = arith.constant 0 : index
    %c0_52 = arith.constant 0 : index
    %134 = vector.load %arg25[%133, %c0_51, %c0_52] : memref<8x8x384xf32, #tpu.memory_space<vmem>>, vector<1x8x384xf32>
    %135 = vector.shape_cast %134 : vector<1x8x384xf32> to vector<8x384xf32>
    %136 = vector.extract_strided_slice %135 {offsets = [0, 0], sizes = [8, 128], strides = [1, 1]} : vector<8x384xf32> to vector<8x128xf32>
    %137 = vector.extract_strided_slice %135 {offsets = [0, 128], sizes = [8, 128], strides = [1, 1]} : vector<8x384xf32> to vector<8x128xf32>
    %138 = vector.extract_strided_slice %135 {offsets = [0, 256], sizes = [8, 128], strides = [1, 1]} : vector<8x384xf32> to vector<8x128xf32>
    %139 = vector.extract_strided_slice %132 {offsets = [0, 0], sizes = [8, 128], strides = [1, 1]} : vector<8x384xf32> to vector<8x128xf32>
    %140 = vector.extract_strided_slice %132 {offsets = [0, 128], sizes = [8, 128], strides = [1, 1]} : vector<8x384xf32> to vector<8x128xf32>
    %141 = vector.extract_strided_slice %132 {offsets = [0, 256], sizes = [8, 128], strides = [1, 1]} : vector<8x384xf32> to vector<8x128xf32>
    %142 = arith.addf %136, %139 : vector<8x128xf32>
    %143 = arith.negf %142 : vector<8x128xf32>
    %144 = math.exp %143 : vector<8x128xf32>
    %cst_53 = arith.constant 1.000000e+00 : f32
    %145 = vector.broadcast %cst_53 : f32 to vector<8x128xf32>
    %146 = arith.addf %145, %144 : vector<8x128xf32>
    %147 = arith.divf %145, %146 : vector<8x128xf32>
    %148 = arith.addf %137, %140 : vector<8x128xf32>
    %149 = arith.negf %148 : vector<8x128xf32>
    %150 = math.exp %149 : vector<8x128xf32>
    %cst_54 = arith.constant 1.000000e+00 : f32
    %151 = vector.broadcast %cst_54 : f32 to vector<8x128xf32>
    %152 = arith.addf %151, %150 : vector<8x128xf32>
    %153 = arith.divf %151, %152 : vector<8x128xf32>
    %154 = arith.mulf %147, %141 : vector<8x128xf32>
    %155 = arith.addf %138, %154 : vector<8x128xf32>
    %156 = math.tanh %155 : vector<8x128xf32>
    %cst_55 = arith.constant 1.000000e+00 : f32
    %157 = vector.broadcast %cst_55 : f32 to vector<8x128xf32>
    %158 = arith.subf %157, %153 : vector<8x128xf32>
    %159 = arith.mulf %158, %156 : vector<8x128xf32>
    %160 = arith.mulf %153, %122 : vector<8x128xf32>
    %161 = arith.addf %159, %160 : vector<8x128xf32>
    %162 = arith.index_cast %c3_i32 : i32 to index
    %c0_56 = arith.constant 0 : index
    %c0_57 = arith.constant 0 : index
    %163 = vector.load %arg23[%162, %c0_56, %c0_57] : memref<8x8x128xf32, #tpu.memory_space<vmem>>, vector<1x8x128xf32>
    %164 = vector.shape_cast %163 : vector<1x8x128xf32> to vector<8x128xf32>
    %165 = vector.shape_cast %161 : vector<8x128xf32> to vector<1x8x128xf32>
    tpu.vector_store %arg23[%162, %c0_56, %c0_57], %165 {strides = array<i32>} : memref<8x8x128xf32, #tpu.memory_space<vmem>>, vector<1x8x128xf32>,
    %c4_i32 = arith.constant 4 : i32
    %166 = arith.truncf %161 : vector<8x128xf32> to vector<8x128xbf16>
    %c0_58 = arith.constant 0 : index
    %c0_59 = arith.constant 0 : index
    %167 = vector.load %arg6[%c0_58, %c0_59] : memref<128x384xbf16, #tpu.memory_space<vmem>>, vector<128x384xbf16>
    %cst_60 = arith.constant dense<0.000000e+00> : vector<8x384xf32>
    %168 = tpu.matmul %166, %167, %cst_60 {dimension_numbers = #tpu.dot_dimension_numbers<[1], [0], [0], [1], [0, 0, 1, 1], [], []>} : vector<8x128xbf16>, vector<128x384xbf16>, vector<8x384xf32> -> vector<8x384xf32>
    %c0_61 = arith.constant 0 : index
    %c0_62 = arith.constant 0 : index
    %169 = vector.load %arg8[%c0_61, %c0_62] : memref<1x384xf32, #tpu.memory_space<vmem>>, vector<1x384xf32>
    %170 = vector.broadcast %169 : vector<1x384xf32> to vector<8x384xf32>
    %171 = arith.addf %168, %170 : vector<8x384xf32>
    %172 = arith.index_cast %c4_i32 : i32 to index
    %c0_63 = arith.constant 0 : index
    %c0_64 = arith.constant 0 : index
    %173 = vector.load %arg25[%172, %c0_63, %c0_64] : memref<8x8x384xf32, #tpu.memory_space<vmem>>, vector<1x8x384xf32>
    %174 = vector.shape_cast %173 : vector<1x8x384xf32> to vector<8x384xf32>
    %175 = vector.extract_strided_slice %174 {offsets = [0, 0], sizes = [8, 128], strides = [1, 1]} : vector<8x384xf32> to vector<8x128xf32>
    %176 = vector.extract_strided_slice %174 {offsets = [0, 128], sizes = [8, 128], strides = [1, 1]} : vector<8x384xf32> to vector<8x128xf32>
    %177 = vector.extract_strided_slice %174 {offsets = [0, 256], sizes = [8, 128], strides = [1, 1]} : vector<8x384xf32> to vector<8x128xf32>
    %178 = vector.extract_strided_slice %171 {offsets = [0, 0], sizes = [8, 128], strides = [1, 1]} : vector<8x384xf32> to vector<8x128xf32>
    %179 = vector.extract_strided_slice %171 {offsets = [0, 128], sizes = [8, 128], strides = [1, 1]} : vector<8x384xf32> to vector<8x128xf32>
    %180 = vector.extract_strided_slice %171 {offsets = [0, 256], sizes = [8, 128], strides = [1, 1]} : vector<8x384xf32> to vector<8x128xf32>
    %181 = arith.addf %175, %178 : vector<8x128xf32>
    %182 = arith.negf %181 : vector<8x128xf32>
    %183 = math.exp %182 : vector<8x128xf32>
    %cst_65 = arith.constant 1.000000e+00 : f32
    %184 = vector.broadcast %cst_65 : f32 to vector<8x128xf32>
    %185 = arith.addf %184, %183 : vector<8x128xf32>
    %186 = arith.divf %184, %185 : vector<8x128xf32>
    %187 = arith.addf %176, %179 : vector<8x128xf32>
    %188 = arith.negf %187 : vector<8x128xf32>
    %189 = math.exp %188 : vector<8x128xf32>
    %cst_66 = arith.constant 1.000000e+00 : f32
    %190 = vector.broadcast %cst_66 : f32 to vector<8x128xf32>
    %191 = arith.addf %190, %189 : vector<8x128xf32>
    %192 = arith.divf %190, %191 : vector<8x128xf32>
    %193 = arith.mulf %186, %180 : vector<8x128xf32>
    %194 = arith.addf %177, %193 : vector<8x128xf32>
    %195 = math.tanh %194 : vector<8x128xf32>
    %cst_67 = arith.constant 1.000000e+00 : f32
    %196 = vector.broadcast %cst_67 : f32 to vector<8x128xf32>
    %197 = arith.subf %196, %192 : vector<8x128xf32>
    %198 = arith.mulf %197, %195 : vector<8x128xf32>
    %199 = arith.mulf %192, %161 : vector<8x128xf32>
    %200 = arith.addf %198, %199 : vector<8x128xf32>
    %201 = arith.index_cast %c4_i32 : i32 to index
    %c0_68 = arith.constant 0 : index
    %c0_69 = arith.constant 0 : index
    %202 = vector.load %arg23[%201, %c0_68, %c0_69] : memref<8x8x128xf32, #tpu.memory_space<vmem>>, vector<1x8x128xf32>
    %203 = vector.shape_cast %202 : vector<1x8x128xf32> to vector<8x128xf32>
    %204 = vector.shape_cast %200 : vector<8x128xf32> to vector<1x8x128xf32>
    tpu.vector_store %arg23[%201, %c0_68, %c0_69], %204 {strides = array<i32>} : memref<8x8x128xf32, #tpu.memory_space<vmem>>, vector<1x8x128xf32>,
    %c5_i32 = arith.constant 5 : i32
    %205 = arith.truncf %200 : vector<8x128xf32> to vector<8x128xbf16>
    %c0_70 = arith.constant 0 : index
    %c0_71 = arith.constant 0 : index
    %206 = vector.load %arg6[%c0_70, %c0_71] : memref<128x384xbf16, #tpu.memory_space<vmem>>, vector<128x384xbf16>
    %cst_72 = arith.constant dense<0.000000e+00> : vector<8x384xf32>
    %207 = tpu.matmul %205, %206, %cst_72 {dimension_numbers = #tpu.dot_dimension_numbers<[1], [0], [0], [1], [0, 0, 1, 1], [], []>} : vector<8x128xbf16>, vector<128x384xbf16>, vector<8x384xf32> -> vector<8x384xf32>
    %c0_73 = arith.constant 0 : index
    %c0_74 = arith.constant 0 : index
    %208 = vector.load %arg8[%c0_73, %c0_74] : memref<1x384xf32, #tpu.memory_space<vmem>>, vector<1x384xf32>
    %209 = vector.broadcast %208 : vector<1x384xf32> to vector<8x384xf32>
    %210 = arith.addf %207, %209 : vector<8x384xf32>
    %211 = arith.index_cast %c5_i32 : i32 to index
    %c0_75 = arith.constant 0 : index
    %c0_76 = arith.constant 0 : index
    %212 = vector.load %arg25[%211, %c0_75, %c0_76] : memref<8x8x384xf32, #tpu.memory_space<vmem>>, vector<1x8x384xf32>
    %213 = vector.shape_cast %212 : vector<1x8x384xf32> to vector<8x384xf32>
    %214 = vector.extract_strided_slice %213 {offsets = [0, 0], sizes = [8, 128], strides = [1, 1]} : vector<8x384xf32> to vector<8x128xf32>
    %215 = vector.extract_strided_slice %213 {offsets = [0, 128], sizes = [8, 128], strides = [1, 1]} : vector<8x384xf32> to vector<8x128xf32>
    %216 = vector.extract_strided_slice %213 {offsets = [0, 256], sizes = [8, 128], strides = [1, 1]} : vector<8x384xf32> to vector<8x128xf32>
    %217 = vector.extract_strided_slice %210 {offsets = [0, 0], sizes = [8, 128], strides = [1, 1]} : vector<8x384xf32> to vector<8x128xf32>
    %218 = vector.extract_strided_slice %210 {offsets = [0, 128], sizes = [8, 128], strides = [1, 1]} : vector<8x384xf32> to vector<8x128xf32>
    %219 = vector.extract_strided_slice %210 {offsets = [0, 256], sizes = [8, 128], strides = [1, 1]} : vector<8x384xf32> to vector<8x128xf32>
    %220 = arith.addf %214, %217 : vector<8x128xf32>
    %221 = arith.negf %220 : vector<8x128xf32>
    %222 = math.exp %221 : vector<8x128xf32>
    %cst_77 = arith.constant 1.000000e+00 : f32
    %223 = vector.broadcast %cst_77 : f32 to vector<8x128xf32>
    %224 = arith.addf %223, %222 : vector<8x128xf32>
    %225 = arith.divf %223, %224 : vector<8x128xf32>
    %226 = arith.addf %215, %218 : vector<8x128xf32>
    %227 = arith.negf %226 : vector<8x128xf32>
    %228 = math.exp %227 : vector<8x128xf32>
    %cst_78 = arith.constant 1.000000e+00 : f32
    %229 = vector.broadcast %cst_78 : f32 to vector<8x128xf32>
    %230 = arith.addf %229, %228 : vector<8x128xf32>
    %231 = arith.divf %229, %230 : vector<8x128xf32>
    %232 = arith.mulf %225, %219 : vector<8x128xf32>
    %233 = arith.addf %216, %232 : vector<8x128xf32>
    %234 = math.tanh %233 : vector<8x128xf32>
    %cst_79 = arith.constant 1.000000e+00 : f32
    %235 = vector.broadcast %cst_79 : f32 to vector<8x128xf32>
    %236 = arith.subf %235, %231 : vector<8x128xf32>
    %237 = arith.mulf %236, %234 : vector<8x128xf32>
    %238 = arith.mulf %231, %200 : vector<8x128xf32>
    %239 = arith.addf %237, %238 : vector<8x128xf32>
    %240 = arith.index_cast %c5_i32 : i32 to index
    %c0_80 = arith.constant 0 : index
    %c0_81 = arith.constant 0 : index
    %241 = vector.load %arg23[%240, %c0_80, %c0_81] : memref<8x8x128xf32, #tpu.memory_space<vmem>>, vector<1x8x128xf32>
    %242 = vector.shape_cast %241 : vector<1x8x128xf32> to vector<8x128xf32>
    %243 = vector.shape_cast %239 : vector<8x128xf32> to vector<1x8x128xf32>
    tpu.vector_store %arg23[%240, %c0_80, %c0_81], %243 {strides = array<i32>} : memref<8x8x128xf32, #tpu.memory_space<vmem>>, vector<1x8x128xf32>,
    %c6_i32 = arith.constant 6 : i32
    %244 = arith.truncf %239 : vector<8x128xf32> to vector<8x128xbf16>
    %c0_82 = arith.constant 0 : index
    %c0_83 = arith.constant 0 : index
    %245 = vector.load %arg6[%c0_82, %c0_83] : memref<128x384xbf16, #tpu.memory_space<vmem>>, vector<128x384xbf16>
    %cst_84 = arith.constant dense<0.000000e+00> : vector<8x384xf32>
    %246 = tpu.matmul %244, %245, %cst_84 {dimension_numbers = #tpu.dot_dimension_numbers<[1], [0], [0], [1], [0, 0, 1, 1], [], []>} : vector<8x128xbf16>, vector<128x384xbf16>, vector<8x384xf32> -> vector<8x384xf32>
    %c0_85 = arith.constant 0 : index
    %c0_86 = arith.constant 0 : index
    %247 = vector.load %arg8[%c0_85, %c0_86] : memref<1x384xf32, #tpu.memory_space<vmem>>, vector<1x384xf32>
    %248 = vector.broadcast %247 : vector<1x384xf32> to vector<8x384xf32>
    %249 = arith.addf %246, %248 : vector<8x384xf32>
    %250 = arith.index_cast %c6_i32 : i32 to index
    %c0_87 = arith.constant 0 : index
    %c0_88 = arith.constant 0 : index
    %251 = vector.load %arg25[%250, %c0_87, %c0_88] : memref<8x8x384xf32, #tpu.memory_space<vmem>>, vector<1x8x384xf32>
    %252 = vector.shape_cast %251 : vector<1x8x384xf32> to vector<8x384xf32>
    %253 = vector.extract_strided_slice %252 {offsets = [0, 0], sizes = [8, 128], strides = [1, 1]} : vector<8x384xf32> to vector<8x128xf32>
    %254 = vector.extract_strided_slice %252 {offsets = [0, 128], sizes = [8, 128], strides = [1, 1]} : vector<8x384xf32> to vector<8x128xf32>
    %255 = vector.extract_strided_slice %252 {offsets = [0, 256], sizes = [8, 128], strides = [1, 1]} : vector<8x384xf32> to vector<8x128xf32>
    %256 = vector.extract_strided_slice %249 {offsets = [0, 0], sizes = [8, 128], strides = [1, 1]} : vector<8x384xf32> to vector<8x128xf32>
    %257 = vector.extract_strided_slice %249 {offsets = [0, 128], sizes = [8, 128], strides = [1, 1]} : vector<8x384xf32> to vector<8x128xf32>
    %258 = vector.extract_strided_slice %249 {offsets = [0, 256], sizes = [8, 128], strides = [1, 1]} : vector<8x384xf32> to vector<8x128xf32>
    %259 = arith.addf %253, %256 : vector<8x128xf32>
    %260 = arith.negf %259 : vector<8x128xf32>
    %261 = math.exp %260 : vector<8x128xf32>
    %cst_89 = arith.constant 1.000000e+00 : f32
    %262 = vector.broadcast %cst_89 : f32 to vector<8x128xf32>
    %263 = arith.addf %262, %261 : vector<8x128xf32>
    %264 = arith.divf %262, %263 : vector<8x128xf32>
    %265 = arith.addf %254, %257 : vector<8x128xf32>
    %266 = arith.negf %265 : vector<8x128xf32>
    %267 = math.exp %266 : vector<8x128xf32>
    %cst_90 = arith.constant 1.000000e+00 : f32
    %268 = vector.broadcast %cst_90 : f32 to vector<8x128xf32>
    %269 = arith.addf %268, %267 : vector<8x128xf32>
    %270 = arith.divf %268, %269 : vector<8x128xf32>
    %271 = arith.mulf %264, %258 : vector<8x128xf32>
    %272 = arith.addf %255, %271 : vector<8x128xf32>
    %273 = math.tanh %272 : vector<8x128xf32>
    %cst_91 = arith.constant 1.000000e+00 : f32
    %274 = vector.broadcast %cst_91 : f32 to vector<8x128xf32>
    %275 = arith.subf %274, %270 : vector<8x128xf32>
    %276 = arith.mulf %275, %273 : vector<8x128xf32>
    %277 = arith.mulf %270, %239 : vector<8x128xf32>
    %278 = arith.addf %276, %277 : vector<8x128xf32>
    %279 = arith.index_cast %c6_i32 : i32 to index
    %c0_92 = arith.constant 0 : index
    %c0_93 = arith.constant 0 : index
    %280 = vector.load %arg23[%279, %c0_92, %c0_93] : memref<8x8x128xf32, #tpu.memory_space<vmem>>, vector<1x8x128xf32>
    %281 = vector.shape_cast %280 : vector<1x8x128xf32> to vector<8x128xf32>
    %282 = vector.shape_cast %278 : vector<8x128xf32> to vector<1x8x128xf32>
    tpu.vector_store %arg23[%279, %c0_92, %c0_93], %282 {strides = array<i32>} : memref<8x8x128xf32, #tpu.memory_space<vmem>>, vector<1x8x128xf32>,
    %c7_i32 = arith.constant 7 : i32
    %283 = arith.truncf %278 : vector<8x128xf32> to vector<8x128xbf16>
    %c0_94 = arith.constant 0 : index
    %c0_95 = arith.constant 0 : index
    %284 = vector.load %arg6[%c0_94, %c0_95] : memref<128x384xbf16, #tpu.memory_space<vmem>>, vector<128x384xbf16>
    %cst_96 = arith.constant dense<0.000000e+00> : vector<8x384xf32>
    %285 = tpu.matmul %283, %284, %cst_96 {dimension_numbers = #tpu.dot_dimension_numbers<[1], [0], [0], [1], [0, 0, 1, 1], [], []>} : vector<8x128xbf16>, vector<128x384xbf16>, vector<8x384xf32> -> vector<8x384xf32>
    %c0_97 = arith.constant 0 : index
    %c0_98 = arith.constant 0 : index
    %286 = vector.load %arg8[%c0_97, %c0_98] : memref<1x384xf32, #tpu.memory_space<vmem>>, vector<1x384xf32>
    %287 = vector.broadcast %286 : vector<1x384xf32> to vector<8x384xf32>
    %288 = arith.addf %285, %287 : vector<8x384xf32>
    %289 = arith.index_cast %c7_i32 : i32 to index
    %c0_99 = arith.constant 0 : index
    %c0_100 = arith.constant 0 : index
    %290 = vector.load %arg25[%289, %c0_99, %c0_100] : memref<8x8x384xf32, #tpu.memory_space<vmem>>, vector<1x8x384xf32>
    %291 = vector.shape_cast %290 : vector<1x8x384xf32> to vector<8x384xf32>
    %292 = vector.extract_strided_slice %291 {offsets = [0, 0], sizes = [8, 128], strides = [1, 1]} : vector<8x384xf32> to vector<8x128xf32>
    %293 = vector.extract_strided_slice %291 {offsets = [0, 128], sizes = [8, 128], strides = [1, 1]} : vector<8x384xf32> to vector<8x128xf32>
    %294 = vector.extract_strided_slice %291 {offsets = [0, 256], sizes = [8, 128], strides = [1, 1]} : vector<8x384xf32> to vector<8x128xf32>
    %295 = vector.extract_strided_slice %288 {offsets = [0, 0], sizes = [8, 128], strides = [1, 1]} : vector<8x384xf32> to vector<8x128xf32>
    %296 = vector.extract_strided_slice %288 {offsets = [0, 128], sizes = [8, 128], strides = [1, 1]} : vector<8x384xf32> to vector<8x128xf32>
    %297 = vector.extract_strided_slice %288 {offsets = [0, 256], sizes = [8, 128], strides = [1, 1]} : vector<8x384xf32> to vector<8x128xf32>
    %298 = arith.addf %292, %295 : vector<8x128xf32>
    %299 = arith.negf %298 : vector<8x128xf32>
    %300 = math.exp %299 : vector<8x128xf32>
    %cst_101 = arith.constant 1.000000e+00 : f32
    %301 = vector.broadcast %cst_101 : f32 to vector<8x128xf32>
    %302 = arith.addf %301, %300 : vector<8x128xf32>
    %303 = arith.divf %301, %302 : vector<8x128xf32>
    %304 = arith.addf %293, %296 : vector<8x128xf32>
    %305 = arith.negf %304 : vector<8x128xf32>
    %306 = math.exp %305 : vector<8x128xf32>
    %cst_102 = arith.constant 1.000000e+00 : f32
    %307 = vector.broadcast %cst_102 : f32 to vector<8x128xf32>
    %308 = arith.addf %307, %306 : vector<8x128xf32>
    %309 = arith.divf %307, %308 : vector<8x128xf32>
    %310 = arith.mulf %303, %297 : vector<8x128xf32>
    %311 = arith.addf %294, %310 : vector<8x128xf32>
    %312 = math.tanh %311 : vector<8x128xf32>
    %cst_103 = arith.constant 1.000000e+00 : f32
    %313 = vector.broadcast %cst_103 : f32 to vector<8x128xf32>
    %314 = arith.subf %313, %309 : vector<8x128xf32>
    %315 = arith.mulf %314, %312 : vector<8x128xf32>
    %316 = arith.mulf %309, %278 : vector<8x128xf32>
    %317 = arith.addf %315, %316 : vector<8x128xf32>
    %318 = arith.index_cast %c7_i32 : i32 to index
    %c0_104 = arith.constant 0 : index
    %c0_105 = arith.constant 0 : index
    %319 = vector.load %arg23[%318, %c0_104, %c0_105] : memref<8x8x128xf32, #tpu.memory_space<vmem>>, vector<1x8x128xf32>
    %320 = vector.shape_cast %319 : vector<1x8x128xf32> to vector<8x128xf32>
    %321 = vector.shape_cast %317 : vector<8x128xf32> to vector<1x8x128xf32>
    tpu.vector_store %arg23[%318, %c0_104, %c0_105], %321 {strides = array<i32>} : memref<8x8x128xf32, #tpu.memory_space<vmem>>, vector<1x8x128xf32>,
    %c8_i32 = arith.constant 8 : i32
    %c0_106 = arith.constant 0 : index
    %c0_107 = arith.constant 0 : index
    %322 = vector.load %arg4[%c0_106, %c0_107] : memref<8x8xf32, #tpu.memory_space<vmem>>, vector<8x8xf32>
    %c0_108 = arith.constant 0 : index
    %c0_109 = arith.constant 0 : index
    %323 = vector.load %arg9[%c0_108, %c0_109] : memref<8x32xf32, #tpu.memory_space<vmem>>, vector<8x32xf32>
    %cst_110 = arith.constant dense<0.000000e+00> : vector<8x32xf32>
    %324 = tpu.matmul %322, %323, %cst_110 {dimension_numbers = #tpu.dot_dimension_numbers<[1], [0], [0], [1], [0, 0, 1, 1], [], []>} : vector<8x8xf32>, vector<8x32xf32>, vector<8x32xf32> -> vector<8x32xf32>
    %c0_111 = arith.constant 0 : index
    %c0_112 = arith.constant 0 : index
    %325 = vector.load %arg10[%c0_111, %c0_112] : memref<1x32xf32, #tpu.memory_space<vmem>>, vector<1x32xf32>
    %326 = vector.broadcast %325 : vector<1x32xf32> to vector<8x32xf32>
    %327 = arith.addf %324, %326 : vector<8x32xf32>
    %328 = math.tanh %327 : vector<8x32xf32>
    %c0_113 = arith.constant 0 : index
    %c0_114 = arith.constant 0 : index
    %329 = vector.load %arg11[%c0_113, %c0_114] : memref<32x128xf32, #tpu.memory_space<vmem>>, vector<32x128xf32>
    %cst_115 = arith.constant dense<0.000000e+00> : vector<8x128xf32>
    %330 = tpu.matmul %328, %329, %cst_115 {dimension_numbers = #tpu.dot_dimension_numbers<[1], [0], [0], [1], [0, 0, 1, 1], [], []>} : vector<8x32xf32>, vector<32x128xf32>, vector<8x128xf32> -> vector<8x128xf32>
    %c0_116 = arith.constant 0 : index
    %c0_117 = arith.constant 0 : index
    %331 = vector.load %arg12[%c0_116, %c0_117] : memref<1x128xf32, #tpu.memory_space<vmem>>, vector<1x128xf32>
    %332 = vector.broadcast %331 : vector<1x128xf32> to vector<8x128xf32>
    %333 = arith.addf %330, %332 : vector<8x128xf32>
    %c0_118 = arith.constant 0 : index
    %c0_119 = arith.constant 0 : index
    %c0_120 = arith.constant 0 : index
    %334 = vector.load %arg23[%c0_118, %c0_119, %c0_120] : memref<8x8x128xf32, #tpu.memory_space<vmem>>, vector<8x8x128xf32>
    %335 = vector.shape_cast %334 : vector<8x8x128xf32> to vector<64x128xf32>
    %336 = arith.truncf %335 : vector<64x128xf32> to vector<64x128xbf16>
    %c0_121 = arith.constant 0 : index
    %c0_122 = arith.constant 0 : index
    %337 = vector.load %arg13[%c0_121, %c0_122] : memref<128x128xbf16, #tpu.memory_space<vmem>>, vector<128x128xbf16>
    %cst_123 = arith.constant dense<0.000000e+00> : vector<64x128xf32>
    %338 = tpu.matmul %336, %337, %cst_123 {dimension_numbers = #tpu.dot_dimension_numbers<[1], [0], [0], [1], [0, 0, 1, 1], [], []>} : vector<64x128xbf16>, vector<128x128xbf16>, vector<64x128xf32> -> vector<64x128xf32>
    %339 = vector.shape_cast %338 : vector<64x128xf32> to vector<8x8x128xf32>
    %c0_124 = arith.constant 0 : index
    %c0_125 = arith.constant 0 : index
    %c0_126 = arith.constant 0 : index
    %340 = vector.load %arg24[%c0_124, %c0_125, %c0_126] : memref<8x8x128xf32, #tpu.memory_space<vmem>>, vector<8x8x128xf32>
    tpu.vector_store %arg24[%c0_124, %c0_125, %c0_126], %339 {strides = array<i32>} : memref<8x8x128xf32, #tpu.memory_space<vmem>>, vector<8x8x128xf32>,
    %cst_127 = arith.constant 0.000000e+00 : f32
    %341 = vector.broadcast %cst_127 : f32 to vector<8x128xf32>
    %c0_128 = arith.constant 0 : index
    %c0_129 = arith.constant 0 : index
    %c0_130 = arith.constant 0 : index
    %342 = vector.load %arg22[%c0_128, %c0_129, %c0_130] : memref<6x8x128xf32, #tpu.memory_space<vmem>>, vector<1x8x128xf32>
    %343 = vector.shape_cast %342 : vector<1x8x128xf32> to vector<8x128xf32>
    %344 = vector.shape_cast %341 : vector<8x128xf32> to vector<1x8x128xf32>
    tpu.vector_store %arg22[%c0_128, %c0_129, %c0_130], %344 {strides = array<i32>} : memref<6x8x128xf32, #tpu.memory_space<vmem>>, vector<1x8x128xf32>,
    %345 = tpu.iota {dimensions = array<i32: 1>} : vector<8x128xi32>
    %c0_131 = arith.constant 0 : index
    %c0_132 = arith.constant 0 : index
    %c0_133 = arith.constant 0 : index
    %346 = vector.load %arg3[%c0_131, %c0_132, %c0_133] : memref<6x8x128xf32, #tpu.memory_space<vmem>>, vector<1x8x128xf32>
    %347 = vector.shape_cast %346 : vector<1x8x128xf32> to vector<8x128xf32>
    %c1_i32_134 = arith.constant 1 : i32
    %c0_135 = arith.constant 0 : index
    %c0_136 = arith.constant 0 : index
    %c0_137 = arith.constant 0 : index
    %348 = vector.load %arg23[%c0_135, %c0_136, %c0_137] : memref<8x8x128xf32, #tpu.memory_space<vmem>>, vector<8x8x128xf32>
    %c0_138 = arith.constant 0 : index
    %c0_139 = arith.constant 0 : index
    %c0_140 = arith.constant 0 : index
    %349 = vector.load %arg24[%c0_138, %c0_139, %c0_140] : memref<8x8x128xf32, #tpu.memory_space<vmem>>, vector<8x8x128xf32>
    %350 = arith.truncf %317 : vector<8x128xf32> to vector<8x128xbf16>
    %c0_141 = arith.constant 0 : index
    %c0_142 = arith.constant 0 : index
    %351 = vector.load %arg15[%c0_141, %c0_142] : memref<128x640xbf16, #tpu.memory_space<vmem>>, vector<128x640xbf16>
    %cst_143 = arith.constant dense<0.000000e+00> : vector<8x640xf32>
    %352 = tpu.matmul %350, %351, %cst_143 {dimension_numbers = #tpu.dot_dimension_numbers<[1], [0], [0], [1], [0, 0, 1, 1], [], []>} : vector<8x128xbf16>, vector<128x640xbf16>, vector<8x640xf32> -> vector<8x640xf32>
    %c0_144 = arith.constant 0 : index
    %c0_145 = arith.constant 0 : index
    %353 = vector.load %arg16[%c0_144, %c0_145] : memref<1x640xf32, #tpu.memory_space<vmem>>, vector<1x640xf32>
    %354 = vector.broadcast %353 : vector<1x640xf32> to vector<8x640xf32>
    %355 = arith.addf %352, %354 : vector<8x640xf32>
    %356 = vector.extract_strided_slice %355 {offsets = [0, 0], sizes = [8, 128], strides = [1, 1]} : vector<8x640xf32> to vector<8x128xf32>
    %357 = arith.addf %356, %333 : vector<8x128xf32>
    %358 = math.tanh %357 : vector<8x128xf32>
    %359 = vector.extract_strided_slice %355 {offsets = [0, 128], sizes = [8, 128], strides = [1, 1]} : vector<8x640xf32> to vector<8x128xf32>
    %360 = vector.extract_strided_slice %355 {offsets = [0, 256], sizes = [8, 384], strides = [1, 1]} : vector<8x640xf32> to vector<8x384xf32>
    %361 = vector.shape_cast %359 : vector<8x128xf32> to vector<1x8x128xf32>
    %362 = vector.broadcast %361 : vector<1x8x128xf32> to vector<8x8x128xf32>
    %363 = arith.addf %349, %362 : vector<8x8x128xf32>
    %364 = math.tanh %363 : vector<8x8x128xf32>
    %c0_146 = arith.constant 0 : index
    %c0_147 = arith.constant 0 : index
    %365 = vector.load %arg14[%c0_146, %c0_147] : memref<1x128xf32, #tpu.memory_space<vmem>>, vector<1x128xf32>
    %366 = vector.shape_cast %365 : vector<1x128xf32> to vector<1x1x128xf32>
    %367 = vector.broadcast %366 : vector<1x1x128xf32> to vector<8x8x128xf32>
    %368 = arith.mulf %364, %367 : vector<8x8x128xf32>
    %cst_148 = arith.constant dense<0.000000e+00> : vector<8x8xf32>
    %369 = vector.multi_reduction <add>, %368, %cst_148 [2] : vector<8x8x128xf32> to vector<8x8xf32>
    %370 = vector.shape_cast %369 : vector<8x8xf32> to vector<8x8x1xf32>
    %cst_149 = arith.constant dense<0xFF800000> : vector<8x1xf32>
    %371 = vector.multi_reduction <maximumf>, %370, %cst_149 [0] : vector<8x8x1xf32> to vector<8x1xf32>
    %372 = vector.shape_cast %371 : vector<8x1xf32> to vector<1x8x1xf32>
    %373 = vector.broadcast %372 : vector<1x8x1xf32> to vector<8x8x1xf32>
    %374 = arith.subf %370, %373 : vector<8x8x1xf32>
    %375 = math.exp %374 : vector<8x8x1xf32>
    %cst_150 = arith.constant dense<0.000000e+00> : vector<8x1xf32>
    %376 = vector.multi_reduction <add>, %375, %cst_150 [0] : vector<8x8x1xf32> to vector<8x1xf32>
    %377 = vector.shape_cast %376 : vector<8x1xf32> to vector<1x8x1xf32>
    %378 = tpu.reciprocal %377 {approx = true} : vector<1x8x1xf32> -> vector<1x8x1xf32>
    %379 = vector.broadcast %378 : vector<1x8x1xf32> to vector<8x8x1xf32>
    %380 = arith.mulf %375, %379 : vector<8x8x1xf32>
    %381 = vector.broadcast %380 : vector<8x8x1xf32> to vector<8x8x128xf32>
    %382 = arith.mulf %381, %348 : vector<8x8x128xf32>
    %cst_151 = arith.constant dense<0.000000e+00> : vector<8x128xf32>
    %383 = vector.multi_reduction <add>, %382, %cst_151 [0] : vector<8x8x128xf32> to vector<8x128xf32>
    %384 = tpu.concatenate %347, %383, %358 in 1 : vector<8x128xf32>, vector<8x128xf32>, vector<8x128xf32> -> vector<8x384xf32>
    %385 = arith.truncf %384 : vector<8x384xf32> to vector<8x384xbf16>
    %c0_152 = arith.constant 0 : index
    %c0_153 = arith.constant 0 : index
    %386 = vector.load %arg17[%c0_152, %c0_153] : memref<384x384xbf16, #tpu.memory_space<vmem>>, vector<384x384xbf16>
    %cst_154 = arith.constant dense<0.000000e+00> : vector<8x384xf32>
    %387 = tpu.matmul %385, %386, %cst_154 {dimension_numbers = #tpu.dot_dimension_numbers<[1], [0], [0], [1], [0, 0, 1, 1], [], []>} : vector<8x384xbf16>, vector<384x384xbf16>, vector<8x384xf32> -> vector<8x384xf32>
    %c0_155 = arith.constant 0 : index
    %c0_156 = arith.constant 0 : index
    %388 = vector.load %arg18[%c0_155, %c0_156] : memref<1x384xf32, #tpu.memory_space<vmem>>, vector<1x384xf32>
    %389 = vector.broadcast %388 : vector<1x384xf32> to vector<8x384xf32>
    %390 = arith.addf %387, %389 : vector<8x384xf32>
    %391 = vector.extract_strided_slice %390 {offsets = [0, 0], sizes = [8, 128], strides = [1, 1]} : vector<8x384xf32> to vector<8x128xf32>
    %392 = vector.extract_strided_slice %390 {offsets = [0, 128], sizes = [8, 128], strides = [1, 1]} : vector<8x384xf32> to vector<8x128xf32>
    %393 = vector.extract_strided_slice %390 {offsets = [0, 256], sizes = [8, 128], strides = [1, 1]} : vector<8x384xf32> to vector<8x128xf32>
    %394 = vector.extract_strided_slice %360 {offsets = [0, 0], sizes = [8, 128], strides = [1, 1]} : vector<8x384xf32> to vector<8x128xf32>
    %395 = vector.extract_strided_slice %360 {offsets = [0, 128], sizes = [8, 128], strides = [1, 1]} : vector<8x384xf32> to vector<8x128xf32>
    %396 = vector.extract_strided_slice %360 {offsets = [0, 256], sizes = [8, 128], strides = [1, 1]} : vector<8x384xf32> to vector<8x128xf32>
    %397 = arith.addf %391, %394 : vector<8x128xf32>
    %398 = arith.negf %397 : vector<8x128xf32>
    %399 = math.exp %398 : vector<8x128xf32>
    %cst_157 = arith.constant 1.000000e+00 : f32
    %400 = vector.broadcast %cst_157 : f32 to vector<8x128xf32>
    %401 = arith.addf %400, %399 : vector<8x128xf32>
    %402 = arith.divf %400, %401 : vector<8x128xf32>
    %403 = arith.addf %392, %395 : vector<8x128xf32>
    %404 = arith.negf %403 : vector<8x128xf32>
    %405 = math.exp %404 : vector<8x128xf32>
    %cst_158 = arith.constant 1.000000e+00 : f32
    %406 = vector.broadcast %cst_158 : f32 to vector<8x128xf32>
    %407 = arith.addf %406, %405 : vector<8x128xf32>
    %408 = arith.divf %406, %407 : vector<8x128xf32>
    %409 = arith.mulf %402, %396 : vector<8x128xf32>
    %410 = arith.addf %393, %409 : vector<8x128xf32>
    %411 = math.tanh %410 : vector<8x128xf32>
    %cst_159 = arith.constant 1.000000e+00 : f32
    %412 = vector.broadcast %cst_159 : f32 to vector<8x128xf32>
    %413 = arith.subf %412, %408 : vector<8x128xf32>
    %414 = arith.mulf %413, %411 : vector<8x128xf32>
    %415 = arith.mulf %408, %317 : vector<8x128xf32>
    %416 = arith.addf %414, %415 : vector<8x128xf32>
    %417 = tpu.concatenate %416, %383, %347 in 1 : vector<8x128xf32>, vector<8x128xf32>, vector<8x128xf32> -> vector<8x384xf32>
    %418 = arith.truncf %417 : vector<8x384xf32> to vector<8x384xbf16>
    %c0_160 = arith.constant 0 : index
    %c0_161 = arith.constant 0 : index
    %419 = vector.load %arg19[%c0_160, %c0_161] : memref<384x128xbf16, #tpu.memory_space<vmem>>, vector<384x128xbf16>
    %cst_162 = arith.constant dense<0.000000e+00> : vector<8x128xf32>
    %420 = tpu.matmul %418, %419, %cst_162 {dimension_numbers = #tpu.dot_dimension_numbers<[1], [0], [0], [1], [0, 0, 1, 1], [], []>} : vector<8x384xbf16>, vector<384x128xbf16>, vector<8x128xf32> -> vector<8x128xf32>
    %c0_163 = arith.constant 0 : index
    %c0_164 = arith.constant 0 : index
    %421 = vector.load %arg20[%c0_163, %c0_164] : memref<1x128xf32, #tpu.memory_space<vmem>>, vector<1x128xf32>
    %422 = vector.broadcast %421 : vector<1x128xf32> to vector<8x128xf32>
    %423 = arith.addf %420, %422 : vector<8x128xf32>
    %424 = arith.index_cast %c1_i32_134 : i32 to index
    %c0_165 = arith.constant 0 : index
    %c0_166 = arith.constant 0 : index
    %425 = vector.load %arg22[%424, %c0_165, %c0_166] : memref<6x8x128xf32, #tpu.memory_space<vmem>>, vector<1x8x128xf32>
    %426 = vector.shape_cast %425 : vector<1x8x128xf32> to vector<8x128xf32>
    %427 = vector.shape_cast %423 : vector<8x128xf32> to vector<1x8x128xf32>
    tpu.vector_store %arg22[%424, %c0_165, %c0_166], %427 {strides = array<i32>} : memref<6x8x128xf32, #tpu.memory_space<vmem>>, vector<1x8x128xf32>,
    %cst_167 = arith.constant dense<0xFF800000> : vector<8xf32>
    %428 = vector.multi_reduction <maximumf>, %423, %cst_167 [1] : vector<8x128xf32> to vector<8xf32>
    %429 = vector.shape_cast %428 : vector<8xf32> to vector<8x1xf32>
    %430 = vector.broadcast %429 : vector<8x1xf32> to vector<8x128xf32>
    %431 = arith.cmpf oge, %423, %430 : vector<8x128xf32>
    %c128_i32 = arith.constant 128 : i32
    %432 = vector.broadcast %c128_i32 : i32 to vector<8x128xi32>
    %433 = arith.select %431, %345, %432 : vector<8x128xi1>, vector<8x128xi32>
    %cst_168 = arith.constant dense<2147483647> : vector<8xi32>
    %434 = vector.multi_reduction <minsi>, %433, %cst_168 [1] : vector<8x128xi32> to vector<8xi32>
    %435 = vector.shape_cast %434 : vector<8xi32> to vector<8x1xi32>
    %436 = vector.broadcast %435 : vector<8x1xi32> to vector<8x128xi32>
    %437 = arith.cmpi eq, %345, %436 : vector<8x128xi32>
    %438 = arith.extui %437 : vector<8x128xi1> to vector<8x128xi32>
    %439 = arith.sitofp %438 : vector<8x128xi32> to vector<8x128xf32>
    %440 = arith.truncf %439 : vector<8x128xf32> to vector<8x128xbf16>
    %c0_169 = arith.constant 0 : index
    %c0_170 = arith.constant 0 : index
    %441 = vector.load %arg21[%c0_169, %c0_170] : memref<128x128xbf16, #tpu.memory_space<vmem>>, vector<128x128xbf16>
    %cst_171 = arith.constant dense<0.000000e+00> : vector<8x128xf32>
    %442 = tpu.matmul %440, %441, %cst_171 {dimension_numbers = #tpu.dot_dimension_numbers<[1], [0], [0], [1], [0, 0, 1, 1], [], []>} : vector<8x128xbf16>, vector<128x128xbf16>, vector<8x128xf32> -> vector<8x128xf32>
    %443 = arith.index_cast %c1_i32_134 : i32 to index
    %444 = memref.load %arg1[%443] : memref<6xi32, #tpu.memory_space<smem>>
    %c0_i32_172 = arith.constant 0 : i32
    %445 = arith.cmpi sgt, %444, %c0_i32_172 : i32
    %446 = arith.extui %445 : i1 to i32
    %447 = arith.sitofp %446 : i32 to f32
    %448 = arith.index_cast %c1_i32_134 : i32 to index
    %c0_173 = arith.constant 0 : index
    %c0_174 = arith.constant 0 : index
    %449 = vector.load %arg3[%448, %c0_173, %c0_174] : memref<6x8x128xf32, #tpu.memory_space<vmem>>, vector<1x8x128xf32>
    %450 = vector.shape_cast %449 : vector<1x8x128xf32> to vector<8x128xf32>
    %451 = vector.broadcast %447 : f32 to vector<8x128xf32>
    %452 = arith.mulf %451, %450 : vector<8x128xf32>
    %cst_175 = arith.constant 1.000000e+00 : f32
    %453 = arith.subf %cst_175, %447 : f32
    %454 = vector.broadcast %453 : f32 to vector<8x128xf32>
    %455 = arith.mulf %454, %442 : vector<8x128xf32>
    %456 = arith.addf %452, %455 : vector<8x128xf32>
    %c2_i32_176 = arith.constant 2 : i32
    %c0_177 = arith.constant 0 : index
    %c0_178 = arith.constant 0 : index
    %c0_179 = arith.constant 0 : index
    %457 = vector.load %arg23[%c0_177, %c0_178, %c0_179] : memref<8x8x128xf32, #tpu.memory_space<vmem>>, vector<8x8x128xf32>
    %c0_180 = arith.constant 0 : index
    %c0_181 = arith.constant 0 : index
    %c0_182 = arith.constant 0 : index
    %458 = vector.load %arg24[%c0_180, %c0_181, %c0_182] : memref<8x8x128xf32, #tpu.memory_space<vmem>>, vector<8x8x128xf32>
    %459 = arith.truncf %416 : vector<8x128xf32> to vector<8x128xbf16>
    %c0_183 = arith.constant 0 : index
    %c0_184 = arith.constant 0 : index
    %460 = vector.load %arg15[%c0_183, %c0_184] : memref<128x640xbf16, #tpu.memory_space<vmem>>, vector<128x640xbf16>
    %cst_185 = arith.constant dense<0.000000e+00> : vector<8x640xf32>
    %461 = tpu.matmul %459, %460, %cst_185 {dimension_numbers = #tpu.dot_dimension_numbers<[1], [0], [0], [1], [0, 0, 1, 1], [], []>} : vector<8x128xbf16>, vector<128x640xbf16>, vector<8x640xf32> -> vector<8x640xf32>
    %c0_186 = arith.constant 0 : index
    %c0_187 = arith.constant 0 : index
    %462 = vector.load %arg16[%c0_186, %c0_187] : memref<1x640xf32, #tpu.memory_space<vmem>>, vector<1x640xf32>
    %463 = vector.broadcast %462 : vector<1x640xf32> to vector<8x640xf32>
    %464 = arith.addf %461, %463 : vector<8x640xf32>
    %465 = vector.extract_strided_slice %464 {offsets = [0, 0], sizes = [8, 128], strides = [1, 1]} : vector<8x640xf32> to vector<8x128xf32>
    %466 = arith.addf %465, %333 : vector<8x128xf32>
    %467 = math.tanh %466 : vector<8x128xf32>
    %468 = vector.extract_strided_slice %464 {offsets = [0, 128], sizes = [8, 128], strides = [1, 1]} : vector<8x640xf32> to vector<8x128xf32>
    %469 = vector.extract_strided_slice %464 {offsets = [0, 256], sizes = [8, 384], strides = [1, 1]} : vector<8x640xf32> to vector<8x384xf32>
    %470 = vector.shape_cast %468 : vector<8x128xf32> to vector<1x8x128xf32>
    %471 = vector.broadcast %470 : vector<1x8x128xf32> to vector<8x8x128xf32>
    %472 = arith.addf %458, %471 : vector<8x8x128xf32>
    %473 = math.tanh %472 : vector<8x8x128xf32>
    %c0_188 = arith.constant 0 : index
    %c0_189 = arith.constant 0 : index
    %474 = vector.load %arg14[%c0_188, %c0_189] : memref<1x128xf32, #tpu.memory_space<vmem>>, vector<1x128xf32>
    %475 = vector.shape_cast %474 : vector<1x128xf32> to vector<1x1x128xf32>
    %476 = vector.broadcast %475 : vector<1x1x128xf32> to vector<8x8x128xf32>
    %477 = arith.mulf %473, %476 : vector<8x8x128xf32>
    %cst_190 = arith.constant dense<0.000000e+00> : vector<8x8xf32>
    %478 = vector.multi_reduction <add>, %477, %cst_190 [2] : vector<8x8x128xf32> to vector<8x8xf32>
    %479 = vector.shape_cast %478 : vector<8x8xf32> to vector<8x8x1xf32>
    %cst_191 = arith.constant dense<0xFF800000> : vector<8x1xf32>
    %480 = vector.multi_reduction <maximumf>, %479, %cst_191 [0] : vector<8x8x1xf32> to vector<8x1xf32>
    %481 = vector.shape_cast %480 : vector<8x1xf32> to vector<1x8x1xf32>
    %482 = vector.broadcast %481 : vector<1x8x1xf32> to vector<8x8x1xf32>
    %483 = arith.subf %479, %482 : vector<8x8x1xf32>
    %484 = math.exp %483 : vector<8x8x1xf32>
    %cst_192 = arith.constant dense<0.000000e+00> : vector<8x1xf32>
    %485 = vector.multi_reduction <add>, %484, %cst_192 [0] : vector<8x8x1xf32> to vector<8x1xf32>
    %486 = vector.shape_cast %485 : vector<8x1xf32> to vector<1x8x1xf32>
    %487 = tpu.reciprocal %486 {approx = true} : vector<1x8x1xf32> -> vector<1x8x1xf32>
    %488 = vector.broadcast %487 : vector<1x8x1xf32> to vector<8x8x1xf32>
    %489 = arith.mulf %484, %488 : vector<8x8x1xf32>
    %490 = vector.broadcast %489 : vector<8x8x1xf32> to vector<8x8x128xf32>
    %491 = arith.mulf %490, %457 : vector<8x8x128xf32>
    %cst_193 = arith.constant dense<0.000000e+00> : vector<8x128xf32>
    %492 = vector.multi_reduction <add>, %491, %cst_193 [0] : vector<8x8x128xf32> to vector<8x128xf32>
    %493 = tpu.concatenate %456, %492, %467 in 1 : vector<8x128xf32>, vector<8x128xf32>, vector<8x128xf32> -> vector<8x384xf32>
    %494 = arith.truncf %493 : vector<8x384xf32> to vector<8x384xbf16>
    %c0_194 = arith.constant 0 : index
    %c0_195 = arith.constant 0 : index
    %495 = vector.load %arg17[%c0_194, %c0_195] : memref<384x384xbf16, #tpu.memory_space<vmem>>, vector<384x384xbf16>
    %cst_196 = arith.constant dense<0.000000e+00> : vector<8x384xf32>
    %496 = tpu.matmul %494, %495, %cst_196 {dimension_numbers = #tpu.dot_dimension_numbers<[1], [0], [0], [1], [0, 0, 1, 1], [], []>} : vector<8x384xbf16>, vector<384x384xbf16>, vector<8x384xf32> -> vector<8x384xf32>
    %c0_197 = arith.constant 0 : index
    %c0_198 = arith.constant 0 : index
    %497 = vector.load %arg18[%c0_197, %c0_198] : memref<1x384xf32, #tpu.memory_space<vmem>>, vector<1x384xf32>
    %498 = vector.broadcast %497 : vector<1x384xf32> to vector<8x384xf32>
    %499 = arith.addf %496, %498 : vector<8x384xf32>
    %500 = vector.extract_strided_slice %499 {offsets = [0, 0], sizes = [8, 128], strides = [1, 1]} : vector<8x384xf32> to vector<8x128xf32>
    %501 = vector.extract_strided_slice %499 {offsets = [0, 128], sizes = [8, 128], strides = [1, 1]} : vector<8x384xf32> to vector<8x128xf32>
    %502 = vector.extract_strided_slice %499 {offsets = [0, 256], sizes = [8, 128], strides = [1, 1]} : vector<8x384xf32> to vector<8x128xf32>
    %503 = vector.extract_strided_slice %469 {offsets = [0, 0], sizes = [8, 128], strides = [1, 1]} : vector<8x384xf32> to vector<8x128xf32>
    %504 = vector.extract_strided_slice %469 {offsets = [0, 128], sizes = [8, 128], strides = [1, 1]} : vector<8x384xf32> to vector<8x128xf32>
    %505 = vector.extract_strided_slice %469 {offsets = [0, 256], sizes = [8, 128], strides = [1, 1]} : vector<8x384xf32> to vector<8x128xf32>
    %506 = arith.addf %500, %503 : vector<8x128xf32>
    %507 = arith.negf %506 : vector<8x128xf32>
    %508 = math.exp %507 : vector<8x128xf32>
    %cst_199 = arith.constant 1.000000e+00 : f32
    %509 = vector.broadcast %cst_199 : f32 to vector<8x128xf32>
    %510 = arith.addf %509, %508 : vector<8x128xf32>
    %511 = arith.divf %509, %510 : vector<8x128xf32>
    %512 = arith.addf %501, %504 : vector<8x128xf32>
    %513 = arith.negf %512 : vector<8x128xf32>
    %514 = math.exp %513 : vector<8x128xf32>
    %cst_200 = arith.constant 1.000000e+00 : f32
    %515 = vector.broadcast %cst_200 : f32 to vector<8x128xf32>
    %516 = arith.addf %515, %514 : vector<8x128xf32>
    %517 = arith.divf %515, %516 : vector<8x128xf32>
    %518 = arith.mulf %511, %505 : vector<8x128xf32>
    %519 = arith.addf %502, %518 : vector<8x128xf32>
    %520 = math.tanh %519 : vector<8x128xf32>
    %cst_201 = arith.constant 1.000000e+00 : f32
    %521 = vector.broadcast %cst_201 : f32 to vector<8x128xf32>
    %522 = arith.subf %521, %517 : vector<8x128xf32>
    %523 = arith.mulf %522, %520 : vector<8x128xf32>
    %524 = arith.mulf %517, %416 : vector<8x128xf32>
    %525 = arith.addf %523, %524 : vector<8x128xf32>
    %526 = tpu.concatenate %525, %492, %456 in 1 : vector<8x128xf32>, vector<8x128xf32>, vector<8x128xf32> -> vector<8x384xf32>
    %527 = arith.truncf %526 : vector<8x384xf32> to vector<8x384xbf16>
    %c0_202 = arith.constant 0 : index
    %c0_203 = arith.constant 0 : index
    %528 = vector.load %arg19[%c0_202, %c0_203] : memref<384x128xbf16, #tpu.memory_space<vmem>>, vector<384x128xbf16>
    %cst_204 = arith.constant dense<0.000000e+00> : vector<8x128xf32>
    %529 = tpu.matmul %527, %528, %cst_204 {dimension_numbers = #tpu.dot_dimension_numbers<[1], [0], [0], [1], [0, 0, 1, 1], [], []>} : vector<8x384xbf16>, vector<384x128xbf16>, vector<8x128xf32> -> vector<8x128xf32>
    %c0_205 = arith.constant 0 : index
    %c0_206 = arith.constant 0 : index
    %530 = vector.load %arg20[%c0_205, %c0_206] : memref<1x128xf32, #tpu.memory_space<vmem>>, vector<1x128xf32>
    %531 = vector.broadcast %530 : vector<1x128xf32> to vector<8x128xf32>
    %532 = arith.addf %529, %531 : vector<8x128xf32>
    %533 = arith.index_cast %c2_i32_176 : i32 to index
    %c0_207 = arith.constant 0 : index
    %c0_208 = arith.constant 0 : index
    %534 = vector.load %arg22[%533, %c0_207, %c0_208] : memref<6x8x128xf32, #tpu.memory_space<vmem>>, vector<1x8x128xf32>
    %535 = vector.shape_cast %534 : vector<1x8x128xf32> to vector<8x128xf32>
    %536 = vector.shape_cast %532 : vector<8x128xf32> to vector<1x8x128xf32>
    tpu.vector_store %arg22[%533, %c0_207, %c0_208], %536 {strides = array<i32>} : memref<6x8x128xf32, #tpu.memory_space<vmem>>, vector<1x8x128xf32>,
    %cst_209 = arith.constant dense<0xFF800000> : vector<8xf32>
    %537 = vector.multi_reduction <maximumf>, %532, %cst_209 [1] : vector<8x128xf32> to vector<8xf32>
    %538 = vector.shape_cast %537 : vector<8xf32> to vector<8x1xf32>
    %539 = vector.broadcast %538 : vector<8x1xf32> to vector<8x128xf32>
    %540 = arith.cmpf oge, %532, %539 : vector<8x128xf32>
    %c128_i32_210 = arith.constant 128 : i32
    %541 = vector.broadcast %c128_i32_210 : i32 to vector<8x128xi32>
    %542 = arith.select %540, %345, %541 : vector<8x128xi1>, vector<8x128xi32>
    %cst_211 = arith.constant dense<2147483647> : vector<8xi32>
    %543 = vector.multi_reduction <minsi>, %542, %cst_211 [1] : vector<8x128xi32> to vector<8xi32>
    %544 = vector.shape_cast %543 : vector<8xi32> to vector<8x1xi32>
    %545 = vector.broadcast %544 : vector<8x1xi32> to vector<8x128xi32>
    %546 = arith.cmpi eq, %345, %545 : vector<8x128xi32>
    %547 = arith.extui %546 : vector<8x128xi1> to vector<8x128xi32>
    %548 = arith.sitofp %547 : vector<8x128xi32> to vector<8x128xf32>
    %549 = arith.truncf %548 : vector<8x128xf32> to vector<8x128xbf16>
    %c0_212 = arith.constant 0 : index
    %c0_213 = arith.constant 0 : index
    %550 = vector.load %arg21[%c0_212, %c0_213] : memref<128x128xbf16, #tpu.memory_space<vmem>>, vector<128x128xbf16>
    %cst_214 = arith.constant dense<0.000000e+00> : vector<8x128xf32>
    %551 = tpu.matmul %549, %550, %cst_214 {dimension_numbers = #tpu.dot_dimension_numbers<[1], [0], [0], [1], [0, 0, 1, 1], [], []>} : vector<8x128xbf16>, vector<128x128xbf16>, vector<8x128xf32> -> vector<8x128xf32>
    %552 = arith.index_cast %c2_i32_176 : i32 to index
    %553 = memref.load %arg1[%552] : memref<6xi32, #tpu.memory_space<smem>>
    %c0_i32_215 = arith.constant 0 : i32
    %554 = arith.cmpi sgt, %553, %c0_i32_215 : i32
    %555 = arith.extui %554 : i1 to i32
    %556 = arith.sitofp %555 : i32 to f32
    %557 = arith.index_cast %c2_i32_176 : i32 to index
    %c0_216 = arith.constant 0 : index
    %c0_217 = arith.constant 0 : index
    %558 = vector.load %arg3[%557, %c0_216, %c0_217] : memref<6x8x128xf32, #tpu.memory_space<vmem>>, vector<1x8x128xf32>
    %559 = vector.shape_cast %558 : vector<1x8x128xf32> to vector<8x128xf32>
    %560 = vector.broadcast %556 : f32 to vector<8x128xf32>
    %561 = arith.mulf %560, %559 : vector<8x128xf32>
    %cst_218 = arith.constant 1.000000e+00 : f32
    %562 = arith.subf %cst_218, %556 : f32
    %563 = vector.broadcast %562 : f32 to vector<8x128xf32>
    %564 = arith.mulf %563, %551 : vector<8x128xf32>
    %565 = arith.addf %561, %564 : vector<8x128xf32>
    %c3_i32_219 = arith.constant 3 : i32
    %c0_220 = arith.constant 0 : index
    %c0_221 = arith.constant 0 : index
    %c0_222 = arith.constant 0 : index
    %566 = vector.load %arg23[%c0_220, %c0_221, %c0_222] : memref<8x8x128xf32, #tpu.memory_space<vmem>>, vector<8x8x128xf32>
    %c0_223 = arith.constant 0 : index
    %c0_224 = arith.constant 0 : index
    %c0_225 = arith.constant 0 : index
    %567 = vector.load %arg24[%c0_223, %c0_224, %c0_225] : memref<8x8x128xf32, #tpu.memory_space<vmem>>, vector<8x8x128xf32>
    %568 = arith.truncf %525 : vector<8x128xf32> to vector<8x128xbf16>
    %c0_226 = arith.constant 0 : index
    %c0_227 = arith.constant 0 : index
    %569 = vector.load %arg15[%c0_226, %c0_227] : memref<128x640xbf16, #tpu.memory_space<vmem>>, vector<128x640xbf16>
    %cst_228 = arith.constant dense<0.000000e+00> : vector<8x640xf32>
    %570 = tpu.matmul %568, %569, %cst_228 {dimension_numbers = #tpu.dot_dimension_numbers<[1], [0], [0], [1], [0, 0, 1, 1], [], []>} : vector<8x128xbf16>, vector<128x640xbf16>, vector<8x640xf32> -> vector<8x640xf32>
    %c0_229 = arith.constant 0 : index
    %c0_230 = arith.constant 0 : index
    %571 = vector.load %arg16[%c0_229, %c0_230] : memref<1x640xf32, #tpu.memory_space<vmem>>, vector<1x640xf32>
    %572 = vector.broadcast %571 : vector<1x640xf32> to vector<8x640xf32>
    %573 = arith.addf %570, %572 : vector<8x640xf32>
    %574 = vector.extract_strided_slice %573 {offsets = [0, 0], sizes = [8, 128], strides = [1, 1]} : vector<8x640xf32> to vector<8x128xf32>
    %575 = arith.addf %574, %333 : vector<8x128xf32>
    %576 = math.tanh %575 : vector<8x128xf32>
    %577 = vector.extract_strided_slice %573 {offsets = [0, 128], sizes = [8, 128], strides = [1, 1]} : vector<8x640xf32> to vector<8x128xf32>
    %578 = vector.extract_strided_slice %573 {offsets = [0, 256], sizes = [8, 384], strides = [1, 1]} : vector<8x640xf32> to vector<8x384xf32>
    %579 = vector.shape_cast %577 : vector<8x128xf32> to vector<1x8x128xf32>
    %580 = vector.broadcast %579 : vector<1x8x128xf32> to vector<8x8x128xf32>
    %581 = arith.addf %567, %580 : vector<8x8x128xf32>
    %582 = math.tanh %581 : vector<8x8x128xf32>
    %c0_231 = arith.constant 0 : index
    %c0_232 = arith.constant 0 : index
    %583 = vector.load %arg14[%c0_231, %c0_232] : memref<1x128xf32, #tpu.memory_space<vmem>>, vector<1x128xf32>
    %584 = vector.shape_cast %583 : vector<1x128xf32> to vector<1x1x128xf32>
    %585 = vector.broadcast %584 : vector<1x1x128xf32> to vector<8x8x128xf32>
    %586 = arith.mulf %582, %585 : vector<8x8x128xf32>
    %cst_233 = arith.constant dense<0.000000e+00> : vector<8x8xf32>
    %587 = vector.multi_reduction <add>, %586, %cst_233 [2] : vector<8x8x128xf32> to vector<8x8xf32>
    %588 = vector.shape_cast %587 : vector<8x8xf32> to vector<8x8x1xf32>
    %cst_234 = arith.constant dense<0xFF800000> : vector<8x1xf32>
    %589 = vector.multi_reduction <maximumf>, %588, %cst_234 [0] : vector<8x8x1xf32> to vector<8x1xf32>
    %590 = vector.shape_cast %589 : vector<8x1xf32> to vector<1x8x1xf32>
    %591 = vector.broadcast %590 : vector<1x8x1xf32> to vector<8x8x1xf32>
    %592 = arith.subf %588, %591 : vector<8x8x1xf32>
    %593 = math.exp %592 : vector<8x8x1xf32>
    %cst_235 = arith.constant dense<0.000000e+00> : vector<8x1xf32>
    %594 = vector.multi_reduction <add>, %593, %cst_235 [0] : vector<8x8x1xf32> to vector<8x1xf32>
    %595 = vector.shape_cast %594 : vector<8x1xf32> to vector<1x8x1xf32>
    %596 = tpu.reciprocal %595 {approx = true} : vector<1x8x1xf32> -> vector<1x8x1xf32>
    %597 = vector.broadcast %596 : vector<1x8x1xf32> to vector<8x8x1xf32>
    %598 = arith.mulf %593, %597 : vector<8x8x1xf32>
    %599 = vector.broadcast %598 : vector<8x8x1xf32> to vector<8x8x128xf32>
    %600 = arith.mulf %599, %566 : vector<8x8x128xf32>
    %cst_236 = arith.constant dense<0.000000e+00> : vector<8x128xf32>
    %601 = vector.multi_reduction <add>, %600, %cst_236 [0] : vector<8x8x128xf32> to vector<8x128xf32>
    %602 = tpu.concatenate %565, %601, %576 in 1 : vector<8x128xf32>, vector<8x128xf32>, vector<8x128xf32> -> vector<8x384xf32>
    %603 = arith.truncf %602 : vector<8x384xf32> to vector<8x384xbf16>
    %c0_237 = arith.constant 0 : index
    %c0_238 = arith.constant 0 : index
    %604 = vector.load %arg17[%c0_237, %c0_238] : memref<384x384xbf16, #tpu.memory_space<vmem>>, vector<384x384xbf16>
    %cst_239 = arith.constant dense<0.000000e+00> : vector<8x384xf32>
    %605 = tpu.matmul %603, %604, %cst_239 {dimension_numbers = #tpu.dot_dimension_numbers<[1], [0], [0], [1], [0, 0, 1, 1], [], []>} : vector<8x384xbf16>, vector<384x384xbf16>, vector<8x384xf32> -> vector<8x384xf32>
    %c0_240 = arith.constant 0 : index
    %c0_241 = arith.constant 0 : index
    %606 = vector.load %arg18[%c0_240, %c0_241] : memref<1x384xf32, #tpu.memory_space<vmem>>, vector<1x384xf32>
    %607 = vector.broadcast %606 : vector<1x384xf32> to vector<8x384xf32>
    %608 = arith.addf %605, %607 : vector<8x384xf32>
    %609 = vector.extract_strided_slice %608 {offsets = [0, 0], sizes = [8, 128], strides = [1, 1]} : vector<8x384xf32> to vector<8x128xf32>
    %610 = vector.extract_strided_slice %608 {offsets = [0, 128], sizes = [8, 128], strides = [1, 1]} : vector<8x384xf32> to vector<8x128xf32>
    %611 = vector.extract_strided_slice %608 {offsets = [0, 256], sizes = [8, 128], strides = [1, 1]} : vector<8x384xf32> to vector<8x128xf32>
    %612 = vector.extract_strided_slice %578 {offsets = [0, 0], sizes = [8, 128], strides = [1, 1]} : vector<8x384xf32> to vector<8x128xf32>
    %613 = vector.extract_strided_slice %578 {offsets = [0, 128], sizes = [8, 128], strides = [1, 1]} : vector<8x384xf32> to vector<8x128xf32>
    %614 = vector.extract_strided_slice %578 {offsets = [0, 256], sizes = [8, 128], strides = [1, 1]} : vector<8x384xf32> to vector<8x128xf32>
    %615 = arith.addf %609, %612 : vector<8x128xf32>
    %616 = arith.negf %615 : vector<8x128xf32>
    %617 = math.exp %616 : vector<8x128xf32>
    %cst_242 = arith.constant 1.000000e+00 : f32
    %618 = vector.broadcast %cst_242 : f32 to vector<8x128xf32>
    %619 = arith.addf %618, %617 : vector<8x128xf32>
    %620 = arith.divf %618, %619 : vector<8x128xf32>
    %621 = arith.addf %610, %613 : vector<8x128xf32>
    %622 = arith.negf %621 : vector<8x128xf32>
    %623 = math.exp %622 : vector<8x128xf32>
    %cst_243 = arith.constant 1.000000e+00 : f32
    %624 = vector.broadcast %cst_243 : f32 to vector<8x128xf32>
    %625 = arith.addf %624, %623 : vector<8x128xf32>
    %626 = arith.divf %624, %625 : vector<8x128xf32>
    %627 = arith.mulf %620, %614 : vector<8x128xf32>
    %628 = arith.addf %611, %627 : vector<8x128xf32>
    %629 = math.tanh %628 : vector<8x128xf32>
    %cst_244 = arith.constant 1.000000e+00 : f32
    %630 = vector.broadcast %cst_244 : f32 to vector<8x128xf32>
    %631 = arith.subf %630, %626 : vector<8x128xf32>
    %632 = arith.mulf %631, %629 : vector<8x128xf32>
    %633 = arith.mulf %626, %525 : vector<8x128xf32>
    %634 = arith.addf %632, %633 : vector<8x128xf32>
    %635 = tpu.concatenate %634, %601, %565 in 1 : vector<8x128xf32>, vector<8x128xf32>, vector<8x128xf32> -> vector<8x384xf32>
    %636 = arith.truncf %635 : vector<8x384xf32> to vector<8x384xbf16>
    %c0_245 = arith.constant 0 : index
    %c0_246 = arith.constant 0 : index
    %637 = vector.load %arg19[%c0_245, %c0_246] : memref<384x128xbf16, #tpu.memory_space<vmem>>, vector<384x128xbf16>
    %cst_247 = arith.constant dense<0.000000e+00> : vector<8x128xf32>
    %638 = tpu.matmul %636, %637, %cst_247 {dimension_numbers = #tpu.dot_dimension_numbers<[1], [0], [0], [1], [0, 0, 1, 1], [], []>} : vector<8x384xbf16>, vector<384x128xbf16>, vector<8x128xf32> -> vector<8x128xf32>
    %c0_248 = arith.constant 0 : index
    %c0_249 = arith.constant 0 : index
    %639 = vector.load %arg20[%c0_248, %c0_249] : memref<1x128xf32, #tpu.memory_space<vmem>>, vector<1x128xf32>
    %640 = vector.broadcast %639 : vector<1x128xf32> to vector<8x128xf32>
    %641 = arith.addf %638, %640 : vector<8x128xf32>
    %642 = arith.index_cast %c3_i32_219 : i32 to index
    %c0_250 = arith.constant 0 : index
    %c0_251 = arith.constant 0 : index
    %643 = vector.load %arg22[%642, %c0_250, %c0_251] : memref<6x8x128xf32, #tpu.memory_space<vmem>>, vector<1x8x128xf32>
    %644 = vector.shape_cast %643 : vector<1x8x128xf32> to vector<8x128xf32>
    %645 = vector.shape_cast %641 : vector<8x128xf32> to vector<1x8x128xf32>
    tpu.vector_store %arg22[%642, %c0_250, %c0_251], %645 {strides = array<i32>} : memref<6x8x128xf32, #tpu.memory_space<vmem>>, vector<1x8x128xf32>,
    %cst_252 = arith.constant dense<0xFF800000> : vector<8xf32>
    %646 = vector.multi_reduction <maximumf>, %641, %cst_252 [1] : vector<8x128xf32> to vector<8xf32>
    %647 = vector.shape_cast %646 : vector<8xf32> to vector<8x1xf32>
    %648 = vector.broadcast %647 : vector<8x1xf32> to vector<8x128xf32>
    %649 = arith.cmpf oge, %641, %648 : vector<8x128xf32>
    %c128_i32_253 = arith.constant 128 : i32
    %650 = vector.broadcast %c128_i32_253 : i32 to vector<8x128xi32>
    %651 = arith.select %649, %345, %650 : vector<8x128xi1>, vector<8x128xi32>
    %cst_254 = arith.constant dense<2147483647> : vector<8xi32>
    %652 = vector.multi_reduction <minsi>, %651, %cst_254 [1] : vector<8x128xi32> to vector<8xi32>
    %653 = vector.shape_cast %652 : vector<8xi32> to vector<8x1xi32>
    %654 = vector.broadcast %653 : vector<8x1xi32> to vector<8x128xi32>
    %655 = arith.cmpi eq, %345, %654 : vector<8x128xi32>
    %656 = arith.extui %655 : vector<8x128xi1> to vector<8x128xi32>
    %657 = arith.sitofp %656 : vector<8x128xi32> to vector<8x128xf32>
    %658 = arith.truncf %657 : vector<8x128xf32> to vector<8x128xbf16>
    %c0_255 = arith.constant 0 : index
    %c0_256 = arith.constant 0 : index
    %659 = vector.load %arg21[%c0_255, %c0_256] : memref<128x128xbf16, #tpu.memory_space<vmem>>, vector<128x128xbf16>
    %cst_257 = arith.constant dense<0.000000e+00> : vector<8x128xf32>
    %660 = tpu.matmul %658, %659, %cst_257 {dimension_numbers = #tpu.dot_dimension_numbers<[1], [0], [0], [1], [0, 0, 1, 1], [], []>} : vector<8x128xbf16>, vector<128x128xbf16>, vector<8x128xf32> -> vector<8x128xf32>
    %661 = arith.index_cast %c3_i32_219 : i32 to index
    %662 = memref.load %arg1[%661] : memref<6xi32, #tpu.memory_space<smem>>
    %c0_i32_258 = arith.constant 0 : i32
    %663 = arith.cmpi sgt, %662, %c0_i32_258 : i32
    %664 = arith.extui %663 : i1 to i32
    %665 = arith.sitofp %664 : i32 to f32
    %666 = arith.index_cast %c3_i32_219 : i32 to index
    %c0_259 = arith.constant 0 : index
    %c0_260 = arith.constant 0 : index
    %667 = vector.load %arg3[%666, %c0_259, %c0_260] : memref<6x8x128xf32, #tpu.memory_space<vmem>>, vector<1x8x128xf32>
    %668 = vector.shape_cast %667 : vector<1x8x128xf32> to vector<8x128xf32>
    %669 = vector.broadcast %665 : f32 to vector<8x128xf32>
    %670 = arith.mulf %669, %668 : vector<8x128xf32>
    %cst_261 = arith.constant 1.000000e+00 : f32
    %671 = arith.subf %cst_261, %665 : f32
    %672 = vector.broadcast %671 : f32 to vector<8x128xf32>
    %673 = arith.mulf %672, %660 : vector<8x128xf32>
    %674 = arith.addf %670, %673 : vector<8x128xf32>
    %c4_i32_262 = arith.constant 4 : i32
    %c0_263 = arith.constant 0 : index
    %c0_264 = arith.constant 0 : index
    %c0_265 = arith.constant 0 : index
    %675 = vector.load %arg23[%c0_263, %c0_264, %c0_265] : memref<8x8x128xf32, #tpu.memory_space<vmem>>, vector<8x8x128xf32>
    %c0_266 = arith.constant 0 : index
    %c0_267 = arith.constant 0 : index
    %c0_268 = arith.constant 0 : index
    %676 = vector.load %arg24[%c0_266, %c0_267, %c0_268] : memref<8x8x128xf32, #tpu.memory_space<vmem>>, vector<8x8x128xf32>
    %677 = arith.truncf %634 : vector<8x128xf32> to vector<8x128xbf16>
    %c0_269 = arith.constant 0 : index
    %c0_270 = arith.constant 0 : index
    %678 = vector.load %arg15[%c0_269, %c0_270] : memref<128x640xbf16, #tpu.memory_space<vmem>>, vector<128x640xbf16>
    %cst_271 = arith.constant dense<0.000000e+00> : vector<8x640xf32>
    %679 = tpu.matmul %677, %678, %cst_271 {dimension_numbers = #tpu.dot_dimension_numbers<[1], [0], [0], [1], [0, 0, 1, 1], [], []>} : vector<8x128xbf16>, vector<128x640xbf16>, vector<8x640xf32> -> vector<8x640xf32>
    %c0_272 = arith.constant 0 : index
    %c0_273 = arith.constant 0 : index
    %680 = vector.load %arg16[%c0_272, %c0_273] : memref<1x640xf32, #tpu.memory_space<vmem>>, vector<1x640xf32>
    %681 = vector.broadcast %680 : vector<1x640xf32> to vector<8x640xf32>
    %682 = arith.addf %679, %681 : vector<8x640xf32>
    %683 = vector.extract_strided_slice %682 {offsets = [0, 0], sizes = [8, 128], strides = [1, 1]} : vector<8x640xf32> to vector<8x128xf32>
    %684 = arith.addf %683, %333 : vector<8x128xf32>
    %685 = math.tanh %684 : vector<8x128xf32>
    %686 = vector.extract_strided_slice %682 {offsets = [0, 128], sizes = [8, 128], strides = [1, 1]} : vector<8x640xf32> to vector<8x128xf32>
    %687 = vector.extract_strided_slice %682 {offsets = [0, 256], sizes = [8, 384], strides = [1, 1]} : vector<8x640xf32> to vector<8x384xf32>
    %688 = vector.shape_cast %686 : vector<8x128xf32> to vector<1x8x128xf32>
    %689 = vector.broadcast %688 : vector<1x8x128xf32> to vector<8x8x128xf32>
    %690 = arith.addf %676, %689 : vector<8x8x128xf32>
    %691 = math.tanh %690 : vector<8x8x128xf32>
    %c0_274 = arith.constant 0 : index
    %c0_275 = arith.constant 0 : index
    %692 = vector.load %arg14[%c0_274, %c0_275] : memref<1x128xf32, #tpu.memory_space<vmem>>, vector<1x128xf32>
    %693 = vector.shape_cast %692 : vector<1x128xf32> to vector<1x1x128xf32>
    %694 = vector.broadcast %693 : vector<1x1x128xf32> to vector<8x8x128xf32>
    %695 = arith.mulf %691, %694 : vector<8x8x128xf32>
    %cst_276 = arith.constant dense<0.000000e+00> : vector<8x8xf32>
    %696 = vector.multi_reduction <add>, %695, %cst_276 [2] : vector<8x8x128xf32> to vector<8x8xf32>
    %697 = vector.shape_cast %696 : vector<8x8xf32> to vector<8x8x1xf32>
    %cst_277 = arith.constant dense<0xFF800000> : vector<8x1xf32>
    %698 = vector.multi_reduction <maximumf>, %697, %cst_277 [0] : vector<8x8x1xf32> to vector<8x1xf32>
    %699 = vector.shape_cast %698 : vector<8x1xf32> to vector<1x8x1xf32>
    %700 = vector.broadcast %699 : vector<1x8x1xf32> to vector<8x8x1xf32>
    %701 = arith.subf %697, %700 : vector<8x8x1xf32>
    %702 = math.exp %701 : vector<8x8x1xf32>
    %cst_278 = arith.constant dense<0.000000e+00> : vector<8x1xf32>
    %703 = vector.multi_reduction <add>, %702, %cst_278 [0] : vector<8x8x1xf32> to vector<8x1xf32>
    %704 = vector.shape_cast %703 : vector<8x1xf32> to vector<1x8x1xf32>
    %705 = tpu.reciprocal %704 {approx = true} : vector<1x8x1xf32> -> vector<1x8x1xf32>
    %706 = vector.broadcast %705 : vector<1x8x1xf32> to vector<8x8x1xf32>
    %707 = arith.mulf %702, %706 : vector<8x8x1xf32>
    %708 = vector.broadcast %707 : vector<8x8x1xf32> to vector<8x8x128xf32>
    %709 = arith.mulf %708, %675 : vector<8x8x128xf32>
    %cst_279 = arith.constant dense<0.000000e+00> : vector<8x128xf32>
    %710 = vector.multi_reduction <add>, %709, %cst_279 [0] : vector<8x8x128xf32> to vector<8x128xf32>
    %711 = tpu.concatenate %674, %710, %685 in 1 : vector<8x128xf32>, vector<8x128xf32>, vector<8x128xf32> -> vector<8x384xf32>
    %712 = arith.truncf %711 : vector<8x384xf32> to vector<8x384xbf16>
    %c0_280 = arith.constant 0 : index
    %c0_281 = arith.constant 0 : index
    %713 = vector.load %arg17[%c0_280, %c0_281] : memref<384x384xbf16, #tpu.memory_space<vmem>>, vector<384x384xbf16>
    %cst_282 = arith.constant dense<0.000000e+00> : vector<8x384xf32>
    %714 = tpu.matmul %712, %713, %cst_282 {dimension_numbers = #tpu.dot_dimension_numbers<[1], [0], [0], [1], [0, 0, 1, 1], [], []>} : vector<8x384xbf16>, vector<384x384xbf16>, vector<8x384xf32> -> vector<8x384xf32>
    %c0_283 = arith.constant 0 : index
    %c0_284 = arith.constant 0 : index
    %715 = vector.load %arg18[%c0_283, %c0_284] : memref<1x384xf32, #tpu.memory_space<vmem>>, vector<1x384xf32>
    %716 = vector.broadcast %715 : vector<1x384xf32> to vector<8x384xf32>
    %717 = arith.addf %714, %716 : vector<8x384xf32>
    %718 = vector.extract_strided_slice %717 {offsets = [0, 0], sizes = [8, 128], strides = [1, 1]} : vector<8x384xf32> to vector<8x128xf32>
    %719 = vector.extract_strided_slice %717 {offsets = [0, 128], sizes = [8, 128], strides = [1, 1]} : vector<8x384xf32> to vector<8x128xf32>
    %720 = vector.extract_strided_slice %717 {offsets = [0, 256], sizes = [8, 128], strides = [1, 1]} : vector<8x384xf32> to vector<8x128xf32>
    %721 = vector.extract_strided_slice %687 {offsets = [0, 0], sizes = [8, 128], strides = [1, 1]} : vector<8x384xf32> to vector<8x128xf32>
    %722 = vector.extract_strided_slice %687 {offsets = [0, 128], sizes = [8, 128], strides = [1, 1]} : vector<8x384xf32> to vector<8x128xf32>
    %723 = vector.extract_strided_slice %687 {offsets = [0, 256], sizes = [8, 128], strides = [1, 1]} : vector<8x384xf32> to vector<8x128xf32>
    %724 = arith.addf %718, %721 : vector<8x128xf32>
    %725 = arith.negf %724 : vector<8x128xf32>
    %726 = math.exp %725 : vector<8x128xf32>
    %cst_285 = arith.constant 1.000000e+00 : f32
    %727 = vector.broadcast %cst_285 : f32 to vector<8x128xf32>
    %728 = arith.addf %727, %726 : vector<8x128xf32>
    %729 = arith.divf %727, %728 : vector<8x128xf32>
    %730 = arith.addf %719, %722 : vector<8x128xf32>
    %731 = arith.negf %730 : vector<8x128xf32>
    %732 = math.exp %731 : vector<8x128xf32>
    %cst_286 = arith.constant 1.000000e+00 : f32
    %733 = vector.broadcast %cst_286 : f32 to vector<8x128xf32>
    %734 = arith.addf %733, %732 : vector<8x128xf32>
    %735 = arith.divf %733, %734 : vector<8x128xf32>
    %736 = arith.mulf %729, %723 : vector<8x128xf32>
    %737 = arith.addf %720, %736 : vector<8x128xf32>
    %738 = math.tanh %737 : vector<8x128xf32>
    %cst_287 = arith.constant 1.000000e+00 : f32
    %739 = vector.broadcast %cst_287 : f32 to vector<8x128xf32>
    %740 = arith.subf %739, %735 : vector<8x128xf32>
    %741 = arith.mulf %740, %738 : vector<8x128xf32>
    %742 = arith.mulf %735, %634 : vector<8x128xf32>
    %743 = arith.addf %741, %742 : vector<8x128xf32>
    %744 = tpu.concatenate %743, %710, %674 in 1 : vector<8x128xf32>, vector<8x128xf32>, vector<8x128xf32> -> vector<8x384xf32>
    %745 = arith.truncf %744 : vector<8x384xf32> to vector<8x384xbf16>
    %c0_288 = arith.constant 0 : index
    %c0_289 = arith.constant 0 : index
    %746 = vector.load %arg19[%c0_288, %c0_289] : memref<384x128xbf16, #tpu.memory_space<vmem>>, vector<384x128xbf16>
    %cst_290 = arith.constant dense<0.000000e+00> : vector<8x128xf32>
    %747 = tpu.matmul %745, %746, %cst_290 {dimension_numbers = #tpu.dot_dimension_numbers<[1], [0], [0], [1], [0, 0, 1, 1], [], []>} : vector<8x384xbf16>, vector<384x128xbf16>, vector<8x128xf32> -> vector<8x128xf32>
    %c0_291 = arith.constant 0 : index
    %c0_292 = arith.constant 0 : index
    %748 = vector.load %arg20[%c0_291, %c0_292] : memref<1x128xf32, #tpu.memory_space<vmem>>, vector<1x128xf32>
    %749 = vector.broadcast %748 : vector<1x128xf32> to vector<8x128xf32>
    %750 = arith.addf %747, %749 : vector<8x128xf32>
    %751 = arith.index_cast %c4_i32_262 : i32 to index
    %c0_293 = arith.constant 0 : index
    %c0_294 = arith.constant 0 : index
    %752 = vector.load %arg22[%751, %c0_293, %c0_294] : memref<6x8x128xf32, #tpu.memory_space<vmem>>, vector<1x8x128xf32>
    %753 = vector.shape_cast %752 : vector<1x8x128xf32> to vector<8x128xf32>
    %754 = vector.shape_cast %750 : vector<8x128xf32> to vector<1x8x128xf32>
    tpu.vector_store %arg22[%751, %c0_293, %c0_294], %754 {strides = array<i32>} : memref<6x8x128xf32, #tpu.memory_space<vmem>>, vector<1x8x128xf32>,
    %cst_295 = arith.constant dense<0xFF800000> : vector<8xf32>
    %755 = vector.multi_reduction <maximumf>, %750, %cst_295 [1] : vector<8x128xf32> to vector<8xf32>
    %756 = vector.shape_cast %755 : vector<8xf32> to vector<8x1xf32>
    %757 = vector.broadcast %756 : vector<8x1xf32> to vector<8x128xf32>
    %758 = arith.cmpf oge, %750, %757 : vector<8x128xf32>
    %c128_i32_296 = arith.constant 128 : i32
    %759 = vector.broadcast %c128_i32_296 : i32 to vector<8x128xi32>
    %760 = arith.select %758, %345, %759 : vector<8x128xi1>, vector<8x128xi32>
    %cst_297 = arith.constant dense<2147483647> : vector<8xi32>
    %761 = vector.multi_reduction <minsi>, %760, %cst_297 [1] : vector<8x128xi32> to vector<8xi32>
    %762 = vector.shape_cast %761 : vector<8xi32> to vector<8x1xi32>
    %763 = vector.broadcast %762 : vector<8x1xi32> to vector<8x128xi32>
    %764 = arith.cmpi eq, %345, %763 : vector<8x128xi32>
    %765 = arith.extui %764 : vector<8x128xi1> to vector<8x128xi32>
    %766 = arith.sitofp %765 : vector<8x128xi32> to vector<8x128xf32>
    %767 = arith.truncf %766 : vector<8x128xf32> to vector<8x128xbf16>
    %c0_298 = arith.constant 0 : index
    %c0_299 = arith.constant 0 : index
    %768 = vector.load %arg21[%c0_298, %c0_299] : memref<128x128xbf16, #tpu.memory_space<vmem>>, vector<128x128xbf16>
    %cst_300 = arith.constant dense<0.000000e+00> : vector<8x128xf32>
    %769 = tpu.matmul %767, %768, %cst_300 {dimension_numbers = #tpu.dot_dimension_numbers<[1], [0], [0], [1], [0, 0, 1, 1], [], []>} : vector<8x128xbf16>, vector<128x128xbf16>, vector<8x128xf32> -> vector<8x128xf32>
    %770 = arith.index_cast %c4_i32_262 : i32 to index
    %771 = memref.load %arg1[%770] : memref<6xi32, #tpu.memory_space<smem>>
    %c0_i32_301 = arith.constant 0 : i32
    %772 = arith.cmpi sgt, %771, %c0_i32_301 : i32
    %773 = arith.extui %772 : i1 to i32
    %774 = arith.sitofp %773 : i32 to f32
    %775 = arith.index_cast %c4_i32_262 : i32 to index
    %c0_302 = arith.constant 0 : index
    %c0_303 = arith.constant 0 : index
    %776 = vector.load %arg3[%775, %c0_302, %c0_303] : memref<6x8x128xf32, #tpu.memory_space<vmem>>, vector<1x8x128xf32>
    %777 = vector.shape_cast %776 : vector<1x8x128xf32> to vector<8x128xf32>
    %778 = vector.broadcast %774 : f32 to vector<8x128xf32>
    %779 = arith.mulf %778, %777 : vector<8x128xf32>
    %cst_304 = arith.constant 1.000000e+00 : f32
    %780 = arith.subf %cst_304, %774 : f32
    %781 = vector.broadcast %780 : f32 to vector<8x128xf32>
    %782 = arith.mulf %781, %769 : vector<8x128xf32>
    %783 = arith.addf %779, %782 : vector<8x128xf32>
    %c5_i32_305 = arith.constant 5 : i32
    %c0_306 = arith.constant 0 : index
    %c0_307 = arith.constant 0 : index
    %c0_308 = arith.constant 0 : index
    %784 = vector.load %arg23[%c0_306, %c0_307, %c0_308] : memref<8x8x128xf32, #tpu.memory_space<vmem>>, vector<8x8x128xf32>
    %c0_309 = arith.constant 0 : index
    %c0_310 = arith.constant 0 : index
    %c0_311 = arith.constant 0 : index
    %785 = vector.load %arg24[%c0_309, %c0_310, %c0_311] : memref<8x8x128xf32, #tpu.memory_space<vmem>>, vector<8x8x128xf32>
    %786 = arith.truncf %743 : vector<8x128xf32> to vector<8x128xbf16>
    %c0_312 = arith.constant 0 : index
    %c0_313 = arith.constant 0 : index
    %787 = vector.load %arg15[%c0_312, %c0_313] : memref<128x640xbf16, #tpu.memory_space<vmem>>, vector<128x640xbf16>
    %cst_314 = arith.constant dense<0.000000e+00> : vector<8x640xf32>
    %788 = tpu.matmul %786, %787, %cst_314 {dimension_numbers = #tpu.dot_dimension_numbers<[1], [0], [0], [1], [0, 0, 1, 1], [], []>} : vector<8x128xbf16>, vector<128x640xbf16>, vector<8x640xf32> -> vector<8x640xf32>
    %c0_315 = arith.constant 0 : index
    %c0_316 = arith.constant 0 : index
    %789 = vector.load %arg16[%c0_315, %c0_316] : memref<1x640xf32, #tpu.memory_space<vmem>>, vector<1x640xf32>
    %790 = vector.broadcast %789 : vector<1x640xf32> to vector<8x640xf32>
    %791 = arith.addf %788, %790 : vector<8x640xf32>
    %792 = vector.extract_strided_slice %791 {offsets = [0, 0], sizes = [8, 128], strides = [1, 1]} : vector<8x640xf32> to vector<8x128xf32>
    %793 = arith.addf %792, %333 : vector<8x128xf32>
    %794 = math.tanh %793 : vector<8x128xf32>
    %795 = vector.extract_strided_slice %791 {offsets = [0, 128], sizes = [8, 128], strides = [1, 1]} : vector<8x640xf32> to vector<8x128xf32>
    %796 = vector.extract_strided_slice %791 {offsets = [0, 256], sizes = [8, 384], strides = [1, 1]} : vector<8x640xf32> to vector<8x384xf32>
    %797 = vector.shape_cast %795 : vector<8x128xf32> to vector<1x8x128xf32>
    %798 = vector.broadcast %797 : vector<1x8x128xf32> to vector<8x8x128xf32>
    %799 = arith.addf %785, %798 : vector<8x8x128xf32>
    %800 = math.tanh %799 : vector<8x8x128xf32>
    %c0_317 = arith.constant 0 : index
    %c0_318 = arith.constant 0 : index
    %801 = vector.load %arg14[%c0_317, %c0_318] : memref<1x128xf32, #tpu.memory_space<vmem>>, vector<1x128xf32>
    %802 = vector.shape_cast %801 : vector<1x128xf32> to vector<1x1x128xf32>
    %803 = vector.broadcast %802 : vector<1x1x128xf32> to vector<8x8x128xf32>
    %804 = arith.mulf %800, %803 : vector<8x8x128xf32>
    %cst_319 = arith.constant dense<0.000000e+00> : vector<8x8xf32>
    %805 = vector.multi_reduction <add>, %804, %cst_319 [2] : vector<8x8x128xf32> to vector<8x8xf32>
    %806 = vector.shape_cast %805 : vector<8x8xf32> to vector<8x8x1xf32>
    %cst_320 = arith.constant dense<0xFF800000> : vector<8x1xf32>
    %807 = vector.multi_reduction <maximumf>, %806, %cst_320 [0] : vector<8x8x1xf32> to vector<8x1xf32>
    %808 = vector.shape_cast %807 : vector<8x1xf32> to vector<1x8x1xf32>
    %809 = vector.broadcast %808 : vector<1x8x1xf32> to vector<8x8x1xf32>
    %810 = arith.subf %806, %809 : vector<8x8x1xf32>
    %811 = math.exp %810 : vector<8x8x1xf32>
    %cst_321 = arith.constant dense<0.000000e+00> : vector<8x1xf32>
    %812 = vector.multi_reduction <add>, %811, %cst_321 [0] : vector<8x8x1xf32> to vector<8x1xf32>
    %813 = vector.shape_cast %812 : vector<8x1xf32> to vector<1x8x1xf32>
    %814 = tpu.reciprocal %813 {approx = true} : vector<1x8x1xf32> -> vector<1x8x1xf32>
    %815 = vector.broadcast %814 : vector<1x8x1xf32> to vector<8x8x1xf32>
    %816 = arith.mulf %811, %815 : vector<8x8x1xf32>
    %817 = vector.broadcast %816 : vector<8x8x1xf32> to vector<8x8x128xf32>
    %818 = arith.mulf %817, %784 : vector<8x8x128xf32>
    %cst_322 = arith.constant dense<0.000000e+00> : vector<8x128xf32>
    %819 = vector.multi_reduction <add>, %818, %cst_322 [0] : vector<8x8x128xf32> to vector<8x128xf32>
    %820 = tpu.concatenate %783, %819, %794 in 1 : vector<8x128xf32>, vector<8x128xf32>, vector<8x128xf32> -> vector<8x384xf32>
    %821 = arith.truncf %820 : vector<8x384xf32> to vector<8x384xbf16>
    %c0_323 = arith.constant 0 : index
    %c0_324 = arith.constant 0 : index
    %822 = vector.load %arg17[%c0_323, %c0_324] : memref<384x384xbf16, #tpu.memory_space<vmem>>, vector<384x384xbf16>
    %cst_325 = arith.constant dense<0.000000e+00> : vector<8x384xf32>
    %823 = tpu.matmul %821, %822, %cst_325 {dimension_numbers = #tpu.dot_dimension_numbers<[1], [0], [0], [1], [0, 0, 1, 1], [], []>} : vector<8x384xbf16>, vector<384x384xbf16>, vector<8x384xf32> -> vector<8x384xf32>
    %c0_326 = arith.constant 0 : index
    %c0_327 = arith.constant 0 : index
    %824 = vector.load %arg18[%c0_326, %c0_327] : memref<1x384xf32, #tpu.memory_space<vmem>>, vector<1x384xf32>
    %825 = vector.broadcast %824 : vector<1x384xf32> to vector<8x384xf32>
    %826 = arith.addf %823, %825 : vector<8x384xf32>
    %827 = vector.extract_strided_slice %826 {offsets = [0, 0], sizes = [8, 128], strides = [1, 1]} : vector<8x384xf32> to vector<8x128xf32>
    %828 = vector.extract_strided_slice %826 {offsets = [0, 128], sizes = [8, 128], strides = [1, 1]} : vector<8x384xf32> to vector<8x128xf32>
    %829 = vector.extract_strided_slice %826 {offsets = [0, 256], sizes = [8, 128], strides = [1, 1]} : vector<8x384xf32> to vector<8x128xf32>
    %830 = vector.extract_strided_slice %796 {offsets = [0, 0], sizes = [8, 128], strides = [1, 1]} : vector<8x384xf32> to vector<8x128xf32>
    %831 = vector.extract_strided_slice %796 {offsets = [0, 128], sizes = [8, 128], strides = [1, 1]} : vector<8x384xf32> to vector<8x128xf32>
    %832 = vector.extract_strided_slice %796 {offsets = [0, 256], sizes = [8, 128], strides = [1, 1]} : vector<8x384xf32> to vector<8x128xf32>
    %833 = arith.addf %827, %830 : vector<8x128xf32>
    %834 = arith.negf %833 : vector<8x128xf32>
    %835 = math.exp %834 : vector<8x128xf32>
    %cst_328 = arith.constant 1.000000e+00 : f32
    %836 = vector.broadcast %cst_328 : f32 to vector<8x128xf32>
    %837 = arith.addf %836, %835 : vector<8x128xf32>
    %838 = arith.divf %836, %837 : vector<8x128xf32>
    %839 = arith.addf %828, %831 : vector<8x128xf32>
    %840 = arith.negf %839 : vector<8x128xf32>
    %841 = math.exp %840 : vector<8x128xf32>
    %cst_329 = arith.constant 1.000000e+00 : f32
    %842 = vector.broadcast %cst_329 : f32 to vector<8x128xf32>
    %843 = arith.addf %842, %841 : vector<8x128xf32>
    %844 = arith.divf %842, %843 : vector<8x128xf32>
    %845 = arith.mulf %838, %832 : vector<8x128xf32>
    %846 = arith.addf %829, %845 : vector<8x128xf32>
    %847 = math.tanh %846 : vector<8x128xf32>
    %cst_330 = arith.constant 1.000000e+00 : f32
    %848 = vector.broadcast %cst_330 : f32 to vector<8x128xf32>
    %849 = arith.subf %848, %844 : vector<8x128xf32>
    %850 = arith.mulf %849, %847 : vector<8x128xf32>
    %851 = arith.mulf %844, %743 : vector<8x128xf32>
    %852 = arith.addf %850, %851 : vector<8x128xf32>
    %853 = tpu.concatenate %852, %819, %783 in 1 : vector<8x128xf32>, vector<8x128xf32>, vector<8x128xf32> -> vector<8x384xf32>
    %854 = arith.truncf %853 : vector<8x384xf32> to vector<8x384xbf16>
    %c0_331 = arith.constant 0 : index
    %c0_332 = arith.constant 0 : index
    %855 = vector.load %arg19[%c0_331, %c0_332] : memref<384x128xbf16, #tpu.memory_space<vmem>>, vector<384x128xbf16>
    %cst_333 = arith.constant dense<0.000000e+00> : vector<8x128xf32>
    %856 = tpu.matmul %854, %855, %cst_333 {dimension_numbers = #tpu.dot_dimension_numbers<[1], [0], [0], [1], [0, 0, 1, 1], [], []>} : vector<8x384xbf16>, vector<384x128xbf16>, vector<8x128xf32> -> vector<8x128xf32>
    %c0_334 = arith.constant 0 : index
    %c0_335 = arith.constant 0 : index
    %857 = vector.load %arg20[%c0_334, %c0_335] : memref<1x128xf32, #tpu.memory_space<vmem>>, vector<1x128xf32>
    %858 = vector.broadcast %857 : vector<1x128xf32> to vector<8x128xf32>
    %859 = arith.addf %856, %858 : vector<8x128xf32>
    %860 = arith.index_cast %c5_i32_305 : i32 to index
    %c0_336 = arith.constant 0 : index
    %c0_337 = arith.constant 0 : index
    %861 = vector.load %arg22[%860, %c0_336, %c0_337] : memref<6x8x128xf32, #tpu.memory_space<vmem>>, vector<1x8x128xf32>
    %862 = vector.shape_cast %861 : vector<1x8x128xf32> to vector<8x128xf32>
    %863 = vector.shape_cast %859 : vector<8x128xf32> to vector<1x8x128xf32>
    tpu.vector_store %arg22[%860, %c0_336, %c0_337], %863 {strides = array<i32>} : memref<6x8x128xf32, #tpu.memory_space<vmem>>, vector<1x8x128xf32>,
    %cst_338 = arith.constant dense<0xFF800000> : vector<8xf32>
    %864 = vector.multi_reduction <maximumf>, %859, %cst_338 [1] : vector<8x128xf32> to vector<8xf32>
    %865 = vector.shape_cast %864 : vector<8xf32> to vector<8x1xf32>
    %866 = vector.broadcast %865 : vector<8x1xf32> to vector<8x128xf32>
    %867 = arith.cmpf oge, %859, %866 : vector<8x128xf32>
    %c128_i32_339 = arith.constant 128 : i32
    %868 = vector.broadcast %c128_i32_339 : i32 to vector<8x128xi32>
    %869 = arith.select %867, %345, %868 : vector<8x128xi1>, vector<8x128xi32>
    %cst_340 = arith.constant dense<2147483647> : vector<8xi32>
    %870 = vector.multi_reduction <minsi>, %869, %cst_340 [1] : vector<8x128xi32> to vector<8xi32>
    %871 = vector.shape_cast %870 : vector<8xi32> to vector<8x1xi32>
    %872 = vector.broadcast %871 : vector<8x1xi32> to vector<8x128xi32>
    %873 = arith.cmpi eq, %345, %872 : vector<8x128xi32>
    %874 = arith.extui %873 : vector<8x128xi1> to vector<8x128xi32>
    %875 = arith.sitofp %874 : vector<8x128xi32> to vector<8x128xf32>
    %876 = arith.truncf %875 : vector<8x128xf32> to vector<8x128xbf16>
    %c0_341 = arith.constant 0 : index
    %c0_342 = arith.constant 0 : index
    %877 = vector.load %arg21[%c0_341, %c0_342] : memref<128x128xbf16, #tpu.memory_space<vmem>>, vector<128x128xbf16>
    %cst_343 = arith.constant dense<0.000000e+00> : vector<8x128xf32>
    %878 = tpu.matmul %876, %877, %cst_343 {dimension_numbers = #tpu.dot_dimension_numbers<[1], [0], [0], [1], [0, 0, 1, 1], [], []>} : vector<8x128xbf16>, vector<128x128xbf16>, vector<8x128xf32> -> vector<8x128xf32>
    %879 = arith.index_cast %c5_i32_305 : i32 to index
    %880 = memref.load %arg1[%879] : memref<6xi32, #tpu.memory_space<smem>>
    %c0_i32_344 = arith.constant 0 : i32
    %881 = arith.cmpi sgt, %880, %c0_i32_344 : i32
    %882 = arith.extui %881 : i1 to i32
    %883 = arith.sitofp %882 : i32 to f32
    %884 = arith.index_cast %c5_i32_305 : i32 to index
    %c0_345 = arith.constant 0 : index
    %c0_346 = arith.constant 0 : index
    %885 = vector.load %arg3[%884, %c0_345, %c0_346] : memref<6x8x128xf32, #tpu.memory_space<vmem>>, vector<1x8x128xf32>
    %886 = vector.shape_cast %885 : vector<1x8x128xf32> to vector<8x128xf32>
    %887 = vector.broadcast %883 : f32 to vector<8x128xf32>
    %888 = arith.mulf %887, %886 : vector<8x128xf32>
    %cst_347 = arith.constant 1.000000e+00 : f32
    %889 = arith.subf %cst_347, %883 : f32
    %890 = vector.broadcast %889 : f32 to vector<8x128xf32>
    %891 = arith.mulf %890, %878 : vector<8x128xf32>
    %892 = arith.addf %888, %891 : vector<8x128xf32>
    %c5_i32_348 = arith.constant 5 : i32
    return
  }
  func.func @transform_0(%arg0: i32, %arg1: memref<6xi32, #tpu.memory_space<smem>>) -> (i32, i32, i32) {
    %c0_i32 = arith.constant 0 : i32
    %c0_i32_0 = arith.constant 0 : i32
    %c0_i32_1 = arith.constant 0 : i32
    %c0_i32_2 = arith.constant 0 : i32
    return %c0_i32, %c0_i32_0, %c0_i32_1 : i32, i32, i32
  }
  func.func @transform_1(%arg0: i32, %arg1: memref<6xi32, #tpu.memory_space<smem>>) -> (i32, i32, i32) {
    %c0_i32 = arith.constant 0 : i32
    %c0_i32_0 = arith.constant 0 : i32
    %c0_i32_1 = arith.constant 0 : i32
    %c0_i32_2 = arith.constant 0 : i32
    return %c0_i32, %c0_i32_0, %c0_i32_1 : i32, i32, i32
  }
  func.func @transform_2(%arg0: i32, %arg1: memref<6xi32, #tpu.memory_space<smem>>) -> (i32, i32) {
    %c0_i32 = arith.constant 0 : i32
    %c0_i32_0 = arith.constant 0 : i32
    %c0_i32_1 = arith.constant 0 : i32
    return %c0_i32, %c0_i32_0 : i32, i32
  }
  func.func @transform_3(%arg0: i32, %arg1: memref<6xi32, #tpu.memory_space<smem>>) -> (i32, i32) {
    %c0_i32 = arith.constant 0 : i32
    %c0_i32_0 = arith.constant 0 : i32
    %c0_i32_1 = arith.constant 0 : i32
    return %c0_i32, %c0_i32_0 : i32, i32
  }
  func.func @transform_4(%arg0: i32, %arg1: memref<6xi32, #tpu.memory_space<smem>>) -> (i32, i32) {
    %c0_i32 = arith.constant 0 : i32
    %c0_i32_0 = arith.constant 0 : i32
    %c0_i32_1 = arith.constant 0 : i32
    return %c0_i32, %c0_i32_0 : i32, i32
  }
  func.func @transform_5(%arg0: i32, %arg1: memref<6xi32, #tpu.memory_space<smem>>) -> (i32, i32) {
    %c0_i32 = arith.constant 0 : i32
    %c0_i32_0 = arith.constant 0 : i32
    %c0_i32_1 = arith.constant 0 : i32
    return %c0_i32, %c0_i32_0 : i32, i32
  }
  func.func @transform_6(%arg0: i32, %arg1: memref<6xi32, #tpu.memory_space<smem>>) -> (i32, i32) {
    %c0_i32 = arith.constant 0 : i32
    %c0_i32_0 = arith.constant 0 : i32
    %c0_i32_1 = arith.constant 0 : i32
    return %c0_i32, %c0_i32_0 : i32, i32
  }
  func.func @transform_7(%arg0: i32, %arg1: memref<6xi32, #tpu.memory_space<smem>>) -> (i32, i32) {
    %c0_i32 = arith.constant 0 : i32
    %c0_i32_0 = arith.constant 0 : i32
    %c0_i32_1 = arith.constant 0 : i32
    return %c0_i32, %c0_i32_0 : i32, i32
  }
  func.func @transform_8(%arg0: i32, %arg1: memref<6xi32, #tpu.memory_space<smem>>) -> (i32, i32) {
    %c0_i32 = arith.constant 0 : i32
    %c0_i32_0 = arith.constant 0 : i32
    %c0_i32_1 = arith.constant 0 : i32
    return %c0_i32, %c0_i32_0 : i32, i32
  }
  func.func @transform_9(%arg0: i32, %arg1: memref<6xi32, #tpu.memory_space<smem>>) -> (i32, i32) {
    %c0_i32 = arith.constant 0 : i32
    %c0_i32_0 = arith.constant 0 : i32
    %c0_i32_1 = arith.constant 0 : i32
    return %c0_i32, %c0_i32_0 : i32, i32
  }
  func.func @transform_10(%arg0: i32, %arg1: memref<6xi32, #tpu.memory_space<smem>>) -> (i32, i32) {
    %c0_i32 = arith.constant 0 : i32
    %c0_i32_0 = arith.constant 0 : i32
    %c0_i32_1 = arith.constant 0 : i32
    return %c0_i32, %c0_i32_0 : i32, i32
  }
  func.func @transform_11(%arg0: i32, %arg1: memref<6xi32, #tpu.memory_space<smem>>) -> (i32, i32) {
    %c0_i32 = arith.constant 0 : i32
    %c0_i32_0 = arith.constant 0 : i32
    %c0_i32_1 = arith.constant 0 : i32
    return %c0_i32, %c0_i32_0 : i32, i32
  }
  func.func @transform_12(%arg0: i32, %arg1: memref<6xi32, #tpu.memory_space<smem>>) -> (i32, i32) {
    %c0_i32 = arith.constant 0 : i32
    %c0_i32_0 = arith.constant 0 : i32
    %c0_i32_1 = arith.constant 0 : i32
    return %c0_i32, %c0_i32_0 : i32, i32
  }
  func.func @transform_13(%arg0: i32, %arg1: memref<6xi32, #tpu.memory_space<smem>>) -> (i32, i32) {
    %c0_i32 = arith.constant 0 : i32
    %c0_i32_0 = arith.constant 0 : i32
    %c0_i32_1 = arith.constant 0 : i32
    return %c0_i32, %c0_i32_0 : i32, i32
  }
  func.func @transform_14(%arg0: i32, %arg1: memref<6xi32, #tpu.memory_space<smem>>) -> (i32, i32) {
    %c0_i32 = arith.constant 0 : i32
    %c0_i32_0 = arith.constant 0 : i32
    %c0_i32_1 = arith.constant 0 : i32
    return %c0_i32, %c0_i32_0 : i32, i32
  }
  func.func @transform_15(%arg0: i32, %arg1: memref<6xi32, #tpu.memory_space<smem>>) -> (i32, i32) {
    %c0_i32 = arith.constant 0 : i32
    %c0_i32_0 = arith.constant 0 : i32
    %c0_i32_1 = arith.constant 0 : i32
    return %c0_i32, %c0_i32_0 : i32, i32
  }
  func.func @transform_16(%arg0: i32, %arg1: memref<6xi32, #tpu.memory_space<smem>>) -> (i32, i32) {
    %c0_i32 = arith.constant 0 : i32
    %c0_i32_0 = arith.constant 0 : i32
    %c0_i32_1 = arith.constant 0 : i32
    return %c0_i32, %c0_i32_0 : i32, i32
  }
  func.func @transform_17(%arg0: i32, %arg1: memref<6xi32, #tpu.memory_space<smem>>) -> (i32, i32) {
    %c0_i32 = arith.constant 0 : i32
    %c0_i32_0 = arith.constant 0 : i32
    %c0_i32_1 = arith.constant 0 : i32
    return %c0_i32, %c0_i32_0 : i32, i32
  }
  func.func @transform_18(%arg0: i32, %arg1: memref<6xi32, #tpu.memory_space<smem>>) -> (i32, i32) {
    %c0_i32 = arith.constant 0 : i32
    %c0_i32_0 = arith.constant 0 : i32
    %c0_i32_1 = arith.constant 0 : i32
    return %c0_i32, %c0_i32_0 : i32, i32
  }
  func.func @transform_19(%arg0: i32, %arg1: memref<6xi32, #tpu.memory_space<smem>>) -> (i32, i32) {
    %c0_i32 = arith.constant 0 : i32
    %c0_i32_0 = arith.constant 0 : i32
    %c0_i32_1 = arith.constant 0 : i32
    return %c0_i32, %c0_i32_0 : i32, i32
  }
  func.func @transform_20(%arg0: i32, %arg1: memref<6xi32, #tpu.memory_space<smem>>) -> (i32, i32, i32) {
    %c0_i32 = arith.constant 0 : i32
    %c0_i32_0 = arith.constant 0 : i32
    %c0_i32_1 = arith.constant 0 : i32
    %c0_i32_2 = arith.constant 0 : i32
    return %c0_i32, %c0_i32_0, %c0_i32_1 : i32, i32, i32
  }
}

</mosaic_0001>

<llo_original>
// kernel: _ptf_jax.1
$region0: #{_ptf_jax.1}
  #allocation0 [shape = 'u32[]', space=smem, size = 0x4, offset = 0x4, fixed_abs, tag = 'smem constant byte address 0x4 - core index']
  #allocation1 [shape = 'u32[144,128]{1,0:T(1,128)}', space=vmem, size = 0x12000, scoped, tag = 'internal scratch']
  #allocation2 [shape = 'f32[8,8,128]{2,1,0:T(8,128)}', space=vmem, size = 0x8000, scoped, tag = 'scratch operand']
  #allocation3 [shape = 'f32[8,8,128]{2,1,0:T(8,128)}', space=vmem, size = 0x8000, scoped, tag = 'scratch operand']
  #allocation4 [shape = 'f32[8,8,384]{2,1,0:T(8,128)}', space=vmem, size = 0x18000, scoped, tag = 'scratch operand']
  #allocation5 [shape = 's32[1]{0}', space=sflag, size = 0x4, scoped, tag = 'scoped memory for _ptf_jax.1']
  #allocation6 [shape = 'u8[512]{0}', space=smem, size = 0x200, scoped, tag = 'prefetched SMEM operand 0']
  %s0 = inlined_call_operand.vmem [shape: s32[6], index: 0, kind: input, shape index: {}]
  %s1 = inlined_call_operand.vmem [shape: bf16[8,8,64], index: 1, kind: input, shape index: {}]
  %s2 = inlined_call_operand.vmem [shape: f32[6,8,128], index: 2, kind: input, shape index: {}]
  %s3 = inlined_call_operand.vmem [shape: f32[8,8], index: 3, kind: input, shape index: {}]
  %s4 = inlined_call_operand.hbm [shape: bf16[64,384], index: 4, kind: input, shape index: {}]
  %s5 = inlined_call_operand.hbm [shape: bf16[128,384], index: 5, kind: input, shape index: {}]
  %s6 = inlined_call_operand.vmem [shape: f32[1,384], index: 6, kind: input, shape index: {}]
  %s7 = inlined_call_operand.hbm [shape: f32[1,384], index: 7, kind: input, shape index: {}]
  %s8 = inlined_call_operand.vmem [shape: f32[8,32], index: 8, kind: input, shape index: {}]
  %s9 = inlined_call_operand.vmem [shape: f32[1,32], index: 9, kind: input, shape index: {}]
  %s10 = inlined_call_operand.hbm [shape: f32[32,128], index: 10, kind: input, shape index: {}]
  %s11 = inlined_call_operand.hbm [shape: f32[1,128], index: 11, kind: input, shape index: {}]
  %s12 = inlined_call_operand.vmem [shape: bf16[128,128], index: 12, kind: input, shape index: {}]
  %s13 = inlined_call_operand.hbm [shape: f32[1,128], index: 13, kind: input, shape index: {}]
  %s14 = inlined_call_operand.hbm [shape: bf16[128,640], index: 14, kind: input, shape index: {}]
  %s15 = inlined_call_operand.hbm [shape: f32[1,640], index: 15, kind: input, shape index: {}]
  %s16 = inlined_call_operand.vmem [shape: bf16[384,384], index: 16, kind: input, shape index: {}]
  %s17 = inlined_call_operand.hbm [shape: f32[1,384], index: 17, kind: input, shape index: {}]
  %s18 = inlined_call_operand.hbm [shape: bf16[384,128], index: 18, kind: input, shape index: {}]
  %s19 = inlined_call_operand.hbm [shape: f32[1,128], index: 19, kind: input, shape index: {}]
  %s20 = inlined_call_operand.vmem [shape: bf16[128,128], index: 20, kind: input, shape index: {}]
  %s21 = inlined_call_operand.hbm [shape: f32[6,8,128], index: 21, kind: output, shape index: {}]
  %s22 = sld [smem:[#allocation0]]
  $region134: #{_ptf_jax.1} parent=0
    _
  %s24 = ssub.s32 1, %s22
  %s25 = scalar_select 0, %s24, %s22
  %s26 = sshll.u32 %s0, 4
  %s27 = int_to_ptr.vmem [resolvable:$true] %s26
  %29 = dma.vmem_to_smem %s27, 16, [#allocation6], [#allocation5]
  %30 = dma.done [#allocation5], 16
  %31 = sfence
  $region1: #{_ptf_jax.1} parent=0
    #allocation7 [shape = 'u8[49152]{0}', space=vmem, size = 0xc000, scoped, tag = 'input window, operand 4, single buffered']
    #allocation8 [shape = 's32[1]{0}', space=sflag, size = 0x4, scoped, tag = 'scoped memory for _ptf_jax.1']
    #allocation9 [shape = 's32[1]{0}', space=sflag, size = 0x4, scoped, tag = 'scoped memory for _ptf_jax.1']
    #allocation10 [shape = 'u8[98304]{0}', space=vmem, size = 0x18000, scoped, tag = 'input window, operand 5, single buffered']
    #allocation11 [shape = 's32[1]{0}', space=sflag, size = 0x4, scoped, tag = 'scoped memory for _ptf_jax.1']
    #allocation12 [shape = 'u8[1536]{0}', space=vmem, size = 0x800, scoped, tag = 'input window, operand 7, single buffered']
    #allocation13 [shape = 'u8[16384]{0}', space=vmem, size = 0x4000, scoped, tag = 'input window, operand 10, single buffered']
    #allocation14 [shape = 's32[1]{0}', space=sflag, size = 0x4, scoped, tag = 'scoped memory for _ptf_jax.1']
    #allocation15 [shape = 'u8[512]{0}', space=vmem, size = 0x400, scoped, tag = 'input window, operand 11, single buffered']
    #allocation16 [shape = 'u8[512]{0}', space=vmem, size = 0x400, scoped, tag = 'input window, operand 13, single buffered']
    #allocation17 [shape = 's32[1]{0}', space=sflag, size = 0x4, scoped, tag = 'scoped memory for _ptf_jax.1']
    #allocation18 [shape = 'u8[163840]{0}', space=vmem, size = 0x28000, scoped, tag = 'input window, operand 14, single buffered']
    #allocation19 [shape = 'u8[2560]{0}', space=vmem, size = 0xc00, scoped, tag = 'input window, operand 15, single buffered']
    #allocation20 [shape = 's32[1]{0}', space=sflag, size = 0x4, scoped, tag = 'scoped memory for _ptf_jax.1']
    #allocation21 [shape = 'u8[1536]{0}', space=vmem, size = 0x800, scoped, tag = 'input window, operand 17, single buffered']
    #allocation22 [shape = 'u8[98304]{0}', space=vmem, size = 0x18000, scoped, tag = 'input window, operand 18, single buffered']
    #allocation23 [shape = 's32[1]{0}', space=sflag, size = 0x4, scoped, tag = 'scoped memory for _ptf_jax.1']
    #allocation24 [shape = 'u8[512]{0}', space=vmem, size = 0x400, scoped, tag = 'input window, operand 19, single buffered']
    #allocation25 [shape = 'u8[24576]{0}', space=vmem, size = 0x6000, scoped, tag = 'output window, operand 0, single buffered']
    %32 = vsyncpa [#allocation8], 0
    %33 = vsyncpa [#allocation11], 0
    %34 = vsyncpa [#allocation14], 0
    %35 = vsyncpa [#allocation17], 0
    %36 = vsyncpa [#allocation20], 0
    %37 = vsyncpa [#allocation23], 0
    %38 = vsyncpa [#allocation9], 0
    // Predicated region
    $region2: #{_ptf_jax.1} parent=1 // pred_check
      _
    $region3: #{_ptf_jax.1} parent=1 // pred_check_branch
      %40 = sbr.rel (0) target = $region5
    $region4: #{_ptf_jax.1} parent=1 // pred_region
      _
    $region5: #{_ptf_jax.1} parent=1 // pred_fallthru
      _
    // Predicated region
    $region6: #{_ptf_jax.1} parent=1 // pred_check
      _
    $region7: #{_ptf_jax.1} parent=1 // pred_check_branch
      %42 = sbr.rel (0) target = $region9
    $region8: #{_ptf_jax.1} parent=1 // pred_region
      _
    $region9: #{_ptf_jax.1} parent=1 // pred_fallthru
      _
    // Predicated region
    $region10: #{_ptf_jax.1} parent=1 // pred_check
      _
    $region11: #{_ptf_jax.1} parent=1 // pred_check_branch
      %44 = sbr.rel (0) target = $region13
    $region12: #{_ptf_jax.1} parent=1 // pred_region
      _
    $region13: #{_ptf_jax.1} parent=1 // pred_fallthru
      _
    // Predicated region
    $region14: #{_ptf_jax.1} parent=1 // pred_check
      _
    $region15: #{_ptf_jax.1} parent=1 // pred_check_branch
      %46 = sbr.rel (0) target = $region17
    $region16: #{_ptf_jax.1} parent=1 // pred_region
      %s48 = ssub.s32 1536, 1536
      %49 = vsyncadd [#allocation8], %s48
      %s50 = sshll.u32 [#allocation7], 4
      %s51 = int_to_ptr.vmem [resolvable:$true] %s50
      %56 = dma.hbm_to_vmem [thread:$0]  %s4, 1536, %s51, [#allocation8], 192, 192, 12
    $region17: #{_ptf_jax.1} parent=1 // pred_fallthru
      _
    // Predicated region
    $region18: #{_ptf_jax.1} parent=1 // pred_check
      _
    $region19: #{_ptf_jax.1} parent=1 // pred_check_branch
      %58 = sbr.rel (0) target = $region21
    $region20: #{_ptf_jax.1} parent=1 // pred_region
      %s60 = ssub.s32 3072, 3072
      %61 = vsyncadd [#allocation11], %s60
      %s62 = sshll.u32 [#allocation10], 4
      %s63 = int_to_ptr.vmem [resolvable:$true] %s62
      %68 = dma.hbm_to_vmem [thread:$0]  %s5, 3072, %s63, [#allocation11], 192, 192, 12
    $region21: #{_ptf_jax.1} parent=1 // pred_fallthru
      _
    // Predicated region
    $region22: #{_ptf_jax.1} parent=1 // pred_check
      _
    $region23: #{_ptf_jax.1} parent=1 // pred_check_branch
      %70 = sbr.rel (0) target = $region25
    $region24: #{_ptf_jax.1} parent=1 // pred_region
      _
    $region25: #{_ptf_jax.1} parent=1 // pred_fallthru
      _
    // Predicated region
    $region26: #{_ptf_jax.1} parent=1 // pred_check
      _
    $region27: #{_ptf_jax.1} parent=1 // pred_check_branch
      %72 = sbr.rel (0) target = $region29
    $region28: #{_ptf_jax.1} parent=1 // pred_region
      %s74 = ssub.s32 48, 48
      %75 = vsyncadd [#allocation11], %s74
      %s77 = sshll.u32 [#allocation12], 4
      %s78 = int_to_ptr.vmem [resolvable:$true] %s77
      %80 = dma.hbm_to_vmem [thread:$0]  %s7, 48, %s78, [#allocation11]
    $region29: #{_ptf_jax.1} parent=1 // pred_fallthru
      _
    // Predicated region
    $region30: #{_ptf_jax.1} parent=1 // pred_check
      _
    $region31: #{_ptf_jax.1} parent=1 // pred_check_branch
      %82 = sbr.rel (0) target = $region33
    $region32: #{_ptf_jax.1} parent=1 // pred_region
      _
    $region33: #{_ptf_jax.1} parent=1 // pred_fallthru
      _
    // Predicated region
    $region34: #{_ptf_jax.1} parent=1 // pred_check
      _
    $region35: #{_ptf_jax.1} parent=1 // pred_check_branch
      %84 = sbr.rel (0) target = $region37
    $region36: #{_ptf_jax.1} parent=1 // pred_region
      _
    $region37: #{_ptf_jax.1} parent=1 // pred_fallthru
      _
    // Predicated region
    $region38: #{_ptf_jax.1} parent=1 // pred_check
      _
    $region39: #{_ptf_jax.1} parent=1 // pred_check_branch
      %86 = sbr.rel (0) target = $region41
    $region40: #{_ptf_jax.1} parent=1 // pred_region
      %s88 = ssub.s32 512, 512
      %89 = vsyncadd [#allocation14], %s88
      %s90 = sshll.u32 [#allocation13], 4
      %s91 = int_to_ptr.vmem [resolvable:$true] %s90
      %96 = dma.hbm_to_vmem [thread:$0]  %s10, 512, %s91, [#allocation14], 128, 128, 8
    $region41: #{_ptf_jax.1} parent=1 // pred_fallthru
      _
    // Predicated region
    $region42: #{_ptf_jax.1} parent=1 // pred_check
      _
    $region43: #{_ptf_jax.1} parent=1 // pred_check_branch
      %98 = sbr.rel (0) target = $region45
    $region44: #{_ptf_jax.1} parent=1 // pred_region
      %s100 = ssub.s32 16, 16
      %101 = vsyncadd [#allocation14], %s100
      %s103 = sshll.u32 [#allocation15], 4
      %s104 = int_to_ptr.vmem [resolvable:$true] %s103
      %106 = dma.hbm_to_vmem [thread:$0]  %s11, 16, %s104, [#allocation14]
    $region45: #{_ptf_jax.1} parent=1 // pred_fallthru
      _
    // Predicated region
    $region46: #{_ptf_jax.1} parent=1 // pred_check
      _
    $region47: #{_ptf_jax.1} parent=1 // pred_check_branch
      %108 = sbr.rel (0) target = $region49
    $region48: #{_ptf_jax.1} parent=1 // pred_region
      _
    $region49: #{_ptf_jax.1} parent=1 // pred_fallthru
      _
    // Predicated region
    $region50: #{_ptf_jax.1} parent=1 // pred_check
      _
    $region51: #{_ptf_jax.1} parent=1 // pred_check_branch
      %110 = sbr.rel (0) target = $region53
    $region52: #{_ptf_jax.1} parent=1 // pred_region
      %s112 = ssub.s32 16, 16
      %113 = vsyncadd [#allocation17], %s112
      %s115 = sshll.u32 [#allocation16], 4
      %s116 = int_to_ptr.vmem [resolvable:$true] %s115
      %118 = dma.hbm_to_vmem [thread:$0]  %s13, 16, %s116, [#allocation17]
    $region53: #{_ptf_jax.1} parent=1 // pred_fallthru
      _
    // Predicated region
    $region54: #{_ptf_jax.1} parent=1 // pred_check
      _
    $region55: #{_ptf_jax.1} parent=1 // pred_check_branch
      %120 = sbr.rel (0) target = $region57
    $region56: #{_ptf_jax.1} parent=1 // pred_region
      %s122 = ssub.s32 5120, 5120
      %123 = vsyncadd [#allocation17], %s122
      %s124 = sshll.u32 [#allocation18], 4
      %s125 = int_to_ptr.vmem [resolvable:$true] %s124
      %130 = dma.hbm_to_vmem [thread:$0]  %s14, 5120, %s125, [#allocation17], 320, 320, 20
    $region57: #{_ptf_jax.1} parent=1 // pred_fallthru
      _
    // Predicated region
    $region58: #{_ptf_jax.1} parent=1 // pred_check
      _
    $region59: #{_ptf_jax.1} parent=1 // pred_check_branch
      %132 = sbr.rel (0) target = $region61
    $region60: #{_ptf_jax.1} parent=1 // pred_region
      %s134 = ssub.s32 80, 80
      %135 = vsyncadd [#allocation20], %s134
      %s137 = sshll.u32 [#allocation19], 4
      %s138 = int_to_ptr.vmem [resolvable:$true] %s137
      %140 = dma.hbm_to_vmem [thread:$0]  %s15, 80, %s138, [#allocation20]
    $region61: #{_ptf_jax.1} parent=1 // pred_fallthru
      _
    // Predicated region
    $region62: #{_ptf_jax.1} parent=1 // pred_check
      _
    $region63: #{_ptf_jax.1} parent=1 // pred_check_branch
      %142 = sbr.rel (0) target = $region65
    $region64: #{_ptf_jax.1} parent=1 // pred_region
      _
    $region65: #{_ptf_jax.1} parent=1 // pred_fallthru
      _
    // Predicated region
    $region66: #{_ptf_jax.1} parent=1 // pred_check
      _
    $region67: #{_ptf_jax.1} parent=1 // pred_check_branch
      %144 = sbr.rel (0) target = $region69
    $region68: #{_ptf_jax.1} parent=1 // pred_region
      %s146 = ssub.s32 48, 48
      %147 = vsyncadd [#allocation20], %s146
      %s149 = sshll.u32 [#allocation21], 4
      %s150 = int_to_ptr.vmem [resolvable:$true] %s149
      %152 = dma.hbm_to_vmem [thread:$0]  %s17, 48, %s150, [#allocation20]
    $region69: #{_ptf_jax.1} parent=1 // pred_fallthru
      _
    // Predicated region
    $region70: #{_ptf_jax.1} parent=1 // pred_check
      _
    $region71: #{_ptf_jax.1} parent=1 // pred_check_branch
      %154 = sbr.rel (0) target = $region73
    $region72: #{_ptf_jax.1} parent=1 // pred_region
      %s156 = ssub.s32 3072, 3072
      %157 = vsyncadd [#allocation23], %s156
      %s158 = sshll.u32 [#allocation22], 4
      %s159 = int_to_ptr.vmem [resolvable:$true] %s158
      %164 = dma.hbm_to_vmem [thread:$0]  %s18, 3072, %s159, [#allocation23], 64, 64, 4
    $region73: #{_ptf_jax.1} parent=1 // pred_fallthru
      _
    // Predicated region
    $region74: #{_ptf_jax.1} parent=1 // pred_check
      _
    $region75: #{_ptf_jax.1} parent=1 // pred_check_branch
      %166 = sbr.rel (0) target = $region77
    $region76: #{_ptf_jax.1} parent=1 // pred_region
      %s168 = ssub.s32 16, 16
      %169 = vsyncadd [#allocation23], %s168
      %s171 = sshll.u32 [#allocation24], 4
      %s172 = int_to_ptr.vmem [resolvable:$true] %s171
      %174 = dma.hbm_to_vmem [thread:$0]  %s19, 16, %s172, [#allocation23]
    $region77: #{_ptf_jax.1} parent=1 // pred_fallthru
      _
    // Predicated region
    $region78: #{_ptf_jax.1} parent=1 // pred_check
      _
    $region79: #{_ptf_jax.1} parent=1 // pred_check_branch
      %176 = sbr.rel (0) target = $region81
    $region80: #{_ptf_jax.1} parent=1 // pred_region
      _
    $region81: #{_ptf_jax.1} parent=1 // pred_fallthru
      _
    // Predicated region
    $region82: #{_ptf_jax.1} parent=1 // pred_check
      _
    $region83: #{_ptf_jax.1} parent=1 // pred_check_branch
      %178 = sbr.rel (0) target = $region85
    $region84: #{_ptf_jax.1} parent=1 // pred_region
      %179 = dma.done [#allocation8], 1536
    $region85: #{_ptf_jax.1} parent=1 // pred_fallthru
      _
    // Predicated region
    $region86: #{_ptf_jax.1} parent=1 // pred_check
      _
    $region87: #{_ptf_jax.1} parent=1 // pred_check_branch
      %181 = sbr.rel (0) target = $region89
    $region88: #{_ptf_jax.1} parent=1 // pred_region
      %182 = dma.done [#allocation11], 3072
    $region89: #{_ptf_jax.1} parent=1 // pred_fallthru
      _
    // Predicated region
    $region90: #{_ptf_jax.1} parent=1 // pred_check
      _
    $region91: #{_ptf_jax.1} parent=1 // pred_check_branch
      %184 = sbr.rel (0) target = $region93
    $region92: #{_ptf_jax.1} parent=1 // pred_region
      %185 = dma.done [#allocation11], 48
    $region93: #{_ptf_jax.1} parent=1 // pred_fallthru
      _
    // Predicated region
    $region94: #{_ptf_jax.1} parent=1 // pred_check
      _
    $region95: #{_ptf_jax.1} parent=1 // pred_check_branch
      %187 = sbr.rel (0) target = $region97
    $region96: #{_ptf_jax.1} parent=1 // pred_region
      %188 = dma.done [#allocation14], 512
    $region97: #{_ptf_jax.1} parent=1 // pred_fallthru
      _
    // Predicated region
    $region98: #{_ptf_jax.1} parent=1 // pred_check
      _
    $region99: #{_ptf_jax.1} parent=1 // pred_check_branch
      %190 = sbr.rel (0) target = $region101
    $region100: #{_ptf_jax.1} parent=1 // pred_region
      %191 = dma.done [#allocation14], 16
    $region101: #{_ptf_jax.1} parent=1 // pred_fallthru
      _
    // Predicated region
    $region102: #{_ptf_jax.1} parent=1 // pred_check
      _
    $region103: #{_ptf_jax.1} parent=1 // pred_check_branch
      %193 = sbr.rel (0) target = $region105
    $region104: #{_ptf_jax.1} parent=1 // pred_region
      %194 = dma.done [#allocation17], 16
    $region105: #{_ptf_jax.1} parent=1 // pred_fallthru
      _
    // Predicated region
    $region106: #{_ptf_jax.1} parent=1 // pred_check
      _
    $region107: #{_ptf_jax.1} parent=1 // pred_check_branch
      %196 = sbr.rel (0) target = $region109
    $region108: #{_ptf_jax.1} parent=1 // pred_region
      %197 = dma.done [#allocation17], 5120
    $region109: #{_ptf_jax.1} parent=1 // pred_fallthru
      _
    // Predicated region
    $region110: #{_ptf_jax.1} parent=1 // pred_check
      _
    $region111: #{_ptf_jax.1} parent=1 // pred_check_branch
      %199 = sbr.rel (0) target = $region113
    $region112: #{_ptf_jax.1} parent=1 // pred_region
      %200 = dma.done [#allocation20], 80
    $region113: #{_ptf_jax.1} parent=1 // pred_fallthru
      _
    // Predicated region
    $region114: #{_ptf_jax.1} parent=1 // pred_check
      _
    $region115: #{_ptf_jax.1} parent=1 // pred_check_branch
      %202 = sbr.rel (0) target = $region117
    $region116: #{_ptf_jax.1} parent=1 // pred_region
      %203 = dma.done [#allocation20], 48
    $region117: #{_ptf_jax.1} parent=1 // pred_fallthru
      _
    // Predicated region
    $region118: #{_ptf_jax.1} parent=1 // pred_check
      _
    $region119: #{_ptf_jax.1} parent=1 // pred_check_branch
      %205 = sbr.rel (0) target = $region121
    $region120: #{_ptf_jax.1} parent=1 // pred_region
      %206 = dma.done [#allocation23], 3072
    $region121: #{_ptf_jax.1} parent=1 // pred_fallthru
      _
    // Predicated region
    $region122: #{_ptf_jax.1} parent=1 // pred_check
      _
    $region123: #{_ptf_jax.1} parent=1 // pred_check_branch
      %208 = sbr.rel (0) target = $region125
    $region124: #{_ptf_jax.1} parent=1 // pred_region
      %209 = dma.done [#allocation23], 16
    $region125: #{_ptf_jax.1} parent=1 // pred_fallthru
      _
    %v211 = vld [vmem:[%s1] sm:$0xf]
    %v212 = vld [vmem:[%s1 + $0x4] sm:$0xf]
    %v213 = vld [vmem:[%s1 + $0x8] sm:$0xf]
    %v214 = vld [vmem:[%s1 + $0xc] sm:$0xf]
    %v215 = vld [vmem:[%s1 + $0x10] sm:$0xf]
    %v216 = vld [vmem:[%s1 + $0x14] sm:$0xf]
    %v217 = vld [vmem:[%s1 + $0x18] sm:$0xf]
    %v218 = vld [vmem:[%s1 + $0x1c] sm:$0xf]
    %v219 = vld [vmem:[#allocation7] sm:$0xff]
    %v220 = vld [vmem:[#allocation7 + $0x8] sm:$0xf]
    %v221 = vld [vmem:[#allocation7 + $0xc] sm:$0xff]
    %v222 = vld [vmem:[#allocation7 + $0x14] sm:$0xf]
    %v223 = vld [vmem:[#allocation7 + $0x18] sm:$0xff]
    %v224 = vld [vmem:[#allocation7 + $0x20] sm:$0xf]
    %v225 = vld [vmem:[#allocation7 + $0x24] sm:$0xff]
    %v226 = vld [vmem:[#allocation7 + $0x2c] sm:$0xf]
    %v227 = vld [vmem:[#allocation7 + $0x30] sm:$0xff]
    %v228 = vld [vmem:[#allocation7 + $0x38] sm:$0xf]
    %v229 = vld [vmem:[#allocation7 + $0x3c] sm:$0xff]
    %v230 = vld [vmem:[#allocation7 + $0x44] sm:$0xf]
    %v231 = vld [vmem:[#allocation7 + $0x48] sm:$0xff]
    %v232 = vld [vmem:[#allocation7 + $0x50] sm:$0xf]
    %v233 = vld [vmem:[#allocation7 + $0x54] sm:$0xff]
    %v234 = vld [vmem:[#allocation7 + $0x5c] sm:$0xf]
    %v235 = vld [vmem:[%s6] sm:$0x7]
    %v237 = vlaneseq
    %v238 = vshrl.u32 %v237, 7
    %v239 = vsub.s32 0, %v238
    %v240 = vrot.slane %v235, %v239
    %v241 = vlaneseq
    %v242 = vshrl.u32 %v241, 7
    %v243 = vsub.s32 1, %v242
    %v244 = vrot.slane %v235, %v243
    %v245 = vlaneseq
    %v246 = vshrl.u32 %v245, 7
    %v247 = vsub.s32 2, %v246
    %v248 = vrot.slane %v235, %v247
    %v260 = vunpack.c.l.b16 %v211
    %v261 = vunpack.c.l.b16 %v212
    %v262 = vunpack.c.l.b16 %v213
    %v263 = vunpack.c.l.b16 %v214
    %v264 = vunpack.c.l.b16 %v215
    %v265 = vunpack.c.l.b16 %v216
    %v266 = vunpack.c.l.b16 %v217
    %v267 = vunpack.c.l.b16 %v218
    %v268 = vpack.c.b16 %v261, %v260
    %v269 = vpack.c.b16 %v263, %v262
    %v270 = vpack.c.b16 %v265, %v264
    %v271 = vpack.c.b16 %v267, %v266
    %v288 = vunpack.c.l.b16 %v219
    %v289 = vunpack.c.h.b16 %v219
    %v290 = vunpack.c.l.b16 %v220
    %v291 = vunpack.c.l.b16 %v221
    %v292 = vunpack.c.h.b16 %v221
    %v293 = vunpack.c.l.b16 %v222
    %v294 = vunpack.c.l.b16 %v223
    %v295 = vunpack.c.h.b16 %v223
    %v296 = vunpack.c.l.b16 %v224
    %v297 = vunpack.c.l.b16 %v225
    %v298 = vunpack.c.h.b16 %v225
    %v299 = vunpack.c.l.b16 %v226
    %v300 = vunpack.c.l.b16 %v227
    %v301 = vunpack.c.h.b16 %v227
    %v302 = vunpack.c.l.b16 %v228
    %v303 = vunpack.c.l.b16 %v229
    %v304 = vunpack.c.h.b16 %v229
    %v305 = vunpack.c.l.b16 %v230
    %v306 = vunpack.c.l.b16 %v231
    %v307 = vunpack.c.h.b16 %v231
    %v308 = vunpack.c.l.b16 %v232
    %v309 = vunpack.c.l.b16 %v233
    %v310 = vunpack.c.h.b16 %v233
    %v311 = vunpack.c.l.b16 %v234
    %v312 = vpack.c.b16 %v291, %v288
    %v313 = vpack.c.b16 %v292, %v289
    %v314 = vpack.c.b16 %v293, %v290
    %v315 = vpack.c.b16 %v297, %v294
    %v316 = vpack.c.b16 %v298, %v295
    %v317 = vpack.c.b16 %v299, %v296
    %v318 = vpack.c.b16 %v303, %v300
    %v319 = vpack.c.b16 %v304, %v301
    %v320 = vpack.c.b16 %v305, %v302
    %v321 = vpack.c.b16 %v309, %v306
    %v322 = vpack.c.b16 %v310, %v307
    %v323 = vpack.c.b16 %v311, %v308
    %vm336 = vcmask 523264
    %v338 = vsel %vm336, %v268, 0
    %v341 = vsel %vm336, %v269, 0
    %v344 = vsel %vm336, %v270, 0
    %v347 = vsel %vm336, %v271, 0
    %349 = vmatprep.subr.bf16.mxu0 %v313
    %350 = vmatpush1.bf16.msra.mxu0 %v312
    %351 = vmatprep.subr.bf16.mxu0 %v316
    %352 = vmatpush1.bf16.msra.mxu0 %v315
    %353 = vmatprep.subr.bf16.mxu0 %v319
    %354 = vmatpush1.bf16.msra.mxu0 %v318
    %355 = vmatprep.subr.bf16.mxu0 %v322
    %356 = vmatpush1.bf16.msra.mxu0 %v321
    %357 = vmatprep.subr.bf16.mxu0 0
    %358 = vmatpush1.bf16.msra.mxu0 0
    %359 = vmatprep.subr.bf16.mxu0 0
    %360 = vmatpush1.bf16.msra.mxu0 0
    %361 = vmatprep.subr.bf16.mxu0 0
    %362 = vmatpush1.bf16.msra.mxu0 0
    %363 = vmatprep.subr.bf16.mxu0 0
    %364 = vmatpush1.bf16.msra.mxu0 0
    %365 = vmatprep.subr.bf16.mxu0 0
    %366 = vmatpush1.bf16.msra.mxu0 0
    %367 = vmatprep.subr.bf16.mxu0 0
    %368 = vmatpush1.bf16.msra.mxu0 0
    %369 = vmatprep.subr.bf16.mxu0 0
    %370 = vmatpush1.bf16.msra.mxu0 0
    %371 = vmatprep.subr.bf16.mxu0 0
    %372 = vmatpush1.bf16.msra.mxu0 0
    %373 = vmatprep.subr.bf16.mxu0 0
    %374 = vmatpush1.bf16.msra.mxu0 0
    %375 = vmatprep.subr.bf16.mxu0 0
    %376 = vmatpush1.bf16.msra.mxu0 0
    %377 = vmatprep.subr.bf16.mxu0 0
    %378 = vmatpush1.bf16.msra.mxu0 0
    %379 = vmatprep.subr.bf16.mxu0 0
    %380 = vmatpush1.bf16.msra.mxu0 0
    %381 = vmatprep.mubr.bf16.mxu0 0
    %382 = vmatmul.mubr.bf16.gmra.mrb[0].mxu0 %v338
    %v383 = vpop.f32.mrb[0].mxu0
    %v384 = vadd.f32 %v240, %v383
    %v385 = vpop.f32.mrb[0].mxu0
    %v386 = vadd.f32 %v244, %v385
    %v387 = vpop.f32.mrb[0].mxu0
    %v388 = vadd.f32 %v240, %v387
    %v389 = vpop.f32.mrb[0].mxu0
    %v390 = vadd.f32 %v244, %v389
    %391 = vmatprep.mubr.bf16.mxu0 0
    %392 = vmatmul.mubr.bf16.gmra.mrb[0].mxu0 %v341
    %v393 = vpop.f32.mrb[0].mxu0
    %v394 = vadd.f32 %v240, %v393
    %v395 = vpop.f32.mrb[0].mxu0
    %v396 = vadd.f32 %v244, %v395
    %v397 = vpop.f32.mrb[0].mxu0
    %v398 = vadd.f32 %v240, %v397
    %v399 = vpop.f32.mrb[0].mxu0
    %v400 = vadd.f32 %v244, %v399
    %401 = vmatprep.mubr.bf16.mxu0 0
    %402 = vmatmul.mubr.bf16.gmra.mrb[0].mxu0 %v344
    %v403 = vpop.f32.mrb[0].mxu0
    %v404 = vadd.f32 %v240, %v403
    %v405 = vpop.f32.mrb[0].mxu0
    %v406 = vadd.f32 %v244, %v405
    %v407 = vpop.f32.mrb[0].mxu0
    %v408 = vadd.f32 %v240, %v407
    %v409 = vpop.f32.mrb[0].mxu0
    %v410 = vadd.f32 %v244, %v409
    %411 = vmatprep.mubr.bf16.mxu0 0
    %412 = vmatmul.mubr.bf16.gmra.mrb[0].mxu0 %v347
    %v413 = vpop.f32.mrb[0].mxu0
    %v414 = vadd.f32 %v240, %v413
    %v415 = vpop.f32.mrb[0].mxu0
    %v416 = vadd.f32 %v244, %v415
    %v417 = vpop.f32.mrb[0].mxu0
    %v418 = vadd.f32 %v240, %v417
    %v419 = vpop.f32.mrb[0].mxu0
    %v420 = vadd.f32 %v244, %v419
    %421 = vdwg.mxu0
    %422 = vmatprep.subr.bf16.mxu0 0
    %423 = vmatpush1.bf16.msra.mxu0 %v314
    %424 = vmatprep.subr.bf16.mxu0 0
    %425 = vmatpush1.bf16.msra.mxu0 %v317
    %426 = vmatprep.subr.bf16.mxu0 0
    %427 = vmatpush1.bf16.msra.mxu0 %v320
    %428 = vmatprep.subr.bf16.mxu0 0
    %429 = vmatpush1.bf16.msra.mxu0 %v323
    %430 = vmatprep.subr.bf16.mxu0 0
    %431 = vmatpush1.bf16.msra.mxu0 0
    %432 = vmatprep.subr.bf16.mxu0 0
    %433 = vmatpush1.bf16.msra.mxu0 0
    %434 = vmatprep.subr.bf16.mxu0 0
    %435 = vmatpush1.bf16.msra.mxu0 0
    %436 = vmatprep.subr.bf16.mxu0 0
    %437 = vmatpush1.bf16.msra.mxu0 0
    %438 = vmatprep.subr.bf16.mxu0 0
    %439 = vmatpush1.bf16.msra.mxu0 0
    %440 = vmatprep.subr.bf16.mxu0 0
    %441 = vmatpush1.bf16.msra.mxu0 0
    %442 = vmatprep.subr.bf16.mxu0 0
    %443 = vmatpush1.bf16.msra.mxu0 0
    %444 = vmatprep.subr.bf16.mxu0 0
    %445 = vmatpush1.bf16.msra.mxu0 0
    %446 = vmatprep.subr.bf16.mxu0 0
    %447 = vmatpush1.bf16.msra.mxu0 0
    %448 = vmatprep.subr.bf16.mxu0 0
    %449 = vmatpush1.bf16.msra.mxu0 0
    %450 = vmatprep.subr.bf16.mxu0 0
    %451 = vmatpush1.bf16.msra.mxu0 0
    %452 = vmatprep.subr.bf16.mxu0 0
    %453 = vmatpush1.bf16.msra.mxu0 0
    %454 = vmatprep.mubr.bf16.mxu0 0
    %455 = vmatmul.mubr.bf16.gmra.mrb[0].mxu0 %v338
    %v456 = vpop.f32.mrb[0].mxu0
    %v457 = vadd.f32 %v248, %v456
    %v458 = vpop.f32.mrb[0].mxu0
    %v459 = vpop.f32.mrb[0].mxu0
    %v460 = vadd.f32 %v248, %v459
    %v461 = vpop.f32.mrb[0].mxu0
    %462 = vmatprep.mubr.bf16.mxu0 0
    %463 = vmatmul.mubr.bf16.gmra.mrb[0].mxu0 %v341
    %v464 = vpop.f32.mrb[0].mxu0
    %v465 = vadd.f32 %v248, %v464
    %v466 = vpop.f32.mrb[0].mxu0
    %v467 = vpop.f32.mrb[0].mxu0
    %v468 = vadd.f32 %v248, %v467
    %v469 = vpop.f32.mrb[0].mxu0
    %470 = vmatprep.mubr.bf16.mxu0 0
    %471 = vmatmul.mubr.bf16.gmra.mrb[0].mxu0 %v344
    %v472 = vpop.f32.mrb[0].mxu0
    %v473 = vadd.f32 %v248, %v472
    %v474 = vpop.f32.mrb[0].mxu0
    %v475 = vpop.f32.mrb[0].mxu0
    %v476 = vadd.f32 %v248, %v475
    %v477 = vpop.f32.mrb[0].mxu0
    %478 = vmatprep.mubr.bf16.mxu0 0
    %479 = vmatmul.mubr.bf16.gmra.mrb[0].mxu0 %v347
    %v480 = vpop.f32.mrb[0].mxu0
    %v481 = vadd.f32 %v248, %v480
    %v482 = vpop.f32.mrb[0].mxu0
    %v483 = vpop.f32.mrb[0].mxu0
    %v484 = vadd.f32 %v248, %v483
    %v485 = vpop.f32.mrb[0].mxu0
    %486 = vdwg.mxu0
    %487 = vst [vmem:[#allocation4] sm:$0xff] %v384
    %488 = vst [vmem:[#allocation4 + $0x8] sm:$0xff] %v386
    %489 = vst [vmem:[#allocation4 + $0x10] sm:$0xff] %v457
    %490 = vst [vmem:[#allocation4 + $0x18] sm:$0xff] %v388
    %491 = vst [vmem:[#allocation4 + $0x20] sm:$0xff] %v390
    %492 = vst [vmem:[#allocation4 + $0x28] sm:$0xff] %v460
    %493 = vst [vmem:[#allocation4 + $0x30] sm:$0xff] %v394
    %494 = vst [vmem:[#allocation4 + $0x38] sm:$0xff] %v396
    %495 = vst [vmem:[#allocation4 + $0x40] sm:$0xff] %v465
    %496 = vst [vmem:[#allocation4 + $0x48] sm:$0xff] %v398
    %497 = vst [vmem:[#allocation4 + $0x50] sm:$0xff] %v400
    %498 = vst [vmem:[#allocation4 + $0x58] sm:$0xff] %v468
    %499 = vst [vmem:[#allocation4 + $0x60] sm:$0xff] %v404
    %500 = vst [vmem:[#allocation4 + $0x68] sm:$0xff] %v406
    %501 = vst [vmem:[#allocation4 + $0x70] sm:$0xff] %v473
    %502 = vst [vmem:[#allocation4 + $0x78] sm:$0xff] %v408
    %503 = vst [vmem:[#allocation4 + $0x80] sm:$0xff] %v410
    %504 = vst [vmem:[#allocation4 + $0x88] sm:$0xff] %v476
    %505 = vst [vmem:[#allocation4 + $0x90] sm:$0xff] %v414
    %506 = vst [vmem:[#allocation4 + $0x98] sm:$0xff] %v416
    %507 = vst [vmem:[#allocation4 + $0xa0] sm:$0xff] %v481
    %508 = vst [vmem:[#allocation4 + $0xa8] sm:$0xff] %v418
    %509 = vst [vmem:[#allocation4 + $0xb0] sm:$0xff] %v420
    %510 = vst [vmem:[#allocation4 + $0xb8] sm:$0xff] %v484
    %v511 = vld [vmem:[#allocation10] sm:$0xff]
    %v512 = vld [vmem:[#allocation10 + $0x8] sm:$0xf]
    %v513 = vld [vmem:[#allocation10 + $0xc] sm:$0xff]
    %v514 = vld [vmem:[#allocation10 + $0x14] sm:$0xf]
    %v515 = vld [vmem:[#allocation10 + $0x18] sm:$0xff]
    %v516 = vld [vmem:[#allocation10 + $0x20] sm:$0xf]
    %v517 = vld [vmem:[#allocation10 + $0x24] sm:$0xff]
    %v518 = vld [vmem:[#allocation10 + $0x2c] sm:$0xf]
    %v519 = vld [vmem:[#allocation10 + $0x30] sm:$0xff]
    %v520 = vld [vmem:[#allocation10 + $0x38] sm:$0xf]
    %v521 = vld [vmem:[#allocation10 + $0x3c] sm:$0xff]
    %v522 = vld [vmem:[#allocation10 + $0x44] sm:$0xf]
    %v523 = vld [vmem:[#allocation10 + $0x48] sm:$0xff]
    %v524 = vld [vmem:[#allocation10 + $0x50] sm:$0xf]
    %v525 = vld [vmem:[#allocation10 + $0x54] sm:$0xff]
    %v526 = vld [vmem:[#allocation10 + $0x5c] sm:$0xf]
    %v527 = vld [vmem:[#allocation10 + $0x60] sm:$0xff]
    %v528 = vld [vmem:[#allocation10 + $0x68] sm:$0xf]
    %v529 = vld [vmem:[#allocation10 + $0x6c] sm:$0xff]
    %v530 = vld [vmem:[#allocation10 + $0x74] sm:$0xf]
    %v531 = vld [vmem:[#allocation10 + $0x78] sm:$0xff]
    %v532 = vld [vmem:[#allocation10 + $0x80] sm:$0xf]
    %v533 = vld [vmem:[#allocation10 + $0x84] sm:$0xff]
    %v534 = vld [vmem:[#allocation10 + $0x8c] sm:$0xf]
    %v535 = vld [vmem:[#allocation10 + $0x90] sm:$0xff]
    %v536 = vld [vmem:[#allocation10 + $0x98] sm:$0xf]
    %v537 = vld [vmem:[#allocation10 + $0x9c] sm:$0xff]
    %v538 = vld [vmem:[#allocation10 + $0xa4] sm:$0xf]
    %v539 = vld [vmem:[#allocation10 + $0xa8] sm:$0xff]
    %v540 = vld [vmem:[#allocation10 + $0xb0] sm:$0xf]
    %v541 = vld [vmem:[#allocation10 + $0xb4] sm:$0xff]
    %v542 = vld [vmem:[#allocation10 + $0xbc] sm:$0xf]
    %v543 = vld [vmem:[#allocation12] sm:$0x7]
    %v545 = vlaneseq
    %v546 = vshrl.u32 %v545, 7
    %v547 = vsub.s32 0, %v546
    %v548 = vrot.slane %v543, %v547
    %v549 = vlaneseq
    %v550 = vshrl.u32 %v549, 7
    %v551 = vsub.s32 1, %v550
    %v552 = vrot.slane %v543, %v551
    %v553 = vlaneseq
    %v554 = vshrl.u32 %v553, 7
    %v555 = vsub.s32 2, %v554
    %v556 = vrot.slane %v543, %v555
    %v592 = vunpack.c.l.b16 %v511
    %v593 = vunpack.c.h.b16 %v511
    %v594 = vunpack.c.l.b16 %v512
    %v595 = vunpack.c.l.b16 %v513
    %v596 = vunpack.c.h.b16 %v513
    %v597 = vunpack.c.l.b16 %v514
    %v598 = vunpack.c.l.b16 %v515
    %v599 = vunpack.c.h.b16 %v515
    %v600 = vunpack.c.l.b16 %v516
    %v601 = vunpack.c.l.b16 %v517
    %v602 = vunpack.c.h.b16 %v517
    %v603 = vunpack.c.l.b16 %v518
    %v604 = vunpack.c.l.b16 %v519
    %v605 = vunpack.c.h.b16 %v519
    %v606 = vunpack.c.l.b16 %v520
    %v607 = vunpack.c.l.b16 %v521
    %v608 = vunpack.c.h.b16 %v521
    %v609 = vunpack.c.l.b16 %v522
    %v610 = vunpack.c.l.b16 %v523
    %v611 = vunpack.c.h.b16 %v523
    %v612 = vunpack.c.l.b16 %v524
    %v613 = vunpack.c.l.b16 %v525
    %v614 = vunpack.c.h.b16 %v525
    %v615 = vunpack.c.l.b16 %v526
    %v616 = vunpack.c.l.b16 %v527
    %v617 = vunpack.c.h.b16 %v527
    %v618 = vunpack.c.l.b16 %v528
    %v619 = vunpack.c.l.b16 %v529
    %v620 = vunpack.c.h.b16 %v529
    %v621 = vunpack.c.l.b16 %v530
    %v622 = vunpack.c.l.b16 %v531
    %v623 = vunpack.c.h.b16 %v531
    %v624 = vunpack.c.l.b16 %v532
    %v625 = vunpack.c.l.b16 %v533
    %v626 = vunpack.c.h.b16 %v533
    %v627 = vunpack.c.l.b16 %v534
    %v628 = vunpack.c.l.b16 %v535
    %v629 = vunpack.c.h.b16 %v535
    %v630 = vunpack.c.l.b16 %v536
    %v631 = vunpack.c.l.b16 %v537
    %v632 = vunpack.c.h.b16 %v537
    %v633 = vunpack.c.l.b16 %v538
    %v634 = vunpack.c.l.b16 %v539
    %v635 = vunpack.c.h.b16 %v539
    %v636 = vunpack.c.l.b16 %v540
    %v637 = vunpack.c.l.b16 %v541
    %v638 = vunpack.c.h.b16 %v541
    %v639 = vunpack.c.l.b16 %v542
    %v640 = vpack.c.b16 %v595, %v592
    %v641 = vpack.c.b16 %v596, %v593
    %v642 = vpack.c.b16 %v597, %v594
    %v643 = vpack.c.b16 %v601, %v598
    %v644 = vpack.c.b16 %v602, %v599
    %v645 = vpack.c.b16 %v603, %v600
    %v646 = vpack.c.b16 %v607, %v604
    %v647 = vpack.c.b16 %v608, %v605
    %v648 = vpack.c.b16 %v609, %v606
    %v649 = vpack.c.b16 %v613, %v610
    %v650 = vpack.c.b16 %v614, %v611
    %v651 = vpack.c.b16 %v615, %v612
    %v652 = vpack.c.b16 %v619, %v616
    %v653 = vpack.c.b16 %v620, %v617
    %v654 = vpack.c.b16 %v621, %v618
    %v655 = vpack.c.b16 %v625, %v622
    %v656 = vpack.c.b16 %v626, %v623
    %v657 = vpack.c.b16 %v627, %v624
    %v658 = vpack.c.b16 %v631, %v628
    %v659 = vpack.c.b16 %v632, %v629
    %v660 = vpack.c.b16 %v633, %v630
    %v661 = vpack.c.b16 %v637, %v634
    %v662 = vpack.c.b16 %v638, %v635
    %v663 = vpack.c.b16 %v639, %v636
    %688 = vmatprep.subr.bf16.mxu0 %v641
    %689 = vmatpush1.bf16.msra.mxu0 %v640
    %690 = vmatprep.subr.bf16.mxu0 %v644
    %691 = vmatpush1.bf16.msra.mxu0 %v643
    %692 = vmatprep.subr.bf16.mxu0 %v647
    %693 = vmatpush1.bf16.msra.mxu0 %v646
    %694 = vmatprep.subr.bf16.mxu0 %v650
    %695 = vmatpush1.bf16.msra.mxu0 %v649
    %696 = vmatprep.subr.bf16.mxu0 %v653
    %697 = vmatpush1.bf16.msra.mxu0 %v652
    %698 = vmatprep.subr.bf16.mxu0 %v656
    %699 = vmatpush1.bf16.msra.mxu0 %v655
    %700 = vmatprep.subr.bf16.mxu0 %v659
    %701 = vmatpush1.bf16.msra.mxu0 %v658
    %702 = vmatprep.subr.bf16.mxu0 %v662
    %703 = vmatpush1.bf16.msra.mxu0 %v661
    %704 = vmatprep.subr.bf16.mxu0 0
    %705 = vmatpush1.bf16.msra.mxu0 0
    %706 = vmatprep.subr.bf16.mxu0 0
    %707 = vmatpush1.bf16.msra.mxu0 0
    %708 = vmatprep.subr.bf16.mxu0 0
    %709 = vmatpush1.bf16.msra.mxu0 0
    %710 = vmatprep.subr.bf16.mxu0 0
    %711 = vmatpush1.bf16.msra.mxu0 0
    %712 = vmatprep.subr.bf16.mxu0 0
    %713 = vmatpush1.bf16.msra.mxu0 0
    %714 = vmatprep.subr.bf16.mxu0 0
    %715 = vmatpush1.bf16.msra.mxu0 0
    %716 = vmatprep.subr.bf16.mxu0 0
    %717 = vmatpush1.bf16.msra.mxu0 0
    %718 = vmatprep.subr.bf16.mxu0 0
    %719 = vmatpush1.bf16.msra.mxu0 0
    %720 = vmatprep.mubr.bf16.mxu0 0
    %721 = vmatmul.mubr.bf16.gmra.mrb[0].mxu0 0
    %v722 = vpop.f32.mrb[0].mxu0
    %v723 = vadd.f32 %v548, %v722
    %v724 = vpop.f32.mrb[0].mxu0
    %v725 = vadd.f32 %v552, %v724
    %v726 = vpop.f32.mrb[0].mxu0
    %v727 = vpop.f32.mrb[0].mxu0
    %728 = vdwg.mxu0
    %729 = vmatprep.subr.bf16.mxu0 0
    %730 = vmatpush1.bf16.msra.mxu0 %v642
    %731 = vmatprep.subr.bf16.mxu0 0
    %732 = vmatpush1.bf16.msra.mxu0 %v645
    %733 = vmatprep.subr.bf16.mxu0 0
    %734 = vmatpush1.bf16.msra.mxu0 %v648
    %735 = vmatprep.subr.bf16.mxu0 0
    %736 = vmatpush1.bf16.msra.mxu0 %v651
    %737 = vmatprep.subr.bf16.mxu0 0
    %738 = vmatpush1.bf16.msra.mxu0 %v654
    %739 = vmatprep.subr.bf16.mxu0 0
    %740 = vmatpush1.bf16.msra.mxu0 %v657
    %741 = vmatprep.subr.bf16.mxu0 0
    %742 = vmatpush1.bf16.msra.mxu0 %v660
    %743 = vmatprep.subr.bf16.mxu0 0
    %744 = vmatpush1.bf16.msra.mxu0 %v663
    %745 = vmatprep.subr.bf16.mxu0 0
    %746 = vmatpush1.bf16.msra.mxu0 0
    %747 = vmatprep.subr.bf16.mxu0 0
    %748 = vmatpush1.bf16.msra.mxu0 0
    %749 = vmatprep.subr.bf16.mxu0 0
    %750 = vmatpush1.bf16.msra.mxu0 0
    %751 = vmatprep.subr.bf16.mxu0 0
    %752 = vmatpush1.bf16.msra.mxu0 0
    %753 = vmatprep.subr.bf16.mxu0 0
    %754 = vmatpush1.bf16.msra.mxu0 0
    %755 = vmatprep.subr.bf16.mxu0 0
    %756 = vmatpush1.bf16.msra.mxu0 0
    %757 = vmatprep.subr.bf16.mxu0 0
    %758 = vmatpush1.bf16.msra.mxu0 0
    %759 = vmatprep.subr.bf16.mxu0 0
    %760 = vmatpush1.bf16.msra.mxu0 0
    %761 = vmatprep.mubr.bf16.mxu0 0
    %762 = vmatmul.mubr.bf16.gmra.mrb[0].mxu0 0
    %v763 = vpop.f32.mrb[0].mxu0
    %v764 = vadd.f32 %v556, %v763
    %v765 = vpop.f32.mrb[0].mxu0
    %v766 = vpop.f32.mrb[0].mxu0
    %v767 = vpop.f32.mrb[0].mxu0
    %768 = vdwg.mxu0
    %v769 = vld [vmem:[#allocation4] sm:$0xff]
    %v770 = vld [vmem:[#allocation4 + $0x8] sm:$0xff]
    %v771 = vld [vmem:[#allocation4 + $0x10] sm:$0xff]
    %v772 = vadd.f32 %v769, %v723
    %v773 = vxor.u32 %v772, 2147483648
    %v774 = vmul.f32 %v773, 1.442695
    %v775 = vpow.pop %v774
    %v776 = vadd.f32 %v775, 1.0
    %v777 = vrcp.pop %v776
    %v778 = vmul.f32 1.0, %v777
    %v779 = vadd.f32 %v770, %v725
    %v780 = vxor.u32 %v779, 2147483648
    %v781 = vmul.f32 %v780, 1.442695
    %v782 = vpow.pop %v781
    %v783 = vadd.f32 %v782, 1.0
    %v784 = vrcp.pop %v783
    %v785 = vmul.f32 1.0, %v784
    %v786 = vmul.f32 %v778, %v764
    %v787 = vadd.f32 %v771, %v786
    %v788 = vtanh.pop %v787
    %v789 = vsub.f32 1.0, %v785
    %v790 = vmul.f32 %v789, %v788
    %v791 = vmul.f32 %v785, 0.0
    %v792 = vadd.f32 %v790, %v791
    %793 = vst [vmem:[#allocation2] sm:$0xff] %v792
    %v794 = vpack.c.bf16 %v792, %v792
    %v795 = vld [vmem:[#allocation10] sm:$0xff]
    %v796 = vld [vmem:[#allocation10 + $0x8] sm:$0xf]
    %v797 = vld [vmem:[#allocation10 + $0xc] sm:$0xff]
    %v798 = vld [vmem:[#allocation10 + $0x14] sm:$0xf]
    %v799 = vld [vmem:[#allocation10 + $0x18] sm:$0xff]
    %v800 = vld [vmem:[#allocation10 + $0x20] sm:$0xf]
    %v801 = vld [vmem:[#allocation10 + $0x24] sm:$0xff]
    %v802 = vld [vmem:[#allocation10 + $0x2c] sm:$0xf]
    %v803 = vld [vmem:[#allocation10 + $0x30] sm:$0xff]
    %v804 = vld [vmem:[#allocation10 + $0x38] sm:$0xf]
    %v805 = vld [vmem:[#allocation10 + $0x3c] sm:$0xff]
    %v806 = vld [vmem:[#allocation10 + $0x44] sm:$0xf]
    %v807 = vld [vmem:[#allocation10 + $0x48] sm:$0xff]
    %v808 = vld [vmem:[#allocation10 + $0x50] sm:$0xf]
    %v809 = vld [vmem:[#allocation10 + $0x54] sm:$0xff]
    %v810 = vld [vmem:[#allocation10 + $0x5c] sm:$0xf]
    %v811 = vld [vmem:[#allocation10 + $0x60] sm:$0xff]
    %v812 = vld [vmem:[#allocation10 + $0x68] sm:$0xf]
    %v813 = vld [vmem:[#allocation10 + $0x6c] sm:$0xff]
    %v814 = vld [vmem:[#allocation10 + $0x74] sm:$0xf]
    %v815 = vld [vmem:[#allocation10 + $0x78] sm:$0xff]
    %v816 = vld [vmem:[#allocation10 + $0x80] sm:$0xf]
    %v817 = vld [vmem:[#allocation10 + $0x84] sm:$0xff]
    %v818 = vld [vmem:[#allocation10 + $0x8c] sm:$0xf]
    %v819 = vld [vmem:[#allocation10 + $0x90] sm:$0xff]
    %v820 = vld [vmem:[#allocation10 + $0x98] sm:$0xf]
    %v821 = vld [vmem:[#allocation10 + $0x9c] sm:$0xff]
    %v822 = vld [vmem:[#allocation10 + $0xa4] sm:$0xf]
    %v823 = vld [vmem:[#allocation10 + $0xa8] sm:$0xff]
    %v824 = vld [vmem:[#allocation10 + $0xb0] sm:$0xf]
    %v825 = vld [vmem:[#allocation10 + $0xb4] sm:$0xff]
    %v826 = vld [vmem:[#allocation10 + $0xbc] sm:$0xf]
    %v827 = vld [vmem:[#allocation12] sm:$0x7]
    %v829 = vlaneseq
    %v830 = vshrl.u32 %v829, 7
    %v831 = vsub.s32 0, %v830
    %v832 = vrot.slane %v827, %v831
    %v833 = vlaneseq
    %v834 = vshrl.u32 %v833, 7
    %v835 = vsub.s32 1, %v834
    %v836 = vrot.slane %v827, %v835
    %v837 = vlaneseq
    %v838 = vshrl.u32 %v837, 7
    %v839 = vsub.s32 2, %v838
    %v840 = vrot.slane %v827, %v839
    %v876 = vunpack.c.l.b16 %v795
    %v877 = vunpack.c.h.b16 %v795
    %v878 = vunpack.c.l.b16 %v796
    %v879 = vunpack.c.l.b16 %v797
    %v880 = vunpack.c.h.b16 %v797
    %v881 = vunpack.c.l.b16 %v798
    %v882 = vunpack.c.l.b16 %v799
    %v883 = vunpack.c.h.b16 %v799
    %v884 = vunpack.c.l.b16 %v800
    %v885 = vunpack.c.l.b16 %v801
    %v886 = vunpack.c.h.b16 %v801
    %v887 = vunpack.c.l.b16 %v802
    %v888 = vunpack.c.l.b16 %v803
    %v889 = vunpack.c.h.b16 %v803
    %v890 = vunpack.c.l.b16 %v804
    %v891 = vunpack.c.l.b16 %v805
    %v892 = vunpack.c.h.b16 %v805
    %v893 = vunpack.c.l.b16 %v806
    %v894 = vunpack.c.l.b16 %v807
    %v895 = vunpack.c.h.b16 %v807
    %v896 = vunpack.c.l.b16 %v808
    %v897 = vunpack.c.l.b16 %v809
    %v898 = vunpack.c.h.b16 %v809
    %v899 = vunpack.c.l.b16 %v810
    %v900 = vunpack.c.l.b16 %v811
    %v901 = vunpack.c.h.b16 %v811
    %v902 = vunpack.c.l.b16 %v812
    %v903 = vunpack.c.l.b16 %v813
    %v904 = vunpack.c.h.b16 %v813
    %v905 = vunpack.c.l.b16 %v814
    %v906 = vunpack.c.l.b16 %v815
    %v907 = vunpack.c.h.b16 %v815
    %v908 = vunpack.c.l.b16 %v816
    %v909 = vunpack.c.l.b16 %v817
    %v910 = vunpack.c.h.b16 %v817
    %v911 = vunpack.c.l.b16 %v818
    %v912 = vunpack.c.l.b16 %v819
    %v913 = vunpack.c.h.b16 %v819
    %v914 = vunpack.c.l.b16 %v820
    %v915 = vunpack.c.l.b16 %v821
    %v916 = vunpack.c.h.b16 %v821
    %v917 = vunpack.c.l.b16 %v822
    %v918 = vunpack.c.l.b16 %v823
    %v919 = vunpack.c.h.b16 %v823
    %v920 = vunpack.c.l.b16 %v824
    %v921 = vunpack.c.l.b16 %v825
    %v922 = vunpack.c.h.b16 %v825
    %v923 = vunpack.c.l.b16 %v826
    %v924 = vpack.c.b16 %v879, %v876
    %v925 = vpack.c.b16 %v880, %v877
    %v926 = vpack.c.b16 %v881, %v878
    %v927 = vpack.c.b16 %v885, %v882
    %v928 = vpack.c.b16 %v886, %v883
    %v929 = vpack.c.b16 %v887, %v884
    %v930 = vpack.c.b16 %v891, %v888
    %v931 = vpack.c.b16 %v892, %v889
    %v932 = vpack.c.b16 %v893, %v890
    %v933 = vpack.c.b16 %v897, %v894
    %v934 = vpack.c.b16 %v898, %v895
    %v935 = vpack.c.b16 %v899, %v896
    %v936 = vpack.c.b16 %v903, %v900
    %v937 = vpack.c.b16 %v904, %v901
    %v938 = vpack.c.b16 %v905, %v902
    %v939 = vpack.c.b16 %v909, %v906
    %v940 = vpack.c.b16 %v910, %v907
    %v941 = vpack.c.b16 %v911, %v908
    %v942 = vpack.c.b16 %v915, %v912
    %v943 = vpack.c.b16 %v916, %v913
    %v944 = vpack.c.b16 %v917, %v914
    %v945 = vpack.c.b16 %v921, %v918
    %v946 = vpack.c.b16 %v922, %v919
    %v947 = vpack.c.b16 %v923, %v920
    %972 = vmatprep.subr.bf16.mxu0 %v925
    %973 = vmatpush1.bf16.msra.mxu0 %v924
    %974 = vmatprep.subr.bf16.mxu0 %v928
    %975 = vmatpush1.bf16.msra.mxu0 %v927
    %976 = vmatprep.subr.bf16.mxu0 %v931
    %977 = vmatpush1.bf16.msra.mxu0 %v930
    %978 = vmatprep.subr.bf16.mxu0 %v934
    %979 = vmatpush1.bf16.msra.mxu0 %v933
    %980 = vmatprep.subr.bf16.mxu0 %v937
    %981 = vmatpush1.bf16.msra.mxu0 %v936
    %982 = vmatprep.subr.bf16.mxu0 %v940
    %983 = vmatpush1.bf16.msra.mxu0 %v939
    %984 = vmatprep.subr.bf16.mxu0 %v943
    %985 = vmatpush1.bf16.msra.mxu0 %v942
    %986 = vmatprep.subr.bf16.mxu0 %v946
    %987 = vmatpush1.bf16.msra.mxu0 %v945
    %988 = vmatprep.subr.bf16.mxu0 0
    %989 = vmatpush1.bf16.msra.mxu0 0
    %990 = vmatprep.subr.bf16.mxu0 0
    %991 = vmatpush1.bf16.msra.mxu0 0
    %992 = vmatprep.subr.bf16.mxu0 0
    %993 = vmatpush1.bf16.msra.mxu0 0
    %994 = vmatprep.subr.bf16.mxu0 0
    %995 = vmatpush1.bf16.msra.mxu0 0
    %996 = vmatprep.subr.bf16.mxu0 0
    %997 = vmatpush1.bf16.msra.mxu0 0
    %998 = vmatprep.subr.bf16.mxu0 0
    %999 = vmatpush1.bf16.msra.mxu0 0
    %1000 = vmatprep.subr.bf16.mxu0 0
    %1001 = vmatpush1.bf16.msra.mxu0 0
    %1002 = vmatprep.subr.bf16.mxu0 0
    %1003 = vmatpush1.bf16.msra.mxu0 0
    %1004 = vmatprep.mubr.bf16.mxu0 0
    %1005 = vmatmul.mubr.bf16.gmra.mrb[0].mxu0 %v794
    %v1006 = vpop.f32.mrb[0].mxu0
    %v1007 = vadd.f32 %v832, %v1006
    %v1008 = vpop.f32.mrb[0].mxu0
    %v1009 = vadd.f32 %v836, %v1008
    %v1010 = vpop.f32.mrb[0].mxu0
    %v1011 = vpop.f32.mrb[0].mxu0
    %1012 = vdwg.mxu0
    %1013 = vmatprep.subr.bf16.mxu0 0
    %1014 = vmatpush1.bf16.msra.mxu0 %v926
    %1015 = vmatprep.subr.bf16.mxu0 0
    %1016 = vmatpush1.bf16.msra.mxu0 %v929
    %1017 = vmatprep.subr.bf16.mxu0 0
    %1018 = vmatpush1.bf16.msra.mxu0 %v932
    %1019 = vmatprep.subr.bf16.mxu0 0
    %1020 = vmatpush1.bf16.msra.mxu0 %v935
    %1021 = vmatprep.subr.bf16.mxu0 0
    %1022 = vmatpush1.bf16.msra.mxu0 %v938
    %1023 = vmatprep.subr.bf16.mxu0 0
    %1024 = vmatpush1.bf16.msra.mxu0 %v941
    %1025 = vmatprep.subr.bf16.mxu0 0
    %1026 = vmatpush1.bf16.msra.mxu0 %v944
    %1027 = vmatprep.subr.bf16.mxu0 0
    %1028 = vmatpush1.bf16.msra.mxu0 %v947
    %1029 = vmatprep.subr.bf16.mxu0 0
    %1030 = vmatpush1.bf16.msra.mxu0 0
    %1031 = vmatprep.subr.bf16.mxu0 0
    %1032 = vmatpush1.bf16.msra.mxu0 0
    %1033 = vmatprep.subr.bf16.mxu0 0
    %1034 = vmatpush1.bf16.msra.mxu0 0
    %1035 = vmatprep.subr.bf16.mxu0 0
    %1036 = vmatpush1.bf16.msra.mxu0 0
    %1037 = vmatprep.subr.bf16.mxu0 0
    %1038 = vmatpush1.bf16.msra.mxu0 0
    %1039 = vmatprep.subr.bf16.mxu0 0
    %1040 = vmatpush1.bf16.msra.mxu0 0
    %1041 = vmatprep.subr.bf16.mxu0 0
    %1042 = vmatpush1.bf16.msra.mxu0 0
    %1043 = vmatprep.subr.bf16.mxu0 0
    %1044 = vmatpush1.bf16.msra.mxu0 0
    %1045 = vmatprep.mubr.bf16.mxu0 0
    %1046 = vmatmul.mubr.bf16.gmra.mrb[0].mxu0 %v794
    %v1047 = vpop.f32.mrb[0].mxu0
    %v1048 = vadd.f32 %v840, %v1047
    %v1049 = vpop.f32.mrb[0].mxu0
    %v1050 = vpop.f32.mrb[0].mxu0
    %v1051 = vpop.f32.mrb[0].mxu0
    %1052 = vdwg.mxu0
    %s1053 = scalar_lea.vmem [#allocation4], 24
    %v1054 = vld [vmem:[%s1053] sm:$0xff]
    %v1055 = vld [vmem:[%s1053 + $0x8] sm:$0xff]
    %v1056 = vld [vmem:[%s1053 + $0x10] sm:$0xff]
    %v1057 = vadd.f32 %v1054, %v1007
    %v1058 = vxor.u32 %v1057, 2147483648
    %v1059 = vmul.f32 %v1058, 1.442695
    %v1060 = vpow.pop %v1059
    %v1061 = vadd.f32 %v1060, 1.0
    %v1062 = vrcp.pop %v1061
    %v1063 = vmul.f32 1.0, %v1062
    %v1064 = vadd.f32 %v1055, %v1009
    %v1065 = vxor.u32 %v1064, 2147483648
    %v1066 = vmul.f32 %v1065, 1.442695
    %v1067 = vpow.pop %v1066
    %v1068 = vadd.f32 %v1067, 1.0
    %v1069 = vrcp.pop %v1068
    %v1070 = vmul.f32 1.0, %v1069
    %v1071 = vmul.f32 %v1063, %v1048
    %v1072 = vadd.f32 %v1056, %v1071
    %v1073 = vtanh.pop %v1072
    %v1074 = vsub.f32 1.0, %v1070
    %v1075 = vmul.f32 %v1074, %v1073
    %v1076 = vmul.f32 %v1070, %v792
    %v1077 = vadd.f32 %v1075, %v1076
    %s1078 = scalar_lea.vmem [#allocation2], 8
    %1079 = vst [vmem:[%s1078] sm:$0xff] %v1077
    %v1080 = vpack.c.bf16 %v1077, %v1077
    %v1081 = vld [vmem:[#allocation10] sm:$0xff]
    %v1082 = vld [vmem:[#allocation10 + $0x8] sm:$0xf]
    %v1083 = vld [vmem:[#allocation10 + $0xc] sm:$0xff]
    %v1084 = vld [vmem:[#allocation10 + $0x14] sm:$0xf]
    %v1085 = vld [vmem:[#allocation10 + $0x18] sm:$0xff]
    %v1086 = vld [vmem:[#allocation10 + $0x20] sm:$0xf]
    %v1087 = vld [vmem:[#allocation10 + $0x24] sm:$0xff]
    %v1088 = vld [vmem:[#allocation10 + $0x2c] sm:$0xf]
    %v1089 = vld [vmem:[#allocation10 + $0x30] sm:$0xff]
    %v1090 = vld [vmem:[#allocation10 + $0x38] sm:$0xf]
    %v1091 = vld [vmem:[#allocation10 + $0x3c] sm:$0xff]
    %v1092 = vld [vmem:[#allocation10 + $0x44] sm:$0xf]
    %v1093 = vld [vmem:[#allocation10 + $0x48] sm:$0xff]
    %v1094 = vld [vmem:[#allocation10 + $0x50] sm:$0xf]
    %v1095 = vld [vmem:[#allocation10 + $0x54] sm:$0xff]
    %v1096 = vld [vmem:[#allocation10 + $0x5c] sm:$0xf]
    %v1097 = vld [vmem:[#allocation10 + $0x60] sm:$0xff]
    %v1098 = vld [vmem:[#allocation10 + $0x68] sm:$0xf]
    %v1099 = vld [vmem:[#allocation10 + $0x6c] sm:$0xff]
    %v1100 = vld [vmem:[#allocation10 + $0x74] sm:$0xf]
    %v1101 = vld [vmem:[#allocation10 + $0x78] sm:$0xff]
    %v1102 = vld [vmem:[#allocation10 + $0x80] sm:$0xf]
    %v1103 = vld [vmem:[#allocation10 + $0x84] sm:$0xff]
    %v1104 = vld [vmem:[#allocation10 + $0x8c] sm:$0xf]
    %v1105 = vld [vmem:[#allocation10 + $0x90] sm:$0xff]
    %v1106 = vld [vmem:[#allocation10 + $0x98] sm:$0xf]
    %v1107 = vld [vmem:[#allocation10 + $0x9c] sm:$0xff]
    %v1108 = vld [vmem:[#allocation10 + $0xa4] sm:$0xf]
    %v1109 = vld [vmem:[#allocation10 + $0xa8] sm:$0xff]
    %v1110 = vld [vmem:[#allocation10 + $0xb0] sm:$0xf]
    %v1111 = vld [vmem:[#allocation10 + $0xb4] sm:$0xff]
    %v1112 = vld [vmem:[#allocation10 + $0xbc] sm:$0xf]
    %v1113 = vld [vmem:[#allocation12] sm:$0x7]
    %v1115 = vlaneseq
    %v1116 = vshrl.u32 %v1115, 7
    %v1117 = vsub.s32 0, %v1116
    %v1118 = vrot.slane %v1113, %v1117
    %v1119 = vlaneseq
    %v1120 = vshrl.u32 %v1119, 7
    %v1121 = vsub.s32 1, %v1120
    %v1122 = vrot.slane %v1113, %v1121
    %v1123 = vlaneseq
    %v1124 = vshrl.u32 %v1123, 7
    %v1125 = vsub.s32 2, %v1124
    %v1126 = vrot.slane %v1113, %v1125
    %v1162 = vunpack.c.l.b16 %v1081
    %v1163 = vunpack.c.h.b16 %v1081
    %v1164 = vunpack.c.l.b16 %v1082
    %v1165 = vunpack.c.l.b16 %v1083
    %v1166 = vunpack.c.h.b16 %v1083
    %v1167 = vunpack.c.l.b16 %v1084
    %v1168 = vunpack.c.l.b16 %v1085
    %v1169 = vunpack.c.h.b16 %v1085
    %v1170 = vunpack.c.l.b16 %v1086
    %v1171 = vunpack.c.l.b16 %v1087
    %v1172 = vunpack.c.h.b16 %v1087
    %v1173 = vunpack.c.l.b16 %v1088
    %v1174 = vunpack.c.l.b16 %v1089
    %v1175 = vunpack.c.h.b16 %v1089
    %v1176 = vunpack.c.l.b16 %v1090
    %v1177 = vunpack.c.l.b16 %v1091
    %v1178 = vunpack.c.h.b16 %v1091
    %v1179 = vunpack.c.l.b16 %v1092
    %v1180 = vunpack.c.l.b16 %v1093
    %v1181 = vunpack.c.h.b16 %v1093
    %v1182 = vunpack.c.l.b16 %v1094
    %v1183 = vunpack.c.l.b16 %v1095
    %v1184 = vunpack.c.h.b16 %v1095
    %v1185 = vunpack.c.l.b16 %v1096
    %v1186 = vunpack.c.l.b16 %v1097
    %v1187 = vunpack.c.h.b16 %v1097
    %v1188 = vunpack.c.l.b16 %v1098
    %v1189 = vunpack.c.l.b16 %v1099
    %v1190 = vunpack.c.h.b16 %v1099
    %v1191 = vunpack.c.l.b16 %v1100
    %v1192 = vunpack.c.l.b16 %v1101
    %v1193 = vunpack.c.h.b16 %v1101
    %v1194 = vunpack.c.l.b16 %v1102
    %v1195 = vunpack.c.l.b16 %v1103
    %v1196 = vunpack.c.h.b16 %v1103
    %v1197 = vunpack.c.l.b16 %v1104
    %v1198 = vunpack.c.l.b16 %v1105
    %v1199 = vunpack.c.h.b16 %v1105
    %v1200 = vunpack.c.l.b16 %v1106
    %v1201 = vunpack.c.l.b16 %v1107
    %v1202 = vunpack.c.h.b16 %v1107
    %v1203 = vunpack.c.l.b16 %v1108
    %v1204 = vunpack.c.l.b16 %v1109
    %v1205 = vunpack.c.h.b16 %v1109
    %v1206 = vunpack.c.l.b16 %v1110
    %v1207 = vunpack.c.l.b16 %v1111
    %v1208 = vunpack.c.h.b16 %v1111
    %v1209 = vunpack.c.l.b16 %v1112
    %v1210 = vpack.c.b16 %v1165, %v1162
    %v1211 = vpack.c.b16 %v1166, %v1163
    %v1212 = vpack.c.b16 %v1167, %v1164
    %v1213 = vpack.c.b16 %v1171, %v1168
    %v1214 = vpack.c.b16 %v1172, %v1169
    %v1215 = vpack.c.b16 %v1173, %v1170
    %v1216 = vpack.c.b16 %v1177, %v1174
    %v1217 = vpack.c.b16 %v1178, %v1175
    %v1218 = vpack.c.b16 %v1179, %v1176
    %v1219 = vpack.c.b16 %v1183, %v1180
    %v1220 = vpack.c.b16 %v1184, %v1181
    %v1221 = vpack.c.b16 %v1185, %v1182
    %v1222 = vpack.c.b16 %v1189, %v1186
    %v1223 = vpack.c.b16 %v1190, %v1187
    %v1224 = vpack.c.b16 %v1191, %v1188
    %v1225 = vpack.c.b16 %v1195, %v1192
    %v1226 = vpack.c.b16 %v1196, %v1193
    %v1227 = vpack.c.b16 %v1197, %v1194
    %v1228 = vpack.c.b16 %v1201, %v1198
    %v1229 = vpack.c.b16 %v1202, %v1199
    %v1230 = vpack.c.b16 %v1203, %v1200
    %v1231 = vpack.c.b16 %v1207, %v1204
    %v1232 = vpack.c.b16 %v1208, %v1205
    %v1233 = vpack.c.b16 %v1209, %v1206
    %1258 = vmatprep.subr.bf16.mxu0 %v1211
    %1259 = vmatpush1.bf16.msra.mxu0 %v1210
    %1260 = vmatprep.subr.bf16.mxu0 %v1214
    %1261 = vmatpush1.bf16.msra.mxu0 %v1213
    %1262 = vmatprep.subr.bf16.mxu0 %v1217
    %1263 = vmatpush1.bf16.msra.mxu0 %v1216
    %1264 = vmatprep.subr.bf16.mxu0 %v1220
    %1265 = vmatpush1.bf16.msra.mxu0 %v1219
    %1266 = vmatprep.subr.bf16.mxu0 %v1223
    %1267 = vmatpush1.bf16.msra.mxu0 %v1222
    %1268 = vmatprep.subr.bf16.mxu0 %v1226
    %1269 = vmatpush1.bf16.msra.mxu0 %v1225
    %1270 = vmatprep.subr.bf16.mxu0 %v1229
    %1271 = vmatpush1.bf16.msra.mxu0 %v1228
    %1272 = vmatprep.subr.bf16.mxu0 %v1232
    %1273 = vmatpush1.bf16.msra.mxu0 %v1231
    %1274 = vmatprep.subr.bf16.mxu0 0
    %1275 = vmatpush1.bf16.msra.mxu0 0
    %1276 = vmatprep.subr.bf16.mxu0 0
    %1277 = vmatpush1.bf16.msra.mxu0 0
    %1278 = vmatprep.subr.bf16.mxu0 0
    %1279 = vmatpush1.bf16.msra.mxu0 0
    %1280 = vmatprep.subr.bf16.mxu0 0
    %1281 = vmatpush1.bf16.msra.mxu0 0
    %1282 = vmatprep.subr.bf16.mxu0 0
    %1283 = vmatpush1.bf16.msra.mxu0 0
    %1284 = vmatprep.subr.bf16.mxu0 0
    %1285 = vmatpush1.bf16.msra.mxu0 0
    %1286 = vmatprep.subr.bf16.mxu0 0
    %1287 = vmatpush1.bf16.msra.mxu0 0
    %1288 = vmatprep.subr.bf16.mxu0 0
    %1289 = vmatpush1.bf16.msra.mxu0 0
    %1290 = vmatprep.mubr.bf16.mxu0 0
    %1291 = vmatmul.mubr.bf16.gmra.mrb[0].mxu0 %v1080
    %v1292 = vpop.f32.mrb[0].mxu0
    %v1293 = vadd.f32 %v1118, %v1292
    %v1294 = vpop.f32.mrb[0].mxu0
    %v1295 = vadd.f32 %v1122, %v1294
    %v1296 = vpop.f32.mrb[0].mxu0
    %v1297 = vpop.f32.mrb[0].mxu0
    %1298 = vdwg.mxu0
    %1299 = vmatprep.subr.bf16.mxu0 0
    %1300 = vmatpush1.bf16.msra.mxu0 %v1212
    %1301 = vmatprep.subr.bf16.mxu0 0
    %1302 = vmatpush1.bf16.msra.mxu0 %v1215
    %1303 = vmatprep.subr.bf16.mxu0 0
    %1304 = vmatpush1.bf16.msra.mxu0 %v1218
    %1305 = vmatprep.subr.bf16.mxu0 0
    %1306 = vmatpush1.bf16.msra.mxu0 %v1221
    %1307 = vmatprep.subr.bf16.mxu0 0
    %1308 = vmatpush1.bf16.msra.mxu0 %v1224
    %1309 = vmatprep.subr.bf16.mxu0 0
    %1310 = vmatpush1.bf16.msra.mxu0 %v1227
    %1311 = vmatprep.subr.bf16.mxu0 0
    %1312 = vmatpush1.bf16.msra.mxu0 %v1230
    %1313 = vmatprep.subr.bf16.mxu0 0
    %1314 = vmatpush1.bf16.msra.mxu0 %v1233
    %1315 = vmatprep.subr.bf16.mxu0 0
    %1316 = vmatpush1.bf16.msra.mxu0 0
    %1317 = vmatprep.subr.bf16.mxu0 0
    %1318 = vmatpush1.bf16.msra.mxu0 0
    %1319 = vmatprep.subr.bf16.mxu0 0
    %1320 = vmatpush1.bf16.msra.mxu0 0
    %1321 = vmatprep.subr.bf16.mxu0 0
    %1322 = vmatpush1.bf16.msra.mxu0 0
    %1323 = vmatprep.subr.bf16.mxu0 0
    %1324 = vmatpush1.bf16.msra.mxu0 0
    %1325 = vmatprep.subr.bf16.mxu0 0
    %1326 = vmatpush1.bf16.msra.mxu0 0
    %1327 = vmatprep.subr.bf16.mxu0 0
    %1328 = vmatpush1.bf16.msra.mxu0 0
    %1329 = vmatprep.subr.bf16.mxu0 0
    %1330 = vmatpush1.bf16.msra.mxu0 0
    %1331 = vmatprep.mubr.bf16.mxu0 0
    %1332 = vmatmul.mubr.bf16.gmra.mrb[0].mxu0 %v1080
    %v1333 = vpop.f32.mrb[0].mxu0
    %v1334 = vadd.f32 %v1126, %v1333
    %v1335 = vpop.f32.mrb[0].mxu0
    %v1336 = vpop.f32.mrb[0].mxu0
    %v1337 = vpop.f32.mrb[0].mxu0
    %1338 = vdwg.mxu0
    %s1339 = scalar_lea.vmem [#allocation4], 48
    %v1340 = vld [vmem:[%s1339] sm:$0xff]
    %v1341 = vld [vmem:[%s1339 + $0x8] sm:$0xff]
    %v1342 = vld [vmem:[%s1339 + $0x10] sm:$0xff]
    %v1343 = vadd.f32 %v1340, %v1293
    %v1344 = vxor.u32 %v1343, 2147483648
    %v1345 = vmul.f32 %v1344, 1.442695
    %v1346 = vpow.pop %v1345
    %v1347 = vadd.f32 %v1346, 1.0
    %v1348 = vrcp.pop %v1347
    %v1349 = vmul.f32 1.0, %v1348
    %v1350 = vadd.f32 %v1341, %v1295
    %v1351 = vxor.u32 %v1350, 2147483648
    %v1352 = vmul.f32 %v1351, 1.442695
    %v1353 = vpow.pop %v1352
    %v1354 = vadd.f32 %v1353, 1.0
    %v1355 = vrcp.pop %v1354
    %v1356 = vmul.f32 1.0, %v1355
    %v1357 = vmul.f32 %v1349, %v1334
    %v1358 = vadd.f32 %v1342, %v1357
    %v1359 = vtanh.pop %v1358
    %v1360 = vsub.f32 1.0, %v1356
    %v1361 = vmul.f32 %v1360, %v1359
    %v1362 = vmul.f32 %v1356, %v1077
    %v1363 = vadd.f32 %v1361, %v1362
    %s1364 = scalar_lea.vmem [#allocation2], 16
    %1365 = vst [vmem:[%s1364] sm:$0xff] %v1363
    %v1366 = vpack.c.bf16 %v1363, %v1363
    %v1367 = vld [vmem:[#allocation10] sm:$0xff]
    %v1368 = vld [vmem:[#allocation10 + $0x8] sm:$0xf]
    %v1369 = vld [vmem:[#allocation10 + $0xc] sm:$0xff]
    %v1370 = vld [vmem:[#allocation10 + $0x14] sm:$0xf]
    %v1371 = vld [vmem:[#allocation10 + $0x18] sm:$0xff]
    %v1372 = vld [vmem:[#allocation10 + $0x20] sm:$0xf]
    %v1373 = vld [vmem:[#allocation10 + $0x24] sm:$0xff]
    %v1374 = vld [vmem:[#allocation10 + $0x2c] sm:$0xf]
    %v1375 = vld [vmem:[#allocation10 + $0x30] sm:$0xff]
    %v1376 = vld [vmem:[#allocation10 + $0x38] sm:$0xf]
    %v1377 = vld [vmem:[#allocation10 + $0x3c] sm:$0xff]
    %v1378 = vld [vmem:[#allocation10 + $0x44] sm:$0xf]
    %v1379 = vld [vmem:[#allocation10 + $0x48] sm:$0xff]
    %v1380 = vld [vmem:[#allocation10 + $0x50] sm:$0xf]
    %v1381 = vld [vmem:[#allocation10 + $0x54] sm:$0xff]
    %v1382 = vld [vmem:[#allocation10 + $0x5c] sm:$0xf]
    %v1383 = vld [vmem:[#allocation10 + $0x60] sm:$0xff]
    %v1384 = vld [vmem:[#allocation10 + $0x68] sm:$0xf]
    %v1385 = vld [vmem:[#allocation10 + $0x6c] sm:$0xff]
    %v1386 = vld [vmem:[#allocation10 + $0x74] sm:$0xf]
    %v1387 = vld [vmem:[#allocation10 + $0x78] sm:$0xff]
    %v1388 = vld [vmem:[#allocation10 + $0x80] sm:$0xf]
    %v1389 = vld [vmem:[#allocation10 + $0x84] sm:$0xff]
    %v1390 = vld [vmem:[#allocation10 + $0x8c] sm:$0xf]
    %v1391 = vld [vmem:[#allocation10 + $0x90] sm:$0xff]
    %v1392 = vld [vmem:[#allocation10 + $0x98] sm:$0xf]
    %v1393 = vld [vmem:[#allocation10 + $0x9c] sm:$0xff]
    %v1394 = vld [vmem:[#allocation10 + $0xa4] sm:$0xf]
    %v1395 = vld [vmem:[#allocation10 + $0xa8] sm:$0xff]
    %v1396 = vld [vmem:[#allocation10 + $0xb0] sm:$0xf]
    %v1397 = vld [vmem:[#allocation10 + $0xb4] sm:$0xff]
    %v1398 = vld [vmem:[#allocation10 + $0xbc] sm:$0xf]
    %v1399 = vld [vmem:[#allocation12] sm:$0x7]
    %v1401 = vlaneseq
    %v1402 = vshrl.u32 %v1401, 7
    %v1403 = vsub.s32 0, %v1402
    %v1404 = vrot.slane %v1399, %v1403
    %v1405 = vlaneseq
    %v1406 = vshrl.u32 %v1405, 7
    %v1407 = vsub.s32 1, %v1406
    %v1408 = vrot.slane %v1399, %v1407
    %v1409 = vlaneseq
    %v1410 = vshrl.u32 %v1409, 7
    %v1411 = vsub.s32 2, %v1410
    %v1412 = vrot.slane %v1399, %v1411
    %v1448 = vunpack.c.l.b16 %v1367
    %v1449 = vunpack.c.h.b16 %v1367
    %v1450 = vunpack.c.l.b16 %v1368
    %v1451 = vunpack.c.l.b16 %v1369
    %v1452 = vunpack.c.h.b16 %v1369
    %v1453 = vunpack.c.l.b16 %v1370
    %v1454 = vunpack.c.l.b16 %v1371
    %v1455 = vunpack.c.h.b16 %v1371
    %v1456 = vunpack.c.l.b16 %v1372
    %v1457 = vunpack.c.l.b16 %v1373
    %v1458 = vunpack.c.h.b16 %v1373
    %v1459 = vunpack.c.l.b16 %v1374
    %v1460 = vunpack.c.l.b16 %v1375
    %v1461 = vunpack.c.h.b16 %v1375
    %v1462 = vunpack.c.l.b16 %v1376
    %v1463 = vunpack.c.l.b16 %v1377
    %v1464 = vunpack.c.h.b16 %v1377
    %v1465 = vunpack.c.l.b16 %v1378
    %v1466 = vunpack.c.l.b16 %v1379
    %v1467 = vunpack.c.h.b16 %v1379
    %v1468 = vunpack.c.l.b16 %v1380
    %v1469 = vunpack.c.l.b16 %v1381
    %v1470 = vunpack.c.h.b16 %v1381
    %v1471 = vunpack.c.l.b16 %v1382
    %v1472 = vunpack.c.l.b16 %v1383
    %v1473 = vunpack.c.h.b16 %v1383
    %v1474 = vunpack.c.l.b16 %v1384
    %v1475 = vunpack.c.l.b16 %v1385
    %v1476 = vunpack.c.h.b16 %v1385
    %v1477 = vunpack.c.l.b16 %v1386
    %v1478 = vunpack.c.l.b16 %v1387
    %v1479 = vunpack.c.h.b16 %v1387
    %v1480 = vunpack.c.l.b16 %v1388
    %v1481 = vunpack.c.l.b16 %v1389
    %v1482 = vunpack.c.h.b16 %v1389
    %v1483 = vunpack.c.l.b16 %v1390
    %v1484 = vunpack.c.l.b16 %v1391
    %v1485 = vunpack.c.h.b16 %v1391
    %v1486 = vunpack.c.l.b16 %v1392
    %v1487 = vunpack.c.l.b16 %v1393
    %v1488 = vunpack.c.h.b16 %v1393
    %v1489 = vunpack.c.l.b16 %v1394
    %v1490 = vunpack.c.l.b16 %v1395
    %v1491 = vunpack.c.h.b16 %v1395
    %v1492 = vunpack.c.l.b16 %v1396
    %v1493 = vunpack.c.l.b16 %v1397
    %v1494 = vunpack.c.h.b16 %v1397
    %v1495 = vunpack.c.l.b16 %v1398
    %v1496 = vpack.c.b16 %v1451, %v1448
    %v1497 = vpack.c.b16 %v1452, %v1449
    %v1498 = vpack.c.b16 %v1453, %v1450
    %v1499 = vpack.c.b16 %v1457, %v1454
    %v1500 = vpack.c.b16 %v1458, %v1455
    %v1501 = vpack.c.b16 %v1459, %v1456
    %v1502 = vpack.c.b16 %v1463, %v1460
    %v1503 = vpack.c.b16 %v1464, %v1461
    %v1504 = vpack.c.b16 %v1465, %v1462
    %v1505 = vpack.c.b16 %v1469, %v1466
    %v1506 = vpack.c.b16 %v1470, %v1467
    %v1507 = vpack.c.b16 %v1471, %v1468
    %v1508 = vpack.c.b16 %v1475, %v1472
    %v1509 = vpack.c.b16 %v1476, %v1473
    %v1510 = vpack.c.b16 %v1477, %v1474
    %v1511 = vpack.c.b16 %v1481, %v1478
    %v1512 = vpack.c.b16 %v1482, %v1479
    %v1513 = vpack.c.b16 %v1483, %v1480
    %v1514 = vpack.c.b16 %v1487, %v1484
    %v1515 = vpack.c.b16 %v1488, %v1485
    %v1516 = vpack.c.b16 %v1489, %v1486
    %v1517 = vpack.c.b16 %v1493, %v1490
    %v1518 = vpack.c.b16 %v1494, %v1491
    %v1519 = vpack.c.b16 %v1495, %v1492
    %1544 = vmatprep.subr.bf16.mxu0 %v1497
    %1545 = vmatpush1.bf16.msra.mxu0 %v1496
    %1546 = vmatprep.subr.bf16.mxu0 %v1500
    %1547 = vmatpush1.bf16.msra.mxu0 %v1499
    %1548 = vmatprep.subr.bf16.mxu0 %v1503
    %1549 = vmatpush1.bf16.msra.mxu0 %v1502
    %1550 = vmatprep.subr.bf16.mxu0 %v1506
    %1551 = vmatpush1.bf16.msra.mxu0 %v1505
    %1552 = vmatprep.subr.bf16.mxu0 %v1509
    %1553 = vmatpush1.bf16.msra.mxu0 %v1508
    %1554 = vmatprep.subr.bf16.mxu0 %v1512
    %1555 = vmatpush1.bf16.msra.mxu0 %v1511
    %1556 = vmatprep.subr.bf16.mxu0 %v1515
    %1557 = vmatpush1.bf16.msra.mxu0 %v1514
    %1558 = vmatprep.subr.bf16.mxu0 %v1518
    %1559 = vmatpush1.bf16.msra.mxu0 %v1517
    %1560 = vmatprep.subr.bf16.mxu0 0
    %1561 = vmatpush1.bf16.msra.mxu0 0
    %1562 = vmatprep.subr.bf16.mxu0 0
    %1563 = vmatpush1.bf16.msra.mxu0 0
    %1564 = vmatprep.subr.bf16.mxu0 0
    %1565 = vmatpush1.bf16.msra.mxu0 0
    %1566 = vmatprep.subr.bf16.mxu0 0
    %1567 = vmatpush1.bf16.msra.mxu0 0
    %1568 = vmatprep.subr.bf16.mxu0 0
    %1569 = vmatpush1.bf16.msra.mxu0 0
    %1570 = vmatprep.subr.bf16.mxu0 0
    %1571 = vmatpush1.bf16.msra.mxu0 0
    %1572 = vmatprep.subr.bf16.mxu0 0
    %1573 = vmatpush1.bf16.msra.mxu0 0
    %1574 = vmatprep.subr.bf16.mxu0 0
    %1575 = vmatpush1.bf16.msra.mxu0 0
    %1576 = vmatprep.mubr.bf16.mxu0 0
    %1577 = vmatmul.mubr.bf16.gmra.mrb[0].mxu0 %v1366
    %v1578 = vpop.f32.mrb[0].mxu0
    %v1579 = vadd.f32 %v1404, %v1578
    %v1580 = vpop.f32.mrb[0].mxu0
    %v1581 = vadd.f32 %v1408, %v1580
    %v1582 = vpop.f32.mrb[0].mxu0
    %v1583 = vpop.f32.mrb[0].mxu0
    %1584 = vdwg.mxu0
    %1585 = vmatprep.subr.bf16.mxu0 0
    %1586 = vmatpush1.bf16.msra.mxu0 %v1498
    %1587 = vmatprep.subr.bf16.mxu0 0
    %1588 = vmatpush1.bf16.msra.mxu0 %v1501
    %1589 = vmatprep.subr.bf16.mxu0 0
    %1590 = vmatpush1.bf16.msra.mxu0 %v1504
    %1591 = vmatprep.subr.bf16.mxu0 0
    %1592 = vmatpush1.bf16.msra.mxu0 %v1507
    %1593 = vmatprep.subr.bf16.mxu0 0
    %1594 = vmatpush1.bf16.msra.mxu0 %v1510
    %1595 = vmatprep.subr.bf16.mxu0 0
    %1596 = vmatpush1.bf16.msra.mxu0 %v1513
    %1597 = vmatprep.subr.bf16.mxu0 0
    %1598 = vmatpush1.bf16.msra.mxu0 %v1516
    %1599 = vmatprep.subr.bf16.mxu0 0
    %1600 = vmatpush1.bf16.msra.mxu0 %v1519
    %1601 = vmatprep.subr.bf16.mxu0 0
    %1602 = vmatpush1.bf16.msra.mxu0 0
    %1603 = vmatprep.subr.bf16.mxu0 0
    %1604 = vmatpush1.bf16.msra.mxu0 0
    %1605 = vmatprep.subr.bf16.mxu0 0
    %1606 = vmatpush1.bf16.msra.mxu0 0
    %1607 = vmatprep.subr.bf16.mxu0 0
    %1608 = vmatpush1.bf16.msra.mxu0 0
    %1609 = vmatprep.subr.bf16.mxu0 0
    %1610 = vmatpush1.bf16.msra.mxu0 0
    %1611 = vmatprep.subr.bf16.mxu0 0
    %1612 = vmatpush1.bf16.msra.mxu0 0
    %1613 = vmatprep.subr.bf16.mxu0 0
    %1614 = vmatpush1.bf16.msra.mxu0 0
    %1615 = vmatprep.subr.bf16.mxu0 0
    %1616 = vmatpush1.bf16.msra.mxu0 0
    %1617 = vmatprep.mubr.bf16.mxu0 0
    %1618 = vmatmul.mubr.bf16.gmra.mrb[0].mxu0 %v1366
    %v1619 = vpop.f32.mrb[0].mxu0
    %v1620 = vadd.f32 %v1412, %v1619
    %v1621 = vpop.f32.mrb[0].mxu0
    %v1622 = vpop.f32.mrb[0].mxu0
    %v1623 = vpop.f32.mrb[0].mxu0
    %1624 = vdwg.mxu0
    %s1625 = scalar_lea.vmem [#allocation4], 72
    %v1626 = vld [vmem:[%s1625] sm:$0xff]
    %v1627 = vld [vmem:[%s1625 + $0x8] sm:$0xff]
    %v1628 = vld [vmem:[%s1625 + $0x10] sm:$0xff]
    %v1629 = vadd.f32 %v1626, %v1579
    %v1630 = vxor.u32 %v1629, 2147483648
    %v1631 = vmul.f32 %v1630, 1.442695
    %v1632 = vpow.pop %v1631
    %v1633 = vadd.f32 %v1632, 1.0
    %v1634 = vrcp.pop %v1633
    %v1635 = vmul.f32 1.0, %v1634
    %v1636 = vadd.f32 %v1627, %v1581
    %v1637 = vxor.u32 %v1636, 2147483648
    %v1638 = vmul.f32 %v1637, 1.442695
    %v1639 = vpow.pop %v1638
    %v1640 = vadd.f32 %v1639, 1.0
    %v1641 = vrcp.pop %v1640
    %v1642 = vmul.f32 1.0, %v1641
    %v1643 = vmul.f32 %v1635, %v1620
    %v1644 = vadd.f32 %v1628, %v1643
    %v1645 = vtanh.pop %v1644
    %v1646 = vsub.f32 1.0, %v1642
    %v1647 = vmul.f32 %v1646, %v1645
    %v1648 = vmul.f32 %v1642, %v1363
    %v1649 = vadd.f32 %v1647, %v1648
    %s1650 = scalar_lea.vmem [#allocation2], 24
    %1651 = vst [vmem:[%s1650] sm:$0xff] %v1649
    %v1652 = vpack.c.bf16 %v1649, %v1649
    %v1653 = vld [vmem:[#allocation10] sm:$0xff]
    %v1654 = vld [vmem:[#allocation10 + $0x8] sm:$0xf]
    %v1655 = vld [vmem:[#allocation10 + $0xc] sm:$0xff]
    %v1656 = vld [vmem:[#allocation10 + $0x14] sm:$0xf]
    %v1657 = vld [vmem:[#allocation10 + $0x18] sm:$0xff]
    %v1658 = vld [vmem:[#allocation10 + $0x20] sm:$0xf]
    %v1659 = vld [vmem:[#allocation10 + $0x24] sm:$0xff]
    %v1660 = vld [vmem:[#allocation10 + $0x2c] sm:$0xf]
    %v1661 = vld [vmem:[#allocation10 + $0x30] sm:$0xff]
    %v1662 = vld [vmem:[#allocation10 + $0x38] sm:$0xf]
    %v1663 = vld [vmem:[#allocation10 + $0x3c] sm:$0xff]
    %v1664 = vld [vmem:[#allocation10 + $0x44] sm:$0xf]
    %v1665 = vld [vmem:[#allocation10 + $0x48] sm:$0xff]
    %v1666 = vld [vmem:[#allocation10 + $0x50] sm:$0xf]
    %v1667 = vld [vmem:[#allocation10 + $0x54] sm:$0xff]
    %v1668 = vld [vmem:[#allocation10 + $0x5c] sm:$0xf]
    %v1669 = vld [vmem:[#allocation10 + $0x60] sm:$0xff]
    %v1670 = vld [vmem:[#allocation10 + $0x68] sm:$0xf]
    %v1671 = vld [vmem:[#allocation10 + $0x6c] sm:$0xff]
    %v1672 = vld [vmem:[#allocation10 + $0x74] sm:$0xf]
    %v1673 = vld [vmem:[#allocation10 + $0x78] sm:$0xff]
    %v1674 = vld [vmem:[#allocation10 + $0x80] sm:$0xf]
    %v1675 = vld [vmem:[#allocation10 + $0x84] sm:$0xff]
    %v1676 = vld [vmem:[#allocation10 + $0x8c] sm:$0xf]
    %v1677 = vld [vmem:[#allocation10 + $0x90] sm:$0xff]
    %v1678 = vld [vmem:[#allocation10 + $0x98] sm:$0xf]
    %v1679 = vld [vmem:[#allocation10 + $0x9c] sm:$0xff]
    %v1680 = vld [vmem:[#allocation10 + $0xa4] sm:$0xf]
    %v1681 = vld [vmem:[#allocation10 + $0xa8] sm:$0xff]
    %v1682 = vld [vmem:[#allocation10 + $0xb0] sm:$0xf]
    %v1683 = vld [vmem:[#allocation10 + $0xb4] sm:$0xff]
    %v1684 = vld [vmem:[#allocation10 + $0xbc] sm:$0xf]
    %v1685 = vld [vmem:[#allocation12] sm:$0x7]
    %v1687 = vlaneseq
    %v1688 = vshrl.u32 %v1687, 7
    %v1689 = vsub.s32 0, %v1688
    %v1690 = vrot.slane %v1685, %v1689
    %v1691 = vlaneseq
    %v1692 = vshrl.u32 %v1691, 7
    %v1693 = vsub.s32 1, %v1692
    %v1694 = vrot.slane %v1685, %v1693
    %v1695 = vlaneseq
    %v1696 = vshrl.u32 %v1695, 7
    %v1697 = vsub.s32 2, %v1696
    %v1698 = vrot.slane %v1685, %v1697
    %v1734 = vunpack.c.l.b16 %v1653
    %v1735 = vunpack.c.h.b16 %v1653
    %v1736 = vunpack.c.l.b16 %v1654
    %v1737 = vunpack.c.l.b16 %v1655
    %v1738 = vunpack.c.h.b16 %v1655
    %v1739 = vunpack.c.l.b16 %v1656
    %v1740 = vunpack.c.l.b16 %v1657
    %v1741 = vunpack.c.h.b16 %v1657
    %v1742 = vunpack.c.l.b16 %v1658
    %v1743 = vunpack.c.l.b16 %v1659
    %v1744 = vunpack.c.h.b16 %v1659
    %v1745 = vunpack.c.l.b16 %v1660
    %v1746 = vunpack.c.l.b16 %v1661
    %v1747 = vunpack.c.h.b16 %v1661
    %v1748 = vunpack.c.l.b16 %v1662
    %v1749 = vunpack.c.l.b16 %v1663
    %v1750 = vunpack.c.h.b16 %v1663
    %v1751 = vunpack.c.l.b16 %v1664
    %v1752 = vunpack.c.l.b16 %v1665
    %v1753 = vunpack.c.h.b16 %v1665
    %v1754 = vunpack.c.l.b16 %v1666
    %v1755 = vunpack.c.l.b16 %v1667
    %v1756 = vunpack.c.h.b16 %v1667
    %v1757 = vunpack.c.l.b16 %v1668
    %v1758 = vunpack.c.l.b16 %v1669
    %v1759 = vunpack.c.h.b16 %v1669
    %v1760 = vunpack.c.l.b16 %v1670
    %v1761 = vunpack.c.l.b16 %v1671
    %v1762 = vunpack.c.h.b16 %v1671
    %v1763 = vunpack.c.l.b16 %v1672
    %v1764 = vunpack.c.l.b16 %v1673
    %v1765 = vunpack.c.h.b16 %v1673
    %v1766 = vunpack.c.l.b16 %v1674
    %v1767 = vunpack.c.l.b16 %v1675
    %v1768 = vunpack.c.h.b16 %v1675
    %v1769 = vunpack.c.l.b16 %v1676
    %v1770 = vunpack.c.l.b16 %v1677
    %v1771 = vunpack.c.h.b16 %v1677
    %v1772 = vunpack.c.l.b16 %v1678
    %v1773 = vunpack.c.l.b16 %v1679
    %v1774 = vunpack.c.h.b16 %v1679
    %v1775 = vunpack.c.l.b16 %v1680
    %v1776 = vunpack.c.l.b16 %v1681
    %v1777 = vunpack.c.h.b16 %v1681
    %v1778 = vunpack.c.l.b16 %v1682
    %v1779 = vunpack.c.l.b16 %v1683
    %v1780 = vunpack.c.h.b16 %v1683
    %v1781 = vunpack.c.l.b16 %v1684
    %v1782 = vpack.c.b16 %v1737, %v1734
    %v1783 = vpack.c.b16 %v1738, %v1735
    %v1784 = vpack.c.b16 %v1739, %v1736
    %v1785 = vpack.c.b16 %v1743, %v1740
    %v1786 = vpack.c.b16 %v1744, %v1741
    %v1787 = vpack.c.b16 %v1745, %v1742
    %v1788 = vpack.c.b16 %v1749, %v1746
    %v1789 = vpack.c.b16 %v1750, %v1747
    %v1790 = vpack.c.b16 %v1751, %v1748
    %v1791 = vpack.c.b16 %v1755, %v1752
    %v1792 = vpack.c.b16 %v1756, %v1753
    %v1793 = vpack.c.b16 %v1757, %v1754
    %v1794 = vpack.c.b16 %v1761, %v1758
    %v1795 = vpack.c.b16 %v1762, %v1759
    %v1796 = vpack.c.b16 %v1763, %v1760
    %v1797 = vpack.c.b16 %v1767, %v1764
    %v1798 = vpack.c.b16 %v1768, %v1765
    %v1799 = vpack.c.b16 %v1769, %v1766
    %v1800 = vpack.c.b16 %v1773, %v1770
    %v1801 = vpack.c.b16 %v1774, %v1771
    %v1802 = vpack.c.b16 %v1775, %v1772
    %v1803 = vpack.c.b16 %v1779, %v1776
    %v1804 = vpack.c.b16 %v1780, %v1777
    %v1805 = vpack.c.b16 %v1781, %v1778
    %1830 = vmatprep.subr.bf16.mxu0 %v1783
    %1831 = vmatpush1.bf16.msra.mxu0 %v1782
    %1832 = vmatprep.subr.bf16.mxu0 %v1786
    %1833 = vmatpush1.bf16.msra.mxu0 %v1785
    %1834 = vmatprep.subr.bf16.mxu0 %v1789
    %1835 = vmatpush1.bf16.msra.mxu0 %v1788
    %1836 = vmatprep.subr.bf16.mxu0 %v1792
    %1837 = vmatpush1.bf16.msra.mxu0 %v1791
    %1838 = vmatprep.subr.bf16.mxu0 %v1795
    %1839 = vmatpush1.bf16.msra.mxu0 %v1794
    %1840 = vmatprep.subr.bf16.mxu0 %v1798
    %1841 = vmatpush1.bf16.msra.mxu0 %v1797
    %1842 = vmatprep.subr.bf16.mxu0 %v1801
    %1843 = vmatpush1.bf16.msra.mxu0 %v1800
    %1844 = vmatprep.subr.bf16.mxu0 %v1804
    %1845 = vmatpush1.bf16.msra.mxu0 %v1803
    %1846 = vmatprep.subr.bf16.mxu0 0
    %1847 = vmatpush1.bf16.msra.mxu0 0
    %1848 = vmatprep.subr.bf16.mxu0 0
    %1849 = vmatpush1.bf16.msra.mxu0 0
    %1850 = vmatprep.subr.bf16.mxu0 0
    %1851 = vmatpush1.bf16.msra.mxu0 0
    %1852 = vmatprep.subr.bf16.mxu0 0
    %1853 = vmatpush1.bf16.msra.mxu0 0
    %1854 = vmatprep.subr.bf16.mxu0 0
    %1855 = vmatpush1.bf16.msra.mxu0 0
    %1856 = vmatprep.subr.bf16.mxu0 0
    %1857 = vmatpush1.bf16.msra.mxu0 0
    %1858 = vmatprep.subr.bf16.mxu0 0
    %1859 = vmatpush1.bf16.msra.mxu0 0
    %1860 = vmatprep.subr.bf16.mxu0 0
    %1861 = vmatpush1.bf16.msra.mxu0 0
    %1862 = vmatprep.mubr.bf16.mxu0 0
    %1863 = vmatmul.mubr.bf16.gmra.mrb[0].mxu0 %v1652
    %v1864 = vpop.f32.mrb[0].mxu0
    %v1865 = vadd.f32 %v1690, %v1864
    %v1866 = vpop.f32.mrb[0].mxu0
    %v1867 = vadd.f32 %v1694, %v1866
    %v1868 = vpop.f32.mrb[0].mxu0
    %v1869 = vpop.f32.mrb[0].mxu0
    %1870 = vdwg.mxu0
    %1871 = vmatprep.subr.bf16.mxu0 0
    %1872 = vmatpush1.bf16.msra.mxu0 %v1784
    %1873 = vmatprep.subr.bf16.mxu0 0
    %1874 = vmatpush1.bf16.msra.mxu0 %v1787
    %1875 = vmatprep.subr.bf16.mxu0 0
    %1876 = vmatpush1.bf16.msra.mxu0 %v1790
    %1877 = vmatprep.subr.bf16.mxu0 0
    %1878 = vmatpush1.bf16.msra.mxu0 %v1793
    %1879 = vmatprep.subr.bf16.mxu0 0
    %1880 = vmatpush1.bf16.msra.mxu0 %v1796
    %1881 = vmatprep.subr.bf16.mxu0 0
    %1882 = vmatpush1.bf16.msra.mxu0 %v1799
    %1883 = vmatprep.subr.bf16.mxu0 0
    %1884 = vmatpush1.bf16.msra.mxu0 %v1802
    %1885 = vmatprep.subr.bf16.mxu0 0
    %1886 = vmatpush1.bf16.msra.mxu0 %v1805
    %1887 = vmatprep.subr.bf16.mxu0 0
    %1888 = vmatpush1.bf16.msra.mxu0 0
    %1889 = vmatprep.subr.bf16.mxu0 0
    %1890 = vmatpush1.bf16.msra.mxu0 0
    %1891 = vmatprep.subr.bf16.mxu0 0
    %1892 = vmatpush1.bf16.msra.mxu0 0
    %1893 = vmatprep.subr.bf16.mxu0 0
    %1894 = vmatpush1.bf16.msra.mxu0 0
    %1895 = vmatprep.subr.bf16.mxu0 0
    %1896 = vmatpush1.bf16.msra.mxu0 0
    %1897 = vmatprep.subr.bf16.mxu0 0
    %1898 = vmatpush1.bf16.msra.mxu0 0
    %1899 = vmatprep.subr.bf16.mxu0 0
    %1900 = vmatpush1.bf16.msra.mxu0 0
    %1901 = vmatprep.subr.bf16.mxu0 0
    %1902 = vmatpush1.bf16.msra.mxu0 0
    %1903 = vmatprep.mubr.bf16.mxu0 0
    %1904 = vmatmul.mubr.bf16.gmra.mrb[0].mxu0 %v1652
    %v1905 = vpop.f32.mrb[0].mxu0
    %v1906 = vadd.f32 %v1698, %v1905
    %v1907 = vpop.f32.mrb[0].mxu0
    %v1908 = vpop.f32.mrb[0].mxu0
    %v1909 = vpop.f32.mrb[0].mxu0
    %1910 = vdwg.mxu0
    %s1911 = scalar_lea.vmem [#allocation4], 96
    %v1912 = vld [vmem:[%s1911] sm:$0xff]
    %v1913 = vld [vmem:[%s1911 + $0x8] sm:$0xff]
    %v1914 = vld [vmem:[%s1911 + $0x10] sm:$0xff]
    %v1915 = vadd.f32 %v1912, %v1865
    %v1916 = vxor.u32 %v1915, 2147483648
    %v1917 = vmul.f32 %v1916, 1.442695
    %v1918 = vpow.pop %v1917
    %v1919 = vadd.f32 %v1918, 1.0
    %v1920 = vrcp.pop %v1919
    %v1921 = vmul.f32 1.0, %v1920
    %v1922 = vadd.f32 %v1913, %v1867
    %v1923 = vxor.u32 %v1922, 2147483648
    %v1924 = vmul.f32 %v1923, 1.442695
    %v1925 = vpow.pop %v1924
    %v1926 = vadd.f32 %v1925, 1.0
    %v1927 = vrcp.pop %v1926
    %v1928 = vmul.f32 1.0, %v1927
    %v1929 = vmul.f32 %v1921, %v1906
    %v1930 = vadd.f32 %v1914, %v1929
    %v1931 = vtanh.pop %v1930
    %v1932 = vsub.f32 1.0, %v1928
    %v1933 = vmul.f32 %v1932, %v1931
    %v1934 = vmul.f32 %v1928, %v1649
    %v1935 = vadd.f32 %v1933, %v1934
    %s1936 = scalar_lea.vmem [#allocation2], 32
    %1937 = vst [vmem:[%s1936] sm:$0xff] %v1935
    %v1938 = vpack.c.bf16 %v1935, %v1935
    %v1939 = vld [vmem:[#allocation10] sm:$0xff]
    %v1940 = vld [vmem:[#allocation10 + $0x8] sm:$0xf]
    %v1941 = vld [vmem:[#allocation10 + $0xc] sm:$0xff]
    %v1942 = vld [vmem:[#allocation10 + $0x14] sm:$0xf]
    %v1943 = vld [vmem:[#allocation10 + $0x18] sm:$0xff]
    %v1944 = vld [vmem:[#allocation10 + $0x20] sm:$0xf]
    %v1945 = vld [vmem:[#allocation10 + $0x24] sm:$0xff]
    %v1946 = vld [vmem:[#allocation10 + $0x2c] sm:$0xf]
    %v1947 = vld [vmem:[#allocation10 + $0x30] sm:$0xff]
    %v1948 = vld [vmem:[#allocation10 + $0x38] sm:$0xf]
    %v1949 = vld [vmem:[#allocation10 + $0x3c] sm:$0xff]
    %v1950 = vld [vmem:[#allocation10 + $0x44] sm:$0xf]
    %v1951 = vld [vmem:[#allocation10 + $0x48] sm:$0xff]
    %v1952 = vld [vmem:[#allocation10 + $0x50] sm:$0xf]
    %v1953 = vld [vmem:[#allocation10 + $0x54] sm:$0xff]
    %v1954 = vld [vmem:[#allocation10 + $0x5c] sm:$0xf]
    %v1955 = vld [vmem:[#allocation10 + $0x60] sm:$0xff]
    %v1956 = vld [vmem:[#allocation10 + $0x68] sm:$0xf]
    %v1957 = vld [vmem:[#allocation10 + $0x6c] sm:$0xff]
    %v1958 = vld [vmem:[#allocation10 + $0x74] sm:$0xf]
    %v1959 = vld [vmem:[#allocation10 + $0x78] sm:$0xff]
    %v1960 = vld [vmem:[#allocation10 + $0x80] sm:$0xf]
    %v1961 = vld [vmem:[#allocation10 + $0x84] sm:$0xff]
    %v1962 = vld [vmem:[#allocation10 + $0x8c] sm:$0xf]
    %v1963 = vld [vmem:[#allocation10 + $0x90] sm:$0xff]
    %v1964 = vld [vmem:[#allocation10 + $0x98] sm:$0xf]
    %v1965 = vld [vmem:[#allocation10 + $0x9c] sm:$0xff]
    %v1966 = vld [vmem:[#allocation10 + $0xa4] sm:$0xf]
    %v1967 = vld [vmem:[#allocation10 + $0xa8] sm:$0xff]
    %v1968 = vld [vmem:[#allocation10 + $0xb0] sm:$0xf]
    %v1969 = vld [vmem:[#allocation10 + $0xb4] sm:$0xff]
    %v1970 = vld [vmem:[#allocation10 + $0xbc] sm:$0xf]
    %v1971 = vld [vmem:[#allocation12] sm:$0x7]
    %v1973 = vlaneseq
    %v1974 = vshrl.u32 %v1973, 7
    %v1975 = vsub.s32 0, %v1974
    %v1976 = vrot.slane %v1971, %v1975
    %v1977 = vlaneseq
    %v1978 = vshrl.u32 %v1977, 7
    %v1979 = vsub.s32 1, %v1978
    %v1980 = vrot.slane %v1971, %v1979
    %v1981 = vlaneseq
    %v1982 = vshrl.u32 %v1981, 7
    %v1983 = vsub.s32 2, %v1982
    %v1984 = vrot.slane %v1971, %v1983
    %v2020 = vunpack.c.l.b16 %v1939
    %v2021 = vunpack.c.h.b16 %v1939
    %v2022 = vunpack.c.l.b16 %v1940
    %v2023 = vunpack.c.l.b16 %v1941
    %v2024 = vunpack.c.h.b16 %v1941
    %v2025 = vunpack.c.l.b16 %v1942
    %v2026 = vunpack.c.l.b16 %v1943
    %v2027 = vunpack.c.h.b16 %v1943
    %v2028 = vunpack.c.l.b16 %v1944
    %v2029 = vunpack.c.l.b16 %v1945
    %v2030 = vunpack.c.h.b16 %v1945
    %v2031 = vunpack.c.l.b16 %v1946
    %v2032 = vunpack.c.l.b16 %v1947
    %v2033 = vunpack.c.h.b16 %v1947
    %v2034 = vunpack.c.l.b16 %v1948
    %v2035 = vunpack.c.l.b16 %v1949
    %v2036 = vunpack.c.h.b16 %v1949
    %v2037 = vunpack.c.l.b16 %v1950
    %v2038 = vunpack.c.l.b16 %v1951
    %v2039 = vunpack.c.h.b16 %v1951
    %v2040 = vunpack.c.l.b16 %v1952
    %v2041 = vunpack.c.l.b16 %v1953
    %v2042 = vunpack.c.h.b16 %v1953
    %v2043 = vunpack.c.l.b16 %v1954
    %v2044 = vunpack.c.l.b16 %v1955
    %v2045 = vunpack.c.h.b16 %v1955
    %v2046 = vunpack.c.l.b16 %v1956
    %v2047 = vunpack.c.l.b16 %v1957
    %v2048 = vunpack.c.h.b16 %v1957
    %v2049 = vunpack.c.l.b16 %v1958
    %v2050 = vunpack.c.l.b16 %v1959
    %v2051 = vunpack.c.h.b16 %v1959
    %v2052 = vunpack.c.l.b16 %v1960
    %v2053 = vunpack.c.l.b16 %v1961
    %v2054 = vunpack.c.h.b16 %v1961
    %v2055 = vunpack.c.l.b16 %v1962
    %v2056 = vunpack.c.l.b16 %v1963
    %v2057 = vunpack.c.h.b16 %v1963
    %v2058 = vunpack.c.l.b16 %v1964
    %v2059 = vunpack.c.l.b16 %v1965
    %v2060 = vunpack.c.h.b16 %v1965
    %v2061 = vunpack.c.l.b16 %v1966
    %v2062 = vunpack.c.l.b16 %v1967
    %v2063 = vunpack.c.h.b16 %v1967
    %v2064 = vunpack.c.l.b16 %v1968
    %v2065 = vunpack.c.l.b16 %v1969
    %v2066 = vunpack.c.h.b16 %v1969
    %v2067 = vunpack.c.l.b16 %v1970
    %v2068 = vpack.c.b16 %v2023, %v2020
    %v2069 = vpack.c.b16 %v2024, %v2021
    %v2070 = vpack.c.b16 %v2025, %v2022
    %v2071 = vpack.c.b16 %v2029, %v2026
    %v2072 = vpack.c.b16 %v2030, %v2027
    %v2073 = vpack.c.b16 %v2031, %v2028
    %v2074 = vpack.c.b16 %v2035, %v2032
    %v2075 = vpack.c.b16 %v2036, %v2033
    %v2076 = vpack.c.b16 %v2037, %v2034
    %v2077 = vpack.c.b16 %v2041, %v2038
    %v2078 = vpack.c.b16 %v2042, %v2039
    %v2079 = vpack.c.b16 %v2043, %v2040
    %v2080 = vpack.c.b16 %v2047, %v2044
    %v2081 = vpack.c.b16 %v2048, %v2045
    %v2082 = vpack.c.b16 %v2049, %v2046
    %v2083 = vpack.c.b16 %v2053, %v2050
    %v2084 = vpack.c.b16 %v2054, %v2051
    %v2085 = vpack.c.b16 %v2055, %v2052
    %v2086 = vpack.c.b16 %v2059, %v2056
    %v2087 = vpack.c.b16 %v2060, %v2057
    %v2088 = vpack.c.b16 %v2061, %v2058
    %v2089 = vpack.c.b16 %v2065, %v2062
    %v2090 = vpack.c.b16 %v2066, %v2063
    %v2091 = vpack.c.b16 %v2067, %v2064
    %2116 = vmatprep.subr.bf16.mxu0 %v2069
    %2117 = vmatpush1.bf16.msra.mxu0 %v2068
    %2118 = vmatprep.subr.bf16.mxu0 %v2072
    %2119 = vmatpush1.bf16.msra.mxu0 %v2071
    %2120 = vmatprep.subr.bf16.mxu0 %v2075
    %2121 = vmatpush1.bf16.msra.mxu0 %v2074
    %2122 = vmatprep.subr.bf16.mxu0 %v2078
    %2123 = vmatpush1.bf16.msra.mxu0 %v2077
    %2124 = vmatprep.subr.bf16.mxu0 %v2081
    %2125 = vmatpush1.bf16.msra.mxu0 %v2080
    %2126 = vmatprep.subr.bf16.mxu0 %v2084
    %2127 = vmatpush1.bf16.msra.mxu0 %v2083
    %2128 = vmatprep.subr.bf16.mxu0 %v2087
    %2129 = vmatpush1.bf16.msra.mxu0 %v2086
    %2130 = vmatprep.subr.bf16.mxu0 %v2090
    %2131 = vmatpush1.bf16.msra.mxu0 %v2089
    %2132 = vmatprep.subr.bf16.mxu0 0
    %2133 = vmatpush1.bf16.msra.mxu0 0
    %2134 = vmatprep.subr.bf16.mxu0 0
    %2135 = vmatpush1.bf16.msra.mxu0 0
    %2136 = vmatprep.subr.bf16.mxu0 0
    %2137 = vmatpush1.bf16.msra.mxu0 0
    %2138 = vmatprep.subr.bf16.mxu0 0
    %2139 = vmatpush1.bf16.msra.mxu0 0
    %2140 = vmatprep.subr.bf16.mxu0 0
    %2141 = vmatpush1.bf16.msra.mxu0 0
    %2142 = vmatprep.subr.bf16.mxu0 0
    %2143 = vmatpush1.bf16.msra.mxu0 0
    %2144 = vmatprep.subr.bf16.mxu0 0
    %2145 = vmatpush1.bf16.msra.mxu0 0
    %2146 = vmatprep.subr.bf16.mxu0 0
    %2147 = vmatpush1.bf16.msra.mxu0 0
    %2148 = vmatprep.mubr.bf16.mxu0 0
    %2149 = vmatmul.mubr.bf16.gmra.mrb[0].mxu0 %v1938
    %v2150 = vpop.f32.mrb[0].mxu0
    %v2151 = vadd.f32 %v1976, %v2150
    %v2152 = vpop.f32.mrb[0].mxu0
    %v2153 = vadd.f32 %v1980, %v2152
    %v2154 = vpop.f32.mrb[0].mxu0
    %v2155 = vpop.f32.mrb[0].mxu0
    %2156 = vdwg.mxu0
    %2157 = vmatprep.subr.bf16.mxu0 0
    %2158 = vmatpush1.bf16.msra.mxu0 %v2070
    %2159 = vmatprep.subr.bf16.mxu0 0
    %2160 = vmatpush1.bf16.msra.mxu0 %v2073
    %2161 = vmatprep.subr.bf16.mxu0 0
    %2162 = vmatpush1.bf16.msra.mxu0 %v2076
    %2163 = vmatprep.subr.bf16.mxu0 0
    %2164 = vmatpush1.bf16.msra.mxu0 %v2079
    %2165 = vmatprep.subr.bf16.mxu0 0
    %2166 = vmatpush1.bf16.msra.mxu0 %v2082
    %2167 = vmatprep.subr.bf16.mxu0 0
    %2168 = vmatpush1.bf16.msra.mxu0 %v2085
    %2169 = vmatprep.subr.bf16.mxu0 0
    %2170 = vmatpush1.bf16.msra.mxu0 %v2088
    %2171 = vmatprep.subr.bf16.mxu0 0
    %2172 = vmatpush1.bf16.msra.mxu0 %v2091
    %2173 = vmatprep.subr.bf16.mxu0 0
    %2174 = vmatpush1.bf16.msra.mxu0 0
    %2175 = vmatprep.subr.bf16.mxu0 0
    %2176 = vmatpush1.bf16.msra.mxu0 0
    %2177 = vmatprep.subr.bf16.mxu0 0
    %2178 = vmatpush1.bf16.msra.mxu0 0
    %2179 = vmatprep.subr.bf16.mxu0 0
    %2180 = vmatpush1.bf16.msra.mxu0 0
    %2181 = vmatprep.subr.bf16.mxu0 0
    %2182 = vmatpush1.bf16.msra.mxu0 0
    %2183 = vmatprep.subr.bf16.mxu0 0
    %2184 = vmatpush1.bf16.msra.mxu0 0
    %2185 = vmatprep.subr.bf16.mxu0 0
    %2186 = vmatpush1.bf16.msra.mxu0 0
    %2187 = vmatprep.subr.bf16.mxu0 0
    %2188 = vmatpush1.bf16.msra.mxu0 0
    %2189 = vmatprep.mubr.bf16.mxu0 0
    %2190 = vmatmul.mubr.bf16.gmra.mrb[0].mxu0 %v1938
    %v2191 = vpop.f32.mrb[0].mxu0
    %v2192 = vadd.f32 %v1984, %v2191
    %v2193 = vpop.f32.mrb[0].mxu0
    %v2194 = vpop.f32.mrb[0].mxu0
    %v2195 = vpop.f32.mrb[0].mxu0
    %2196 = vdwg.mxu0
    %s2197 = scalar_lea.vmem [#allocation4], 120
    %v2198 = vld [vmem:[%s2197] sm:$0xff]
    %v2199 = vld [vmem:[%s2197 + $0x8] sm:$0xff]
    %v2200 = vld [vmem:[%s2197 + $0x10] sm:$0xff]
    %v2201 = vadd.f32 %v2198, %v2151
    %v2202 = vxor.u32 %v2201, 2147483648
    %v2203 = vmul.f32 %v2202, 1.442695
    %v2204 = vpow.pop %v2203
    %v2205 = vadd.f32 %v2204, 1.0
    %v2206 = vrcp.pop %v2205
    %v2207 = vmul.f32 1.0, %v2206
    %v2208 = vadd.f32 %v2199, %v2153
    %v2209 = vxor.u32 %v2208, 2147483648
    %v2210 = vmul.f32 %v2209, 1.442695
    %v2211 = vpow.pop %v2210
    %v2212 = vadd.f32 %v2211, 1.0
    %v2213 = vrcp.pop %v2212
    %v2214 = vmul.f32 1.0, %v2213
    %v2215 = vmul.f32 %v2207, %v2192
    %v2216 = vadd.f32 %v2200, %v2215
    %v2217 = vtanh.pop %v2216
    %v2218 = vsub.f32 1.0, %v2214
    %v2219 = vmul.f32 %v2218, %v2217
    %v2220 = vmul.f32 %v2214, %v1935
    %v2221 = vadd.f32 %v2219, %v2220
    %s2222 = scalar_lea.vmem [#allocation2], 40
    %2223 = vst [vmem:[%s2222] sm:$0xff] %v2221
    %v2224 = vpack.c.bf16 %v2221, %v2221
    %v2225 = vld [vmem:[#allocation10] sm:$0xff]
    %v2226 = vld [vmem:[#allocation10 + $0x8] sm:$0xf]
    %v2227 = vld [vmem:[#allocation10 + $0xc] sm:$0xff]
    %v2228 = vld [vmem:[#allocation10 + $0x14] sm:$0xf]
    %v2229 = vld [vmem:[#allocation10 + $0x18] sm:$0xff]
    %v2230 = vld [vmem:[#allocation10 + $0x20] sm:$0xf]
    %v2231 = vld [vmem:[#allocation10 + $0x24] sm:$0xff]
    %v2232 = vld [vmem:[#allocation10 + $0x2c] sm:$0xf]
    %v2233 = vld [vmem:[#allocation10 + $0x30] sm:$0xff]
    %v2234 = vld [vmem:[#allocation10 + $0x38] sm:$0xf]
    %v2235 = vld [vmem:[#allocation10 + $0x3c] sm:$0xff]
    %v2236 = vld [vmem:[#allocation10 + $0x44] sm:$0xf]
    %v2237 = vld [vmem:[#allocation10 + $0x48] sm:$0xff]
    %v2238 = vld [vmem:[#allocation10 + $0x50] sm:$0xf]
    %v2239 = vld [vmem:[#allocation10 + $0x54] sm:$0xff]
    %v2240 = vld [vmem:[#allocation10 + $0x5c] sm:$0xf]
    %v2241 = vld [vmem:[#allocation10 + $0x60] sm:$0xff]
    %v2242 = vld [vmem:[#allocation10 + $0x68] sm:$0xf]
    %v2243 = vld [vmem:[#allocation10 + $0x6c] sm:$0xff]
    %v2244 = vld [vmem:[#allocation10 + $0x74] sm:$0xf]
    %v2245 = vld [vmem:[#allocation10 + $0x78] sm:$0xff]
    %v2246 = vld [vmem:[#allocation10 + $0x80] sm:$0xf]
    %v2247 = vld [vmem:[#allocation10 + $0x84] sm:$0xff]
    %v2248 = vld [vmem:[#allocation10 + $0x8c] sm:$0xf]
    %v2249 = vld [vmem:[#allocation10 + $0x90] sm:$0xff]
    %v2250 = vld [vmem:[#allocation10 + $0x98] sm:$0xf]
    %v2251 = vld [vmem:[#allocation10 + $0x9c] sm:$0xff]
    %v2252 = vld [vmem:[#allocation10 + $0xa4] sm:$0xf]
    %v2253 = vld [vmem:[#allocation10 + $0xa8] sm:$0xff]
    %v2254 = vld [vmem:[#allocation10 + $0xb0] sm:$0xf]
    %v2255 = vld [vmem:[#allocation10 + $0xb4] sm:$0xff]
    %v2256 = vld [vmem:[#allocation10 + $0xbc] sm:$0xf]
    %v2257 = vld [vmem:[#allocation12] sm:$0x7]
    %v2259 = vlaneseq
    %v2260 = vshrl.u32 %v2259, 7
    %v2261 = vsub.s32 0, %v2260
    %v2262 = vrot.slane %v2257, %v2261
    %v2263 = vlaneseq
    %v2264 = vshrl.u32 %v2263, 7
    %v2265 = vsub.s32 1, %v2264
    %v2266 = vrot.slane %v2257, %v2265
    %v2267 = vlaneseq
    %v2268 = vshrl.u32 %v2267, 7
    %v2269 = vsub.s32 2, %v2268
    %v2270 = vrot.slane %v2257, %v2269
    %v2306 = vunpack.c.l.b16 %v2225
    %v2307 = vunpack.c.h.b16 %v2225
    %v2308 = vunpack.c.l.b16 %v2226
    %v2309 = vunpack.c.l.b16 %v2227
    %v2310 = vunpack.c.h.b16 %v2227
    %v2311 = vunpack.c.l.b16 %v2228
    %v2312 = vunpack.c.l.b16 %v2229
    %v2313 = vunpack.c.h.b16 %v2229
    %v2314 = vunpack.c.l.b16 %v2230
    %v2315 = vunpack.c.l.b16 %v2231
    %v2316 = vunpack.c.h.b16 %v2231
    %v2317 = vunpack.c.l.b16 %v2232
    %v2318 = vunpack.c.l.b16 %v2233
    %v2319 = vunpack.c.h.b16 %v2233
    %v2320 = vunpack.c.l.b16 %v2234
    %v2321 = vunpack.c.l.b16 %v2235
    %v2322 = vunpack.c.h.b16 %v2235
    %v2323 = vunpack.c.l.b16 %v2236
    %v2324 = vunpack.c.l.b16 %v2237
    %v2325 = vunpack.c.h.b16 %v2237
    %v2326 = vunpack.c.l.b16 %v2238
    %v2327 = vunpack.c.l.b16 %v2239
    %v2328 = vunpack.c.h.b16 %v2239
    %v2329 = vunpack.c.l.b16 %v2240
    %v2330 = vunpack.c.l.b16 %v2241
    %v2331 = vunpack.c.h.b16 %v2241
    %v2332 = vunpack.c.l.b16 %v2242
    %v2333 = vunpack.c.l.b16 %v2243
    %v2334 = vunpack.c.h.b16 %v2243
    %v2335 = vunpack.c.l.b16 %v2244
    %v2336 = vunpack.c.l.b16 %v2245
    %v2337 = vunpack.c.h.b16 %v2245
    %v2338 = vunpack.c.l.b16 %v2246
    %v2339 = vunpack.c.l.b16 %v2247
    %v2340 = vunpack.c.h.b16 %v2247
    %v2341 = vunpack.c.l.b16 %v2248
    %v2342 = vunpack.c.l.b16 %v2249
    %v2343 = vunpack.c.h.b16 %v2249
    %v2344 = vunpack.c.l.b16 %v2250
    %v2345 = vunpack.c.l.b16 %v2251
    %v2346 = vunpack.c.h.b16 %v2251
    %v2347 = vunpack.c.l.b16 %v2252
    %v2348 = vunpack.c.l.b16 %v2253
    %v2349 = vunpack.c.h.b16 %v2253
    %v2350 = vunpack.c.l.b16 %v2254
    %v2351 = vunpack.c.l.b16 %v2255
    %v2352 = vunpack.c.h.b16 %v2255
    %v2353 = vunpack.c.l.b16 %v2256
    %v2354 = vpack.c.b16 %v2309, %v2306
    %v2355 = vpack.c.b16 %v2310, %v2307
    %v2356 = vpack.c.b16 %v2311, %v2308
    %v2357 = vpack.c.b16 %v2315, %v2312
    %v2358 = vpack.c.b16 %v2316, %v2313
    %v2359 = vpack.c.b16 %v2317, %v2314
    %v2360 = vpack.c.b16 %v2321, %v2318
    %v2361 = vpack.c.b16 %v2322, %v2319
    %v2362 = vpack.c.b16 %v2323, %v2320
    %v2363 = vpack.c.b16 %v2327, %v2324
    %v2364 = vpack.c.b16 %v2328, %v2325
    %v2365 = vpack.c.b16 %v2329, %v2326
    %v2366 = vpack.c.b16 %v2333, %v2330
    %v2367 = vpack.c.b16 %v2334, %v2331
    %v2368 = vpack.c.b16 %v2335, %v2332
    %v2369 = vpack.c.b16 %v2339, %v2336
    %v2370 = vpack.c.b16 %v2340, %v2337
    %v2371 = vpack.c.b16 %v2341, %v2338
    %v2372 = vpack.c.b16 %v2345, %v2342
    %v2373 = vpack.c.b16 %v2346, %v2343
    %v2374 = vpack.c.b16 %v2347, %v2344
    %v2375 = vpack.c.b16 %v2351, %v2348
    %v2376 = vpack.c.b16 %v2352, %v2349
    %v2377 = vpack.c.b16 %v2353, %v2350
    %2402 = vmatprep.subr.bf16.mxu0 %v2355
    %2403 = vmatpush1.bf16.msra.mxu0 %v2354
    %2404 = vmatprep.subr.bf16.mxu0 %v2358
    %2405 = vmatpush1.bf16.msra.mxu0 %v2357
    %2406 = vmatprep.subr.bf16.mxu0 %v2361
    %2407 = vmatpush1.bf16.msra.mxu0 %v2360
    %2408 = vmatprep.subr.bf16.mxu0 %v2364
    %2409 = vmatpush1.bf16.msra.mxu0 %v2363
    %2410 = vmatprep.subr.bf16.mxu0 %v2367
    %2411 = vmatpush1.bf16.msra.mxu0 %v2366
    %2412 = vmatprep.subr.bf16.mxu0 %v2370
    %2413 = vmatpush1.bf16.msra.mxu0 %v2369
    %2414 = vmatprep.subr.bf16.mxu0 %v2373
    %2415 = vmatpush1.bf16.msra.mxu0 %v2372
    %2416 = vmatprep.subr.bf16.mxu0 %v2376
    %2417 = vmatpush1.bf16.msra.mxu0 %v2375
    %2418 = vmatprep.subr.bf16.mxu0 0
    %2419 = vmatpush1.bf16.msra.mxu0 0
    %2420 = vmatprep.subr.bf16.mxu0 0
    %2421 = vmatpush1.bf16.msra.mxu0 0
    %2422 = vmatprep.subr.bf16.mxu0 0
    %2423 = vmatpush1.bf16.msra.mxu0 0
    %2424 = vmatprep.subr.bf16.mxu0 0
    %2425 = vmatpush1.bf16.msra.mxu0 0
    %2426 = vmatprep.subr.bf16.mxu0 0
    %2427 = vmatpush1.bf16.msra.mxu0 0
    %2428 = vmatprep.subr.bf16.mxu0 0
    %2429 = vmatpush1.bf16.msra.mxu0 0
    %2430 = vmatprep.subr.bf16.mxu0 0
    %2431 = vmatpush1.bf16.msra.mxu0 0
    %2432 = vmatprep.subr.bf16.mxu0 0
    %2433 = vmatpush1.bf16.msra.mxu0 0
    %2434 = vmatprep.mubr.bf16.mxu0 0
    %2435 = vmatmul.mubr.bf16.gmra.mrb[0].mxu0 %v2224
    %v2436 = vpop.f32.mrb[0].mxu0
    %v2437 = vadd.f32 %v2262, %v2436
    %v2438 = vpop.f32.mrb[0].mxu0
    %v2439 = vadd.f32 %v2266, %v2438
    %v2440 = vpop.f32.mrb[0].mxu0
    %v2441 = vpop.f32.mrb[0].mxu0
    %2442 = vdwg.mxu0
    %2443 = vmatprep.subr.bf16.mxu0 0
    %2444 = vmatpush1.bf16.msra.mxu0 %v2356
    %2445 = vmatprep.subr.bf16.mxu0 0
    %2446 = vmatpush1.bf16.msra.mxu0 %v2359
    %2447 = vmatprep.subr.bf16.mxu0 0
    %2448 = vmatpush1.bf16.msra.mxu0 %v2362
    %2449 = vmatprep.subr.bf16.mxu0 0
    %2450 = vmatpush1.bf16.msra.mxu0 %v2365
    %2451 = vmatprep.subr.bf16.mxu0 0
    %2452 = vmatpush1.bf16.msra.mxu0 %v2368
    %2453 = vmatprep.subr.bf16.mxu0 0
    %2454 = vmatpush1.bf16.msra.mxu0 %v2371
    %2455 = vmatprep.subr.bf16.mxu0 0
    %2456 = vmatpush1.bf16.msra.mxu0 %v2374
    %2457 = vmatprep.subr.bf16.mxu0 0
    %2458 = vmatpush1.bf16.msra.mxu0 %v2377
    %2459 = vmatprep.subr.bf16.mxu0 0
    %2460 = vmatpush1.bf16.msra.mxu0 0
    %2461 = vmatprep.subr.bf16.mxu0 0
    %2462 = vmatpush1.bf16.msra.mxu0 0
    %2463 = vmatprep.subr.bf16.mxu0 0
    %2464 = vmatpush1.bf16.msra.mxu0 0
    %2465 = vmatprep.subr.bf16.mxu0 0
    %2466 = vmatpush1.bf16.msra.mxu0 0
    %2467 = vmatprep.subr.bf16.mxu0 0
    %2468 = vmatpush1.bf16.msra.mxu0 0
    %2469 = vmatprep.subr.bf16.mxu0 0
    %2470 = vmatpush1.bf16.msra.mxu0 0
    %2471 = vmatprep.subr.bf16.mxu0 0
    %2472 = vmatpush1.bf16.msra.mxu0 0
    %2473 = vmatprep.subr.bf16.mxu0 0
    %2474 = vmatpush1.bf16.msra.mxu0 0
    %2475 = vmatprep.mubr.bf16.mxu0 0
    %2476 = vmatmul.mubr.bf16.gmra.mrb[0].mxu0 %v2224
    %v2477 = vpop.f32.mrb[0].mxu0
    %v2478 = vadd.f32 %v2270, %v2477
    %v2479 = vpop.f32.mrb[0].mxu0
    %v2480 = vpop.f32.mrb[0].mxu0
    %v2481 = vpop.f32.mrb[0].mxu0
    %2482 = vdwg.mxu0
    %s2483 = scalar_lea.vmem [#allocation4], 144
    %v2484 = vld [vmem:[%s2483] sm:$0xff]
    %v2485 = vld [vmem:[%s2483 + $0x8] sm:$0xff]
    %v2486 = vld [vmem:[%s2483 + $0x10] sm:$0xff]
    %v2487 = vadd.f32 %v2484, %v2437
    %v2488 = vxor.u32 %v2487, 2147483648
    %v2489 = vmul.f32 %v2488, 1.442695
    %v2490 = vpow.pop %v2489
    %v2491 = vadd.f32 %v2490, 1.0
    %v2492 = vrcp.pop %v2491
    %v2493 = vmul.f32 1.0, %v2492
    %v2494 = vadd.f32 %v2485, %v2439
    %v2495 = vxor.u32 %v2494, 2147483648
    %v2496 = vmul.f32 %v2495, 1.442695
    %v2497 = vpow.pop %v2496
    %v2498 = vadd.f32 %v2497, 1.0
    %v2499 = vrcp.pop %v2498
    %v2500 = vmul.f32 1.0, %v2499
    %v2501 = vmul.f32 %v2493, %v2478
    %v2502 = vadd.f32 %v2486, %v2501
    %v2503 = vtanh.pop %v2502
    %v2504 = vsub.f32 1.0, %v2500
    %v2505 = vmul.f32 %v2504, %v2503
    %v2506 = vmul.f32 %v2500, %v2221
    %v2507 = vadd.f32 %v2505, %v2506
    %s2508 = scalar_lea.vmem [#allocation2], 48
    %2509 = vst [vmem:[%s2508] sm:$0xff] %v2507
    %v2510 = vpack.c.bf16 %v2507, %v2507
    %v2511 = vld [vmem:[#allocation10] sm:$0xff]
    %v2512 = vld [vmem:[#allocation10 + $0x8] sm:$0xf]
    %v2513 = vld [vmem:[#allocation10 + $0xc] sm:$0xff]
    %v2514 = vld [vmem:[#allocation10 + $0x14] sm:$0xf]
    %v2515 = vld [vmem:[#allocation10 + $0x18] sm:$0xff]
    %v2516 = vld [vmem:[#allocation10 + $0x20] sm:$0xf]
    %v2517 = vld [vmem:[#allocation10 + $0x24] sm:$0xff]
    %v2518 = vld [vmem:[#allocation10 + $0x2c] sm:$0xf]
    %v2519 = vld [vmem:[#allocation10 + $0x30] sm:$0xff]
    %v2520 = vld [vmem:[#allocation10 + $0x38] sm:$0xf]
    %v2521 = vld [vmem:[#allocation10 + $0x3c] sm:$0xff]
    %v2522 = vld [vmem:[#allocation10 + $0x44] sm:$0xf]
    %v2523 = vld [vmem:[#allocation10 + $0x48] sm:$0xff]
    %v2524 = vld [vmem:[#allocation10 + $0x50] sm:$0xf]
    %v2525 = vld [vmem:[#allocation10 + $0x54] sm:$0xff]
    %v2526 = vld [vmem:[#allocation10 + $0x5c] sm:$0xf]
    %v2527 = vld [vmem:[#allocation10 + $0x60] sm:$0xff]
    %v2528 = vld [vmem:[#allocation10 + $0x68] sm:$0xf]
    %v2529 = vld [vmem:[#allocation10 + $0x6c] sm:$0xff]
    %v2530 = vld [vmem:[#allocation10 + $0x74] sm:$0xf]
    %v2531 = vld [vmem:[#allocation10 + $0x78] sm:$0xff]
    %v2532 = vld [vmem:[#allocation10 + $0x80] sm:$0xf]
    %v2533 = vld [vmem:[#allocation10 + $0x84] sm:$0xff]
    %v2534 = vld [vmem:[#allocation10 + $0x8c] sm:$0xf]
    %v2535 = vld [vmem:[#allocation10 + $0x90] sm:$0xff]
    %v2536 = vld [vmem:[#allocation10 + $0x98] sm:$0xf]
    %v2537 = vld [vmem:[#allocation10 + $0x9c] sm:$0xff]
    %v2538 = vld [vmem:[#allocation10 + $0xa4] sm:$0xf]
    %v2539 = vld [vmem:[#allocation10 + $0xa8] sm:$0xff]
    %v2540 = vld [vmem:[#allocation10 + $0xb0] sm:$0xf]
    %v2541 = vld [vmem:[#allocation10 + $0xb4] sm:$0xff]
    %v2542 = vld [vmem:[#allocation10 + $0xbc] sm:$0xf]
    %v2543 = vld [vmem:[#allocation12] sm:$0x7]
    %v2545 = vlaneseq
    %v2546 = vshrl.u32 %v2545, 7
    %v2547 = vsub.s32 0, %v2546
    %v2548 = vrot.slane %v2543, %v2547
    %v2549 = vlaneseq
    %v2550 = vshrl.u32 %v2549, 7
    %v2551 = vsub.s32 1, %v2550
    %v2552 = vrot.slane %v2543, %v2551
    %v2553 = vlaneseq
    %v2554 = vshrl.u32 %v2553, 7
    %v2555 = vsub.s32 2, %v2554
    %v2556 = vrot.slane %v2543, %v2555
    %v2592 = vunpack.c.l.b16 %v2511
    %v2593 = vunpack.c.h.b16 %v2511
    %v2594 = vunpack.c.l.b16 %v2512
    %v2595 = vunpack.c.l.b16 %v2513
    %v2596 = vunpack.c.h.b16 %v2513
    %v2597 = vunpack.c.l.b16 %v2514
    %v2598 = vunpack.c.l.b16 %v2515
    %v2599 = vunpack.c.h.b16 %v2515
    %v2600 = vunpack.c.l.b16 %v2516
    %v2601 = vunpack.c.l.b16 %v2517
    %v2602 = vunpack.c.h.b16 %v2517
    %v2603 = vunpack.c.l.b16 %v2518
    %v2604 = vunpack.c.l.b16 %v2519
    %v2605 = vunpack.c.h.b16 %v2519
    %v2606 = vunpack.c.l.b16 %v2520
    %v2607 = vunpack.c.l.b16 %v2521
    %v2608 = vunpack.c.h.b16 %v2521
    %v2609 = vunpack.c.l.b16 %v2522
    %v2610 = vunpack.c.l.b16 %v2523
    %v2611 = vunpack.c.h.b16 %v2523
    %v2612 = vunpack.c.l.b16 %v2524
    %v2613 = vunpack.c.l.b16 %v2525
    %v2614 = vunpack.c.h.b16 %v2525
    %v2615 = vunpack.c.l.b16 %v2526
    %v2616 = vunpack.c.l.b16 %v2527
    %v2617 = vunpack.c.h.b16 %v2527
    %v2618 = vunpack.c.l.b16 %v2528
    %v2619 = vunpack.c.l.b16 %v2529
    %v2620 = vunpack.c.h.b16 %v2529
    %v2621 = vunpack.c.l.b16 %v2530
    %v2622 = vunpack.c.l.b16 %v2531
    %v2623 = vunpack.c.h.b16 %v2531
    %v2624 = vunpack.c.l.b16 %v2532
    %v2625 = vunpack.c.l.b16 %v2533
    %v2626 = vunpack.c.h.b16 %v2533
    %v2627 = vunpack.c.l.b16 %v2534
    %v2628 = vunpack.c.l.b16 %v2535
    %v2629 = vunpack.c.h.b16 %v2535
    %v2630 = vunpack.c.l.b16 %v2536
    %v2631 = vunpack.c.l.b16 %v2537
    %v2632 = vunpack.c.h.b16 %v2537
    %v2633 = vunpack.c.l.b16 %v2538
    %v2634 = vunpack.c.l.b16 %v2539
    %v2635 = vunpack.c.h.b16 %v2539
    %v2636 = vunpack.c.l.b16 %v2540
    %v2637 = vunpack.c.l.b16 %v2541
    %v2638 = vunpack.c.h.b16 %v2541
    %v2639 = vunpack.c.l.b16 %v2542
    %v2640 = vpack.c.b16 %v2595, %v2592
    %v2641 = vpack.c.b16 %v2596, %v2593
    %v2642 = vpack.c.b16 %v2597, %v2594
    %v2643 = vpack.c.b16 %v2601, %v2598
    %v2644 = vpack.c.b16 %v2602, %v2599
    %v2645 = vpack.c.b16 %v2603, %v2600
    %v2646 = vpack.c.b16 %v2607, %v2604
    %v2647 = vpack.c.b16 %v2608, %v2605
    %v2648 = vpack.c.b16 %v2609, %v2606
    %v2649 = vpack.c.b16 %v2613, %v2610
    %v2650 = vpack.c.b16 %v2614, %v2611
    %v2651 = vpack.c.b16 %v2615, %v2612
    %v2652 = vpack.c.b16 %v2619, %v2616
    %v2653 = vpack.c.b16 %v2620, %v2617
    %v2654 = vpack.c.b16 %v2621, %v2618
    %v2655 = vpack.c.b16 %v2625, %v2622
    %v2656 = vpack.c.b16 %v2626, %v2623
    %v2657 = vpack.c.b16 %v2627, %v2624
    %v2658 = vpack.c.b16 %v2631, %v2628
    %v2659 = vpack.c.b16 %v2632, %v2629
    %v2660 = vpack.c.b16 %v2633, %v2630
    %v2661 = vpack.c.b16 %v2637, %v2634
    %v2662 = vpack.c.b16 %v2638, %v2635
    %v2663 = vpack.c.b16 %v2639, %v2636
    %2688 = vmatprep.subr.bf16.mxu0 %v2641
    %2689 = vmatpush1.bf16.msra.mxu0 %v2640
    %2690 = vmatprep.subr.bf16.mxu0 %v2644
    %2691 = vmatpush1.bf16.msra.mxu0 %v2643
    %2692 = vmatprep.subr.bf16.mxu0 %v2647
    %2693 = vmatpush1.bf16.msra.mxu0 %v2646
    %2694 = vmatprep.subr.bf16.mxu0 %v2650
    %2695 = vmatpush1.bf16.msra.mxu0 %v2649
    %2696 = vmatprep.subr.bf16.mxu0 %v2653
    %2697 = vmatpush1.bf16.msra.mxu0 %v2652
    %2698 = vmatprep.subr.bf16.mxu0 %v2656
    %2699 = vmatpush1.bf16.msra.mxu0 %v2655
    %2700 = vmatprep.subr.bf16.mxu0 %v2659
    %2701 = vmatpush1.bf16.msra.mxu0 %v2658
    %2702 = vmatprep.subr.bf16.mxu0 %v2662
    %2703 = vmatpush1.bf16.msra.mxu0 %v2661
    %2704 = vmatprep.subr.bf16.mxu0 0
    %2705 = vmatpush1.bf16.msra.mxu0 0
    %2706 = vmatprep.subr.bf16.mxu0 0
    %2707 = vmatpush1.bf16.msra.mxu0 0
    %2708 = vmatprep.subr.bf16.mxu0 0
    %2709 = vmatpush1.bf16.msra.mxu0 0
    %2710 = vmatprep.subr.bf16.mxu0 0
    %2711 = vmatpush1.bf16.msra.mxu0 0
    %2712 = vmatprep.subr.bf16.mxu0 0
    %2713 = vmatpush1.bf16.msra.mxu0 0
    %2714 = vmatprep.subr.bf16.mxu0 0
    %2715 = vmatpush1.bf16.msra.mxu0 0
    %2716 = vmatprep.subr.bf16.mxu0 0
    %2717 = vmatpush1.bf16.msra.mxu0 0
    %2718 = vmatprep.subr.bf16.mxu0 0
    %2719 = vmatpush1.bf16.msra.mxu0 0
    %2720 = vmatprep.mubr.bf16.mxu0 0
    %2721 = vmatmul.mubr.bf16.gmra.mrb[0].mxu0 %v2510
    %v2722 = vpop.f32.mrb[0].mxu0
    %v2723 = vadd.f32 %v2548, %v2722
    %v2724 = vpop.f32.mrb[0].mxu0
    %v2725 = vadd.f32 %v2552, %v2724
    %v2726 = vpop.f32.mrb[0].mxu0
    %v2727 = vpop.f32.mrb[0].mxu0
    %2728 = vdwg.mxu0
    %2729 = vmatprep.subr.bf16.mxu0 0
    %2730 = vmatpush1.bf16.msra.mxu0 %v2642
    %2731 = vmatprep.subr.bf16.mxu0 0
    %2732 = vmatpush1.bf16.msra.mxu0 %v2645
    %2733 = vmatprep.subr.bf16.mxu0 0
    %2734 = vmatpush1.bf16.msra.mxu0 %v2648
    %2735 = vmatprep.subr.bf16.mxu0 0
    %2736 = vmatpush1.bf16.msra.mxu0 %v2651
    %2737 = vmatprep.subr.bf16.mxu0 0
    %2738 = vmatpush1.bf16.msra.mxu0 %v2654
    %2739 = vmatprep.subr.bf16.mxu0 0
    %2740 = vmatpush1.bf16.msra.mxu0 %v2657
    %2741 = vmatprep.subr.bf16.mxu0 0
    %2742 = vmatpush1.bf16.msra.mxu0 %v2660
    %2743 = vmatprep.subr.bf16.mxu0 0
    %2744 = vmatpush1.bf16.msra.mxu0 %v2663
    %2745 = vmatprep.subr.bf16.mxu0 0
    %2746 = vmatpush1.bf16.msra.mxu0 0
    %2747 = vmatprep.subr.bf16.mxu0 0
    %2748 = vmatpush1.bf16.msra.mxu0 0
    %2749 = vmatprep.subr.bf16.mxu0 0
    %2750 = vmatpush1.bf16.msra.mxu0 0
    %2751 = vmatprep.subr.bf16.mxu0 0
    %2752 = vmatpush1.bf16.msra.mxu0 0
    %2753 = vmatprep.subr.bf16.mxu0 0
    %2754 = vmatpush1.bf16.msra.mxu0 0
    %2755 = vmatprep.subr.bf16.mxu0 0
    %2756 = vmatpush1.bf16.msra.mxu0 0
    %2757 = vmatprep.subr.bf16.mxu0 0
    %2758 = vmatpush1.bf16.msra.mxu0 0
    %2759 = vmatprep.subr.bf16.mxu0 0
    %2760 = vmatpush1.bf16.msra.mxu0 0
    %2761 = vmatprep.mubr.bf16.mxu0 0
    %2762 = vmatmul.mubr.bf16.gmra.mrb[0].mxu0 %v2510
    %v2763 = vpop.f32.mrb[0].mxu0
    %v2764 = vadd.f32 %v2556, %v2763
    %v2765 = vpop.f32.mrb[0].mxu0
    %v2766 = vpop.f32.mrb[0].mxu0
    %v2767 = vpop.f32.mrb[0].mxu0
    %2768 = vdwg.mxu0
    %s2769 = scalar_lea.vmem [#allocation4], 168
    %v2770 = vld [vmem:[%s2769] sm:$0xff]
    %v2771 = vld [vmem:[%s2769 + $0x8] sm:$0xff]
    %v2772 = vld [vmem:[%s2769 + $0x10] sm:$0xff]
    %v2773 = vadd.f32 %v2770, %v2723
    %v2774 = vxor.u32 %v2773, 2147483648
    %v2775 = vmul.f32 %v2774, 1.442695
    %v2776 = vpow.pop %v2775
    %v2777 = vadd.f32 %v2776, 1.0
    %v2778 = vrcp.pop %v2777
    %v2779 = vmul.f32 1.0, %v2778
    %v2780 = vadd.f32 %v2771, %v2725
    %v2781 = vxor.u32 %v2780, 2147483648
    %v2782 = vmul.f32 %v2781, 1.442695
    %v2783 = vpow.pop %v2782
    %v2784 = vadd.f32 %v2783, 1.0
    %v2785 = vrcp.pop %v2784
    %v2786 = vmul.f32 1.0, %v2785
    %v2787 = vmul.f32 %v2779, %v2764
    %v2788 = vadd.f32 %v2772, %v2787
    %v2789 = vtanh.pop %v2788
    %v2790 = vsub.f32 1.0, %v2786
    %v2791 = vmul.f32 %v2790, %v2789
    %v2792 = vmul.f32 %v2786, %v2507
    %v2793 = vadd.f32 %v2791, %v2792
    %s2794 = scalar_lea.vmem [#allocation2], 56
    %2795 = vst [vmem:[%s2794] sm:$0xff] %v2793
    %v2796 = vld [vmem:[%s3] sm:$0xff]
    %v2797 = vld [vmem:[%s8] sm:$0xff]
    %v2798 = vld [vmem:[%s9] sm:$0x1]
    %v2800 = vlaneseq
    %v2801 = vshrl.u32 %v2800, 7
    %v2802 = vsub.s32 0, %v2801
    %v2803 = vrot.slane %v2798, %v2802
    %vm2805 = vcmask 64512
    %v2807 = vsel %vm2805, %v2796, 0
    %2809 = vmatprep.subr.mxu0 0.0
    %2810 = vmatpush1.msra.mxu0 %v2797
    %2811 = vmatprep.subr.mxu0 0.0
    %2812 = vmatpush1.msra.mxu0 0.0
    %2813 = vmatprep.subr.mxu0 0.0
    %2814 = vmatpush1.msra.mxu0 0.0
    %2815 = vmatprep.subr.mxu0 0.0
    %2816 = vmatpush1.msra.mxu0 0.0
    %2817 = vmatprep.subr.mxu0 0.0
    %2818 = vmatpush1.msra.mxu0 0.0
    %2819 = vmatprep.subr.mxu0 0.0
    %2820 = vmatpush1.msra.mxu0 0.0
    %2821 = vmatprep.subr.mxu0 0.0
    %2822 = vmatpush1.msra.mxu0 0.0
    %2823 = vmatprep.subr.mxu0 0.0
    %2824 = vmatpush1.msra.mxu0 0.0
    %2825 = vmatprep.subr.mxu0 0.0
    %2826 = vmatpush1.msra.mxu0 0.0
    %2827 = vmatprep.subr.mxu0 0.0
    %2828 = vmatpush1.msra.mxu0 0.0
    %2829 = vmatprep.subr.mxu0 0.0
    %2830 = vmatpush1.msra.mxu0 0.0
    %2831 = vmatprep.subr.mxu0 0.0
    %2832 = vmatpush1.msra.mxu0 0.0
    %2833 = vmatprep.subr.mxu0 0.0
    %2834 = vmatpush1.msra.mxu0 0.0
    %2835 = vmatprep.subr.mxu0 0.0
    %2836 = vmatpush1.msra.mxu0 0.0
    %2837 = vmatprep.subr.mxu0 0.0
    %2838 = vmatpush1.msra.mxu0 0.0
    %2839 = vmatprep.subr.mxu0 0.0
    %2840 = vmatpush1.msra.mxu0 0.0
    %2841 = vmatprep.subr.mxu0 0.0
    %2842 = vmatpush1.msra.mxu0 0.0
    %2843 = vmatprep.subr.mxu0 0.0
    %2844 = vmatpush1.msra.mxu0 0.0
    %2845 = vmatprep.subr.mxu0 0.0
    %2846 = vmatpush1.msra.mxu0 0.0
    %2847 = vmatprep.subr.mxu0 0.0
    %2848 = vmatpush1.msra.mxu0 0.0
    %2849 = vmatprep.subr.mxu0 0.0
    %2850 = vmatpush1.msra.mxu0 0.0
    %2851 = vmatprep.subr.mxu0 0.0
    %2852 = vmatpush1.msra.mxu0 0.0
    %2853 = vmatprep.subr.mxu0 0.0
    %2854 = vmatpush1.msra.mxu0 0.0
    %2855 = vmatprep.subr.mxu0 0.0
    %2856 = vmatpush1.msra.mxu0 0.0
    %2857 = vmatprep.subr.mxu0 0.0
    %2858 = vmatpush1.msra.mxu0 0.0
    %2859 = vmatprep.subr.mxu0 0.0
    %2860 = vmatpush1.msra.mxu0 0.0
    %2861 = vmatprep.subr.mxu0 0.0
    %2862 = vmatpush1.msra.mxu0 0.0
    %2863 = vmatprep.subr.mxu0 0.0
    %2864 = vmatpush1.msra.mxu0 0.0
    %2865 = vmatprep.subr.mxu0 0.0
    %2866 = vmatpush1.msra.mxu0 0.0
    %2867 = vmatprep.subr.mxu0 0.0
    %2868 = vmatpush1.msra.mxu0 0.0
    %2869 = vmatprep.subr.mxu0 0.0
    %2870 = vmatpush1.msra.mxu0 0.0
    %2871 = vmatprep.subr.mxu0 0.0
    %2872 = vmatpush1.msra.mxu0 0.0
    %2873 = vmatprep.mubr.f32.mxu0 0.0
    %2874 = vmatmul.mubr.f32.gmra.mrb[0].mxu0 %v2807
    %v2875 = vpop.f32.mrb[0].mxu0
    %v2876 = vadd.f32 %v2803, %v2875
    %v2877 = vpop.f32.mrb[0].mxu0
    %2878 = vdwg.mxu0
    %v2879 = vtanh.pop %v2876
    %v2880 = vld [vmem:[#allocation13] sm:$0xff]
    %v2881 = vld [vmem:[#allocation13 + $0x8] sm:$0xff]
    %v2882 = vld [vmem:[#allocation13 + $0x10] sm:$0xff]
    %v2883 = vld [vmem:[#allocation13 + $0x18] sm:$0xff]
    %v2884 = vld [vmem:[#allocation15] sm:$0x1]
    %v2886 = vlaneseq
    %v2887 = vshrl.u32 %v2886, 7
    %v2888 = vsub.s32 0, %v2887
    %v2889 = vrot.slane %v2884, %v2888
    %vm2891 = vcmask 261120
    %v2893 = vsel %vm2891, %v2879, 0
    %2895 = vmatprep.subr.mxu0 0.0
    %2896 = vmatpush1.msra.mxu0 %v2880
    %2897 = vmatprep.subr.mxu0 0.0
    %2898 = vmatpush1.msra.mxu0 %v2881
    %2899 = vmatprep.subr.mxu0 0.0
    %2900 = vmatpush1.msra.mxu0 %v2882
    %2901 = vmatprep.subr.mxu0 0.0
    %2902 = vmatpush1.msra.mxu0 %v2883
    %2903 = vmatprep.subr.mxu0 0.0
    %2904 = vmatpush1.msra.mxu0 0.0
    %2905 = vmatprep.subr.mxu0 0.0
    %2906 = vmatpush1.msra.mxu0 0.0
    %2907 = vmatprep.subr.mxu0 0.0
    %2908 = vmatpush1.msra.mxu0 0.0
    %2909 = vmatprep.subr.mxu0 0.0
    %2910 = vmatpush1.msra.mxu0 0.0
    %2911 = vmatprep.subr.mxu0 0.0
    %2912 = vmatpush1.msra.mxu0 0.0
    %2913 = vmatprep.subr.mxu0 0.0
    %2914 = vmatpush1.msra.mxu0 0.0
    %2915 = vmatprep.subr.mxu0 0.0
    %2916 = vmatpush1.msra.mxu0 0.0
    %2917 = vmatprep.subr.mxu0 0.0
    %2918 = vmatpush1.msra.mxu0 0.0
    %2919 = vmatprep.subr.mxu0 0.0
    %2920 = vmatpush1.msra.mxu0 0.0
    %2921 = vmatprep.subr.mxu0 0.0
    %2922 = vmatpush1.msra.mxu0 0.0
    %2923 = vmatprep.subr.mxu0 0.0
    %2924 = vmatpush1.msra.mxu0 0.0
    %2925 = vmatprep.subr.mxu0 0.0
    %2926 = vmatpush1.msra.mxu0 0.0
    %2927 = vmatprep.subr.mxu0 0.0
    %2928 = vmatpush1.msra.mxu0 0.0
    %2929 = vmatprep.subr.mxu0 0.0
    %2930 = vmatpush1.msra.mxu0 0.0
    %2931 = vmatprep.subr.mxu0 0.0
    %2932 = vmatpush1.msra.mxu0 0.0
    %2933 = vmatprep.subr.mxu0 0.0
    %2934 = vmatpush1.msra.mxu0 0.0
    %2935 = vmatprep.subr.mxu0 0.0
    %2936 = vmatpush1.msra.mxu0 0.0
    %2937 = vmatprep.subr.mxu0 0.0
    %2938 = vmatpush1.msra.mxu0 0.0
    %2939 = vmatprep.subr.mxu0 0.0
    %2940 = vmatpush1.msra.mxu0 0.0
    %2941 = vmatprep.subr.mxu0 0.0
    %2942 = vmatpush1.msra.mxu0 0.0
    %2943 = vmatprep.subr.mxu0 0.0
    %2944 = vmatpush1.msra.mxu0 0.0
    %2945 = vmatprep.subr.mxu0 0.0
    %2946 = vmatpush1.msra.mxu0 0.0
    %2947 = vmatprep.subr.mxu0 0.0
    %2948 = vmatpush1.msra.mxu0 0.0
    %2949 = vmatprep.subr.mxu0 0.0
    %2950 = vmatpush1.msra.mxu0 0.0
    %2951 = vmatprep.subr.mxu0 0.0
    %2952 = vmatpush1.msra.mxu0 0.0
    %2953 = vmatprep.subr.mxu0 0.0
    %2954 = vmatpush1.msra.mxu0 0.0
    %2955 = vmatprep.subr.mxu0 0.0
    %2956 = vmatpush1.msra.mxu0 0.0
    %2957 = vmatprep.subr.mxu0 0.0
    %2958 = vmatpush1.msra.mxu0 0.0
    %2959 = vmatprep.mubr.f32.mxu0 0.0
    %2960 = vmatmul.mubr.f32.gmra.mrb[0].mxu0 %v2893
    %v2961 = vpop.f32.mrb[0].mxu0
    %v2962 = vadd.f32 %v2889, %v2961
    %v2963 = vpop.f32.mrb[0].mxu0
    %2964 = vdwg.mxu0
    %v2965 = vld [vmem:[#allocation2] sm:$0xff]
    %v2966 = vld [vmem:[#allocation2 + $0x8] sm:$0xff]
    %v2967 = vld [vmem:[#allocation2 + $0x10] sm:$0xff]
    %v2968 = vld [vmem:[#allocation2 + $0x18] sm:$0xff]
    %v2969 = vld [vmem:[#allocation2 + $0x20] sm:$0xff]
    %v2970 = vld [vmem:[#allocation2 + $0x28] sm:$0xff]
    %v2971 = vld [vmem:[#allocation2 + $0x30] sm:$0xff]
    %v2972 = vld [vmem:[#allocation2 + $0x38] sm:$0xff]
    %v2973 = vpack.c.bf16 %v2966, %v2965
    %v2974 = vpack.c.bf16 %v2968, %v2967
    %v2975 = vpack.c.bf16 %v2970, %v2969
    %v2976 = vpack.c.bf16 %v2972, %v2971
    %v2977 = vld [vmem:[%s12] sm:$0xf]
    %v2978 = vld [vmem:[%s12 + $0x4] sm:$0xf]
    %v2979 = vld [vmem:[%s12 + $0x8] sm:$0xf]
    %v2980 = vld [vmem:[%s12 + $0xc] sm:$0xf]
    %v2981 = vld [vmem:[%s12 + $0x10] sm:$0xf]
    %v2982 = vld [vmem:[%s12 + $0x14] sm:$0xf]
    %v2983 = vld [vmem:[%s12 + $0x18] sm:$0xf]
    %v2984 = vld [vmem:[%s12 + $0x1c] sm:$0xf]
    %v2985 = vld [vmem:[%s12 + $0x20] sm:$0xf]
    %v2986 = vld [vmem:[%s12 + $0x24] sm:$0xf]
    %v2987 = vld [vmem:[%s12 + $0x28] sm:$0xf]
    %v2988 = vld [vmem:[%s12 + $0x2c] sm:$0xf]
    %v2989 = vld [vmem:[%s12 + $0x30] sm:$0xf]
    %v2990 = vld [vmem:[%s12 + $0x34] sm:$0xf]
    %v2991 = vld [vmem:[%s12 + $0x38] sm:$0xf]
    %v2992 = vld [vmem:[%s12 + $0x3c] sm:$0xf]
    %v3009 = vunpack.c.l.b16 %v2977
    %v3010 = vunpack.c.l.b16 %v2978
    %v3011 = vunpack.c.l.b16 %v2979
    %v3012 = vunpack.c.l.b16 %v2980
    %v3013 = vunpack.c.l.b16 %v2981
    %v3014 = vunpack.c.l.b16 %v2982
    %v3015 = vunpack.c.l.b16 %v2983
    %v3016 = vunpack.c.l.b16 %v2984
    %v3017 = vunpack.c.l.b16 %v2985
    %v3018 = vunpack.c.l.b16 %v2986
    %v3019 = vunpack.c.l.b16 %v2987
    %v3020 = vunpack.c.l.b16 %v2988
    %v3021 = vunpack.c.l.b16 %v2989
    %v3022 = vunpack.c.l.b16 %v2990
    %v3023 = vunpack.c.l.b16 %v2991
    %v3024 = vunpack.c.l.b16 %v2992
    %v3025 = vpack.c.b16 %v3010, %v3009
    %v3026 = vpack.c.b16 %v3012, %v3011
    %v3027 = vpack.c.b16 %v3014, %v3013
    %v3028 = vpack.c.b16 %v3016, %v3015
    %v3029 = vpack.c.b16 %v3018, %v3017
    %v3030 = vpack.c.b16 %v3020, %v3019
    %v3031 = vpack.c.b16 %v3022, %v3021
    %v3032 = vpack.c.b16 %v3024, %v3023
    %3041 = vmatprep.subr.bf16.mxu0 0
    %3042 = vmatpush1.bf16.msra.mxu0 %v3025
    %3043 = vmatprep.subr.bf16.mxu0 0
    %3044 = vmatpush1.bf16.msra.mxu0 %v3026
    %3045 = vmatprep.subr.bf16.mxu0 0
    %3046 = vmatpush1.bf16.msra.mxu0 %v3027
    %3047 = vmatprep.subr.bf16.mxu0 0
    %3048 = vmatpush1.bf16.msra.mxu0 %v3028
    %3049 = vmatprep.subr.bf16.mxu0 0
    %3050 = vmatpush1.bf16.msra.mxu0 %v3029
    %3051 = vmatprep.subr.bf16.mxu0 0
    %3052 = vmatpush1.bf16.msra.mxu0 %v3030
    %3053 = vmatprep.subr.bf16.mxu0 0
    %3054 = vmatpush1.bf16.msra.mxu0 %v3031
    %3055 = vmatprep.subr.bf16.mxu0 0
    %3056 = vmatpush1.bf16.msra.mxu0 %v3032
    %3057 = vmatprep.subr.bf16.mxu0 0
    %3058 = vmatpush1.bf16.msra.mxu0 0
    %3059 = vmatprep.subr.bf16.mxu0 0
    %3060 = vmatpush1.bf16.msra.mxu0 0
    %3061 = vmatprep.subr.bf16.mxu0 0
    %3062 = vmatpush1.bf16.msra.mxu0 0
    %3063 = vmatprep.subr.bf16.mxu0 0
    %3064 = vmatpush1.bf16.msra.mxu0 0
    %3065 = vmatprep.subr.bf16.mxu0 0
    %3066 = vmatpush1.bf16.msra.mxu0 0
    %3067 = vmatprep.subr.bf16.mxu0 0
    %3068 = vmatpush1.bf16.msra.mxu0 0
    %3069 = vmatprep.subr.bf16.mxu0 0
    %3070 = vmatpush1.bf16.msra.mxu0 0
    %3071 = vmatprep.subr.bf16.mxu0 0
    %3072 = vmatpush1.bf16.msra.mxu0 0
    %3073 = vmatprep.mubr.bf16.mxu0 0
    %3074 = vmatmul.mubr.bf16.gmra.mrb[0].mxu0 %v2973
    %v3075 = vpop.f32.mrb[0].mxu0
    %v3076 = vadd.f32 0.0, %v3075
    %v3077 = vpop.f32.mrb[0].mxu0
    %v3078 = vpop.f32.mrb[0].mxu0
    %v3079 = vadd.f32 0.0, %v3078
    %v3080 = vpop.f32.mrb[0].mxu0
    %3081 = vmatprep.mubr.bf16.mxu0 0
    %3082 = vmatmul.mubr.bf16.gmra.mrb[0].mxu0 %v2974
    %v3083 = vpop.f32.mrb[0].mxu0
    %v3084 = vadd.f32 0.0, %v3083
    %v3085 = vpop.f32.mrb[0].mxu0
    %v3086 = vpop.f32.mrb[0].mxu0
    %v3087 = vadd.f32 0.0, %v3086
    %v3088 = vpop.f32.mrb[0].mxu0
    %3089 = vmatprep.mubr.bf16.mxu0 0
    %3090 = vmatmul.mubr.bf16.gmra.mrb[0].mxu0 %v2975
    %v3091 = vpop.f32.mrb[0].mxu0
    %v3092 = vadd.f32 0.0, %v3091
    %v3093 = vpop.f32.mrb[0].mxu0
    %v3094 = vpop.f32.mrb[0].mxu0
    %v3095 = vadd.f32 0.0, %v3094
    %v3096 = vpop.f32.mrb[0].mxu0
    %3097 = vmatprep.mubr.bf16.mxu0 0
    %3098 = vmatmul.mubr.bf16.gmra.mrb[0].mxu0 %v2976
    %v3099 = vpop.f32.mrb[0].mxu0
    %v3100 = vadd.f32 0.0, %v3099
    %v3101 = vpop.f32.mrb[0].mxu0
    %v3102 = vpop.f32.mrb[0].mxu0
    %v3103 = vadd.f32 0.0, %v3102
    %v3104 = vpop.f32.mrb[0].mxu0
    %3105 = vdwg.mxu0
    %3106 = vst [vmem:[#allocation3] sm:$0xff] %v3076
    %3107 = vst [vmem:[#allocation3 + $0x8] sm:$0xff] %v3079
    %3108 = vst [vmem:[#allocation3 + $0x10] sm:$0xff] %v3084
    %3109 = vst [vmem:[#allocation3 + $0x18] sm:$0xff] %v3087
    %3110 = vst [vmem:[#allocation3 + $0x20] sm:$0xff] %v3092
    %3111 = vst [vmem:[#allocation3 + $0x28] sm:$0xff] %v3095
    %3112 = vst [vmem:[#allocation3 + $0x30] sm:$0xff] %v3100
    %3113 = vst [vmem:[#allocation3 + $0x38] sm:$0xff] %v3103
    %3114 = vst [vmem:[#allocation25] sm:$0xff] 0.0
    %v3115 = vlaneseq
    %v3116 = vand.u32 %v3115, 127
    %v3117 = vld [vmem:[%s2] sm:$0xff]
    %v3118 = vld [vmem:[#allocation2] sm:$0xff]
    %v3119 = vld [vmem:[#allocation2 + $0x8] sm:$0xff]
    %v3120 = vld [vmem:[#allocation2 + $0x10] sm:$0xff]
    %v3121 = vld [vmem:[#allocation2 + $0x18] sm:$0xff]
    %v3122 = vld [vmem:[#allocation2 + $0x20] sm:$0xff]
    %v3123 = vld [vmem:[#allocation2 + $0x28] sm:$0xff]
    %v3124 = vld [vmem:[#allocation2 + $0x30] sm:$0xff]
    %v3125 = vld [vmem:[#allocation2 + $0x38] sm:$0xff]
    %v3126 = vld [vmem:[#allocation3] sm:$0xff]
    %v3127 = vld [vmem:[#allocation3 + $0x8] sm:$0xff]
    %v3128 = vld [vmem:[#allocation3 + $0x10] sm:$0xff]
    %v3129 = vld [vmem:[#allocation3 + $0x18] sm:$0xff]
    %v3130 = vld [vmem:[#allocation3 + $0x20] sm:$0xff]
    %v3131 = vld [vmem:[#allocation3 + $0x28] sm:$0xff]
    %v3132 = vld [vmem:[#allocation3 + $0x30] sm:$0xff]
    %v3133 = vld [vmem:[#allocation3 + $0x38] sm:$0xff]
    %v3134 = vpack.c.bf16 %v2793, %v2793
    %v3135 = vld [vmem:[#allocation18] sm:$0xff]
    %v3136 = vld [vmem:[#allocation18 + $0x8] sm:$0xff]
    %v3137 = vld [vmem:[#allocation18 + $0x10] sm:$0xf]
    %v3138 = vld [vmem:[#allocation18 + $0x14] sm:$0xff]
    %v3139 = vld [vmem:[#allocation18 + $0x1c] sm:$0xff]
    %v3140 = vld [vmem:[#allocation18 + $0x24] sm:$0xf]
    %v3141 = vld [vmem:[#allocation18 + $0x28] sm:$0xff]
    %v3142 = vld [vmem:[#allocation18 + $0x30] sm:$0xff]
    %v3143 = vld [vmem:[#allocation18 + $0x38] sm:$0xf]
    %v3144 = vld [vmem:[#allocation18 + $0x3c] sm:$0xff]
    %v3145 = vld [vmem:[#allocation18 + $0x44] sm:$0xff]
    %v3146 = vld [vmem:[#allocation18 + $0x4c] sm:$0xf]
    %v3147 = vld [vmem:[#allocation18 + $0x50] sm:$0xff]
    %v3148 = vld [vmem:[#allocation18 + $0x58] sm:$0xff]
    %v3149 = vld [vmem:[#allocation18 + $0x60] sm:$0xf]
    %v3150 = vld [vmem:[#allocation18 + $0x64] sm:$0xff]
    %v3151 = vld [vmem:[#allocation18 + $0x6c] sm:$0xff]
    %v3152 = vld [vmem:[#allocation18 + $0x74] sm:$0xf]
    %v3153 = vld [vmem:[#allocation18 + $0x78] sm:$0xff]
    %v3154 = vld [vmem:[#allocation18 + $0x80] sm:$0xff]
    %v3155 = vld [vmem:[#allocation18 + $0x88] sm:$0xf]
    %v3156 = vld [vmem:[#allocation18 + $0x8c] sm:$0xff]
    %v3157 = vld [vmem:[#allocation18 + $0x94] sm:$0xff]
    %v3158 = vld [vmem:[#allocation18 + $0x9c] sm:$0xf]
    %v3159 = vld [vmem:[#allocation18 + $0xa0] sm:$0xff]
    %v3160 = vld [vmem:[#allocation18 + $0xa8] sm:$0xff]
    %v3161 = vld [vmem:[#allocation18 + $0xb0] sm:$0xf]
    %v3162 = vld [vmem:[#allocation18 + $0xb4] sm:$0xff]
    %v3163 = vld [vmem:[#allocation18 + $0xbc] sm:$0xff]
    %v3164 = vld [vmem:[#allocation18 + $0xc4] sm:$0xf]
    %v3165 = vld [vmem:[#allocation18 + $0xc8] sm:$0xff]
    %v3166 = vld [vmem:[#allocation18 + $0xd0] sm:$0xff]
    %v3167 = vld [vmem:[#allocation18 + $0xd8] sm:$0xf]
    %v3168 = vld [vmem:[#allocation18 + $0xdc] sm:$0xff]
    %v3169 = vld [vmem:[#allocation18 + $0xe4] sm:$0xff]
    %v3170 = vld [vmem:[#allocation18 + $0xec] sm:$0xf]
    %v3171 = vld [vmem:[#allocation18 + $0xf0] sm:$0xff]
    %v3172 = vld [vmem:[#allocation18 + $0xf8] sm:$0xff]
    %v3173 = vld [vmem:[#allocation18 + $0x100] sm:$0xf]
    %v3174 = vld [vmem:[#allocation18 + $0x104] sm:$0xff]
    %v3175 = vld [vmem:[#allocation18 + $0x10c] sm:$0xff]
    %v3176 = vld [vmem:[#allocation18 + $0x114] sm:$0xf]
    %v3177 = vld [vmem:[#allocation18 + $0x118] sm:$0xff]
    %v3178 = vld [vmem:[#allocation18 + $0x120] sm:$0xff]
    %v3179 = vld [vmem:[#allocation18 + $0x128] sm:$0xf]
    %v3180 = vld [vmem:[#allocation18 + $0x12c] sm:$0xff]
    %v3181 = vld [vmem:[#allocation18 + $0x134] sm:$0xff]
    %v3182 = vld [vmem:[#allocation18 + $0x13c] sm:$0xf]
    %v3183 = vld [vmem:[#allocation19] sm:$0x1f]
    %v3185 = vlaneseq
    %v3186 = vshrl.u32 %v3185, 7
    %v3187 = vsub.s32 0, %v3186
    %v3188 = vrot.slane %v3183, %v3187
    %v3189 = vlaneseq
    %v3190 = vshrl.u32 %v3189, 7
    %v3191 = vsub.s32 1, %v3190
    %v3192 = vrot.slane %v3183, %v3191
    %v3193 = vlaneseq
    %v3194 = vshrl.u32 %v3193, 7
    %v3195 = vsub.s32 2, %v3194
    %v3196 = vrot.slane %v3183, %v3195
    %v3197 = vlaneseq
    %v3198 = vshrl.u32 %v3197, 7
    %v3199 = vsub.s32 3, %v3198
    %v3200 = vrot.slane %v3183, %v3199
    %v3201 = vlaneseq
    %v3202 = vshrl.u32 %v3201, 7
    %v3203 = vsub.s32 4, %v3202
    %v3204 = vrot.slane %v3183, %v3203
    %v3258 = vunpack.c.l.b16 %v3135
    %v3259 = vunpack.c.h.b16 %v3135
    %v3260 = vunpack.c.l.b16 %v3136
    %v3261 = vunpack.c.h.b16 %v3136
    %v3262 = vunpack.c.l.b16 %v3137
    %v3263 = vunpack.c.l.b16 %v3138
    %v3264 = vunpack.c.h.b16 %v3138
    %v3265 = vunpack.c.l.b16 %v3139
    %v3266 = vunpack.c.h.b16 %v3139
    %v3267 = vunpack.c.l.b16 %v3140
    %v3268 = vunpack.c.l.b16 %v3141
    %v3269 = vunpack.c.h.b16 %v3141
    %v3270 = vunpack.c.l.b16 %v3142
    %v3271 = vunpack.c.h.b16 %v3142
    %v3272 = vunpack.c.l.b16 %v3143
    %v3273 = vunpack.c.l.b16 %v3144
    %v3274 = vunpack.c.h.b16 %v3144
    %v3275 = vunpack.c.l.b16 %v3145
    %v3276 = vunpack.c.h.b16 %v3145
    %v3277 = vunpack.c.l.b16 %v3146
    %v3278 = vunpack.c.l.b16 %v3147
    %v3279 = vunpack.c.h.b16 %v3147
    %v3280 = vunpack.c.l.b16 %v3148
    %v3281 = vunpack.c.h.b16 %v3148
    %v3282 = vunpack.c.l.b16 %v3149
    %v3283 = vunpack.c.l.b16 %v3150
    %v3284 = vunpack.c.h.b16 %v3150
    %v3285 = vunpack.c.l.b16 %v3151
    %v3286 = vunpack.c.h.b16 %v3151
    %v3287 = vunpack.c.l.b16 %v3152
    %v3288 = vunpack.c.l.b16 %v3153
    %v3289 = vunpack.c.h.b16 %v3153
    %v3290 = vunpack.c.l.b16 %v3154
    %v3291 = vunpack.c.h.b16 %v3154
    %v3292 = vunpack.c.l.b16 %v3155
    %v3293 = vunpack.c.l.b16 %v3156
    %v3294 = vunpack.c.h.b16 %v3156
    %v3295 = vunpack.c.l.b16 %v3157
    %v3296 = vunpack.c.h.b16 %v3157
    %v3297 = vunpack.c.l.b16 %v3158
    %v3298 = vunpack.c.l.b16 %v3159
    %v3299 = vunpack.c.h.b16 %v3159
    %v3300 = vunpack.c.l.b16 %v3160
    %v3301 = vunpack.c.h.b16 %v3160
    %v3302 = vunpack.c.l.b16 %v3161
    %v3303 = vunpack.c.l.b16 %v3162
    %v3304 = vunpack.c.h.b16 %v3162
    %v3305 = vunpack.c.l.b16 %v3163
    %v3306 = vunpack.c.h.b16 %v3163
    %v3307 = vunpack.c.l.b16 %v3164
    %v3308 = vunpack.c.l.b16 %v3165
    %v3309 = vunpack.c.h.b16 %v3165
    %v3310 = vunpack.c.l.b16 %v3166
    %v3311 = vunpack.c.h.b16 %v3166
    %v3312 = vunpack.c.l.b16 %v3167
    %v3313 = vunpack.c.l.b16 %v3168
    %v3314 = vunpack.c.h.b16 %v3168
    %v3315 = vunpack.c.l.b16 %v3169
    %v3316 = vunpack.c.h.b16 %v3169
    %v3317 = vunpack.c.l.b16 %v3170
    %v3318 = vunpack.c.l.b16 %v3171
    %v3319 = vunpack.c.h.b16 %v3171
    %v3320 = vunpack.c.l.b16 %v3172
    %v3321 = vunpack.c.h.b16 %v3172
    %v3322 = vunpack.c.l.b16 %v3173
    %v3323 = vunpack.c.l.b16 %v3174
    %v3324 = vunpack.c.h.b16 %v3174
    %v3325 = vunpack.c.l.b16 %v3175
    %v3326 = vunpack.c.h.b16 %v3175
    %v3327 = vunpack.c.l.b16 %v3176
    %v3328 = vunpack.c.l.b16 %v3177
    %v3329 = vunpack.c.h.b16 %v3177
    %v3330 = vunpack.c.l.b16 %v3178
    %v3331 = vunpack.c.h.b16 %v3178
    %v3332 = vunpack.c.l.b16 %v3179
    %v3333 = vunpack.c.l.b16 %v3180
    %v3334 = vunpack.c.h.b16 %v3180
    %v3335 = vunpack.c.l.b16 %v3181
    %v3336 = vunpack.c.h.b16 %v3181
    %v3337 = vunpack.c.l.b16 %v3182
    %v3338 = vpack.c.b16 %v3263, %v3258
    %v3339 = vpack.c.b16 %v3264, %v3259
    %v3340 = vpack.c.b16 %v3265, %v3260
    %v3341 = vpack.c.b16 %v3266, %v3261
    %v3342 = vpack.c.b16 %v3267, %v3262
    %v3343 = vpack.c.b16 %v3273, %v3268
    %v3344 = vpack.c.b16 %v3274, %v3269
    %v3345 = vpack.c.b16 %v3275, %v3270
    %v3346 = vpack.c.b16 %v3276, %v3271
    %v3347 = vpack.c.b16 %v3277, %v3272
    %v3348 = vpack.c.b16 %v3283, %v3278
    %v3349 = vpack.c.b16 %v3284, %v3279
    %v3350 = vpack.c.b16 %v3285, %v3280
    %v3351 = vpack.c.b16 %v3286, %v3281
    %v3352 = vpack.c.b16 %v3287, %v3282
    %v3353 = vpack.c.b16 %v3293, %v3288
    %v3354 = vpack.c.b16 %v3294, %v3289
    %v3355 = vpack.c.b16 %v3295, %v3290
    %v3356 = vpack.c.b16 %v3296, %v3291
    %v3357 = vpack.c.b16 %v3297, %v3292
    %v3358 = vpack.c.b16 %v3303, %v3298
    %v3359 = vpack.c.b16 %v3304, %v3299
    %v3360 = vpack.c.b16 %v3305, %v3300
    %v3361 = vpack.c.b16 %v3306, %v3301
    %v3362 = vpack.c.b16 %v3307, %v3302
    %v3363 = vpack.c.b16 %v3313, %v3308
    %v3364 = vpack.c.b16 %v3314, %v3309
    %v3365 = vpack.c.b16 %v3315, %v3310
    %v3366 = vpack.c.b16 %v3316, %v3311
    %v3367 = vpack.c.b16 %v3317, %v3312
    %v3368 = vpack.c.b16 %v3323, %v3318
    %v3369 = vpack.c.b16 %v3324, %v3319
    %v3370 = vpack.c.b16 %v3325, %v3320
    %v3371 = vpack.c.b16 %v3326, %v3321
    %v3372 = vpack.c.b16 %v3327, %v3322
    %v3373 = vpack.c.b16 %v3333, %v3328
    %v3374 = vpack.c.b16 %v3334, %v3329
    %v3375 = vpack.c.b16 %v3335, %v3330
    %v3376 = vpack.c.b16 %v3336, %v3331
    %v3377 = vpack.c.b16 %v3337, %v3332
    %3418 = vmatprep.subr.bf16.mxu0 %v3339
    %3419 = vmatpush1.bf16.msra.mxu0 %v3338
    %3420 = vmatprep.subr.bf16.mxu0 %v3344
    %3421 = vmatpush1.bf16.msra.mxu0 %v3343
    %3422 = vmatprep.subr.bf16.mxu0 %v3349
    %3423 = vmatpush1.bf16.msra.mxu0 %v3348
    %3424 = vmatprep.subr.bf16.mxu0 %v3354
    %3425 = vmatpush1.bf16.msra.mxu0 %v3353
    %3426 = vmatprep.subr.bf16.mxu0 %v3359
    %3427 = vmatpush1.bf16.msra.mxu0 %v3358
    %3428 = vmatprep.subr.bf16.mxu0 %v3364
    %3429 = vmatpush1.bf16.msra.mxu0 %v3363
    %3430 = vmatprep.subr.bf16.mxu0 %v3369
    %3431 = vmatpush1.bf16.msra.mxu0 %v3368
    %3432 = vmatprep.subr.bf16.mxu0 %v3374
    %3433 = vmatpush1.bf16.msra.mxu0 %v3373
    %3434 = vmatprep.subr.bf16.mxu0 0
    %3435 = vmatpush1.bf16.msra.mxu0 0
    %3436 = vmatprep.subr.bf16.mxu0 0
    %3437 = vmatpush1.bf16.msra.mxu0 0
    %3438 = vmatprep.subr.bf16.mxu0 0
    %3439 = vmatpush1.bf16.msra.mxu0 0
    %3440 = vmatprep.subr.bf16.mxu0 0
    %3441 = vmatpush1.bf16.msra.mxu0 0
    %3442 = vmatprep.subr.bf16.mxu0 0
    %3443 = vmatpush1.bf16.msra.mxu0 0
    %3444 = vmatprep.subr.bf16.mxu0 0
    %3445 = vmatpush1.bf16.msra.mxu0 0
    %3446 = vmatprep.subr.bf16.mxu0 0
    %3447 = vmatpush1.bf16.msra.mxu0 0
    %3448 = vmatprep.subr.bf16.mxu0 0
    %3449 = vmatpush1.bf16.msra.mxu0 0
    %3450 = vmatprep.mubr.bf16.mxu0 0
    %3451 = vmatmul.mubr.bf16.gmra.mrb[0].mxu0 %v3134
    %v3452 = vpop.f32.mrb[0].mxu0
    %v3453 = vadd.f32 %v3188, %v3452
    %v3454 = vpop.f32.mrb[0].mxu0
    %v3455 = vadd.f32 %v3192, %v3454
    %v3456 = vpop.f32.mrb[0].mxu0
    %v3457 = vpop.f32.mrb[0].mxu0
    %3458 = vdwg.mxu0
    %3459 = vmatprep.subr.bf16.mxu0 %v3341
    %3460 = vmatpush1.bf16.msra.mxu0 %v3340
    %3461 = vmatprep.subr.bf16.mxu0 %v3346
    %3462 = vmatpush1.bf16.msra.mxu0 %v3345
    %3463 = vmatprep.subr.bf16.mxu0 %v3351
    %3464 = vmatpush1.bf16.msra.mxu0 %v3350
    %3465 = vmatprep.subr.bf16.mxu0 %v3356
    %3466 = vmatpush1.bf16.msra.mxu0 %v3355
    %3467 = vmatprep.subr.bf16.mxu0 %v3361
    %3468 = vmatpush1.bf16.msra.mxu0 %v3360
    %3469 = vmatprep.subr.bf16.mxu0 %v3366
    %3470 = vmatpush1.bf16.msra.mxu0 %v3365
    %3471 = vmatprep.subr.bf16.mxu0 %v3371
    %3472 = vmatpush1.bf16.msra.mxu0 %v3370
    %3473 = vmatprep.subr.bf16.mxu0 %v3376
    %3474 = vmatpush1.bf16.msra.mxu0 %v3375
    %3475 = vmatprep.subr.bf16.mxu0 0
    %3476 = vmatpush1.bf16.msra.mxu0 0
    %3477 = vmatprep.subr.bf16.mxu0 0
    %3478 = vmatpush1.bf16.msra.mxu0 0
    %3479 = vmatprep.subr.bf16.mxu0 0
    %3480 = vmatpush1.bf16.msra.mxu0 0
    %3481 = vmatprep.subr.bf16.mxu0 0
    %3482 = vmatpush1.bf16.msra.mxu0 0
    %3483 = vmatprep.subr.bf16.mxu0 0
    %3484 = vmatpush1.bf16.msra.mxu0 0
    %3485 = vmatprep.subr.bf16.mxu0 0
    %3486 = vmatpush1.bf16.msra.mxu0 0
    %3487 = vmatprep.subr.bf16.mxu0 0
    %3488 = vmatpush1.bf16.msra.mxu0 0
    %3489 = vmatprep.subr.bf16.mxu0 0
    %3490 = vmatpush1.bf16.msra.mxu0 0
    %3491 = vmatprep.mubr.bf16.mxu0 0
    %3492 = vmatmul.mubr.bf16.gmra.mrb[0].mxu0 %v3134
    %v3493 = vpop.f32.mrb[0].mxu0
    %v3494 = vadd.f32 %v3196, %v3493
    %v3495 = vpop.f32.mrb[0].mxu0
    %v3496 = vadd.f32 %v3200, %v3495
    %v3497 = vpop.f32.mrb[0].mxu0
    %v3498 = vpop.f32.mrb[0].mxu0
    %3499 = vdwg.mxu0
    %3500 = vmatprep.subr.bf16.mxu0 0
    %3501 = vmatpush1.bf16.msra.mxu0 %v3342
    %3502 = vmatprep.subr.bf16.mxu0 0
    %3503 = vmatpush1.bf16.msra.mxu0 %v3347
    %3504 = vmatprep.subr.bf16.mxu0 0
    %3505 = vmatpush1.bf16.msra.mxu0 %v3352
    %3506 = vmatprep.subr.bf16.mxu0 0
    %3507 = vmatpush1.bf16.msra.mxu0 %v3357
    %3508 = vmatprep.subr.bf16.mxu0 0
    %3509 = vmatpush1.bf16.msra.mxu0 %v3362
    %3510 = vmatprep.subr.bf16.mxu0 0
    %3511 = vmatpush1.bf16.msra.mxu0 %v3367
    %3512 = vmatprep.subr.bf16.mxu0 0
    %3513 = vmatpush1.bf16.msra.mxu0 %v3372
    %3514 = vmatprep.subr.bf16.mxu0 0
    %3515 = vmatpush1.bf16.msra.mxu0 %v3377
    %3516 = vmatprep.subr.bf16.mxu0 0
    %3517 = vmatpush1.bf16.msra.mxu0 0
    %3518 = vmatprep.subr.bf16.mxu0 0
    %3519 = vmatpush1.bf16.msra.mxu0 0
    %3520 = vmatprep.subr.bf16.mxu0 0
    %3521 = vmatpush1.bf16.msra.mxu0 0
    %3522 = vmatprep.subr.bf16.mxu0 0
    %3523 = vmatpush1.bf16.msra.mxu0 0
    %3524 = vmatprep.subr.bf16.mxu0 0
    %3525 = vmatpush1.bf16.msra.mxu0 0
    %3526 = vmatprep.subr.bf16.mxu0 0
    %3527 = vmatpush1.bf16.msra.mxu0 0
    %3528 = vmatprep.subr.bf16.mxu0 0
    %3529 = vmatpush1.bf16.msra.mxu0 0
    %3530 = vmatprep.subr.bf16.mxu0 0
    %3531 = vmatpush1.bf16.msra.mxu0 0
    %3532 = vmatprep.mubr.bf16.mxu0 0
    %3533 = vmatmul.mubr.bf16.gmra.mrb[0].mxu0 %v3134
    %v3534 = vpop.f32.mrb[0].mxu0
    %v3535 = vadd.f32 %v3204, %v3534
    %v3536 = vpop.f32.mrb[0].mxu0
    %v3537 = vpop.f32.mrb[0].mxu0
    %v3538 = vpop.f32.mrb[0].mxu0
    %3539 = vdwg.mxu0
    %v3540 = vadd.f32 %v3453, %v2962
    %v3541 = vtanh.pop %v3540
    %v3542 = vadd.f32 %v3126, %v3455
    %v3543 = vadd.f32 %v3127, %v3455
    %v3544 = vadd.f32 %v3128, %v3455
    %v3545 = vadd.f32 %v3129, %v3455
    %v3546 = vadd.f32 %v3130, %v3455
    %v3547 = vadd.f32 %v3131, %v3455
    %v3548 = vadd.f32 %v3132, %v3455
    %v3549 = vadd.f32 %v3133, %v3455
    %v3550 = vtanh.pop %v3542
    %v3551 = vtanh.pop %v3543
    %v3552 = vtanh.pop %v3544
    %v3553 = vtanh.pop %v3545
    %v3554 = vtanh.pop %v3546
    %v3555 = vtanh.pop %v3547
    %v3556 = vtanh.pop %v3548
    %v3557 = vtanh.pop %v3549
    %v3558 = vld [vmem:[#allocation16] sm:$0x1]
    %v3560 = vlaneseq
    %v3561 = vshrl.u32 %v3560, 7
    %v3562 = vsub.s32 0, %v3561
    %v3563 = vrot.slane %v3558, %v3562
    %v3565 = vmul.f32 %v3550, %v3563
    %v3566 = vmul.f32 %v3551, %v3563
    %v3567 = vmul.f32 %v3552, %v3563
    %v3568 = vmul.f32 %v3553, %v3563
    %v3569 = vmul.f32 %v3554, %v3563
    %v3570 = vmul.f32 %v3555, %v3563
    %v3571 = vmul.f32 %v3556, %v3563
    %v3572 = vmul.f32 %v3557, %v3563
    %3573 = vadd.xlane.f32.xlu0 %v3565
    %v3574 = vpop.xlane.xlu0 %3573
    %3575 = vadd.xlane.f32.xlu0 %v3566
    %v3576 = vpop.xlane.xlu0 %3575
    %3577 = vadd.xlane.f32.xlu0 %v3567
    %v3578 = vpop.xlane.xlu0 %3577
    %3579 = vadd.xlane.f32.xlu0 %v3568
    %v3580 = vpop.xlane.xlu0 %3579
    %3581 = vadd.xlane.f32.xlu0 %v3569
    %v3582 = vpop.xlane.xlu0 %3581
    %3583 = vadd.xlane.f32.xlu0 %v3570
    %v3584 = vpop.xlane.xlu0 %3583
    %3585 = vadd.xlane.f32.xlu0 %v3571
    %v3586 = vpop.xlane.xlu0 %3585
    %3587 = vadd.xlane.f32.xlu0 %v3572
    %v3588 = vpop.xlane.xlu0 %3587
    %v3589 = vmax.f32 %v3574, %v3582
    %v3590 = vmax.f32 %v3576, %v3584
    %v3591 = vmax.f32 %v3578, %v3586
    %v3592 = vmax.f32 %v3580, %v3588
    %v3593 = vmax.f32 %v3589, %v3590
    %v3594 = vmax.f32 %v3591, %v3592
    %v3595 = vmax.f32 %v3593, %v3594
    %v3596 = vsub.f32 %v3574, %v3595
    %v3597 = vsub.f32 %v3576, %v3595
    %v3598 = vsub.f32 %v3578, %v3595
    %v3599 = vsub.f32 %v3580, %v3595
    %v3600 = vsub.f32 %v3582, %v3595
    %v3601 = vsub.f32 %v3584, %v3595
    %v3602 = vsub.f32 %v3586, %v3595
    %v3603 = vsub.f32 %v3588, %v3595
    %v3604 = vmul.f32 %v3596, 1.442695
    %v3605 = vpow.pop %v3604
    %v3606 = vmul.f32 %v3597, 1.442695
    %v3607 = vpow.pop %v3606
    %v3608 = vmul.f32 %v3598, 1.442695
    %v3609 = vpow.pop %v3608
    %v3610 = vmul.f32 %v3599, 1.442695
    %v3611 = vpow.pop %v3610
    %v3612 = vmul.f32 %v3600, 1.442695
    %v3613 = vpow.pop %v3612
    %v3614 = vmul.f32 %v3601, 1.442695
    %v3615 = vpow.pop %v3614
    %v3616 = vmul.f32 %v3602, 1.442695
    %v3617 = vpow.pop %v3616
    %v3618 = vmul.f32 %v3603, 1.442695
    %v3619 = vpow.pop %v3618
    %v3620 = vadd.f32 %v3605, %v3607
    %v3621 = vadd.f32 %v3620, %v3609
    %v3622 = vadd.f32 %v3621, %v3611
    %v3623 = vadd.f32 %v3622, %v3613
    %v3624 = vadd.f32 %v3623, %v3615
    %v3625 = vadd.f32 %v3624, %v3617
    %v3626 = vadd.f32 %v3625, %v3619
    %v3627 = vrcp.pop %v3626
    %v3628 = vmul.f32 %v3605, %v3627
    %v3629 = vmul.f32 %v3607, %v3627
    %v3630 = vmul.f32 %v3609, %v3627
    %v3631 = vmul.f32 %v3611, %v3627
    %v3632 = vmul.f32 %v3613, %v3627
    %v3633 = vmul.f32 %v3615, %v3627
    %v3634 = vmul.f32 %v3617, %v3627
    %v3635 = vmul.f32 %v3619, %v3627
    %v3636 = vmul.f32 %v3628, %v3118
    %v3637 = vmul.f32 %v3629, %v3119
    %v3638 = vmul.f32 %v3630, %v3120
    %v3639 = vmul.f32 %v3631, %v3121
    %v3640 = vmul.f32 %v3632, %v3122
    %v3641 = vmul.f32 %v3633, %v3123
    %v3642 = vmul.f32 %v3634, %v3124
    %v3643 = vmul.f32 %v3635, %v3125
    %v3644 = vadd.f32 %v3636, %v3637
    %v3645 = vadd.f32 %v3644, %v3638
    %v3646 = vadd.f32 %v3645, %v3639
    %v3647 = vadd.f32 %v3646, %v3640
    %v3648 = vadd.f32 %v3647, %v3641
    %v3649 = vadd.f32 %v3648, %v3642
    %v3650 = vadd.f32 %v3649, %v3643
    %v3651 = vpack.c.bf16 %v3117, %v3117
    %v3652 = vpack.c.bf16 %v3650, %v3650
    %v3653 = vpack.c.bf16 %v3541, %v3541
    %v3654 = vld [vmem:[%s16] sm:$0xff]
    %v3655 = vld [vmem:[%s16 + $0x8] sm:$0xf]
    %v3656 = vld [vmem:[%s16 + $0xc] sm:$0xff]
    %v3657 = vld [vmem:[%s16 + $0x14] sm:$0xf]
    %v3658 = vld [vmem:[%s16 + $0x18] sm:$0xff]
    %v3659 = vld [vmem:[%s16 + $0x20] sm:$0xf]
    %v3660 = vld [vmem:[%s16 + $0x24] sm:$0xff]
    %v3661 = vld [vmem:[%s16 + $0x2c] sm:$0xf]
    %v3662 = vld [vmem:[%s16 + $0x30] sm:$0xff]
    %v3663 = vld [vmem:[%s16 + $0x38] sm:$0xf]
    %v3664 = vld [vmem:[%s16 + $0x3c] sm:$0xff]
    %v3665 = vld [vmem:[%s16 + $0x44] sm:$0xf]
    %v3666 = vld [vmem:[%s16 + $0x48] sm:$0xff]
    %v3667 = vld [vmem:[%s16 + $0x50] sm:$0xf]
    %v3668 = vld [vmem:[%s16 + $0x54] sm:$0xff]
    %v3669 = vld [vmem:[%s16 + $0x5c] sm:$0xf]
    %v3670 = vld [vmem:[%s16 + $0x60] sm:$0xff]
    %v3671 = vld [vmem:[%s16 + $0x68] sm:$0xf]
    %v3672 = vld [vmem:[%s16 + $0x6c] sm:$0xff]
    %v3673 = vld [vmem:[%s16 + $0x74] sm:$0xf]
    %v3674 = vld [vmem:[%s16 + $0x78] sm:$0xff]
    %v3675 = vld [vmem:[%s16 + $0x80] sm:$0xf]
    %v3676 = vld [vmem:[%s16 + $0x84] sm:$0xff]
    %v3677 = vld [vmem:[%s16 + $0x8c] sm:$0xf]
    %v3678 = vld [vmem:[%s16 + $0x90] sm:$0xff]
    %v3679 = vld [vmem:[%s16 + $0x98] sm:$0xf]
    %v3680 = vld [vmem:[%s16 + $0x9c] sm:$0xff]
    %v3681 = vld [vmem:[%s16 + $0xa4] sm:$0xf]
    %v3682 = vld [vmem:[%s16 + $0xa8] sm:$0xff]
    %v3683 = vld [vmem:[%s16 + $0xb0] sm:$0xf]
    %v3684 = vld [vmem:[%s16 + $0xb4] sm:$0xff]
    %v3685 = vld [vmem:[%s16 + $0xbc] sm:$0xf]
    %v3686 = vld [vmem:[%s16 + $0xc0] sm:$0xff]
    %v3687 = vld [vmem:[%s16 + $0xc8] sm:$0xf]
    %v3688 = vld [vmem:[%s16 + $0xcc] sm:$0xff]
    %v3689 = vld [vmem:[%s16 + $0xd4] sm:$0xf]
    %v3690 = vld [vmem:[%s16 + $0xd8] sm:$0xff]
    %v3691 = vld [vmem:[%s16 + $0xe0] sm:$0xf]
    %v3692 = vld [vmem:[%s16 + $0xe4] sm:$0xff]
    %v3693 = vld [vmem:[%s16 + $0xec] sm:$0xf]
    %v3694 = vld [vmem:[%s16 + $0xf0] sm:$0xff]
    %v3695 = vld [vmem:[%s16 + $0xf8] sm:$0xf]
    %v3696 = vld [vmem:[%s16 + $0xfc] sm:$0xff]
    %v3697 = vld [vmem:[%s16 + $0x104] sm:$0xf]
    %v3698 = vld [vmem:[%s16 + $0x108] sm:$0xff]
    %v3699 = vld [vmem:[%s16 + $0x110] sm:$0xf]
    %v3700 = vld [vmem:[%s16 + $0x114] sm:$0xff]
    %v3701 = vld [vmem:[%s16 + $0x11c] sm:$0xf]
    %v3702 = vld [vmem:[%s16 + $0x120] sm:$0xff]
    %v3703 = vld [vmem:[%s16 + $0x128] sm:$0xf]
    %v3704 = vld [vmem:[%s16 + $0x12c] sm:$0xff]
    %v3705 = vld [vmem:[%s16 + $0x134] sm:$0xf]
    %v3706 = vld [vmem:[%s16 + $0x138] sm:$0xff]
    %v3707 = vld [vmem:[%s16 + $0x140] sm:$0xf]
    %v3708 = vld [vmem:[%s16 + $0x144] sm:$0xff]
    %v3709 = vld [vmem:[%s16 + $0x14c] sm:$0xf]
    %v3710 = vld [vmem:[%s16 + $0x150] sm:$0xff]
    %v3711 = vld [vmem:[%s16 + $0x158] sm:$0xf]
    %v3712 = vld [vmem:[%s16 + $0x15c] sm:$0xff]
    %v3713 = vld [vmem:[%s16 + $0x164] sm:$0xf]
    %v3714 = vld [vmem:[%s16 + $0x168] sm:$0xff]
    %v3715 = vld [vmem:[%s16 + $0x170] sm:$0xf]
    %v3716 = vld [vmem:[%s16 + $0x174] sm:$0xff]
    %v3717 = vld [vmem:[%s16 + $0x17c] sm:$0xf]
    %v3718 = vld [vmem:[%s16 + $0x180] sm:$0xff]
    %v3719 = vld [vmem:[%s16 + $0x188] sm:$0xf]
    %v3720 = vld [vmem:[%s16 + $0x18c] sm:$0xff]
    %v3721 = vld [vmem:[%s16 + $0x194] sm:$0xf]
    %v3722 = vld [vmem:[%s16 + $0x198] sm:$0xff]
    %v3723 = vld [vmem:[%s16 + $0x1a0] sm:$0xf]
    %v3724 = vld [vmem:[%s16 + $0x1a4] sm:$0xff]
    %v3725 = vld [vmem:[%s16 + $0x1ac] sm:$0xf]
    %v3726 = vld [vmem:[%s16 + $0x1b0] sm:$0xff]
    %v3727 = vld [vmem:[%s16 + $0x1b8] sm:$0xf]
    %v3728 = vld [vmem:[%s16 + $0x1bc] sm:$0xff]
    %v3729 = vld [vmem:[%s16 + $0x1c4] sm:$0xf]
    %v3730 = vld [vmem:[%s16 + $0x1c8] sm:$0xff]
    %v3731 = vld [vmem:[%s16 + $0x1d0] sm:$0xf]
    %v3732 = vld [vmem:[%s16 + $0x1d4] sm:$0xff]
    %v3733 = vld [vmem:[%s16 + $0x1dc] sm:$0xf]
    %v3734 = vld [vmem:[%s16 + $0x1e0] sm:$0xff]
    %v3735 = vld [vmem:[%s16 + $0x1e8] sm:$0xf]
    %v3736 = vld [vmem:[%s16 + $0x1ec] sm:$0xff]
    %v3737 = vld [vmem:[%s16 + $0x1f4] sm:$0xf]
    %v3738 = vld [vmem:[%s16 + $0x1f8] sm:$0xff]
    %v3739 = vld [vmem:[%s16 + $0x200] sm:$0xf]
    %v3740 = vld [vmem:[%s16 + $0x204] sm:$0xff]
    %v3741 = vld [vmem:[%s16 + $0x20c] sm:$0xf]
    %v3742 = vld [vmem:[%s16 + $0x210] sm:$0xff]
    %v3743 = vld [vmem:[%s16 + $0x218] sm:$0xf]
    %v3744 = vld [vmem:[%s16 + $0x21c] sm:$0xff]
    %v3745 = vld [vmem:[%s16 + $0x224] sm:$0xf]
    %v3746 = vld [vmem:[%s16 + $0x228] sm:$0xff]
    %v3747 = vld [vmem:[%s16 + $0x230] sm:$0xf]
    %v3748 = vld [vmem:[%s16 + $0x234] sm:$0xff]
    %v3749 = vld [vmem:[%s16 + $0x23c] sm:$0xf]
    %v3750 = vld [vmem:[#allocation21] sm:$0x7]
    %v3752 = vlaneseq
    %v3753 = vshrl.u32 %v3752, 7
    %v3754 = vsub.s32 0, %v3753
    %v3755 = vrot.slane %v3750, %v3754
    %v3756 = vlaneseq
    %v3757 = vshrl.u32 %v3756, 7
    %v3758 = vsub.s32 1, %v3757
    %v3759 = vrot.slane %v3750, %v3758
    %v3760 = vlaneseq
    %v3761 = vshrl.u32 %v3760, 7
    %v3762 = vsub.s32 2, %v3761
    %v3763 = vrot.slane %v3750, %v3762
    %v3863 = vunpack.c.l.b16 %v3654
    %v3864 = vunpack.c.h.b16 %v3654
    %v3865 = vunpack.c.l.b16 %v3655
    %v3866 = vunpack.c.l.b16 %v3656
    %v3867 = vunpack.c.h.b16 %v3656
    %v3868 = vunpack.c.l.b16 %v3657
    %v3869 = vunpack.c.l.b16 %v3658
    %v3870 = vunpack.c.h.b16 %v3658
    %v3871 = vunpack.c.l.b16 %v3659
    %v3872 = vunpack.c.l.b16 %v3660
    %v3873 = vunpack.c.h.b16 %v3660
    %v3874 = vunpack.c.l.b16 %v3661
    %v3875 = vunpack.c.l.b16 %v3662
    %v3876 = vunpack.c.h.b16 %v3662
    %v3877 = vunpack.c.l.b16 %v3663
    %v3878 = vunpack.c.l.b16 %v3664
    %v3879 = vunpack.c.h.b16 %v3664
    %v3880 = vunpack.c.l.b16 %v3665
    %v3881 = vunpack.c.l.b16 %v3666
    %v3882 = vunpack.c.h.b16 %v3666
    %v3883 = vunpack.c.l.b16 %v3667
    %v3884 = vunpack.c.l.b16 %v3668
    %v3885 = vunpack.c.h.b16 %v3668
    %v3886 = vunpack.c.l.b16 %v3669
    %v3887 = vunpack.c.l.b16 %v3670
    %v3888 = vunpack.c.h.b16 %v3670
    %v3889 = vunpack.c.l.b16 %v3671
    %v3890 = vunpack.c.l.b16 %v3672
    %v3891 = vunpack.c.h.b16 %v3672
    %v3892 = vunpack.c.l.b16 %v3673
    %v3893 = vunpack.c.l.b16 %v3674
    %v3894 = vunpack.c.h.b16 %v3674
    %v3895 = vunpack.c.l.b16 %v3675
    %v3896 = vunpack.c.l.b16 %v3676
    %v3897 = vunpack.c.h.b16 %v3676
    %v3898 = vunpack.c.l.b16 %v3677
    %v3899 = vunpack.c.l.b16 %v3678
    %v3900 = vunpack.c.h.b16 %v3678
    %v3901 = vunpack.c.l.b16 %v3679
    %v3902 = vunpack.c.l.b16 %v3680
    %v3903 = vunpack.c.h.b16 %v3680
    %v3904 = vunpack.c.l.b16 %v3681
    %v3905 = vunpack.c.l.b16 %v3682
    %v3906 = vunpack.c.h.b16 %v3682
    %v3907 = vunpack.c.l.b16 %v3683
    %v3908 = vunpack.c.l.b16 %v3684
    %v3909 = vunpack.c.h.b16 %v3684
    %v3910 = vunpack.c.l.b16 %v3685
    %v3911 = vunpack.c.l.b16 %v3686
    %v3912 = vunpack.c.h.b16 %v3686
    %v3913 = vunpack.c.l.b16 %v3687
    %v3914 = vunpack.c.l.b16 %v3688
    %v3915 = vunpack.c.h.b16 %v3688
    %v3916 = vunpack.c.l.b16 %v3689
    %v3917 = vunpack.c.l.b16 %v3690
    %v3918 = vunpack.c.h.b16 %v3690
    %v3919 = vunpack.c.l.b16 %v3691
    %v3920 = vunpack.c.l.b16 %v3692
    %v3921 = vunpack.c.h.b16 %v3692
    %v3922 = vunpack.c.l.b16 %v3693
    %v3923 = vunpack.c.l.b16 %v3694
    %v3924 = vunpack.c.h.b16 %v3694
    %v3925 = vunpack.c.l.b16 %v3695
    %v3926 = vunpack.c.l.b16 %v3696
    %v3927 = vunpack.c.h.b16 %v3696
    %v3928 = vunpack.c.l.b16 %v3697
    %v3929 = vunpack.c.l.b16 %v3698
    %v3930 = vunpack.c.h.b16 %v3698
    %v3931 = vunpack.c.l.b16 %v3699
    %v3932 = vunpack.c.l.b16 %v3700
    %v3933 = vunpack.c.h.b16 %v3700
    %v3934 = vunpack.c.l.b16 %v3701
    %v3935 = vunpack.c.l.b16 %v3702
    %v3936 = vunpack.c.h.b16 %v3702
    %v3937 = vunpack.c.l.b16 %v3703
    %v3938 = vunpack.c.l.b16 %v3704
    %v3939 = vunpack.c.h.b16 %v3704
    %v3940 = vunpack.c.l.b16 %v3705
    %v3941 = vunpack.c.l.b16 %v3706
    %v3942 = vunpack.c.h.b16 %v3706
    %v3943 = vunpack.c.l.b16 %v3707
    %v3944 = vunpack.c.l.b16 %v3708
    %v3945 = vunpack.c.h.b16 %v3708
    %v3946 = vunpack.c.l.b16 %v3709
    %v3947 = vunpack.c.l.b16 %v3710
    %v3948 = vunpack.c.h.b16 %v3710
    %v3949 = vunpack.c.l.b16 %v3711
    %v3950 = vunpack.c.l.b16 %v3712
    %v3951 = vunpack.c.h.b16 %v3712
    %v3952 = vunpack.c.l.b16 %v3713
    %v3953 = vunpack.c.l.b16 %v3714
    %v3954 = vunpack.c.h.b16 %v3714
    %v3955 = vunpack.c.l.b16 %v3715
    %v3956 = vunpack.c.l.b16 %v3716
    %v3957 = vunpack.c.h.b16 %v3716
    %v3958 = vunpack.c.l.b16 %v3717
    %v3959 = vunpack.c.l.b16 %v3718
    %v3960 = vunpack.c.h.b16 %v3718
    %v3961 = vunpack.c.l.b16 %v3719
    %v3962 = vunpack.c.l.b16 %v3720
    %v3963 = vunpack.c.h.b16 %v3720
    %v3964 = vunpack.c.l.b16 %v3721
    %v3965 = vunpack.c.l.b16 %v3722
    %v3966 = vunpack.c.h.b16 %v3722
    %v3967 = vunpack.c.l.b16 %v3723
    %v3968 = vunpack.c.l.b16 %v3724
    %v3969 = vunpack.c.h.b16 %v3724
    %v3970 = vunpack.c.l.b16 %v3725
    %v3971 = vunpack.c.l.b16 %v3726
    %v3972 = vunpack.c.h.b16 %v3726
    %v3973 = vunpack.c.l.b16 %v3727
    %v3974 = vunpack.c.l.b16 %v3728
    %v3975 = vunpack.c.h.b16 %v3728
    %v3976 = vunpack.c.l.b16 %v3729
    %v3977 = vunpack.c.l.b16 %v3730
    %v3978 = vunpack.c.h.b16 %v3730
    %v3979 = vunpack.c.l.b16 %v3731
    %v3980 = vunpack.c.l.b16 %v3732
    %v3981 = vunpack.c.h.b16 %v3732
    %v3982 = vunpack.c.l.b16 %v3733
    %v3983 = vunpack.c.l.b16 %v3734
    %v3984 = vunpack.c.h.b16 %v3734
    %v3985 = vunpack.c.l.b16 %v3735
    %v3986 = vunpack.c.l.b16 %v3736
    %v3987 = vunpack.c.h.b16 %v3736
    %v3988 = vunpack.c.l.b16 %v3737
    %v3989 = vunpack.c.l.b16 %v3738
    %v3990 = vunpack.c.h.b16 %v3738
    %v3991 = vunpack.c.l.b16 %v3739
    %v3992 = vunpack.c.l.b16 %v3740
    %v3993 = vunpack.c.h.b16 %v3740
    %v3994 = vunpack.c.l.b16 %v3741
    %v3995 = vunpack.c.l.b16 %v3742
    %v3996 = vunpack.c.h.b16 %v3742
    %v3997 = vunpack.c.l.b16 %v3743
    %v3998 = vunpack.c.l.b16 %v3744
    %v3999 = vunpack.c.h.b16 %v3744
    %v4000 = vunpack.c.l.b16 %v3745
    %v4001 = vunpack.c.l.b16 %v3746
    %v4002 = vunpack.c.h.b16 %v3746
    %v4003 = vunpack.c.l.b16 %v3747
    %v4004 = vunpack.c.l.b16 %v3748
    %v4005 = vunpack.c.h.b16 %v3748
    %v4006 = vunpack.c.l.b16 %v3749
    %v4007 = vpack.c.b16 %v3866, %v3863
    %v4008 = vpack.c.b16 %v3867, %v3864
    %v4009 = vpack.c.b16 %v3868, %v3865
    %v4010 = vpack.c.b16 %v3872, %v3869
    %v4011 = vpack.c.b16 %v3873, %v3870
    %v4012 = vpack.c.b16 %v3874, %v3871
    %v4013 = vpack.c.b16 %v3878, %v3875
    %v4014 = vpack.c.b16 %v3879, %v3876
    %v4015 = vpack.c.b16 %v3880, %v3877
    %v4016 = vpack.c.b16 %v3884, %v3881
    %v4017 = vpack.c.b16 %v3885, %v3882
    %v4018 = vpack.c.b16 %v3886, %v3883
    %v4019 = vpack.c.b16 %v3890, %v3887
    %v4020 = vpack.c.b16 %v3891, %v3888
    %v4021 = vpack.c.b16 %v3892, %v3889
    %v4022 = vpack.c.b16 %v3896, %v3893
    %v4023 = vpack.c.b16 %v3897, %v3894
    %v4024 = vpack.c.b16 %v3898, %v3895
    %v4025 = vpack.c.b16 %v3902, %v3899
    %v4026 = vpack.c.b16 %v3903, %v3900
    %v4027 = vpack.c.b16 %v3904, %v3901
    %v4028 = vpack.c.b16 %v3908, %v3905
    %v4029 = vpack.c.b16 %v3909, %v3906
    %v4030 = vpack.c.b16 %v3910, %v3907
    %v4031 = vpack.c.b16 %v3914, %v3911
    %v4032 = vpack.c.b16 %v3915, %v3912
    %v4033 = vpack.c.b16 %v3916, %v3913
    %v4034 = vpack.c.b16 %v3920, %v3917
    %v4035 = vpack.c.b16 %v3921, %v3918
    %v4036 = vpack.c.b16 %v3922, %v3919
    %v4037 = vpack.c.b16 %v3926, %v3923
    %v4038 = vpack.c.b16 %v3927, %v3924
    %v4039 = vpack.c.b16 %v3928, %v3925
    %v4040 = vpack.c.b16 %v3932, %v3929
    %v4041 = vpack.c.b16 %v3933, %v3930
    %v4042 = vpack.c.b16 %v3934, %v3931
    %v4043 = vpack.c.b16 %v3938, %v3935
    %v4044 = vpack.c.b16 %v3939, %v3936
    %v4045 = vpack.c.b16 %v3940, %v3937
    %v4046 = vpack.c.b16 %v3944, %v3941
    %v4047 = vpack.c.b16 %v3945, %v3942
    %v4048 = vpack.c.b16 %v3946, %v3943
    %v4049 = vpack.c.b16 %v3950, %v3947
    %v4050 = vpack.c.b16 %v3951, %v3948
    %v4051 = vpack.c.b16 %v3952, %v3949
    %v4052 = vpack.c.b16 %v3956, %v3953
    %v4053 = vpack.c.b16 %v3957, %v3954
    %v4054 = vpack.c.b16 %v3958, %v3955
    %v4055 = vpack.c.b16 %v3962, %v3959
    %v4056 = vpack.c.b16 %v3963, %v3960
    %v4057 = vpack.c.b16 %v3964, %v3961
    %v4058 = vpack.c.b16 %v3968, %v3965
    %v4059 = vpack.c.b16 %v3969, %v3966
    %v4060 = vpack.c.b16 %v3970, %v3967
    %v4061 = vpack.c.b16 %v3974, %v3971
    %v4062 = vpack.c.b16 %v3975, %v3972
    %v4063 = vpack.c.b16 %v3976, %v3973
    %v4064 = vpack.c.b16 %v3980, %v3977
    %v4065 = vpack.c.b16 %v3981, %v3978
    %v4066 = vpack.c.b16 %v3982, %v3979
    %v4067 = vpack.c.b16 %v3986, %v3983
    %v4068 = vpack.c.b16 %v3987, %v3984
    %v4069 = vpack.c.b16 %v3988, %v3985
    %v4070 = vpack.c.b16 %v3992, %v3989
    %v4071 = vpack.c.b16 %v3993, %v3990
    %v4072 = vpack.c.b16 %v3994, %v3991
    %v4073 = vpack.c.b16 %v3998, %v3995
    %v4074 = vpack.c.b16 %v3999, %v3996
    %v4075 = vpack.c.b16 %v4000, %v3997
    %v4076 = vpack.c.b16 %v4004, %v4001
    %v4077 = vpack.c.b16 %v4005, %v4002
    %v4078 = vpack.c.b16 %v4006, %v4003
    %4151 = vmatprep.subr.bf16.mxu0 %v4008
    %4152 = vmatpush1.bf16.msra.mxu0 %v4007
    %4153 = vmatprep.subr.bf16.mxu0 %v4011
    %4154 = vmatpush1.bf16.msra.mxu0 %v4010
    %4155 = vmatprep.subr.bf16.mxu0 %v4014
    %4156 = vmatpush1.bf16.msra.mxu0 %v4013
    %4157 = vmatprep.subr.bf16.mxu0 %v4017
    %4158 = vmatpush1.bf16.msra.mxu0 %v4016
    %4159 = vmatprep.subr.bf16.mxu0 %v4020
    %4160 = vmatpush1.bf16.msra.mxu0 %v4019
    %4161 = vmatprep.subr.bf16.mxu0 %v4023
    %4162 = vmatpush1.bf16.msra.mxu0 %v4022
    %4163 = vmatprep.subr.bf16.mxu0 %v4026
    %4164 = vmatpush1.bf16.msra.mxu0 %v4025
    %4165 = vmatprep.subr.bf16.mxu0 %v4029
    %4166 = vmatpush1.bf16.msra.mxu0 %v4028
    %4167 = vmatprep.subr.bf16.mxu0 %v4032
    %4168 = vmatpush1.bf16.msra.mxu0 %v4031
    %4169 = vmatprep.subr.bf16.mxu0 %v4035
    %4170 = vmatpush1.bf16.msra.mxu0 %v4034
    %4171 = vmatprep.subr.bf16.mxu0 %v4038
    %4172 = vmatpush1.bf16.msra.mxu0 %v4037
    %4173 = vmatprep.subr.bf16.mxu0 %v4041
    %4174 = vmatpush1.bf16.msra.mxu0 %v4040
    %4175 = vmatprep.subr.bf16.mxu0 %v4044
    %4176 = vmatpush1.bf16.msra.mxu0 %v4043
    %4177 = vmatprep.subr.bf16.mxu0 %v4047
    %4178 = vmatpush1.bf16.msra.mxu0 %v4046
    %4179 = vmatprep.subr.bf16.mxu0 %v4050
    %4180 = vmatpush1.bf16.msra.mxu0 %v4049
    %4181 = vmatprep.subr.bf16.mxu0 %v4053
    %4182 = vmatpush1.bf16.msra.mxu0 %v4052
    %4183 = vmatprep.mubr.bf16.mxu0 %v3652
    %4184 = vmatmul.mubr.bf16.gmra.mrb[0].mxu0 %v3651
    %v4185 = vpop.f32.mrb[0].mxu0
    %v4186 = vadd.f32 %v3755, %v4185
    %v4187 = vpop.f32.mrb[0].mxu0
    %v4188 = vadd.f32 %v3759, %v4187
    %v4189 = vpop.f32.mrb[0].mxu0
    %v4190 = vpop.f32.mrb[0].mxu0
    %4191 = vdwg.mxu0
    %4192 = vmatprep.subr.bf16.mxu0 %v4056
    %4193 = vmatpush1.bf16.msra.mxu0 %v4055
    %4194 = vmatprep.subr.bf16.mxu0 %v4059
    %4195 = vmatpush1.bf16.msra.mxu0 %v4058
    %4196 = vmatprep.subr.bf16.mxu0 %v4062
    %4197 = vmatpush1.bf16.msra.mxu0 %v4061
    %4198 = vmatprep.subr.bf16.mxu0 %v4065
    %4199 = vmatpush1.bf16.msra.mxu0 %v4064
    %4200 = vmatprep.subr.bf16.mxu0 %v4068
    %4201 = vmatpush1.bf16.msra.mxu0 %v4067
    %4202 = vmatprep.subr.bf16.mxu0 %v4071
    %4203 = vmatpush1.bf16.msra.mxu0 %v4070
    %4204 = vmatprep.subr.bf16.mxu0 %v4074
    %4205 = vmatpush1.bf16.msra.mxu0 %v4073
    %4206 = vmatprep.subr.bf16.mxu0 %v4077
    %4207 = vmatpush1.bf16.msra.mxu0 %v4076
    %4208 = vmatprep.subr.bf16.mxu0 0
    %4209 = vmatpush1.bf16.msra.mxu0 0
    %4210 = vmatprep.subr.bf16.mxu0 0
    %4211 = vmatpush1.bf16.msra.mxu0 0
    %4212 = vmatprep.subr.bf16.mxu0 0
    %4213 = vmatpush1.bf16.msra.mxu0 0
    %4214 = vmatprep.subr.bf16.mxu0 0
    %4215 = vmatpush1.bf16.msra.mxu0 0
    %4216 = vmatprep.subr.bf16.mxu0 0
    %4217 = vmatpush1.bf16.msra.mxu0 0
    %4218 = vmatprep.subr.bf16.mxu0 0
    %4219 = vmatpush1.bf16.msra.mxu0 0
    %4220 = vmatprep.subr.bf16.mxu0 0
    %4221 = vmatpush1.bf16.msra.mxu0 0
    %4222 = vmatprep.subr.bf16.mxu0 0
    %4223 = vmatpush1.bf16.msra.mxu0 0
    %4224 = vmatprep.mubr.bf16.mxu0 0
    %4225 = vmatmul.mubr.bf16.gmra.mrb[0].mxu0 %v3653
    %v4226 = vpop.f32.mrb[0].mxu0
    %v4227 = vadd.f32 %v4186, %v4226
    %v4228 = vpop.f32.mrb[0].mxu0
    %v4229 = vadd.f32 %v4188, %v4228
    %v4230 = vpop.f32.mrb[0].mxu0
    %v4231 = vpop.f32.mrb[0].mxu0
    %4232 = vdwg.mxu0
    %4233 = vmatprep.subr.bf16.mxu0 0
    %4234 = vmatpush1.bf16.msra.mxu0 %v4009
    %4235 = vmatprep.subr.bf16.mxu0 0
    %4236 = vmatpush1.bf16.msra.mxu0 %v4012
    %4237 = vmatprep.subr.bf16.mxu0 0
    %4238 = vmatpush1.bf16.msra.mxu0 %v4015
    %4239 = vmatprep.subr.bf16.mxu0 0
    %4240 = vmatpush1.bf16.msra.mxu0 %v4018
    %4241 = vmatprep.subr.bf16.mxu0 0
    %4242 = vmatpush1.bf16.msra.mxu0 %v4021
    %4243 = vmatprep.subr.bf16.mxu0 0
    %4244 = vmatpush1.bf16.msra.mxu0 %v4024
    %4245 = vmatprep.subr.bf16.mxu0 0
    %4246 = vmatpush1.bf16.msra.mxu0 %v4027
    %4247 = vmatprep.subr.bf16.mxu0 0
    %4248 = vmatpush1.bf16.msra.mxu0 %v4030
    %4249 = vmatprep.subr.bf16.mxu0 0
    %4250 = vmatpush1.bf16.msra.mxu0 %v4033
    %4251 = vmatprep.subr.bf16.mxu0 0
    %4252 = vmatpush1.bf16.msra.mxu0 %v4036
    %4253 = vmatprep.subr.bf16.mxu0 0
    %4254 = vmatpush1.bf16.msra.mxu0 %v4039
    %4255 = vmatprep.subr.bf16.mxu0 0
    %4256 = vmatpush1.bf16.msra.mxu0 %v4042
    %4257 = vmatprep.subr.bf16.mxu0 0
    %4258 = vmatpush1.bf16.msra.mxu0 %v4045
    %4259 = vmatprep.subr.bf16.mxu0 0
    %4260 = vmatpush1.bf16.msra.mxu0 %v4048
    %4261 = vmatprep.subr.bf16.mxu0 0
    %4262 = vmatpush1.bf16.msra.mxu0 %v4051
    %4263 = vmatprep.subr.bf16.mxu0 0
    %4264 = vmatpush1.bf16.msra.mxu0 %v4054
    %4265 = vmatprep.mubr.bf16.mxu0 %v3652
    %4266 = vmatmul.mubr.bf16.gmra.mrb[0].mxu0 %v3651
    %v4267 = vpop.f32.mrb[0].mxu0
    %v4268 = vadd.f32 %v3763, %v4267
    %v4269 = vpop.f32.mrb[0].mxu0
    %v4270 = vpop.f32.mrb[0].mxu0
    %v4271 = vpop.f32.mrb[0].mxu0
    %4272 = vdwg.mxu0
    %4273 = vmatprep.subr.bf16.mxu0 0
    %4274 = vmatpush1.bf16.msra.mxu0 %v4057
    %4275 = vmatprep.subr.bf16.mxu0 0
    %4276 = vmatpush1.bf16.msra.mxu0 %v4060
    %4277 = vmatprep.subr.bf16.mxu0 0
    %4278 = vmatpush1.bf16.msra.mxu0 %v4063
    %4279 = vmatprep.subr.bf16.mxu0 0
    %4280 = vmatpush1.bf16.msra.mxu0 %v4066
    %4281 = vmatprep.subr.bf16.mxu0 0
    %4282 = vmatpush1.bf16.msra.mxu0 %v4069
    %4283 = vmatprep.subr.bf16.mxu0 0
    %4284 = vmatpush1.bf16.msra.mxu0 %v4072
    %4285 = vmatprep.subr.bf16.mxu0 0
    %4286 = vmatpush1.bf16.msra.mxu0 %v4075
    %4287 = vmatprep.subr.bf16.mxu0 0
    %4288 = vmatpush1.bf16.msra.mxu0 %v4078
    %4289 = vmatprep.subr.bf16.mxu0 0
    %4290 = vmatpush1.bf16.msra.mxu0 0
    %4291 = vmatprep.subr.bf16.mxu0 0
    %4292 = vmatpush1.bf16.msra.mxu0 0
    %4293 = vmatprep.subr.bf16.mxu0 0
    %4294 = vmatpush1.bf16.msra.mxu0 0
    %4295 = vmatprep.subr.bf16.mxu0 0
    %4296 = vmatpush1.bf16.msra.mxu0 0
    %4297 = vmatprep.subr.bf16.mxu0 0
    %4298 = vmatpush1.bf16.msra.mxu0 0
    %4299 = vmatprep.subr.bf16.mxu0 0
    %4300 = vmatpush1.bf16.msra.mxu0 0
    %4301 = vmatprep.subr.bf16.mxu0 0
    %4302 = vmatpush1.bf16.msra.mxu0 0
    %4303 = vmatprep.subr.bf16.mxu0 0
    %4304 = vmatpush1.bf16.msra.mxu0 0
    %4305 = vmatprep.mubr.bf16.mxu0 0
    %4306 = vmatmul.mubr.bf16.gmra.mrb[0].mxu0 %v3653
    %v4307 = vpop.f32.mrb[0].mxu0
    %v4308 = vadd.f32 %v4268, %v4307
    %v4309 = vpop.f32.mrb[0].mxu0
    %v4310 = vpop.f32.mrb[0].mxu0
    %v4311 = vpop.f32.mrb[0].mxu0
    %4312 = vdwg.mxu0
    %v4313 = vadd.f32 %v4227, %v3494
    %v4314 = vxor.u32 %v4313, 2147483648
    %v4315 = vmul.f32 %v4314, 1.442695
    %v4316 = vpow.pop %v4315
    %v4317 = vadd.f32 %v4316, 1.0
    %v4318 = vrcp.pop %v4317
    %v4319 = vmul.f32 1.0, %v4318
    %v4320 = vadd.f32 %v4229, %v3496
    %v4321 = vxor.u32 %v4320, 2147483648
    %v4322 = vmul.f32 %v4321, 1.442695
    %v4323 = vpow.pop %v4322
    %v4324 = vadd.f32 %v4323, 1.0
    %v4325 = vrcp.pop %v4324
    %v4326 = vmul.f32 1.0, %v4325
    %v4327 = vmul.f32 %v4319, %v3535
    %v4328 = vadd.f32 %v4308, %v4327
    %v4329 = vtanh.pop %v4328
    %v4330 = vsub.f32 1.0, %v4326
    %v4331 = vmul.f32 %v4330, %v4329
    %v4332 = vmul.f32 %v4326, %v2793
    %v4333 = vadd.f32 %v4331, %v4332
    %v4334 = vpack.c.bf16 %v4333, %v4333
    %v4335 = vld [vmem:[#allocation22] sm:$0xf]
    %v4336 = vld [vmem:[#allocation22 + $0x4] sm:$0xf]
    %v4337 = vld [vmem:[#allocation22 + $0x8] sm:$0xf]
    %v4338 = vld [vmem:[#allocation22 + $0xc] sm:$0xf]
    %v4339 = vld [vmem:[#allocation22 + $0x10] sm:$0xf]
    %v4340 = vld [vmem:[#allocation22 + $0x14] sm:$0xf]
    %v4341 = vld [vmem:[#allocation22 + $0x18] sm:$0xf]
    %v4342 = vld [vmem:[#allocation22 + $0x1c] sm:$0xf]
    %v4343 = vld [vmem:[#allocation22 + $0x20] sm:$0xf]
    %v4344 = vld [vmem:[#allocation22 + $0x24] sm:$0xf]
    %v4345 = vld [vmem:[#allocation22 + $0x28] sm:$0xf]
    %v4346 = vld [vmem:[#allocation22 + $0x2c] sm:$0xf]
    %v4347 = vld [vmem:[#allocation22 + $0x30] sm:$0xf]
    %v4348 = vld [vmem:[#allocation22 + $0x34] sm:$0xf]
    %v4349 = vld [vmem:[#allocation22 + $0x38] sm:$0xf]
    %v4350 = vld [vmem:[#allocation22 + $0x3c] sm:$0xf]
    %v4351 = vld [vmem:[#allocation22 + $0x40] sm:$0xf]
    %v4352 = vld [vmem:[#allocation22 + $0x44] sm:$0xf]
    %v4353 = vld [vmem:[#allocation22 + $0x48] sm:$0xf]
    %v4354 = vld [vmem:[#allocation22 + $0x4c] sm:$0xf]
    %v4355 = vld [vmem:[#allocation22 + $0x50] sm:$0xf]
    %v4356 = vld [vmem:[#allocation22 + $0x54] sm:$0xf]
    %v4357 = vld [vmem:[#allocation22 + $0x58] sm:$0xf]
    %v4358 = vld [vmem:[#allocation22 + $0x5c] sm:$0xf]
    %v4359 = vld [vmem:[#allocation22 + $0x60] sm:$0xf]
    %v4360 = vld [vmem:[#allocation22 + $0x64] sm:$0xf]
    %v4361 = vld [vmem:[#allocation22 + $0x68] sm:$0xf]
    %v4362 = vld [vmem:[#allocation22 + $0x6c] sm:$0xf]
    %v4363 = vld [vmem:[#allocation22 + $0x70] sm:$0xf]
    %v4364 = vld [vmem:[#allocation22 + $0x74] sm:$0xf]
    %v4365 = vld [vmem:[#allocation22 + $0x78] sm:$0xf]
    %v4366 = vld [vmem:[#allocation22 + $0x7c] sm:$0xf]
    %v4367 = vld [vmem:[#allocation22 + $0x80] sm:$0xf]
    %v4368 = vld [vmem:[#allocation22 + $0x84] sm:$0xf]
    %v4369 = vld [vmem:[#allocation22 + $0x88] sm:$0xf]
    %v4370 = vld [vmem:[#allocation22 + $0x8c] sm:$0xf]
    %v4371 = vld [vmem:[#allocation22 + $0x90] sm:$0xf]
    %v4372 = vld [vmem:[#allocation22 + $0x94] sm:$0xf]
    %v4373 = vld [vmem:[#allocation22 + $0x98] sm:$0xf]
    %v4374 = vld [vmem:[#allocation22 + $0x9c] sm:$0xf]
    %v4375 = vld [vmem:[#allocation22 + $0xa0] sm:$0xf]
    %v4376 = vld [vmem:[#allocation22 + $0xa4] sm:$0xf]
    %v4377 = vld [vmem:[#allocation22 + $0xa8] sm:$0xf]
    %v4378 = vld [vmem:[#allocation22 + $0xac] sm:$0xf]
    %v4379 = vld [vmem:[#allocation22 + $0xb0] sm:$0xf]
    %v4380 = vld [vmem:[#allocation22 + $0xb4] sm:$0xf]
    %v4381 = vld [vmem:[#allocation22 + $0xb8] sm:$0xf]
    %v4382 = vld [vmem:[#allocation22 + $0xbc] sm:$0xf]
    %v4383 = vld [vmem:[#allocation24] sm:$0x1]
    %v4385 = vlaneseq
    %v4386 = vshrl.u32 %v4385, 7
    %v4387 = vsub.s32 0, %v4386
    %v4388 = vrot.slane %v4383, %v4387
    %v4438 = vunpack.c.l.b16 %v4335
    %v4439 = vunpack.c.l.b16 %v4336
    %v4440 = vunpack.c.l.b16 %v4337
    %v4441 = vunpack.c.l.b16 %v4338
    %v4442 = vunpack.c.l.b16 %v4339
    %v4443 = vunpack.c.l.b16 %v4340
    %v4444 = vunpack.c.l.b16 %v4341
    %v4445 = vunpack.c.l.b16 %v4342
    %v4446 = vunpack.c.l.b16 %v4343
    %v4447 = vunpack.c.l.b16 %v4344
    %v4448 = vunpack.c.l.b16 %v4345
    %v4449 = vunpack.c.l.b16 %v4346
    %v4450 = vunpack.c.l.b16 %v4347
    %v4451 = vunpack.c.l.b16 %v4348
    %v4452 = vunpack.c.l.b16 %v4349
    %v4453 = vunpack.c.l.b16 %v4350
    %v4454 = vunpack.c.l.b16 %v4351
    %v4455 = vunpack.c.l.b16 %v4352
    %v4456 = vunpack.c.l.b16 %v4353
    %v4457 = vunpack.c.l.b16 %v4354
    %v4458 = vunpack.c.l.b16 %v4355
    %v4459 = vunpack.c.l.b16 %v4356
    %v4460 = vunpack.c.l.b16 %v4357
    %v4461 = vunpack.c.l.b16 %v4358
    %v4462 = vunpack.c.l.b16 %v4359
    %v4463 = vunpack.c.l.b16 %v4360
    %v4464 = vunpack.c.l.b16 %v4361
    %v4465 = vunpack.c.l.b16 %v4362
    %v4466 = vunpack.c.l.b16 %v4363
    %v4467 = vunpack.c.l.b16 %v4364
    %v4468 = vunpack.c.l.b16 %v4365
    %v4469 = vunpack.c.l.b16 %v4366
    %v4470 = vunpack.c.l.b16 %v4367
    %v4471 = vunpack.c.l.b16 %v4368
    %v4472 = vunpack.c.l.b16 %v4369
    %v4473 = vunpack.c.l.b16 %v4370
    %v4474 = vunpack.c.l.b16 %v4371
    %v4475 = vunpack.c.l.b16 %v4372
    %v4476 = vunpack.c.l.b16 %v4373
    %v4477 = vunpack.c.l.b16 %v4374
    %v4478 = vunpack.c.l.b16 %v4375
    %v4479 = vunpack.c.l.b16 %v4376
    %v4480 = vunpack.c.l.b16 %v4377
    %v4481 = vunpack.c.l.b16 %v4378
    %v4482 = vunpack.c.l.b16 %v4379
    %v4483 = vunpack.c.l.b16 %v4380
    %v4484 = vunpack.c.l.b16 %v4381
    %v4485 = vunpack.c.l.b16 %v4382
    %v4486 = vpack.c.b16 %v4439, %v4438
    %v4487 = vpack.c.b16 %v4441, %v4440
    %v4488 = vpack.c.b16 %v4443, %v4442
    %v4489 = vpack.c.b16 %v4445, %v4444
    %v4490 = vpack.c.b16 %v4447, %v4446
    %v4491 = vpack.c.b16 %v4449, %v4448
    %v4492 = vpack.c.b16 %v4451, %v4450
    %v4493 = vpack.c.b16 %v4453, %v4452
    %v4494 = vpack.c.b16 %v4455, %v4454
    %v4495 = vpack.c.b16 %v4457, %v4456
    %v4496 = vpack.c.b16 %v4459, %v4458
    %v4497 = vpack.c.b16 %v4461, %v4460
    %v4498 = vpack.c.b16 %v4463, %v4462
    %v4499 = vpack.c.b16 %v4465, %v4464
    %v4500 = vpack.c.b16 %v4467, %v4466
    %v4501 = vpack.c.b16 %v4469, %v4468
    %v4502 = vpack.c.b16 %v4471, %v4470
    %v4503 = vpack.c.b16 %v4473, %v4472
    %v4504 = vpack.c.b16 %v4475, %v4474
    %v4505 = vpack.c.b16 %v4477, %v4476
    %v4506 = vpack.c.b16 %v4479, %v4478
    %v4507 = vpack.c.b16 %v4481, %v4480
    %v4508 = vpack.c.b16 %v4483, %v4482
    %v4509 = vpack.c.b16 %v4485, %v4484
    %4534 = vmatprep.subr.bf16.mxu0 0
    %4535 = vmatpush1.bf16.msra.mxu0 %v4486
    %4536 = vmatprep.subr.bf16.mxu0 0
    %4537 = vmatpush1.bf16.msra.mxu0 %v4487
    %4538 = vmatprep.subr.bf16.mxu0 0
    %4539 = vmatpush1.bf16.msra.mxu0 %v4488
    %4540 = vmatprep.subr.bf16.mxu0 0
    %4541 = vmatpush1.bf16.msra.mxu0 %v4489
    %4542 = vmatprep.subr.bf16.mxu0 0
    %4543 = vmatpush1.bf16.msra.mxu0 %v4490
    %4544 = vmatprep.subr.bf16.mxu0 0
    %4545 = vmatpush1.bf16.msra.mxu0 %v4491
    %4546 = vmatprep.subr.bf16.mxu0 0
    %4547 = vmatpush1.bf16.msra.mxu0 %v4492
    %4548 = vmatprep.subr.bf16.mxu0 0
    %4549 = vmatpush1.bf16.msra.mxu0 %v4493
    %4550 = vmatprep.subr.bf16.mxu0 0
    %4551 = vmatpush1.bf16.msra.mxu0 %v4494
    %4552 = vmatprep.subr.bf16.mxu0 0
    %4553 = vmatpush1.bf16.msra.mxu0 %v4495
    %4554 = vmatprep.subr.bf16.mxu0 0
    %4555 = vmatpush1.bf16.msra.mxu0 %v4496
    %4556 = vmatprep.subr.bf16.mxu0 0
    %4557 = vmatpush1.bf16.msra.mxu0 %v4497
    %4558 = vmatprep.subr.bf16.mxu0 0
    %4559 = vmatpush1.bf16.msra.mxu0 %v4498
    %4560 = vmatprep.subr.bf16.mxu0 0
    %4561 = vmatpush1.bf16.msra.mxu0 %v4499
    %4562 = vmatprep.subr.bf16.mxu0 0
    %4563 = vmatpush1.bf16.msra.mxu0 %v4500
    %4564 = vmatprep.subr.bf16.mxu0 0
    %4565 = vmatpush1.bf16.msra.mxu0 %v4501
    %4566 = vmatprep.mubr.bf16.mxu0 %v3652
    %4567 = vmatmul.mubr.bf16.gmra.mrb[0].mxu0 %v4334
    %v4568 = vpop.f32.mrb[0].mxu0
    %v4569 = vadd.f32 %v4388, %v4568
    %v4570 = vpop.f32.mrb[0].mxu0
    %v4571 = vpop.f32.mrb[0].mxu0
    %v4572 = vpop.f32.mrb[0].mxu0
    %4573 = vdwg.mxu0
    %4574 = vmatprep.subr.bf16.mxu0 0
    %4575 = vmatpush1.bf16.msra.mxu0 %v4502
    %4576 = vmatprep.subr.bf16.mxu0 0
    %4577 = vmatpush1.bf16.msra.mxu0 %v4503
    %4578 = vmatprep.subr.bf16.mxu0 0
    %4579 = vmatpush1.bf16.msra.mxu0 %v4504
    %4580 = vmatprep.subr.bf16.mxu0 0
    %4581 = vmatpush1.bf16.msra.mxu0 %v4505
    %4582 = vmatprep.subr.bf16.mxu0 0
    %4583 = vmatpush1.bf16.msra.mxu0 %v4506
    %4584 = vmatprep.subr.bf16.mxu0 0
    %4585 = vmatpush1.bf16.msra.mxu0 %v4507
    %4586 = vmatprep.subr.bf16.mxu0 0
    %4587 = vmatpush1.bf16.msra.mxu0 %v4508
    %4588 = vmatprep.subr.bf16.mxu0 0
    %4589 = vmatpush1.bf16.msra.mxu0 %v4509
    %4590 = vmatprep.subr.bf16.mxu0 0
    %4591 = vmatpush1.bf16.msra.mxu0 0
    %4592 = vmatprep.subr.bf16.mxu0 0
    %4593 = vmatpush1.bf16.msra.mxu0 0
    %4594 = vmatprep.subr.bf16.mxu0 0
    %4595 = vmatpush1.bf16.msra.mxu0 0
    %4596 = vmatprep.subr.bf16.mxu0 0
    %4597 = vmatpush1.bf16.msra.mxu0 0
    %4598 = vmatprep.subr.bf16.mxu0 0
    %4599 = vmatpush1.bf16.msra.mxu0 0
    %4600 = vmatprep.subr.bf16.mxu0 0
    %4601 = vmatpush1.bf16.msra.mxu0 0
    %4602 = vmatprep.subr.bf16.mxu0 0
    %4603 = vmatpush1.bf16.msra.mxu0 0
    %4604 = vmatprep.subr.bf16.mxu0 0
    %4605 = vmatpush1.bf16.msra.mxu0 0
    %4606 = vmatprep.mubr.bf16.mxu0 0
    %4607 = vmatmul.mubr.bf16.gmra.mrb[0].mxu0 %v3651
    %v4608 = vpop.f32.mrb[0].mxu0
    %v4609 = vadd.f32 %v4569, %v4608
    %v4610 = vpop.f32.mrb[0].mxu0
    %v4611 = vpop.f32.mrb[0].mxu0
    %v4612 = vpop.f32.mrb[0].mxu0
    %4613 = vdwg.mxu0
    %s4614 = scalar_lea.vmem [#allocation25], 8
    %4615 = vst [vmem:[%s4614] sm:$0xff] %v4609
    %4616 = vmax.xlane.f32.xlu0 %v4609
    %v4617 = vpop.xlane.xlu0 %4616
    %vm4618 = vcmp.ge.f32.partialorder %v4609, %v4617
    %v4619 = vsel %vm4618, %v3116, 128
    %v4620 = vand.u32 %v4619, 65535
    %v4621 = vshra.s32 %v4619, 16
    %v4622 = vcvt.s32.f32 %v4620
    %v4623 = vcvt.s32.f32 %v4621
    %4624 = vmin.xlane.f32.xlu0 %v4623
    %v4625 = vpop.xlane.xlu0 %4624
    %vm4626 = vcmp.eq.f32.partialorder %v4623, %v4625
    %v4627 = vsel %vm4626, %v4622, inf
    %4628 = vmin.xlane.f32.xlu0 %v4627
    %v4629 = vpop.xlane.xlu0 %4628
    %v4630 = vcvt.f32.s32 %v4629
    %v4631 = vcvt.f32.s32 %v4625
    %v4632 = vshll.u32 %v4631, 16
    %v4633 = vadd.s32 %v4632, %v4630
    %vm4634 = vcmp.eq.s32.totalorder %v3116, %v4633
    %v4635 = vsel %vm4634, 1, 0
    %v4636 = vcvt.s32.f32 %v4635
    %v4637 = vpack.c.bf16 %v4636, %v4636
    %v4638 = vld [vmem:[%s20] sm:$0xf]
    %v4639 = vld [vmem:[%s20 + $0x4] sm:$0xf]
    %v4640 = vld [vmem:[%s20 + $0x8] sm:$0xf]
    %v4641 = vld [vmem:[%s20 + $0xc] sm:$0xf]
    %v4642 = vld [vmem:[%s20 + $0x10] sm:$0xf]
    %v4643 = vld [vmem:[%s20 + $0x14] sm:$0xf]
    %v4644 = vld [vmem:[%s20 + $0x18] sm:$0xf]
    %v4645 = vld [vmem:[%s20 + $0x1c] sm:$0xf]
    %v4646 = vld [vmem:[%s20 + $0x20] sm:$0xf]
    %v4647 = vld [vmem:[%s20 + $0x24] sm:$0xf]
    %v4648 = vld [vmem:[%s20 + $0x28] sm:$0xf]
    %v4649 = vld [vmem:[%s20 + $0x2c] sm:$0xf]
    %v4650 = vld [vmem:[%s20 + $0x30] sm:$0xf]
    %v4651 = vld [vmem:[%s20 + $0x34] sm:$0xf]
    %v4652 = vld [vmem:[%s20 + $0x38] sm:$0xf]
    %v4653 = vld [vmem:[%s20 + $0x3c] sm:$0xf]
    %v4670 = vunpack.c.l.b16 %v4638
    %v4671 = vunpack.c.l.b16 %v4639
    %v4672 = vunpack.c.l.b16 %v4640
    %v4673 = vunpack.c.l.b16 %v4641
    %v4674 = vunpack.c.l.b16 %v4642
    %v4675 = vunpack.c.l.b16 %v4643
    %v4676 = vunpack.c.l.b16 %v4644
    %v4677 = vunpack.c.l.b16 %v4645
    %v4678 = vunpack.c.l.b16 %v4646
    %v4679 = vunpack.c.l.b16 %v4647
    %v4680 = vunpack.c.l.b16 %v4648
    %v4681 = vunpack.c.l.b16 %v4649
    %v4682 = vunpack.c.l.b16 %v4650
    %v4683 = vunpack.c.l.b16 %v4651
    %v4684 = vunpack.c.l.b16 %v4652
    %v4685 = vunpack.c.l.b16 %v4653
    %v4686 = vpack.c.b16 %v4671, %v4670
    %v4687 = vpack.c.b16 %v4673, %v4672
    %v4688 = vpack.c.b16 %v4675, %v4674
    %v4689 = vpack.c.b16 %v4677, %v4676
    %v4690 = vpack.c.b16 %v4679, %v4678
    %v4691 = vpack.c.b16 %v4681, %v4680
    %v4692 = vpack.c.b16 %v4683, %v4682
    %v4693 = vpack.c.b16 %v4685, %v4684
    %4702 = vmatprep.subr.bf16.mxu0 0
    %4703 = vmatpush1.bf16.msra.mxu0 %v4686
    %4704 = vmatprep.subr.bf16.mxu0 0
    %4705 = vmatpush1.bf16.msra.mxu0 %v4687
    %4706 = vmatprep.subr.bf16.mxu0 0
    %4707 = vmatpush1.bf16.msra.mxu0 %v4688
    %4708 = vmatprep.subr.bf16.mxu0 0
    %4709 = vmatpush1.bf16.msra.mxu0 %v4689
    %4710 = vmatprep.subr.bf16.mxu0 0
    %4711 = vmatpush1.bf16.msra.mxu0 %v4690
    %4712 = vmatprep.subr.bf16.mxu0 0
    %4713 = vmatpush1.bf16.msra.mxu0 %v4691
    %4714 = vmatprep.subr.bf16.mxu0 0
    %4715 = vmatpush1.bf16.msra.mxu0 %v4692
    %4716 = vmatprep.subr.bf16.mxu0 0
    %4717 = vmatpush1.bf16.msra.mxu0 %v4693
    %4718 = vmatprep.subr.bf16.mxu0 0
    %4719 = vmatpush1.bf16.msra.mxu0 0
    %4720 = vmatprep.subr.bf16.mxu0 0
    %4721 = vmatpush1.bf16.msra.mxu0 0
    %4722 = vmatprep.subr.bf16.mxu0 0
    %4723 = vmatpush1.bf16.msra.mxu0 0
    %4724 = vmatprep.subr.bf16.mxu0 0
    %4725 = vmatpush1.bf16.msra.mxu0 0
    %4726 = vmatprep.subr.bf16.mxu0 0
    %4727 = vmatpush1.bf16.msra.mxu0 0
    %4728 = vmatprep.subr.bf16.mxu0 0
    %4729 = vmatpush1.bf16.msra.mxu0 0
    %4730 = vmatprep.subr.bf16.mxu0 0
    %4731 = vmatpush1.bf16.msra.mxu0 0
    %4732 = vmatprep.subr.bf16.mxu0 0
    %4733 = vmatpush1.bf16.msra.mxu0 0
    %4734 = vmatprep.mubr.bf16.mxu0 0
    %4735 = vmatmul.mubr.bf16.gmra.mrb[0].mxu0 %v4637
    %v4736 = vpop.f32.mrb[0].mxu0
    %v4737 = vadd.f32 0.0, %v4736
    %v4738 = vpop.f32.mrb[0].mxu0
    %v4739 = vpop.f32.mrb[0].mxu0
    %v4740 = vpop.f32.mrb[0].mxu0
    %4741 = vdwg.mxu0
    %s4742 = sld [smem:[#allocation6 + $0x1]]
    %p4743 = scmp.gt.s32.totalorder %s4742, 0
    %s4744 = scalar_select %p4743, 1, 0
    %s4745 = scvt.s32.f32 %s4744
    %s4746 = scalar_lea.vmem %s2, 8
    %v4747 = vld [vmem:[%s4746] sm:$0xff]
    %v4748 = vstv %s4745
    %v4749 = vmul.f32 %v4748, %v4747
    %s4750 = ssub.f32 1.0, %s4745
    %v4751 = vstv %s4750
    %v4752 = vmul.f32 %v4751, %v4737
    %v4753 = vadd.f32 %v4749, %v4752
    %v4754 = vld [vmem:[#allocation2] sm:$0xff]
    %v4755 = vld [vmem:[#allocation2 + $0x8] sm:$0xff]
    %v4756 = vld [vmem:[#allocation2 + $0x10] sm:$0xff]
    %v4757 = vld [vmem:[#allocation2 + $0x18] sm:$0xff]
    %v4758 = vld [vmem:[#allocation2 + $0x20] sm:$0xff]
    %v4759 = vld [vmem:[#allocation2 + $0x28] sm:$0xff]
    %v4760 = vld [vmem:[#allocation2 + $0x30] sm:$0xff]
    %v4761 = vld [vmem:[#allocation2 + $0x38] sm:$0xff]
    %v4762 = vld [vmem:[#allocation3] sm:$0xff]
    %v4763 = vld [vmem:[#allocation3 + $0x8] sm:$0xff]
    %v4764 = vld [vmem:[#allocation3 + $0x10] sm:$0xff]
    %v4765 = vld [vmem:[#allocation3 + $0x18] sm:$0xff]
    %v4766 = vld [vmem:[#allocation3 + $0x20] sm:$0xff]
    %v4767 = vld [vmem:[#allocation3 + $0x28] sm:$0xff]
    %v4768 = vld [vmem:[#allocation3 + $0x30] sm:$0xff]
    %v4769 = vld [vmem:[#allocation3 + $0x38] sm:$0xff]
    %v4770 = vld [vmem:[#allocation18] sm:$0xff]
    %v4771 = vld [vmem:[#allocation18 + $0x8] sm:$0xff]
    %v4772 = vld [vmem:[#allocation18 + $0x10] sm:$0xf]
    %v4773 = vld [vmem:[#allocation18 + $0x14] sm:$0xff]
    %v4774 = vld [vmem:[#allocation18 + $0x1c] sm:$0xff]
    %v4775 = vld [vmem:[#allocation18 + $0x24] sm:$0xf]
    %v4776 = vld [vmem:[#allocation18 + $0x28] sm:$0xff]
    %v4777 = vld [vmem:[#allocation18 + $0x30] sm:$0xff]
    %v4778 = vld [vmem:[#allocation18 + $0x38] sm:$0xf]
    %v4779 = vld [vmem:[#allocation18 + $0x3c] sm:$0xff]
    %v4780 = vld [vmem:[#allocation18 + $0x44] sm:$0xff]
    %v4781 = vld [vmem:[#allocation18 + $0x4c] sm:$0xf]
    %v4782 = vld [vmem:[#allocation18 + $0x50] sm:$0xff]
    %v4783 = vld [vmem:[#allocation18 + $0x58] sm:$0xff]
    %v4784 = vld [vmem:[#allocation18 + $0x60] sm:$0xf]
    %v4785 = vld [vmem:[#allocation18 + $0x64] sm:$0xff]
    %v4786 = vld [vmem:[#allocation18 + $0x6c] sm:$0xff]
    %v4787 = vld [vmem:[#allocation18 + $0x74] sm:$0xf]
    %v4788 = vld [vmem:[#allocation18 + $0x78] sm:$0xff]
    %v4789 = vld [vmem:[#allocation18 + $0x80] sm:$0xff]
    %v4790 = vld [vmem:[#allocation18 + $0x88] sm:$0xf]
    %v4791 = vld [vmem:[#allocation18 + $0x8c] sm:$0xff]
    %v4792 = vld [vmem:[#allocation18 + $0x94] sm:$0xff]
    %v4793 = vld [vmem:[#allocation18 + $0x9c] sm:$0xf]
    %v4794 = vld [vmem:[#allocation18 + $0xa0] sm:$0xff]
    %v4795 = vld [vmem:[#allocation18 + $0xa8] sm:$0xff]
    %v4796 = vld [vmem:[#allocation18 + $0xb0] sm:$0xf]
    %v4797 = vld [vmem:[#allocation18 + $0xb4] sm:$0xff]
    %v4798 = vld [vmem:[#allocation18 + $0xbc] sm:$0xff]
    %v4799 = vld [vmem:[#allocation18 + $0xc4] sm:$0xf]
    %v4800 = vld [vmem:[#allocation18 + $0xc8] sm:$0xff]
    %v4801 = vld [vmem:[#allocation18 + $0xd0] sm:$0xff]
    %v4802 = vld [vmem:[#allocation18 + $0xd8] sm:$0xf]
    %v4803 = vld [vmem:[#allocation18 + $0xdc] sm:$0xff]
    %v4804 = vld [vmem:[#allocation18 + $0xe4] sm:$0xff]
    %v4805 = vld [vmem:[#allocation18 + $0xec] sm:$0xf]
    %v4806 = vld [vmem:[#allocation18 + $0xf0] sm:$0xff]
    %v4807 = vld [vmem:[#allocation18 + $0xf8] sm:$0xff]
    %v4808 = vld [vmem:[#allocation18 + $0x100] sm:$0xf]
    %v4809 = vld [vmem:[#allocation18 + $0x104] sm:$0xff]
    %v4810 = vld [vmem:[#allocation18 + $0x10c] sm:$0xff]
    %v4811 = vld [vmem:[#allocation18 + $0x114] sm:$0xf]
    %v4812 = vld [vmem:[#allocation18 + $0x118] sm:$0xff]
    %v4813 = vld [vmem:[#allocation18 + $0x120] sm:$0xff]
    %v4814 = vld [vmem:[#allocation18 + $0x128] sm:$0xf]
    %v4815 = vld [vmem:[#allocation18 + $0x12c] sm:$0xff]
    %v4816 = vld [vmem:[#allocation18 + $0x134] sm:$0xff]
    %v4817 = vld [vmem:[#allocation18 + $0x13c] sm:$0xf]
    %v4818 = vld [vmem:[#allocation19] sm:$0x1f]
    %v4820 = vlaneseq
    %v4821 = vshrl.u32 %v4820, 7
    %v4822 = vsub.s32 0, %v4821
    %v4823 = vrot.slane %v4818, %v4822
    %v4824 = vlaneseq
    %v4825 = vshrl.u32 %v4824, 7
    %v4826 = vsub.s32 1, %v4825
    %v4827 = vrot.slane %v4818, %v4826
    %v4828 = vlaneseq
    %v4829 = vshrl.u32 %v4828, 7
    %v4830 = vsub.s32 2, %v4829
    %v4831 = vrot.slane %v4818, %v4830
    %v4832 = vlaneseq
    %v4833 = vshrl.u32 %v4832, 7
    %v4834 = vsub.s32 3, %v4833
    %v4835 = vrot.slane %v4818, %v4834
    %v4836 = vlaneseq
    %v4837 = vshrl.u32 %v4836, 7
    %v4838 = vsub.s32 4, %v4837
    %v4839 = vrot.slane %v4818, %v4838
    %v4893 = vunpack.c.l.b16 %v4770
    %v4894 = vunpack.c.h.b16 %v4770
    %v4895 = vunpack.c.l.b16 %v4771
    %v4896 = vunpack.c.h.b16 %v4771
    %v4897 = vunpack.c.l.b16 %v4772
    %v4898 = vunpack.c.l.b16 %v4773
    %v4899 = vunpack.c.h.b16 %v4773
    %v4900 = vunpack.c.l.b16 %v4774
    %v4901 = vunpack.c.h.b16 %v4774
    %v4902 = vunpack.c.l.b16 %v4775
    %v4903 = vunpack.c.l.b16 %v4776
    %v4904 = vunpack.c.h.b16 %v4776
    %v4905 = vunpack.c.l.b16 %v4777
    %v4906 = vunpack.c.h.b16 %v4777
    %v4907 = vunpack.c.l.b16 %v4778
    %v4908 = vunpack.c.l.b16 %v4779
    %v4909 = vunpack.c.h.b16 %v4779
    %v4910 = vunpack.c.l.b16 %v4780
    %v4911 = vunpack.c.h.b16 %v4780
    %v4912 = vunpack.c.l.b16 %v4781
    %v4913 = vunpack.c.l.b16 %v4782
    %v4914 = vunpack.c.h.b16 %v4782
    %v4915 = vunpack.c.l.b16 %v4783
    %v4916 = vunpack.c.h.b16 %v4783
    %v4917 = vunpack.c.l.b16 %v4784
    %v4918 = vunpack.c.l.b16 %v4785
    %v4919 = vunpack.c.h.b16 %v4785
    %v4920 = vunpack.c.l.b16 %v4786
    %v4921 = vunpack.c.h.b16 %v4786
    %v4922 = vunpack.c.l.b16 %v4787
    %v4923 = vunpack.c.l.b16 %v4788
    %v4924 = vunpack.c.h.b16 %v4788
    %v4925 = vunpack.c.l.b16 %v4789
    %v4926 = vunpack.c.h.b16 %v4789
    %v4927 = vunpack.c.l.b16 %v4790
    %v4928 = vunpack.c.l.b16 %v4791
    %v4929 = vunpack.c.h.b16 %v4791
    %v4930 = vunpack.c.l.b16 %v4792
    %v4931 = vunpack.c.h.b16 %v4792
    %v4932 = vunpack.c.l.b16 %v4793
    %v4933 = vunpack.c.l.b16 %v4794
    %v4934 = vunpack.c.h.b16 %v4794
    %v4935 = vunpack.c.l.b16 %v4795
    %v4936 = vunpack.c.h.b16 %v4795
    %v4937 = vunpack.c.l.b16 %v4796
    %v4938 = vunpack.c.l.b16 %v4797
    %v4939 = vunpack.c.h.b16 %v4797
    %v4940 = vunpack.c.l.b16 %v4798
    %v4941 = vunpack.c.h.b16 %v4798
    %v4942 = vunpack.c.l.b16 %v4799
    %v4943 = vunpack.c.l.b16 %v4800
    %v4944 = vunpack.c.h.b16 %v4800
    %v4945 = vunpack.c.l.b16 %v4801
    %v4946 = vunpack.c.h.b16 %v4801
    %v4947 = vunpack.c.l.b16 %v4802
    %v4948 = vunpack.c.l.b16 %v4803
    %v4949 = vunpack.c.h.b16 %v4803
    %v4950 = vunpack.c.l.b16 %v4804
    %v4951 = vunpack.c.h.b16 %v4804
    %v4952 = vunpack.c.l.b16 %v4805
    %v4953 = vunpack.c.l.b16 %v4806
    %v4954 = vunpack.c.h.b16 %v4806
    %v4955 = vunpack.c.l.b16 %v4807
    %v4956 = vunpack.c.h.b16 %v4807
    %v4957 = vunpack.c.l.b16 %v4808
    %v4958 = vunpack.c.l.b16 %v4809
    %v4959 = vunpack.c.h.b16 %v4809
    %v4960 = vunpack.c.l.b16 %v4810
    %v4961 = vunpack.c.h.b16 %v4810
    %v4962 = vunpack.c.l.b16 %v4811
    %v4963 = vunpack.c.l.b16 %v4812
    %v4964 = vunpack.c.h.b16 %v4812
    %v4965 = vunpack.c.l.b16 %v4813
    %v4966 = vunpack.c.h.b16 %v4813
    %v4967 = vunpack.c.l.b16 %v4814
    %v4968 = vunpack.c.l.b16 %v4815
    %v4969 = vunpack.c.h.b16 %v4815
    %v4970 = vunpack.c.l.b16 %v4816
    %v4971 = vunpack.c.h.b16 %v4816
    %v4972 = vunpack.c.l.b16 %v4817
    %v4973 = vpack.c.b16 %v4898, %v4893
    %v4974 = vpack.c.b16 %v4899, %v4894
    %v4975 = vpack.c.b16 %v4900, %v4895
    %v4976 = vpack.c.b16 %v4901, %v4896
    %v4977 = vpack.c.b16 %v4902, %v4897
    %v4978 = vpack.c.b16 %v4908, %v4903
    %v4979 = vpack.c.b16 %v4909, %v4904
    %v4980 = vpack.c.b16 %v4910, %v4905
    %v4981 = vpack.c.b16 %v4911, %v4906
    %v4982 = vpack.c.b16 %v4912, %v4907
    %v4983 = vpack.c.b16 %v4918, %v4913
    %v4984 = vpack.c.b16 %v4919, %v4914
    %v4985 = vpack.c.b16 %v4920, %v4915
    %v4986 = vpack.c.b16 %v4921, %v4916
    %v4987 = vpack.c.b16 %v4922, %v4917
    %v4988 = vpack.c.b16 %v4928, %v4923
    %v4989 = vpack.c.b16 %v4929, %v4924
    %v4990 = vpack.c.b16 %v4930, %v4925
    %v4991 = vpack.c.b16 %v4931, %v4926
    %v4992 = vpack.c.b16 %v4932, %v4927
    %v4993 = vpack.c.b16 %v4938, %v4933
    %v4994 = vpack.c.b16 %v4939, %v4934
    %v4995 = vpack.c.b16 %v4940, %v4935
    %v4996 = vpack.c.b16 %v4941, %v4936
    %v4997 = vpack.c.b16 %v4942, %v4937
    %v4998 = vpack.c.b16 %v4948, %v4943
    %v4999 = vpack.c.b16 %v4949, %v4944
    %v5000 = vpack.c.b16 %v4950, %v4945
    %v5001 = vpack.c.b16 %v4951, %v4946
    %v5002 = vpack.c.b16 %v4952, %v4947
    %v5003 = vpack.c.b16 %v4958, %v4953
    %v5004 = vpack.c.b16 %v4959, %v4954
    %v5005 = vpack.c.b16 %v4960, %v4955
    %v5006 = vpack.c.b16 %v4961, %v4956
    %v5007 = vpack.c.b16 %v4962, %v4957
    %v5008 = vpack.c.b16 %v4968, %v4963
    %v5009 = vpack.c.b16 %v4969, %v4964
    %v5010 = vpack.c.b16 %v4970, %v4965
    %v5011 = vpack.c.b16 %v4971, %v4966
    %v5012 = vpack.c.b16 %v4972, %v4967
    %5053 = vmatprep.subr.bf16.mxu0 %v4974
    %5054 = vmatpush1.bf16.msra.mxu0 %v4973
    %5055 = vmatprep.subr.bf16.mxu0 %v4979
    %5056 = vmatpush1.bf16.msra.mxu0 %v4978
    %5057 = vmatprep.subr.bf16.mxu0 %v4984
    %5058 = vmatpush1.bf16.msra.mxu0 %v4983
    %5059 = vmatprep.subr.bf16.mxu0 %v4989
    %5060 = vmatpush1.bf16.msra.mxu0 %v4988
    %5061 = vmatprep.subr.bf16.mxu0 %v4994
    %5062 = vmatpush1.bf16.msra.mxu0 %v4993
    %5063 = vmatprep.subr.bf16.mxu0 %v4999
    %5064 = vmatpush1.bf16.msra.mxu0 %v4998
    %5065 = vmatprep.subr.bf16.mxu0 %v5004
    %5066 = vmatpush1.bf16.msra.mxu0 %v5003
    %5067 = vmatprep.subr.bf16.mxu0 %v5009
    %5068 = vmatpush1.bf16.msra.mxu0 %v5008
    %5069 = vmatprep.subr.bf16.mxu0 0
    %5070 = vmatpush1.bf16.msra.mxu0 0
    %5071 = vmatprep.subr.bf16.mxu0 0
    %5072 = vmatpush1.bf16.msra.mxu0 0
    %5073 = vmatprep.subr.bf16.mxu0 0
    %5074 = vmatpush1.bf16.msra.mxu0 0
    %5075 = vmatprep.subr.bf16.mxu0 0
    %5076 = vmatpush1.bf16.msra.mxu0 0
    %5077 = vmatprep.subr.bf16.mxu0 0
    %5078 = vmatpush1.bf16.msra.mxu0 0
    %5079 = vmatprep.subr.bf16.mxu0 0
    %5080 = vmatpush1.bf16.msra.mxu0 0
    %5081 = vmatprep.subr.bf16.mxu0 0
    %5082 = vmatpush1.bf16.msra.mxu0 0
    %5083 = vmatprep.subr.bf16.mxu0 0
    %5084 = vmatpush1.bf16.msra.mxu0 0
    %5085 = vmatprep.mubr.bf16.mxu0 0
    %5086 = vmatmul.mubr.bf16.gmra.mrb[0].mxu0 %v4334
    %v5087 = vpop.f32.mrb[0].mxu0
    %v5088 = vadd.f32 %v4823, %v5087
    %v5089 = vpop.f32.mrb[0].mxu0
    %v5090 = vadd.f32 %v4827, %v5089
    %v5091 = vpop.f32.mrb[0].mxu0
    %v5092 = vpop.f32.mrb[0].mxu0
    %5093 = vdwg.mxu0
    %5094 = vmatprep.subr.bf16.mxu0 %v4976
    %5095 = vmatpush1.bf16.msra.mxu0 %v4975
    %5096 = vmatprep.subr.bf16.mxu0 %v4981
    %5097 = vmatpush1.bf16.msra.mxu0 %v4980
    %5098 = vmatprep.subr.bf16.mxu0 %v4986
    %5099 = vmatpush1.bf16.msra.mxu0 %v4985
    %5100 = vmatprep.subr.bf16.mxu0 %v4991
    %5101 = vmatpush1.bf16.msra.mxu0 %v4990
    %5102 = vmatprep.subr.bf16.mxu0 %v4996
    %5103 = vmatpush1.bf16.msra.mxu0 %v4995
    %5104 = vmatprep.subr.bf16.mxu0 %v5001
    %5105 = vmatpush1.bf16.msra.mxu0 %v5000
    %5106 = vmatprep.subr.bf16.mxu0 %v5006
    %5107 = vmatpush1.bf16.msra.mxu0 %v5005
    %5108 = vmatprep.subr.bf16.mxu0 %v5011
    %5109 = vmatpush1.bf16.msra.mxu0 %v5010
    %5110 = vmatprep.subr.bf16.mxu0 0
    %5111 = vmatpush1.bf16.msra.mxu0 0
    %5112 = vmatprep.subr.bf16.mxu0 0
    %5113 = vmatpush1.bf16.msra.mxu0 0
    %5114 = vmatprep.subr.bf16.mxu0 0
    %5115 = vmatpush1.bf16.msra.mxu0 0
    %5116 = vmatprep.subr.bf16.mxu0 0
    %5117 = vmatpush1.bf16.msra.mxu0 0
    %5118 = vmatprep.subr.bf16.mxu0 0
    %5119 = vmatpush1.bf16.msra.mxu0 0
    %5120 = vmatprep.subr.bf16.mxu0 0
    %5121 = vmatpush1.bf16.msra.mxu0 0
    %5122 = vmatprep.subr.bf16.mxu0 0
    %5123 = vmatpush1.bf16.msra.mxu0 0
    %5124 = vmatprep.subr.bf16.mxu0 0
    %5125 = vmatpush1.bf16.msra.mxu0 0
    %5126 = vmatprep.mubr.bf16.mxu0 0
    %5127 = vmatmul.mubr.bf16.gmra.mrb[0].mxu0 %v4334
    %v5128 = vpop.f32.mrb[0].mxu0
    %v5129 = vadd.f32 %v4831, %v5128
    %v5130 = vpop.f32.mrb[0].mxu0
    %v5131 = vadd.f32 %v4835, %v5130
    %v5132 = vpop.f32.mrb[0].mxu0
    %v5133 = vpop.f32.mrb[0].mxu0
    %5134 = vdwg.mxu0
    %5135 = vmatprep.subr.bf16.mxu0 0
    %5136 = vmatpush1.bf16.msra.mxu0 %v4977
    %5137 = vmatprep.subr.bf16.mxu0 0
    %5138 = vmatpush1.bf16.msra.mxu0 %v4982
    %5139 = vmatprep.subr.bf16.mxu0 0
    %5140 = vmatpush1.bf16.msra.mxu0 %v4987
    %5141 = vmatprep.subr.bf16.mxu0 0
    %5142 = vmatpush1.bf16.msra.mxu0 %v4992
    %5143 = vmatprep.subr.bf16.mxu0 0
    %5144 = vmatpush1.bf16.msra.mxu0 %v4997
    %5145 = vmatprep.subr.bf16.mxu0 0
    %5146 = vmatpush1.bf16.msra.mxu0 %v5002
    %5147 = vmatprep.subr.bf16.mxu0 0
    %5148 = vmatpush1.bf16.msra.mxu0 %v5007
    %5149 = vmatprep.subr.bf16.mxu0 0
    %5150 = vmatpush1.bf16.msra.mxu0 %v5012
    %5151 = vmatprep.subr.bf16.mxu0 0
    %5152 = vmatpush1.bf16.msra.mxu0 0
    %5153 = vmatprep.subr.bf16.mxu0 0
    %5154 = vmatpush1.bf16.msra.mxu0 0
    %5155 = vmatprep.subr.bf16.mxu0 0
    %5156 = vmatpush1.bf16.msra.mxu0 0
    %5157 = vmatprep.subr.bf16.mxu0 0
    %5158 = vmatpush1.bf16.msra.mxu0 0
    %5159 = vmatprep.subr.bf16.mxu0 0
    %5160 = vmatpush1.bf16.msra.mxu0 0
    %5161 = vmatprep.subr.bf16.mxu0 0
    %5162 = vmatpush1.bf16.msra.mxu0 0
    %5163 = vmatprep.subr.bf16.mxu0 0
    %5164 = vmatpush1.bf16.msra.mxu0 0
    %5165 = vmatprep.subr.bf16.mxu0 0
    %5166 = vmatpush1.bf16.msra.mxu0 0
    %5167 = vmatprep.mubr.bf16.mxu0 0
    %5168 = vmatmul.mubr.bf16.gmra.mrb[0].mxu0 %v4334
    %v5169 = vpop.f32.mrb[0].mxu0
    %v5170 = vadd.f32 %v4839, %v5169
    %v5171 = vpop.f32.mrb[0].mxu0
    %v5172 = vpop.f32.mrb[0].mxu0
    %v5173 = vpop.f32.mrb[0].mxu0
    %5174 = vdwg.mxu0
    %v5175 = vadd.f32 %v5088, %v2962
    %v5176 = vtanh.pop %v5175
    %v5177 = vadd.f32 %v4762, %v5090
    %v5178 = vadd.f32 %v4763, %v5090
    %v5179 = vadd.f32 %v4764, %v5090
    %v5180 = vadd.f32 %v4765, %v5090
    %v5181 = vadd.f32 %v4766, %v5090
    %v5182 = vadd.f32 %v4767, %v5090
    %v5183 = vadd.f32 %v4768, %v5090
    %v5184 = vadd.f32 %v4769, %v5090
    %v5185 = vtanh.pop %v5177
    %v5186 = vtanh.pop %v5178
    %v5187 = vtanh.pop %v5179
    %v5188 = vtanh.pop %v5180
    %v5189 = vtanh.pop %v5181
    %v5190 = vtanh.pop %v5182
    %v5191 = vtanh.pop %v5183
    %v5192 = vtanh.pop %v5184
    %v5193 = vld [vmem:[#allocation16] sm:$0x1]
    %v5195 = vlaneseq
    %v5196 = vshrl.u32 %v5195, 7
    %v5197 = vsub.s32 0, %v5196
    %v5198 = vrot.slane %v5193, %v5197
    %v5200 = vmul.f32 %v5185, %v5198
    %v5201 = vmul.f32 %v5186, %v5198
    %v5202 = vmul.f32 %v5187, %v5198
    %v5203 = vmul.f32 %v5188, %v5198
    %v5204 = vmul.f32 %v5189, %v5198
    %v5205 = vmul.f32 %v5190, %v5198
    %v5206 = vmul.f32 %v5191, %v5198
    %v5207 = vmul.f32 %v5192, %v5198
    %5208 = vadd.xlane.f32.xlu0 %v5200
    %v5209 = vpop.xlane.xlu0 %5208
    %5210 = vadd.xlane.f32.xlu0 %v5201
    %v5211 = vpop.xlane.xlu0 %5210
    %5212 = vadd.xlane.f32.xlu0 %v5202
    %v5213 = vpop.xlane.xlu0 %5212
    %5214 = vadd.xlane.f32.xlu0 %v5203
    %v5215 = vpop.xlane.xlu0 %5214
    %5216 = vadd.xlane.f32.xlu0 %v5204
    %v5217 = vpop.xlane.xlu0 %5216
    %5218 = vadd.xlane.f32.xlu0 %v5205
    %v5219 = vpop.xlane.xlu0 %5218
    %5220 = vadd.xlane.f32.xlu0 %v5206
    %v5221 = vpop.xlane.xlu0 %5220
    %5222 = vadd.xlane.f32.xlu0 %v5207
    %v5223 = vpop.xlane.xlu0 %5222
    %v5224 = vmax.f32 %v5209, %v5217
    %v5225 = vmax.f32 %v5211, %v5219
    %v5226 = vmax.f32 %v5213, %v5221
    %v5227 = vmax.f32 %v5215, %v5223
    %v5228 = vmax.f32 %v5224, %v5225
    %v5229 = vmax.f32 %v5226, %v5227
    %v5230 = vmax.f32 %v5228, %v5229
    %v5231 = vsub.f32 %v5209, %v5230
    %v5232 = vsub.f32 %v5211, %v5230
    %v5233 = vsub.f32 %v5213, %v5230
    %v5234 = vsub.f32 %v5215, %v5230
    %v5235 = vsub.f32 %v5217, %v5230
    %v5236 = vsub.f32 %v5219, %v5230
    %v5237 = vsub.f32 %v5221, %v5230
    %v5238 = vsub.f32 %v5223, %v5230
    %v5239 = vmul.f32 %v5231, 1.442695
    %v5240 = vpow.pop %v5239
    %v5241 = vmul.f32 %v5232, 1.442695
    %v5242 = vpow.pop %v5241
    %v5243 = vmul.f32 %v5233, 1.442695
    %v5244 = vpow.pop %v5243
    %v5245 = vmul.f32 %v5234, 1.442695
    %v5246 = vpow.pop %v5245
    %v5247 = vmul.f32 %v5235, 1.442695
    %v5248 = vpow.pop %v5247
    %v5249 = vmul.f32 %v5236, 1.442695
    %v5250 = vpow.pop %v5249
    %v5251 = vmul.f32 %v5237, 1.442695
    %v5252 = vpow.pop %v5251
    %v5253 = vmul.f32 %v5238, 1.442695
    %v5254 = vpow.pop %v5253
    %v5255 = vadd.f32 %v5240, %v5242
    %v5256 = vadd.f32 %v5255, %v5244
    %v5257 = vadd.f32 %v5256, %v5246
    %v5258 = vadd.f32 %v5257, %v5248
    %v5259 = vadd.f32 %v5258, %v5250
    %v5260 = vadd.f32 %v5259, %v5252
    %v5261 = vadd.f32 %v5260, %v5254
    %v5262 = vrcp.pop %v5261
    %v5263 = vmul.f32 %v5240, %v5262
    %v5264 = vmul.f32 %v5242, %v5262
    %v5265 = vmul.f32 %v5244, %v5262
    %v5266 = vmul.f32 %v5246, %v5262
    %v5267 = vmul.f32 %v5248, %v5262
    %v5268 = vmul.f32 %v5250, %v5262
    %v5269 = vmul.f32 %v5252, %v5262
    %v5270 = vmul.f32 %v5254, %v5262
    %v5271 = vmul.f32 %v5263, %v4754
    %v5272 = vmul.f32 %v5264, %v4755
    %v5273 = vmul.f32 %v5265, %v4756
    %v5274 = vmul.f32 %v5266, %v4757
    %v5275 = vmul.f32 %v5267, %v4758
    %v5276 = vmul.f32 %v5268, %v4759
    %v5277 = vmul.f32 %v5269, %v4760
    %v5278 = vmul.f32 %v5270, %v4761
    %v5279 = vadd.f32 %v5271, %v5272
    %v5280 = vadd.f32 %v5279, %v5273
    %v5281 = vadd.f32 %v5280, %v5274
    %v5282 = vadd.f32 %v5281, %v5275
    %v5283 = vadd.f32 %v5282, %v5276
    %v5284 = vadd.f32 %v5283, %v5277
    %v5285 = vadd.f32 %v5284, %v5278
    %v5286 = vpack.c.bf16 %v4753, %v4753
    %v5287 = vpack.c.bf16 %v5285, %v5285
    %v5288 = vpack.c.bf16 %v5176, %v5176
    %v5289 = vld [vmem:[%s16] sm:$0xff]
    %v5290 = vld [vmem:[%s16 + $0x8] sm:$0xf]
    %v5291 = vld [vmem:[%s16 + $0xc] sm:$0xff]
    %v5292 = vld [vmem:[%s16 + $0x14] sm:$0xf]
    %v5293 = vld [vmem:[%s16 + $0x18] sm:$0xff]
    %v5294 = vld [vmem:[%s16 + $0x20] sm:$0xf]
    %v5295 = vld [vmem:[%s16 + $0x24] sm:$0xff]
    %v5296 = vld [vmem:[%s16 + $0x2c] sm:$0xf]
    %v5297 = vld [vmem:[%s16 + $0x30] sm:$0xff]
    %v5298 = vld [vmem:[%s16 + $0x38] sm:$0xf]
    %v5299 = vld [vmem:[%s16 + $0x3c] sm:$0xff]
    %v5300 = vld [vmem:[%s16 + $0x44] sm:$0xf]
    %v5301 = vld [vmem:[%s16 + $0x48] sm:$0xff]
    %v5302 = vld [vmem:[%s16 + $0x50] sm:$0xf]
    %v5303 = vld [vmem:[%s16 + $0x54] sm:$0xff]
    %v5304 = vld [vmem:[%s16 + $0x5c] sm:$0xf]
    %v5305 = vld [vmem:[%s16 + $0x60] sm:$0xff]
    %v5306 = vld [vmem:[%s16 + $0x68] sm:$0xf]
    %v5307 = vld [vmem:[%s16 + $0x6c] sm:$0xff]
    %v5308 = vld [vmem:[%s16 + $0x74] sm:$0xf]
    %v5309 = vld [vmem:[%s16 + $0x78] sm:$0xff]
    %v5310 = vld [vmem:[%s16 + $0x80] sm:$0xf]
    %v5311 = vld [vmem:[%s16 + $0x84] sm:$0xff]
    %v5312 = vld [vmem:[%s16 + $0x8c] sm:$0xf]
    %v5313 = vld [vmem:[%s16 + $0x90] sm:$0xff]
    %v5314 = vld [vmem:[%s16 + $0x98] sm:$0xf]
    %v5315 = vld [vmem:[%s16 + $0x9c] sm:$0xff]
    %v5316 = vld [vmem:[%s16 + $0xa4] sm:$0xf]
    %v5317 = vld [vmem:[%s16 + $0xa8] sm:$0xff]
    %v5318 = vld [vmem:[%s16 + $0xb0] sm:$0xf]
    %v5319 = vld [vmem:[%s16 + $0xb4] sm:$0xff]
    %v5320 = vld [vmem:[%s16 + $0xbc] sm:$0xf]
    %v5321 = vld [vmem:[%s16 + $0xc0] sm:$0xff]
    %v5322 = vld [vmem:[%s16 + $0xc8] sm:$0xf]
    %v5323 = vld [vmem:[%s16 + $0xcc] sm:$0xff]
    %v5324 = vld [vmem:[%s16 + $0xd4] sm:$0xf]
    %v5325 = vld [vmem:[%s16 + $0xd8] sm:$0xff]
    %v5326 = vld [vmem:[%s16 + $0xe0] sm:$0xf]
    %v5327 = vld [vmem:[%s16 + $0xe4] sm:$0xff]
    %v5328 = vld [vmem:[%s16 + $0xec] sm:$0xf]
    %v5329 = vld [vmem:[%s16 + $0xf0] sm:$0xff]
    %v5330 = vld [vmem:[%s16 + $0xf8] sm:$0xf]
    %v5331 = vld [vmem:[%s16 + $0xfc] sm:$0xff]
    %v5332 = vld [vmem:[%s16 + $0x104] sm:$0xf]
    %v5333 = vld [vmem:[%s16 + $0x108] sm:$0xff]
    %v5334 = vld [vmem:[%s16 + $0x110] sm:$0xf]
    %v5335 = vld [vmem:[%s16 + $0x114] sm:$0xff]
    %v5336 = vld [vmem:[%s16 + $0x11c] sm:$0xf]
    %v5337 = vld [vmem:[%s16 + $0x120] sm:$0xff]
    %v5338 = vld [vmem:[%s16 + $0x128] sm:$0xf]
    %v5339 = vld [vmem:[%s16 + $0x12c] sm:$0xff]
    %v5340 = vld [vmem:[%s16 + $0x134] sm:$0xf]
    %v5341 = vld [vmem:[%s16 + $0x138] sm:$0xff]
    %v5342 = vld [vmem:[%s16 + $0x140] sm:$0xf]
    %v5343 = vld [vmem:[%s16 + $0x144] sm:$0xff]
    %v5344 = vld [vmem:[%s16 + $0x14c] sm:$0xf]
    %v5345 = vld [vmem:[%s16 + $0x150] sm:$0xff]
    %v5346 = vld [vmem:[%s16 + $0x158] sm:$0xf]
    %v5347 = vld [vmem:[%s16 + $0x15c] sm:$0xff]
    %v5348 = vld [vmem:[%s16 + $0x164] sm:$0xf]
    %v5349 = vld [vmem:[%s16 + $0x168] sm:$0xff]
    %v5350 = vld [vmem:[%s16 + $0x170] sm:$0xf]
    %v5351 = vld [vmem:[%s16 + $0x174] sm:$0xff]
    %v5352 = vld [vmem:[%s16 + $0x17c] sm:$0xf]
    %v5353 = vld [vmem:[%s16 + $0x180] sm:$0xff]
    %v5354 = vld [vmem:[%s16 + $0x188] sm:$0xf]
    %v5355 = vld [vmem:[%s16 + $0x18c] sm:$0xff]
    %v5356 = vld [vmem:[%s16 + $0x194] sm:$0xf]
    %v5357 = vld [vmem:[%s16 + $0x198] sm:$0xff]
    %v5358 = vld [vmem:[%s16 + $0x1a0] sm:$0xf]
    %v5359 = vld [vmem:[%s16 + $0x1a4] sm:$0xff]
    %v5360 = vld [vmem:[%s16 + $0x1ac] sm:$0xf]
    %v5361 = vld [vmem:[%s16 + $0x1b0] sm:$0xff]
    %v5362 = vld [vmem:[%s16 + $0x1b8] sm:$0xf]
    %v5363 = vld [vmem:[%s16 + $0x1bc] sm:$0xff]
    %v5364 = vld [vmem:[%s16 + $0x1c4] sm:$0xf]
    %v5365 = vld [vmem:[%s16 + $0x1c8] sm:$0xff]
    %v5366 = vld [vmem:[%s16 + $0x1d0] sm:$0xf]
    %v5367 = vld [vmem:[%s16 + $0x1d4] sm:$0xff]
    %v5368 = vld [vmem:[%s16 + $0x1dc] sm:$0xf]
    %v5369 = vld [vmem:[%s16 + $0x1e0] sm:$0xff]
    %v5370 = vld [vmem:[%s16 + $0x1e8] sm:$0xf]
    %v5371 = vld [vmem:[%s16 + $0x1ec] sm:$0xff]
    %v5372 = vld [vmem:[%s16 + $0x1f4] sm:$0xf]
    %v5373 = vld [vmem:[%s16 + $0x1f8] sm:$0xff]
    %v5374 = vld [vmem:[%s16 + $0x200] sm:$0xf]
    %v5375 = vld [vmem:[%s16 + $0x204] sm:$0xff]
    %v5376 = vld [vmem:[%s16 + $0x20c] sm:$0xf]
    %v5377 = vld [vmem:[%s16 + $0x210] sm:$0xff]
    %v5378 = vld [vmem:[%s16 + $0x218] sm:$0xf]
    %v5379 = vld [vmem:[%s16 + $0x21c] sm:$0xff]
    %v5380 = vld [vmem:[%s16 + $0x224] sm:$0xf]
    %v5381 = vld [vmem:[%s16 + $0x228] sm:$0xff]
    %v5382 = vld [vmem:[%s16 + $0x230] sm:$0xf]
    %v5383 = vld [vmem:[%s16 + $0x234] sm:$0xff]
    %v5384 = vld [vmem:[%s16 + $0x23c] sm:$0xf]
    %v5385 = vld [vmem:[#allocation21] sm:$0x7]
    %v5387 = vlaneseq
    %v5388 = vshrl.u32 %v5387, 7
    %v5389 = vsub.s32 0, %v5388
    %v5390 = vrot.slane %v5385, %v5389
    %v5391 = vlaneseq
    %v5392 = vshrl.u32 %v5391, 7
    %v5393 = vsub.s32 1, %v5392
    %v5394 = vrot.slane %v5385, %v5393
    %v5395 = vlaneseq
    %v5396 = vshrl.u32 %v5395, 7
    %v5397 = vsub.s32 2, %v5396
    %v5398 = vrot.slane %v5385, %v5397
    %v5498 = vunpack.c.l.b16 %v5289
    %v5499 = vunpack.c.h.b16 %v5289
    %v5500 = vunpack.c.l.b16 %v5290
    %v5501 = vunpack.c.l.b16 %v5291
    %v5502 = vunpack.c.h.b16 %v5291
    %v5503 = vunpack.c.l.b16 %v5292
    %v5504 = vunpack.c.l.b16 %v5293
    %v5505 = vunpack.c.h.b16 %v5293
    %v5506 = vunpack.c.l.b16 %v5294
    %v5507 = vunpack.c.l.b16 %v5295
    %v5508 = vunpack.c.h.b16 %v5295
    %v5509 = vunpack.c.l.b16 %v5296
    %v5510 = vunpack.c.l.b16 %v5297
    %v5511 = vunpack.c.h.b16 %v5297
    %v5512 = vunpack.c.l.b16 %v5298
    %v5513 = vunpack.c.l.b16 %v5299
    %v5514 = vunpack.c.h.b16 %v5299
    %v5515 = vunpack.c.l.b16 %v5300
    %v5516 = vunpack.c.l.b16 %v5301
    %v5517 = vunpack.c.h.b16 %v5301
    %v5518 = vunpack.c.l.b16 %v5302
    %v5519 = vunpack.c.l.b16 %v5303
    %v5520 = vunpack.c.h.b16 %v5303
    %v5521 = vunpack.c.l.b16 %v5304
    %v5522 = vunpack.c.l.b16 %v5305
    %v5523 = vunpack.c.h.b16 %v5305
    %v5524 = vunpack.c.l.b16 %v5306
    %v5525 = vunpack.c.l.b16 %v5307
    %v5526 = vunpack.c.h.b16 %v5307
    %v5527 = vunpack.c.l.b16 %v5308
    %v5528 = vunpack.c.l.b16 %v5309
    %v5529 = vunpack.c.h.b16 %v5309
    %v5530 = vunpack.c.l.b16 %v5310
    %v5531 = vunpack.c.l.b16 %v5311
    %v5532 = vunpack.c.h.b16 %v5311
    %v5533 = vunpack.c.l.b16 %v5312
    %v5534 = vunpack.c.l.b16 %v5313
    %v5535 = vunpack.c.h.b16 %v5313
    %v5536 = vunpack.c.l.b16 %v5314
    %v5537 = vunpack.c.l.b16 %v5315
    %v5538 = vunpack.c.h.b16 %v5315
    %v5539 = vunpack.c.l.b16 %v5316
    %v5540 = vunpack.c.l.b16 %v5317
    %v5541 = vunpack.c.h.b16 %v5317
    %v5542 = vunpack.c.l.b16 %v5318
    %v5543 = vunpack.c.l.b16 %v5319
    %v5544 = vunpack.c.h.b16 %v5319
    %v5545 = vunpack.c.l.b16 %v5320
    %v5546 = vunpack.c.l.b16 %v5321
    %v5547 = vunpack.c.h.b16 %v5321
    %v5548 = vunpack.c.l.b16 %v5322
    %v5549 = vunpack.c.l.b16 %v5323
    %v5550 = vunpack.c.h.b16 %v5323
    %v5551 = vunpack.c.l.b16 %v5324
    %v5552 = vunpack.c.l.b16 %v5325
    %v5553 = vunpack.c.h.b16 %v5325
    %v5554 = vunpack.c.l.b16 %v5326
    %v5555 = vunpack.c.l.b16 %v5327
    %v5556 = vunpack.c.h.b16 %v5327
    %v5557 = vunpack.c.l.b16 %v5328
    %v5558 = vunpack.c.l.b16 %v5329
    %v5559 = vunpack.c.h.b16 %v5329
    %v5560 = vunpack.c.l.b16 %v5330
    %v5561 = vunpack.c.l.b16 %v5331
    %v5562 = vunpack.c.h.b16 %v5331
    %v5563 = vunpack.c.l.b16 %v5332
    %v5564 = vunpack.c.l.b16 %v5333
    %v5565 = vunpack.c.h.b16 %v5333
    %v5566 = vunpack.c.l.b16 %v5334
    %v5567 = vunpack.c.l.b16 %v5335
    %v5568 = vunpack.c.h.b16 %v5335
    %v5569 = vunpack.c.l.b16 %v5336
    %v5570 = vunpack.c.l.b16 %v5337
    %v5571 = vunpack.c.h.b16 %v5337
    %v5572 = vunpack.c.l.b16 %v5338
    %v5573 = vunpack.c.l.b16 %v5339
    %v5574 = vunpack.c.h.b16 %v5339
    %v5575 = vunpack.c.l.b16 %v5340
    %v5576 = vunpack.c.l.b16 %v5341
    %v5577 = vunpack.c.h.b16 %v5341
    %v5578 = vunpack.c.l.b16 %v5342
    %v5579 = vunpack.c.l.b16 %v5343
    %v5580 = vunpack.c.h.b16 %v5343
    %v5581 = vunpack.c.l.b16 %v5344
    %v5582 = vunpack.c.l.b16 %v5345
    %v5583 = vunpack.c.h.b16 %v5345
    %v5584 = vunpack.c.l.b16 %v5346
    %v5585 = vunpack.c.l.b16 %v5347
    %v5586 = vunpack.c.h.b16 %v5347
    %v5587 = vunpack.c.l.b16 %v5348
    %v5588 = vunpack.c.l.b16 %v5349
    %v5589 = vunpack.c.h.b16 %v5349
    %v5590 = vunpack.c.l.b16 %v5350
    %v5591 = vunpack.c.l.b16 %v5351
    %v5592 = vunpack.c.h.b16 %v5351
    %v5593 = vunpack.c.l.b16 %v5352
    %v5594 = vunpack.c.l.b16 %v5353
    %v5595 = vunpack.c.h.b16 %v5353
    %v5596 = vunpack.c.l.b16 %v5354
    %v5597 = vunpack.c.l.b16 %v5355
    %v5598 = vunpack.c.h.b16 %v5355
    %v5599 = vunpack.c.l.b16 %v5356
    %v5600 = vunpack.c.l.b16 %v5357
    %v5601 = vunpack.c.h.b16 %v5357
    %v5602 = vunpack.c.l.b16 %v5358
    %v5603 = vunpack.c.l.b16 %v5359
    %v5604 = vunpack.c.h.b16 %v5359
    %v5605 = vunpack.c.l.b16 %v5360
    %v5606 = vunpack.c.l.b16 %v5361
    %v5607 = vunpack.c.h.b16 %v5361
    %v5608 = vunpack.c.l.b16 %v5362
    %v5609 = vunpack.c.l.b16 %v5363
    %v5610 = vunpack.c.h.b16 %v5363
    %v5611 = vunpack.c.l.b16 %v5364
    %v5612 = vunpack.c.l.b16 %v5365
    %v5613 = vunpack.c.h.b16 %v5365
    %v5614 = vunpack.c.l.b16 %v5366
    %v5615 = vunpack.c.l.b16 %v5367
    %v5616 = vunpack.c.h.b16 %v5367
    %v5617 = vunpack.c.l.b16 %v5368
    %v5618 = vunpack.c.l.b16 %v5369
    %v5619 = vunpack.c.h.b16 %v5369
    %v5620 = vunpack.c.l.b16 %v5370
    %v5621 = vunpack.c.l.b16 %v5371
    %v5622 = vunpack.c.h.b16 %v5371
    %v5623 = vunpack.c.l.b16 %v5372
    %v5624 = vunpack.c.l.b16 %v5373
    %v5625 = vunpack.c.h.b16 %v5373
    %v5626 = vunpack.c.l.b16 %v5374
    %v5627 = vunpack.c.l.b16 %v5375
    %v5628 = vunpack.c.h.b16 %v5375
    %v5629 = vunpack.c.l.b16 %v5376
    %v5630 = vunpack.c.l.b16 %v5377
    %v5631 = vunpack.c.h.b16 %v5377
    %v5632 = vunpack.c.l.b16 %v5378
    %v5633 = vunpack.c.l.b16 %v5379
    %v5634 = vunpack.c.h.b16 %v5379
    %v5635 = vunpack.c.l.b16 %v5380
    %v5636 = vunpack.c.l.b16 %v5381
    %v5637 = vunpack.c.h.b16 %v5381
    %v5638 = vunpack.c.l.b16 %v5382
    %v5639 = vunpack.c.l.b16 %v5383
    %v5640 = vunpack.c.h.b16 %v5383
    %v5641 = vunpack.c.l.b16 %v5384
    %v5642 = vpack.c.b16 %v5501, %v5498
    %v5643 = vpack.c.b16 %v5502, %v5499
    %v5644 = vpack.c.b16 %v5503, %v5500
    %v5645 = vpack.c.b16 %v5507, %v5504
    %v5646 = vpack.c.b16 %v5508, %v5505
    %v5647 = vpack.c.b16 %v5509, %v5506
    %v5648 = vpack.c.b16 %v5513, %v5510
    %v5649 = vpack.c.b16 %v5514, %v5511
    %v5650 = vpack.c.b16 %v5515, %v5512
    %v5651 = vpack.c.b16 %v5519, %v5516
    %v5652 = vpack.c.b16 %v5520, %v5517
    %v5653 = vpack.c.b16 %v5521, %v5518
    %v5654 = vpack.c.b16 %v5525, %v5522
    %v5655 = vpack.c.b16 %v5526, %v5523
    %v5656 = vpack.c.b16 %v5527, %v5524
    %v5657 = vpack.c.b16 %v5531, %v5528
    %v5658 = vpack.c.b16 %v5532, %v5529
    %v5659 = vpack.c.b16 %v5533, %v5530
    %v5660 = vpack.c.b16 %v5537, %v5534
    %v5661 = vpack.c.b16 %v5538, %v5535
    %v5662 = vpack.c.b16 %v5539, %v5536
    %v5663 = vpack.c.b16 %v5543, %v5540
    %v5664 = vpack.c.b16 %v5544, %v5541
    %v5665 = vpack.c.b16 %v5545, %v5542
    %v5666 = vpack.c.b16 %v5549, %v5546
    %v5667 = vpack.c.b16 %v5550, %v5547
    %v5668 = vpack.c.b16 %v5551, %v5548
    %v5669 = vpack.c.b16 %v5555, %v5552
    %v5670 = vpack.c.b16 %v5556, %v5553
    %v5671 = vpack.c.b16 %v5557, %v5554
    %v5672 = vpack.c.b16 %v5561, %v5558
    %v5673 = vpack.c.b16 %v5562, %v5559
    %v5674 = vpack.c.b16 %v5563, %v5560
    %v5675 = vpack.c.b16 %v5567, %v5564
    %v5676 = vpack.c.b16 %v5568, %v5565
    %v5677 = vpack.c.b16 %v5569, %v5566
    %v5678 = vpack.c.b16 %v5573, %v5570
    %v5679 = vpack.c.b16 %v5574, %v5571
    %v5680 = vpack.c.b16 %v5575, %v5572
    %v5681 = vpack.c.b16 %v5579, %v5576
    %v5682 = vpack.c.b16 %v5580, %v5577
    %v5683 = vpack.c.b16 %v5581, %v5578
    %v5684 = vpack.c.b16 %v5585, %v5582
    %v5685 = vpack.c.b16 %v5586, %v5583
    %v5686 = vpack.c.b16 %v5587, %v5584
    %v5687 = vpack.c.b16 %v5591, %v5588
    %v5688 = vpack.c.b16 %v5592, %v5589
    %v5689 = vpack.c.b16 %v5593, %v5590
    %v5690 = vpack.c.b16 %v5597, %v5594
    %v5691 = vpack.c.b16 %v5598, %v5595
    %v5692 = vpack.c.b16 %v5599, %v5596
    %v5693 = vpack.c.b16 %v5603, %v5600
    %v5694 = vpack.c.b16 %v5604, %v5601
    %v5695 = vpack.c.b16 %v5605, %v5602
    %v5696 = vpack.c.b16 %v5609, %v5606
    %v5697 = vpack.c.b16 %v5610, %v5607
    %v5698 = vpack.c.b16 %v5611, %v5608
    %v5699 = vpack.c.b16 %v5615, %v5612
    %v5700 = vpack.c.b16 %v5616, %v5613
    %v5701 = vpack.c.b16 %v5617, %v5614
    %v5702 = vpack.c.b16 %v5621, %v5618
    %v5703 = vpack.c.b16 %v5622, %v5619
    %v5704 = vpack.c.b16 %v5623, %v5620
    %v5705 = vpack.c.b16 %v5627, %v5624
    %v5706 = vpack.c.b16 %v5628, %v5625
    %v5707 = vpack.c.b16 %v5629, %v5626
    %v5708 = vpack.c.b16 %v5633, %v5630
    %v5709 = vpack.c.b16 %v5634, %v5631
    %v5710 = vpack.c.b16 %v5635, %v5632
    %v5711 = vpack.c.b16 %v5639, %v5636
    %v5712 = vpack.c.b16 %v5640, %v5637
    %v5713 = vpack.c.b16 %v5641, %v5638
    %5786 = vmatprep.subr.bf16.mxu0 %v5643
    %5787 = vmatpush1.bf16.msra.mxu0 %v5642
    %5788 = vmatprep.subr.bf16.mxu0 %v5646
    %5789 = vmatpush1.bf16.msra.mxu0 %v5645
    %5790 = vmatprep.subr.bf16.mxu0 %v5649
    %5791 = vmatpush1.bf16.msra.mxu0 %v5648
    %5792 = vmatprep.subr.bf16.mxu0 %v5652
    %5793 = vmatpush1.bf16.msra.mxu0 %v5651
    %5794 = vmatprep.subr.bf16.mxu0 %v5655
    %5795 = vmatpush1.bf16.msra.mxu0 %v5654
    %5796 = vmatprep.subr.bf16.mxu0 %v5658
    %5797 = vmatpush1.bf16.msra.mxu0 %v5657
    %5798 = vmatprep.subr.bf16.mxu0 %v5661
    %5799 = vmatpush1.bf16.msra.mxu0 %v5660
    %5800 = vmatprep.subr.bf16.mxu0 %v5664
    %5801 = vmatpush1.bf16.msra.mxu0 %v5663
    %5802 = vmatprep.subr.bf16.mxu0 %v5667
    %5803 = vmatpush1.bf16.msra.mxu0 %v5666
    %5804 = vmatprep.subr.bf16.mxu0 %v5670
    %5805 = vmatpush1.bf16.msra.mxu0 %v5669
    %5806 = vmatprep.subr.bf16.mxu0 %v5673
    %5807 = vmatpush1.bf16.msra.mxu0 %v5672
    %5808 = vmatprep.subr.bf16.mxu0 %v5676
    %5809 = vmatpush1.bf16.msra.mxu0 %v5675
    %5810 = vmatprep.subr.bf16.mxu0 %v5679
    %5811 = vmatpush1.bf16.msra.mxu0 %v5678
    %5812 = vmatprep.subr.bf16.mxu0 %v5682
    %5813 = vmatpush1.bf16.msra.mxu0 %v5681
    %5814 = vmatprep.subr.bf16.mxu0 %v5685
    %5815 = vmatpush1.bf16.msra.mxu0 %v5684
    %5816 = vmatprep.subr.bf16.mxu0 %v5688
    %5817 = vmatpush1.bf16.msra.mxu0 %v5687
    %5818 = vmatprep.mubr.bf16.mxu0 %v5287
    %5819 = vmatmul.mubr.bf16.gmra.mrb[0].mxu0 %v5286
    %v5820 = vpop.f32.mrb[0].mxu0
    %v5821 = vadd.f32 %v5390, %v5820
    %v5822 = vpop.f32.mrb[0].mxu0
    %v5823 = vadd.f32 %v5394, %v5822
    %v5824 = vpop.f32.mrb[0].mxu0
    %v5825 = vpop.f32.mrb[0].mxu0
    %5826 = vdwg.mxu0
    %5827 = vmatprep.subr.bf16.mxu0 %v5691
    %5828 = vmatpush1.bf16.msra.mxu0 %v5690
    %5829 = vmatprep.subr.bf16.mxu0 %v5694
    %5830 = vmatpush1.bf16.msra.mxu0 %v5693
    %5831 = vmatprep.subr.bf16.mxu0 %v5697
    %5832 = vmatpush1.bf16.msra.mxu0 %v5696
    %5833 = vmatprep.subr.bf16.mxu0 %v5700
    %5834 = vmatpush1.bf16.msra.mxu0 %v5699
    %5835 = vmatprep.subr.bf16.mxu0 %v5703
    %5836 = vmatpush1.bf16.msra.mxu0 %v5702
    %5837 = vmatprep.subr.bf16.mxu0 %v5706
    %5838 = vmatpush1.bf16.msra.mxu0 %v5705
    %5839 = vmatprep.subr.bf16.mxu0 %v5709
    %5840 = vmatpush1.bf16.msra.mxu0 %v5708
    %5841 = vmatprep.subr.bf16.mxu0 %v5712
    %5842 = vmatpush1.bf16.msra.mxu0 %v5711
    %5843 = vmatprep.subr.bf16.mxu0 0
    %5844 = vmatpush1.bf16.msra.mxu0 0
    %5845 = vmatprep.subr.bf16.mxu0 0
    %5846 = vmatpush1.bf16.msra.mxu0 0
    %5847 = vmatprep.subr.bf16.mxu0 0
    %5848 = vmatpush1.bf16.msra.mxu0 0
    %5849 = vmatprep.subr.bf16.mxu0 0
    %5850 = vmatpush1.bf16.msra.mxu0 0
    %5851 = vmatprep.subr.bf16.mxu0 0
    %5852 = vmatpush1.bf16.msra.mxu0 0
    %5853 = vmatprep.subr.bf16.mxu0 0
    %5854 = vmatpush1.bf16.msra.mxu0 0
    %5855 = vmatprep.subr.bf16.mxu0 0
    %5856 = vmatpush1.bf16.msra.mxu0 0
    %5857 = vmatprep.subr.bf16.mxu0 0
    %5858 = vmatpush1.bf16.msra.mxu0 0
    %5859 = vmatprep.mubr.bf16.mxu0 0
    %5860 = vmatmul.mubr.bf16.gmra.mrb[0].mxu0 %v5288
    %v5861 = vpop.f32.mrb[0].mxu0
    %v5862 = vadd.f32 %v5821, %v5861
    %v5863 = vpop.f32.mrb[0].mxu0
    %v5864 = vadd.f32 %v5823, %v5863
    %v5865 = vpop.f32.mrb[0].mxu0
    %v5866 = vpop.f32.mrb[0].mxu0
    %5867 = vdwg.mxu0
    %5868 = vmatprep.subr.bf16.mxu0 0
    %5869 = vmatpush1.bf16.msra.mxu0 %v5644
    %5870 = vmatprep.subr.bf16.mxu0 0
    %5871 = vmatpush1.bf16.msra.mxu0 %v5647
    %5872 = vmatprep.subr.bf16.mxu0 0
    %5873 = vmatpush1.bf16.msra.mxu0 %v5650
    %5874 = vmatprep.subr.bf16.mxu0 0
    %5875 = vmatpush1.bf16.msra.mxu0 %v5653
    %5876 = vmatprep.subr.bf16.mxu0 0
    %5877 = vmatpush1.bf16.msra.mxu0 %v5656
    %5878 = vmatprep.subr.bf16.mxu0 0
    %5879 = vmatpush1.bf16.msra.mxu0 %v5659
    %5880 = vmatprep.subr.bf16.mxu0 0
    %5881 = vmatpush1.bf16.msra.mxu0 %v5662
    %5882 = vmatprep.subr.bf16.mxu0 0
    %5883 = vmatpush1.bf16.msra.mxu0 %v5665
    %5884 = vmatprep.subr.bf16.mxu0 0
    %5885 = vmatpush1.bf16.msra.mxu0 %v5668
    %5886 = vmatprep.subr.bf16.mxu0 0
    %5887 = vmatpush1.bf16.msra.mxu0 %v5671
    %5888 = vmatprep.subr.bf16.mxu0 0
    %5889 = vmatpush1.bf16.msra.mxu0 %v5674
    %5890 = vmatprep.subr.bf16.mxu0 0
    %5891 = vmatpush1.bf16.msra.mxu0 %v5677
    %5892 = vmatprep.subr.bf16.mxu0 0
    %5893 = vmatpush1.bf16.msra.mxu0 %v5680
    %5894 = vmatprep.subr.bf16.mxu0 0
    %5895 = vmatpush1.bf16.msra.mxu0 %v5683
    %5896 = vmatprep.subr.bf16.mxu0 0
    %5897 = vmatpush1.bf16.msra.mxu0 %v5686
    %5898 = vmatprep.subr.bf16.mxu0 0
    %5899 = vmatpush1.bf16.msra.mxu0 %v5689
    %5900 = vmatprep.mubr.bf16.mxu0 %v5287
    %5901 = vmatmul.mubr.bf16.gmra.mrb[0].mxu0 %v5286
    %v5902 = vpop.f32.mrb[0].mxu0
    %v5903 = vadd.f32 %v5398, %v5902
    %v5904 = vpop.f32.mrb[0].mxu0
    %v5905 = vpop.f32.mrb[0].mxu0
    %v5906 = vpop.f32.mrb[0].mxu0
    %5907 = vdwg.mxu0
    %5908 = vmatprep.subr.bf16.mxu0 0
    %5909 = vmatpush1.bf16.msra.mxu0 %v5692
    %5910 = vmatprep.subr.bf16.mxu0 0
    %5911 = vmatpush1.bf16.msra.mxu0 %v5695
    %5912 = vmatprep.subr.bf16.mxu0 0
    %5913 = vmatpush1.bf16.msra.mxu0 %v5698
    %5914 = vmatprep.subr.bf16.mxu0 0
    %5915 = vmatpush1.bf16.msra.mxu0 %v5701
    %5916 = vmatprep.subr.bf16.mxu0 0
    %5917 = vmatpush1.bf16.msra.mxu0 %v5704
    %5918 = vmatprep.subr.bf16.mxu0 0
    %5919 = vmatpush1.bf16.msra.mxu0 %v5707
    %5920 = vmatprep.subr.bf16.mxu0 0
    %5921 = vmatpush1.bf16.msra.mxu0 %v5710
    %5922 = vmatprep.subr.bf16.mxu0 0
    %5923 = vmatpush1.bf16.msra.mxu0 %v5713
    %5924 = vmatprep.subr.bf16.mxu0 0
    %5925 = vmatpush1.bf16.msra.mxu0 0
    %5926 = vmatprep.subr.bf16.mxu0 0
    %5927 = vmatpush1.bf16.msra.mxu0 0
    %5928 = vmatprep.subr.bf16.mxu0 0
    %5929 = vmatpush1.bf16.msra.mxu0 0
    %5930 = vmatprep.subr.bf16.mxu0 0
    %5931 = vmatpush1.bf16.msra.mxu0 0
    %5932 = vmatprep.subr.bf16.mxu0 0
    %5933 = vmatpush1.bf16.msra.mxu0 0
    %5934 = vmatprep.subr.bf16.mxu0 0
    %5935 = vmatpush1.bf16.msra.mxu0 0
    %5936 = vmatprep.subr.bf16.mxu0 0
    %5937 = vmatpush1.bf16.msra.mxu0 0
    %5938 = vmatprep.subr.bf16.mxu0 0
    %5939 = vmatpush1.bf16.msra.mxu0 0
    %5940 = vmatprep.mubr.bf16.mxu0 0
    %5941 = vmatmul.mubr.bf16.gmra.mrb[0].mxu0 %v5288
    %v5942 = vpop.f32.mrb[0].mxu0
    %v5943 = vadd.f32 %v5903, %v5942
    %v5944 = vpop.f32.mrb[0].mxu0
    %v5945 = vpop.f32.mrb[0].mxu0
    %v5946 = vpop.f32.mrb[0].mxu0
    %5947 = vdwg.mxu0
    %v5948 = vadd.f32 %v5862, %v5129
    %v5949 = vxor.u32 %v5948, 2147483648
    %v5950 = vmul.f32 %v5949, 1.442695
    %v5951 = vpow.pop %v5950
    %v5952 = vadd.f32 %v5951, 1.0
    %v5953 = vrcp.pop %v5952
    %v5954 = vmul.f32 1.0, %v5953
    %v5955 = vadd.f32 %v5864, %v5131
    %v5956 = vxor.u32 %v5955, 2147483648
    %v5957 = vmul.f32 %v5956, 1.442695
    %v5958 = vpow.pop %v5957
    %v5959 = vadd.f32 %v5958, 1.0
    %v5960 = vrcp.pop %v5959
    %v5961 = vmul.f32 1.0, %v5960
    %v5962 = vmul.f32 %v5954, %v5170
    %v5963 = vadd.f32 %v5943, %v5962
    %v5964 = vtanh.pop %v5963
    %v5965 = vsub.f32 1.0, %v5961
    %v5966 = vmul.f32 %v5965, %v5964
    %v5967 = vmul.f32 %v5961, %v4333
    %v5968 = vadd.f32 %v5966, %v5967
    %v5969 = vpack.c.bf16 %v5968, %v5968
    %v5970 = vld [vmem:[#allocation22] sm:$0xf]
    %v5971 = vld [vmem:[#allocation22 + $0x4] sm:$0xf]
    %v5972 = vld [vmem:[#allocation22 + $0x8] sm:$0xf]
    %v5973 = vld [vmem:[#allocation22 + $0xc] sm:$0xf]
    %v5974 = vld [vmem:[#allocation22 + $0x10] sm:$0xf]
    %v5975 = vld [vmem:[#allocation22 + $0x14] sm:$0xf]
    %v5976 = vld [vmem:[#allocation22 + $0x18] sm:$0xf]
    %v5977 = vld [vmem:[#allocation22 + $0x1c] sm:$0xf]
    %v5978 = vld [vmem:[#allocation22 + $0x20] sm:$0xf]
    %v5979 = vld [vmem:[#allocation22 + $0x24] sm:$0xf]
    %v5980 = vld [vmem:[#allocation22 + $0x28] sm:$0xf]
    %v5981 = vld [vmem:[#allocation22 + $0x2c] sm:$0xf]
    %v5982 = vld [vmem:[#allocation22 + $0x30] sm:$0xf]
    %v5983 = vld [vmem:[#allocation22 + $0x34] sm:$0xf]
    %v5984 = vld [vmem:[#allocation22 + $0x38] sm:$0xf]
    %v5985 = vld [vmem:[#allocation22 + $0x3c] sm:$0xf]
    %v5986 = vld [vmem:[#allocation22 + $0x40] sm:$0xf]
    %v5987 = vld [vmem:[#allocation22 + $0x44] sm:$0xf]
    %v5988 = vld [vmem:[#allocation22 + $0x48] sm:$0xf]
    %v5989 = vld [vmem:[#allocation22 + $0x4c] sm:$0xf]
    %v5990 = vld [vmem:[#allocation22 + $0x50] sm:$0xf]
    %v5991 = vld [vmem:[#allocation22 + $0x54] sm:$0xf]
    %v5992 = vld [vmem:[#allocation22 + $0x58] sm:$0xf]
    %v5993 = vld [vmem:[#allocation22 + $0x5c] sm:$0xf]
    %v5994 = vld [vmem:[#allocation22 + $0x60] sm:$0xf]
    %v5995 = vld [vmem:[#allocation22 + $0x64] sm:$0xf]
    %v5996 = vld [vmem:[#allocation22 + $0x68] sm:$0xf]
    %v5997 = vld [vmem:[#allocation22 + $0x6c] sm:$0xf]
    %v5998 = vld [vmem:[#allocation22 + $0x70] sm:$0xf]
    %v5999 = vld [vmem:[#allocation22 + $0x74] sm:$0xf]
    %v6000 = vld [vmem:[#allocation22 + $0x78] sm:$0xf]
    %v6001 = vld [vmem:[#allocation22 + $0x7c] sm:$0xf]
    %v6002 = vld [vmem:[#allocation22 + $0x80] sm:$0xf]
    %v6003 = vld [vmem:[#allocation22 + $0x84] sm:$0xf]
    %v6004 = vld [vmem:[#allocation22 + $0x88] sm:$0xf]
    %v6005 = vld [vmem:[#allocation22 + $0x8c] sm:$0xf]
    %v6006 = vld [vmem:[#allocation22 + $0x90] sm:$0xf]
    %v6007 = vld [vmem:[#allocation22 + $0x94] sm:$0xf]
    %v6008 = vld [vmem:[#allocation22 + $0x98] sm:$0xf]
    %v6009 = vld [vmem:[#allocation22 + $0x9c] sm:$0xf]
    %v6010 = vld [vmem:[#allocation22 + $0xa0] sm:$0xf]
    %v6011 = vld [vmem:[#allocation22 + $0xa4] sm:$0xf]
    %v6012 = vld [vmem:[#allocation22 + $0xa8] sm:$0xf]
    %v6013 = vld [vmem:[#allocation22 + $0xac] sm:$0xf]
    %v6014 = vld [vmem:[#allocation22 + $0xb0] sm:$0xf]
    %v6015 = vld [vmem:[#allocation22 + $0xb4] sm:$0xf]
    %v6016 = vld [vmem:[#allocation22 + $0xb8] sm:$0xf]
    %v6017 = vld [vmem:[#allocation22 + $0xbc] sm:$0xf]
    %v6018 = vld [vmem:[#allocation24] sm:$0x1]
    %v6020 = vlaneseq
    %v6021 = vshrl.u32 %v6020, 7
    %v6022 = vsub.s32 0, %v6021
    %v6023 = vrot.slane %v6018, %v6022
    %v6073 = vunpack.c.l.b16 %v5970
    %v6074 = vunpack.c.l.b16 %v5971
    %v6075 = vunpack.c.l.b16 %v5972
    %v6076 = vunpack.c.l.b16 %v5973
    %v6077 = vunpack.c.l.b16 %v5974
    %v6078 = vunpack.c.l.b16 %v5975
    %v6079 = vunpack.c.l.b16 %v5976
    %v6080 = vunpack.c.l.b16 %v5977
    %v6081 = vunpack.c.l.b16 %v5978
    %v6082 = vunpack.c.l.b16 %v5979
    %v6083 = vunpack.c.l.b16 %v5980
    %v6084 = vunpack.c.l.b16 %v5981
    %v6085 = vunpack.c.l.b16 %v5982
    %v6086 = vunpack.c.l.b16 %v5983
    %v6087 = vunpack.c.l.b16 %v5984
    %v6088 = vunpack.c.l.b16 %v5985
    %v6089 = vunpack.c.l.b16 %v5986
    %v6090 = vunpack.c.l.b16 %v5987
    %v6091 = vunpack.c.l.b16 %v5988
    %v6092 = vunpack.c.l.b16 %v5989
    %v6093 = vunpack.c.l.b16 %v5990
    %v6094 = vunpack.c.l.b16 %v5991
    %v6095 = vunpack.c.l.b16 %v5992
    %v6096 = vunpack.c.l.b16 %v5993
    %v6097 = vunpack.c.l.b16 %v5994
    %v6098 = vunpack.c.l.b16 %v5995
    %v6099 = vunpack.c.l.b16 %v5996
    %v6100 = vunpack.c.l.b16 %v5997
    %v6101 = vunpack.c.l.b16 %v5998
    %v6102 = vunpack.c.l.b16 %v5999
    %v6103 = vunpack.c.l.b16 %v6000
    %v6104 = vunpack.c.l.b16 %v6001
    %v6105 = vunpack.c.l.b16 %v6002
    %v6106 = vunpack.c.l.b16 %v6003
    %v6107 = vunpack.c.l.b16 %v6004
    %v6108 = vunpack.c.l.b16 %v6005
    %v6109 = vunpack.c.l.b16 %v6006
    %v6110 = vunpack.c.l.b16 %v6007
    %v6111 = vunpack.c.l.b16 %v6008
    %v6112 = vunpack.c.l.b16 %v6009
    %v6113 = vunpack.c.l.b16 %v6010
    %v6114 = vunpack.c.l.b16 %v6011
    %v6115 = vunpack.c.l.b16 %v6012
    %v6116 = vunpack.c.l.b16 %v6013
    %v6117 = vunpack.c.l.b16 %v6014
    %v6118 = vunpack.c.l.b16 %v6015
    %v6119 = vunpack.c.l.b16 %v6016
    %v6120 = vunpack.c.l.b16 %v6017
    %v6121 = vpack.c.b16 %v6074, %v6073
    %v6122 = vpack.c.b16 %v6076, %v6075
    %v6123 = vpack.c.b16 %v6078, %v6077
    %v6124 = vpack.c.b16 %v6080, %v6079
    %v6125 = vpack.c.b16 %v6082, %v6081
    %v6126 = vpack.c.b16 %v6084, %v6083
    %v6127 = vpack.c.b16 %v6086, %v6085
    %v6128 = vpack.c.b16 %v6088, %v6087
    %v6129 = vpack.c.b16 %v6090, %v6089
    %v6130 = vpack.c.b16 %v6092, %v6091
    %v6131 = vpack.c.b16 %v6094, %v6093
    %v6132 = vpack.c.b16 %v6096, %v6095
    %v6133 = vpack.c.b16 %v6098, %v6097
    %v6134 = vpack.c.b16 %v6100, %v6099
    %v6135 = vpack.c.b16 %v6102, %v6101
    %v6136 = vpack.c.b16 %v6104, %v6103
    %v6137 = vpack.c.b16 %v6106, %v6105
    %v6138 = vpack.c.b16 %v6108, %v6107
    %v6139 = vpack.c.b16 %v6110, %v6109
    %v6140 = vpack.c.b16 %v6112, %v6111
    %v6141 = vpack.c.b16 %v6114, %v6113
    %v6142 = vpack.c.b16 %v6116, %v6115
    %v6143 = vpack.c.b16 %v6118, %v6117
    %v6144 = vpack.c.b16 %v6120, %v6119
    %6169 = vmatprep.subr.bf16.mxu0 0
    %6170 = vmatpush1.bf16.msra.mxu0 %v6121
    %6171 = vmatprep.subr.bf16.mxu0 0
    %6172 = vmatpush1.bf16.msra.mxu0 %v6122
    %6173 = vmatprep.subr.bf16.mxu0 0
    %6174 = vmatpush1.bf16.msra.mxu0 %v6123
    %6175 = vmatprep.subr.bf16.mxu0 0
    %6176 = vmatpush1.bf16.msra.mxu0 %v6124
    %6177 = vmatprep.subr.bf16.mxu0 0
    %6178 = vmatpush1.bf16.msra.mxu0 %v6125
    %6179 = vmatprep.subr.bf16.mxu0 0
    %6180 = vmatpush1.bf16.msra.mxu0 %v6126
    %6181 = vmatprep.subr.bf16.mxu0 0
    %6182 = vmatpush1.bf16.msra.mxu0 %v6127
    %6183 = vmatprep.subr.bf16.mxu0 0
    %6184 = vmatpush1.bf16.msra.mxu0 %v6128
    %6185 = vmatprep.subr.bf16.mxu0 0
    %6186 = vmatpush1.bf16.msra.mxu0 %v6129
    %6187 = vmatprep.subr.bf16.mxu0 0
    %6188 = vmatpush1.bf16.msra.mxu0 %v6130
    %6189 = vmatprep.subr.bf16.mxu0 0
    %6190 = vmatpush1.bf16.msra.mxu0 %v6131
    %6191 = vmatprep.subr.bf16.mxu0 0
    %6192 = vmatpush1.bf16.msra.mxu0 %v6132
    %6193 = vmatprep.subr.bf16.mxu0 0
    %6194 = vmatpush1.bf16.msra.mxu0 %v6133
    %6195 = vmatprep.subr.bf16.mxu0 0
    %6196 = vmatpush1.bf16.msra.mxu0 %v6134
    %6197 = vmatprep.subr.bf16.mxu0 0
    %6198 = vmatpush1.bf16.msra.mxu0 %v6135
    %6199 = vmatprep.subr.bf16.mxu0 0
    %6200 = vmatpush1.bf16.msra.mxu0 %v6136
    %6201 = vmatprep.mubr.bf16.mxu0 %v5287
    %6202 = vmatmul.mubr.bf16.gmra.mrb[0].mxu0 %v5969
    %v6203 = vpop.f32.mrb[0].mxu0
    %v6204 = vadd.f32 %v6023, %v6203
    %v6205 = vpop.f32.mrb[0].mxu0
    %v6206 = vpop.f32.mrb[0].mxu0
    %v6207 = vpop.f32.mrb[0].mxu0
    %6208 = vdwg.mxu0
    %6209 = vmatprep.subr.bf16.mxu0 0
    %6210 = vmatpush1.bf16.msra.mxu0 %v6137
    %6211 = vmatprep.subr.bf16.mxu0 0
    %6212 = vmatpush1.bf16.msra.mxu0 %v6138
    %6213 = vmatprep.subr.bf16.mxu0 0
    %6214 = vmatpush1.bf16.msra.mxu0 %v6139
    %6215 = vmatprep.subr.bf16.mxu0 0
    %6216 = vmatpush1.bf16.msra.mxu0 %v6140
    %6217 = vmatprep.subr.bf16.mxu0 0
    %6218 = vmatpush1.bf16.msra.mxu0 %v6141
    %6219 = vmatprep.subr.bf16.mxu0 0
    %6220 = vmatpush1.bf16.msra.mxu0 %v6142
    %6221 = vmatprep.subr.bf16.mxu0 0
    %6222 = vmatpush1.bf16.msra.mxu0 %v6143
    %6223 = vmatprep.subr.bf16.mxu0 0
    %6224 = vmatpush1.bf16.msra.mxu0 %v6144
    %6225 = vmatprep.subr.bf16.mxu0 0
    %6226 = vmatpush1.bf16.msra.mxu0 0
    %6227 = vmatprep.subr.bf16.mxu0 0
    %6228 = vmatpush1.bf16.msra.mxu0 0
    %6229 = vmatprep.subr.bf16.mxu0 0
    %6230 = vmatpush1.bf16.msra.mxu0 0
    %6231 = vmatprep.subr.bf16.mxu0 0
    %6232 = vmatpush1.bf16.msra.mxu0 0
    %6233 = vmatprep.subr.bf16.mxu0 0
    %6234 = vmatpush1.bf16.msra.mxu0 0
    %6235 = vmatprep.subr.bf16.mxu0 0
    %6236 = vmatpush1.bf16.msra.mxu0 0
    %6237 = vmatprep.subr.bf16.mxu0 0
    %6238 = vmatpush1.bf16.msra.mxu0 0
    %6239 = vmatprep.subr.bf16.mxu0 0
    %6240 = vmatpush1.bf16.msra.mxu0 0
    %6241 = vmatprep.mubr.bf16.mxu0 0
    %6242 = vmatmul.mubr.bf16.gmra.mrb[0].mxu0 %v5286
    %v6243 = vpop.f32.mrb[0].mxu0
    %v6244 = vadd.f32 %v6204, %v6243
    %v6245 = vpop.f32.mrb[0].mxu0
    %v6246 = vpop.f32.mrb[0].mxu0
    %v6247 = vpop.f32.mrb[0].mxu0
    %6248 = vdwg.mxu0
    %s6249 = scalar_lea.vmem [#allocation25], 16
    %6250 = vst [vmem:[%s6249] sm:$0xff] %v6244
    %6251 = vmax.xlane.f32.xlu0 %v6244
    %v6252 = vpop.xlane.xlu0 %6251
    %vm6253 = vcmp.ge.f32.partialorder %v6244, %v6252
    %v6254 = vsel %vm6253, %v3116, 128
    %v6255 = vand.u32 %v6254, 65535
    %v6256 = vshra.s32 %v6254, 16
    %v6257 = vcvt.s32.f32 %v6255
    %v6258 = vcvt.s32.f32 %v6256
    %6259 = vmin.xlane.f32.xlu0 %v6258
    %v6260 = vpop.xlane.xlu0 %6259
    %vm6261 = vcmp.eq.f32.partialorder %v6258, %v6260
    %v6262 = vsel %vm6261, %v6257, inf
    %6263 = vmin.xlane.f32.xlu0 %v6262
    %v6264 = vpop.xlane.xlu0 %6263
    %v6265 = vcvt.f32.s32 %v6264
    %v6266 = vcvt.f32.s32 %v6260
    %v6267 = vshll.u32 %v6266, 16
    %v6268 = vadd.s32 %v6267, %v6265
    %vm6269 = vcmp.eq.s32.totalorder %v3116, %v6268
    %v6270 = vsel %vm6269, 1, 0
    %v6271 = vcvt.s32.f32 %v6270
    %v6272 = vpack.c.bf16 %v6271, %v6271
    %v6273 = vld [vmem:[%s20] sm:$0xf]
    %v6274 = vld [vmem:[%s20 + $0x4] sm:$0xf]
    %v6275 = vld [vmem:[%s20 + $0x8] sm:$0xf]
    %v6276 = vld [vmem:[%s20 + $0xc] sm:$0xf]
    %v6277 = vld [vmem:[%s20 + $0x10] sm:$0xf]
    %v6278 = vld [vmem:[%s20 + $0x14] sm:$0xf]
    %v6279 = vld [vmem:[%s20 + $0x18] sm:$0xf]
    %v6280 = vld [vmem:[%s20 + $0x1c] sm:$0xf]
    %v6281 = vld [vmem:[%s20 + $0x20] sm:$0xf]
    %v6282 = vld [vmem:[%s20 + $0x24] sm:$0xf]
    %v6283 = vld [vmem:[%s20 + $0x28] sm:$0xf]
    %v6284 = vld [vmem:[%s20 + $0x2c] sm:$0xf]
    %v6285 = vld [vmem:[%s20 + $0x30] sm:$0xf]
    %v6286 = vld [vmem:[%s20 + $0x34] sm:$0xf]
    %v6287 = vld [vmem:[%s20 + $0x38] sm:$0xf]
    %v6288 = vld [vmem:[%s20 + $0x3c] sm:$0xf]
    %v6305 = vunpack.c.l.b16 %v6273
    %v6306 = vunpack.c.l.b16 %v6274
    %v6307 = vunpack.c.l.b16 %v6275
    %v6308 = vunpack.c.l.b16 %v6276
    %v6309 = vunpack.c.l.b16 %v6277
    %v6310 = vunpack.c.l.b16 %v6278
    %v6311 = vunpack.c.l.b16 %v6279
    %v6312 = vunpack.c.l.b16 %v6280
    %v6313 = vunpack.c.l.b16 %v6281
    %v6314 = vunpack.c.l.b16 %v6282
    %v6315 = vunpack.c.l.b16 %v6283
    %v6316 = vunpack.c.l.b16 %v6284
    %v6317 = vunpack.c.l.b16 %v6285
    %v6318 = vunpack.c.l.b16 %v6286
    %v6319 = vunpack.c.l.b16 %v6287
    %v6320 = vunpack.c.l.b16 %v6288
    %v6321 = vpack.c.b16 %v6306, %v6305
    %v6322 = vpack.c.b16 %v6308, %v6307
    %v6323 = vpack.c.b16 %v6310, %v6309
    %v6324 = vpack.c.b16 %v6312, %v6311
    %v6325 = vpack.c.b16 %v6314, %v6313
    %v6326 = vpack.c.b16 %v6316, %v6315
    %v6327 = vpack.c.b16 %v6318, %v6317
    %v6328 = vpack.c.b16 %v6320, %v6319
    %6337 = vmatprep.subr.bf16.mxu0 0
    %6338 = vmatpush1.bf16.msra.mxu0 %v6321
    %6339 = vmatprep.subr.bf16.mxu0 0
    %6340 = vmatpush1.bf16.msra.mxu0 %v6322
    %6341 = vmatprep.subr.bf16.mxu0 0
    %6342 = vmatpush1.bf16.msra.mxu0 %v6323
    %6343 = vmatprep.subr.bf16.mxu0 0
    %6344 = vmatpush1.bf16.msra.mxu0 %v6324
    %6345 = vmatprep.subr.bf16.mxu0 0
    %6346 = vmatpush1.bf16.msra.mxu0 %v6325
    %6347 = vmatprep.subr.bf16.mxu0 0
    %6348 = vmatpush1.bf16.msra.mxu0 %v6326
    %6349 = vmatprep.subr.bf16.mxu0 0
    %6350 = vmatpush1.bf16.msra.mxu0 %v6327
    %6351 = vmatprep.subr.bf16.mxu0 0
    %6352 = vmatpush1.bf16.msra.mxu0 %v6328
    %6353 = vmatprep.subr.bf16.mxu0 0
    %6354 = vmatpush1.bf16.msra.mxu0 0
    %6355 = vmatprep.subr.bf16.mxu0 0
    %6356 = vmatpush1.bf16.msra.mxu0 0
    %6357 = vmatprep.subr.bf16.mxu0 0
    %6358 = vmatpush1.bf16.msra.mxu0 0
    %6359 = vmatprep.subr.bf16.mxu0 0
    %6360 = vmatpush1.bf16.msra.mxu0 0
    %6361 = vmatprep.subr.bf16.mxu0 0
    %6362 = vmatpush1.bf16.msra.mxu0 0
    %6363 = vmatprep.subr.bf16.mxu0 0
    %6364 = vmatpush1.bf16.msra.mxu0 0
    %6365 = vmatprep.subr.bf16.mxu0 0
    %6366 = vmatpush1.bf16.msra.mxu0 0
    %6367 = vmatprep.subr.bf16.mxu0 0
    %6368 = vmatpush1.bf16.msra.mxu0 0
    %6369 = vmatprep.mubr.bf16.mxu0 0
    %6370 = vmatmul.mubr.bf16.gmra.mrb[0].mxu0 %v6272
    %v6371 = vpop.f32.mrb[0].mxu0
    %v6372 = vadd.f32 0.0, %v6371
    %v6373 = vpop.f32.mrb[0].mxu0
    %v6374 = vpop.f32.mrb[0].mxu0
    %v6375 = vpop.f32.mrb[0].mxu0
    %6376 = vdwg.mxu0
    %s6377 = sld [smem:[#allocation6 + $0x2]]
    %p6378 = scmp.gt.s32.totalorder %s6377, 0
    %s6379 = scalar_select %p6378, 1, 0
    %s6380 = scvt.s32.f32 %s6379
    %s6381 = scalar_lea.vmem %s2, 16
    %v6382 = vld [vmem:[%s6381] sm:$0xff]
    %v6383 = vstv %s6380
    %v6384 = vmul.f32 %v6383, %v6382
    %s6385 = ssub.f32 1.0, %s6380
    %v6386 = vstv %s6385
    %v6387 = vmul.f32 %v6386, %v6372
    %v6388 = vadd.f32 %v6384, %v6387
    %v6389 = vld [vmem:[#allocation2] sm:$0xff]
    %v6390 = vld [vmem:[#allocation2 + $0x8] sm:$0xff]
    %v6391 = vld [vmem:[#allocation2 + $0x10] sm:$0xff]
    %v6392 = vld [vmem:[#allocation2 + $0x18] sm:$0xff]
    %v6393 = vld [vmem:[#allocation2 + $0x20] sm:$0xff]
    %v6394 = vld [vmem:[#allocation2 + $0x28] sm:$0xff]
    %v6395 = vld [vmem:[#allocation2 + $0x30] sm:$0xff]
    %v6396 = vld [vmem:[#allocation2 + $0x38] sm:$0xff]
    %v6397 = vld [vmem:[#allocation3] sm:$0xff]
    %v6398 = vld [vmem:[#allocation3 + $0x8] sm:$0xff]
    %v6399 = vld [vmem:[#allocation3 + $0x10] sm:$0xff]
    %v6400 = vld [vmem:[#allocation3 + $0x18] sm:$0xff]
    %v6401 = vld [vmem:[#allocation3 + $0x20] sm:$0xff]
    %v6402 = vld [vmem:[#allocation3 + $0x28] sm:$0xff]
    %v6403 = vld [vmem:[#allocation3 + $0x30] sm:$0xff]
    %v6404 = vld [vmem:[#allocation3 + $0x38] sm:$0xff]
    %v6405 = vld [vmem:[#allocation18] sm:$0xff]
    %v6406 = vld [vmem:[#allocation18 + $0x8] sm:$0xff]
    %v6407 = vld [vmem:[#allocation18 + $0x10] sm:$0xf]
    %v6408 = vld [vmem:[#allocation18 + $0x14] sm:$0xff]
    %v6409 = vld [vmem:[#allocation18 + $0x1c] sm:$0xff]
    %v6410 = vld [vmem:[#allocation18 + $0x24] sm:$0xf]
    %v6411 = vld [vmem:[#allocation18 + $0x28] sm:$0xff]
    %v6412 = vld [vmem:[#allocation18 + $0x30] sm:$0xff]
    %v6413 = vld [vmem:[#allocation18 + $0x38] sm:$0xf]
    %v6414 = vld [vmem:[#allocation18 + $0x3c] sm:$0xff]
    %v6415 = vld [vmem:[#allocation18 + $0x44] sm:$0xff]
    %v6416 = vld [vmem:[#allocation18 + $0x4c] sm:$0xf]
    %v6417 = vld [vmem:[#allocation18 + $0x50] sm:$0xff]
    %v6418 = vld [vmem:[#allocation18 + $0x58] sm:$0xff]
    %v6419 = vld [vmem:[#allocation18 + $0x60] sm:$0xf]
    %v6420 = vld [vmem:[#allocation18 + $0x64] sm:$0xff]
    %v6421 = vld [vmem:[#allocation18 + $0x6c] sm:$0xff]
    %v6422 = vld [vmem:[#allocation18 + $0x74] sm:$0xf]
    %v6423 = vld [vmem:[#allocation18 + $0x78] sm:$0xff]
    %v6424 = vld [vmem:[#allocation18 + $0x80] sm:$0xff]
    %v6425 = vld [vmem:[#allocation18 + $0x88] sm:$0xf]
    %v6426 = vld [vmem:[#allocation18 + $0x8c] sm:$0xff]
    %v6427 = vld [vmem:[#allocation18 + $0x94] sm:$0xff]
    %v6428 = vld [vmem:[#allocation18 + $0x9c] sm:$0xf]
    %v6429 = vld [vmem:[#allocation18 + $0xa0] sm:$0xff]
    %v6430 = vld [vmem:[#allocation18 + $0xa8] sm:$0xff]
    %v6431 = vld [vmem:[#allocation18 + $0xb0] sm:$0xf]
    %v6432 = vld [vmem:[#allocation18 + $0xb4] sm:$0xff]
    %v6433 = vld [vmem:[#allocation18 + $0xbc] sm:$0xff]
    %v6434 = vld [vmem:[#allocation18 + $0xc4] sm:$0xf]
    %v6435 = vld [vmem:[#allocation18 + $0xc8] sm:$0xff]
    %v6436 = vld [vmem:[#allocation18 + $0xd0] sm:$0xff]
    %v6437 = vld [vmem:[#allocation18 + $0xd8] sm:$0xf]
    %v6438 = vld [vmem:[#allocation18 + $0xdc] sm:$0xff]
    %v6439 = vld [vmem:[#allocation18 + $0xe4] sm:$0xff]
    %v6440 = vld [vmem:[#allocation18 + $0xec] sm:$0xf]
    %v6441 = vld [vmem:[#allocation18 + $0xf0] sm:$0xff]
    %v6442 = vld [vmem:[#allocation18 + $0xf8] sm:$0xff]
    %v6443 = vld [vmem:[#allocation18 + $0x100] sm:$0xf]
    %v6444 = vld [vmem:[#allocation18 + $0x104] sm:$0xff]
    %v6445 = vld [vmem:[#allocation18 + $0x10c] sm:$0xff]
    %v6446 = vld [vmem:[#allocation18 + $0x114] sm:$0xf]
    %v6447 = vld [vmem:[#allocation18 + $0x118] sm:$0xff]
    %v6448 = vld [vmem:[#allocation18 + $0x120] sm:$0xff]
    %v6449 = vld [vmem:[#allocation18 + $0x128] sm:$0xf]
    %v6450 = vld [vmem:[#allocation18 + $0x12c] sm:$0xff]
    %v6451 = vld [vmem:[#allocation18 + $0x134] sm:$0xff]
    %v6452 = vld [vmem:[#allocation18 + $0x13c] sm:$0xf]
    %v6453 = vld [vmem:[#allocation19] sm:$0x1f]
    %v6455 = vlaneseq
    %v6456 = vshrl.u32 %v6455, 7
    %v6457 = vsub.s32 0, %v6456
    %v6458 = vrot.slane %v6453, %v6457
    %v6459 = vlaneseq
    %v6460 = vshrl.u32 %v6459, 7
    %v6461 = vsub.s32 1, %v6460
    %v6462 = vrot.slane %v6453, %v6461
    %v6463 = vlaneseq
    %v6464 = vshrl.u32 %v6463, 7
    %v6465 = vsub.s32 2, %v6464
    %v6466 = vrot.slane %v6453, %v6465
    %v6467 = vlaneseq
    %v6468 = vshrl.u32 %v6467, 7
    %v6469 = vsub.s32 3, %v6468
    %v6470 = vrot.slane %v6453, %v6469
    %v6471 = vlaneseq
    %v6472 = vshrl.u32 %v6471, 7
    %v6473 = vsub.s32 4, %v6472
    %v6474 = vrot.slane %v6453, %v6473
    %v6528 = vunpack.c.l.b16 %v6405
    %v6529 = vunpack.c.h.b16 %v6405
    %v6530 = vunpack.c.l.b16 %v6406
    %v6531 = vunpack.c.h.b16 %v6406
    %v6532 = vunpack.c.l.b16 %v6407
    %v6533 = vunpack.c.l.b16 %v6408
    %v6534 = vunpack.c.h.b16 %v6408
    %v6535 = vunpack.c.l.b16 %v6409
    %v6536 = vunpack.c.h.b16 %v6409
    %v6537 = vunpack.c.l.b16 %v6410
    %v6538 = vunpack.c.l.b16 %v6411
    %v6539 = vunpack.c.h.b16 %v6411
    %v6540 = vunpack.c.l.b16 %v6412
    %v6541 = vunpack.c.h.b16 %v6412
    %v6542 = vunpack.c.l.b16 %v6413
    %v6543 = vunpack.c.l.b16 %v6414
    %v6544 = vunpack.c.h.b16 %v6414
    %v6545 = vunpack.c.l.b16 %v6415
    %v6546 = vunpack.c.h.b16 %v6415
    %v6547 = vunpack.c.l.b16 %v6416
    %v6548 = vunpack.c.l.b16 %v6417
    %v6549 = vunpack.c.h.b16 %v6417
    %v6550 = vunpack.c.l.b16 %v6418
    %v6551 = vunpack.c.h.b16 %v6418
    %v6552 = vunpack.c.l.b16 %v6419
    %v6553 = vunpack.c.l.b16 %v6420
    %v6554 = vunpack.c.h.b16 %v6420
    %v6555 = vunpack.c.l.b16 %v6421
    %v6556 = vunpack.c.h.b16 %v6421
    %v6557 = vunpack.c.l.b16 %v6422
    %v6558 = vunpack.c.l.b16 %v6423
    %v6559 = vunpack.c.h.b16 %v6423
    %v6560 = vunpack.c.l.b16 %v6424
    %v6561 = vunpack.c.h.b16 %v6424
    %v6562 = vunpack.c.l.b16 %v6425
    %v6563 = vunpack.c.l.b16 %v6426
    %v6564 = vunpack.c.h.b16 %v6426
    %v6565 = vunpack.c.l.b16 %v6427
    %v6566 = vunpack.c.h.b16 %v6427
    %v6567 = vunpack.c.l.b16 %v6428
    %v6568 = vunpack.c.l.b16 %v6429
    %v6569 = vunpack.c.h.b16 %v6429
    %v6570 = vunpack.c.l.b16 %v6430
    %v6571 = vunpack.c.h.b16 %v6430
    %v6572 = vunpack.c.l.b16 %v6431
    %v6573 = vunpack.c.l.b16 %v6432
    %v6574 = vunpack.c.h.b16 %v6432
    %v6575 = vunpack.c.l.b16 %v6433
    %v6576 = vunpack.c.h.b16 %v6433
    %v6577 = vunpack.c.l.b16 %v6434
    %v6578 = vunpack.c.l.b16 %v6435
    %v6579 = vunpack.c.h.b16 %v6435
    %v6580 = vunpack.c.l.b16 %v6436
    %v6581 = vunpack.c.h.b16 %v6436
    %v6582 = vunpack.c.l.b16 %v6437
    %v6583 = vunpack.c.l.b16 %v6438
    %v6584 = vunpack.c.h.b16 %v6438
    %v6585 = vunpack.c.l.b16 %v6439
    %v6586 = vunpack.c.h.b16 %v6439
    %v6587 = vunpack.c.l.b16 %v6440
    %v6588 = vunpack.c.l.b16 %v6441
    %v6589 = vunpack.c.h.b16 %v6441
    %v6590 = vunpack.c.l.b16 %v6442
    %v6591 = vunpack.c.h.b16 %v6442
    %v6592 = vunpack.c.l.b16 %v6443
    %v6593 = vunpack.c.l.b16 %v6444
    %v6594 = vunpack.c.h.b16 %v6444
    %v6595 = vunpack.c.l.b16 %v6445
    %v6596 = vunpack.c.h.b16 %v6445
    %v6597 = vunpack.c.l.b16 %v6446
    %v6598 = vunpack.c.l.b16 %v6447
    %v6599 = vunpack.c.h.b16 %v6447
    %v6600 = vunpack.c.l.b16 %v6448
    %v6601 = vunpack.c.h.b16 %v6448
    %v6602 = vunpack.c.l.b16 %v6449
    %v6603 = vunpack.c.l.b16 %v6450
    %v6604 = vunpack.c.h.b16 %v6450
    %v6605 = vunpack.c.l.b16 %v6451
    %v6606 = vunpack.c.h.b16 %v6451
    %v6607 = vunpack.c.l.b16 %v6452
    %v6608 = vpack.c.b16 %v6533, %v6528
    %v6609 = vpack.c.b16 %v6534, %v6529
    %v6610 = vpack.c.b16 %v6535, %v6530
    %v6611 = vpack.c.b16 %v6536, %v6531
    %v6612 = vpack.c.b16 %v6537, %v6532
    %v6613 = vpack.c.b16 %v6543, %v6538
    %v6614 = vpack.c.b16 %v6544, %v6539
    %v6615 = vpack.c.b16 %v6545, %v6540
    %v6616 = vpack.c.b16 %v6546, %v6541
    %v6617 = vpack.c.b16 %v6547, %v6542
    %v6618 = vpack.c.b16 %v6553, %v6548
    %v6619 = vpack.c.b16 %v6554, %v6549
    %v6620 = vpack.c.b16 %v6555, %v6550
    %v6621 = vpack.c.b16 %v6556, %v6551
    %v6622 = vpack.c.b16 %v6557, %v6552
    %v6623 = vpack.c.b16 %v6563, %v6558
    %v6624 = vpack.c.b16 %v6564, %v6559
    %v6625 = vpack.c.b16 %v6565, %v6560
    %v6626 = vpack.c.b16 %v6566, %v6561
    %v6627 = vpack.c.b16 %v6567, %v6562
    %v6628 = vpack.c.b16 %v6573, %v6568
    %v6629 = vpack.c.b16 %v6574, %v6569
    %v6630 = vpack.c.b16 %v6575, %v6570
    %v6631 = vpack.c.b16 %v6576, %v6571
    %v6632 = vpack.c.b16 %v6577, %v6572
    %v6633 = vpack.c.b16 %v6583, %v6578
    %v6634 = vpack.c.b16 %v6584, %v6579
    %v6635 = vpack.c.b16 %v6585, %v6580
    %v6636 = vpack.c.b16 %v6586, %v6581
    %v6637 = vpack.c.b16 %v6587, %v6582
    %v6638 = vpack.c.b16 %v6593, %v6588
    %v6639 = vpack.c.b16 %v6594, %v6589
    %v6640 = vpack.c.b16 %v6595, %v6590
    %v6641 = vpack.c.b16 %v6596, %v6591
    %v6642 = vpack.c.b16 %v6597, %v6592
    %v6643 = vpack.c.b16 %v6603, %v6598
    %v6644 = vpack.c.b16 %v6604, %v6599
    %v6645 = vpack.c.b16 %v6605, %v6600
    %v6646 = vpack.c.b16 %v6606, %v6601
    %v6647 = vpack.c.b16 %v6607, %v6602
    %6688 = vmatprep.subr.bf16.mxu0 %v6609
    %6689 = vmatpush1.bf16.msra.mxu0 %v6608
    %6690 = vmatprep.subr.bf16.mxu0 %v6614
    %6691 = vmatpush1.bf16.msra.mxu0 %v6613
    %6692 = vmatprep.subr.bf16.mxu0 %v6619
    %6693 = vmatpush1.bf16.msra.mxu0 %v6618
    %6694 = vmatprep.subr.bf16.mxu0 %v6624
    %6695 = vmatpush1.bf16.msra.mxu0 %v6623
    %6696 = vmatprep.subr.bf16.mxu0 %v6629
    %6697 = vmatpush1.bf16.msra.mxu0 %v6628
    %6698 = vmatprep.subr.bf16.mxu0 %v6634
    %6699 = vmatpush1.bf16.msra.mxu0 %v6633
    %6700 = vmatprep.subr.bf16.mxu0 %v6639
    %6701 = vmatpush1.bf16.msra.mxu0 %v6638
    %6702 = vmatprep.subr.bf16.mxu0 %v6644
    %6703 = vmatpush1.bf16.msra.mxu0 %v6643
    %6704 = vmatprep.subr.bf16.mxu0 0
    %6705 = vmatpush1.bf16.msra.mxu0 0
    %6706 = vmatprep.subr.bf16.mxu0 0
    %6707 = vmatpush1.bf16.msra.mxu0 0
    %6708 = vmatprep.subr.bf16.mxu0 0
    %6709 = vmatpush1.bf16.msra.mxu0 0
    %6710 = vmatprep.subr.bf16.mxu0 0
    %6711 = vmatpush1.bf16.msra.mxu0 0
    %6712 = vmatprep.subr.bf16.mxu0 0
    %6713 = vmatpush1.bf16.msra.mxu0 0
    %6714 = vmatprep.subr.bf16.mxu0 0
    %6715 = vmatpush1.bf16.msra.mxu0 0
    %6716 = vmatprep.subr.bf16.mxu0 0
    %6717 = vmatpush1.bf16.msra.mxu0 0
    %6718 = vmatprep.subr.bf16.mxu0 0
    %6719 = vmatpush1.bf16.msra.mxu0 0
    %6720 = vmatprep.mubr.bf16.mxu0 0
    %6721 = vmatmul.mubr.bf16.gmra.mrb[0].mxu0 %v5969
    %v6722 = vpop.f32.mrb[0].mxu0
    %v6723 = vadd.f32 %v6458, %v6722
    %v6724 = vpop.f32.mrb[0].mxu0
    %v6725 = vadd.f32 %v6462, %v6724
    %v6726 = vpop.f32.mrb[0].mxu0
    %v6727 = vpop.f32.mrb[0].mxu0
    %6728 = vdwg.mxu0
    %6729 = vmatprep.subr.bf16.mxu0 %v6611
    %6730 = vmatpush1.bf16.msra.mxu0 %v6610
    %6731 = vmatprep.subr.bf16.mxu0 %v6616
    %6732 = vmatpush1.bf16.msra.mxu0 %v6615
    %6733 = vmatprep.subr.bf16.mxu0 %v6621
    %6734 = vmatpush1.bf16.msra.mxu0 %v6620
    %6735 = vmatprep.subr.bf16.mxu0 %v6626
    %6736 = vmatpush1.bf16.msra.mxu0 %v6625
    %6737 = vmatprep.subr.bf16.mxu0 %v6631
    %6738 = vmatpush1.bf16.msra.mxu0 %v6630
    %6739 = vmatprep.subr.bf16.mxu0 %v6636
    %6740 = vmatpush1.bf16.msra.mxu0 %v6635
    %6741 = vmatprep.subr.bf16.mxu0 %v6641
    %6742 = vmatpush1.bf16.msra.mxu0 %v6640
    %6743 = vmatprep.subr.bf16.mxu0 %v6646
    %6744 = vmatpush1.bf16.msra.mxu0 %v6645
    %6745 = vmatprep.subr.bf16.mxu0 0
    %6746 = vmatpush1.bf16.msra.mxu0 0
    %6747 = vmatprep.subr.bf16.mxu0 0
    %6748 = vmatpush1.bf16.msra.mxu0 0
    %6749 = vmatprep.subr.bf16.mxu0 0
    %6750 = vmatpush1.bf16.msra.mxu0 0
    %6751 = vmatprep.subr.bf16.mxu0 0
    %6752 = vmatpush1.bf16.msra.mxu0 0
    %6753 = vmatprep.subr.bf16.mxu0 0
    %6754 = vmatpush1.bf16.msra.mxu0 0
    %6755 = vmatprep.subr.bf16.mxu0 0
    %6756 = vmatpush1.bf16.msra.mxu0 0
    %6757 = vmatprep.subr.bf16.mxu0 0
    %6758 = vmatpush1.bf16.msra.mxu0 0
    %6759 = vmatprep.subr.bf16.mxu0 0
    %6760 = vmatpush1.bf16.msra.mxu0 0
    %6761 = vmatprep.mubr.bf16.mxu0 0
    %6762 = vmatmul.mubr.bf16.gmra.mrb[0].mxu0 %v5969
    %v6763 = vpop.f32.mrb[0].mxu0
    %v6764 = vadd.f32 %v6466, %v6763
    %v6765 = vpop.f32.mrb[0].mxu0
    %v6766 = vadd.f32 %v6470, %v6765
    %v6767 = vpop.f32.mrb[0].mxu0
    %v6768 = vpop.f32.mrb[0].mxu0
    %6769 = vdwg.mxu0
    %6770 = vmatprep.subr.bf16.mxu0 0
    %6771 = vmatpush1.bf16.msra.mxu0 %v6612
    %6772 = vmatprep.subr.bf16.mxu0 0
    %6773 = vmatpush1.bf16.msra.mxu0 %v6617
    %6774 = vmatprep.subr.bf16.mxu0 0
    %6775 = vmatpush1.bf16.msra.mxu0 %v6622
    %6776 = vmatprep.subr.bf16.mxu0 0
    %6777 = vmatpush1.bf16.msra.mxu0 %v6627
    %6778 = vmatprep.subr.bf16.mxu0 0
    %6779 = vmatpush1.bf16.msra.mxu0 %v6632
    %6780 = vmatprep.subr.bf16.mxu0 0
    %6781 = vmatpush1.bf16.msra.mxu0 %v6637
    %6782 = vmatprep.subr.bf16.mxu0 0
    %6783 = vmatpush1.bf16.msra.mxu0 %v6642
    %6784 = vmatprep.subr.bf16.mxu0 0
    %6785 = vmatpush1.bf16.msra.mxu0 %v6647
    %6786 = vmatprep.subr.bf16.mxu0 0
    %6787 = vmatpush1.bf16.msra.mxu0 0
    %6788 = vmatprep.subr.bf16.mxu0 0
    %6789 = vmatpush1.bf16.msra.mxu0 0
    %6790 = vmatprep.subr.bf16.mxu0 0
    %6791 = vmatpush1.bf16.msra.mxu0 0
    %6792 = vmatprep.subr.bf16.mxu0 0
    %6793 = vmatpush1.bf16.msra.mxu0 0
    %6794 = vmatprep.subr.bf16.mxu0 0
    %6795 = vmatpush1.bf16.msra.mxu0 0
    %6796 = vmatprep.subr.bf16.mxu0 0
    %6797 = vmatpush1.bf16.msra.mxu0 0
    %6798 = vmatprep.subr.bf16.mxu0 0
    %6799 = vmatpush1.bf16.msra.mxu0 0
    %6800 = vmatprep.subr.bf16.mxu0 0
    %6801 = vmatpush1.bf16.msra.mxu0 0
    %6802 = vmatprep.mubr.bf16.mxu0 0
    %6803 = vmatmul.mubr.bf16.gmra.mrb[0].mxu0 %v5969
    %v6804 = vpop.f32.mrb[0].mxu0
    %v6805 = vadd.f32 %v6474, %v6804
    %v6806 = vpop.f32.mrb[0].mxu0
    %v6807 = vpop.f32.mrb[0].mxu0
    %v6808 = vpop.f32.mrb[0].mxu0
    %6809 = vdwg.mxu0
    %v6810 = vadd.f32 %v6723, %v2962
    %v6811 = vtanh.pop %v6810
    %v6812 = vadd.f32 %v6397, %v6725
    %v6813 = vadd.f32 %v6398, %v6725
    %v6814 = vadd.f32 %v6399, %v6725
    %v6815 = vadd.f32 %v6400, %v6725
    %v6816 = vadd.f32 %v6401, %v6725
    %v6817 = vadd.f32 %v6402, %v6725
    %v6818 = vadd.f32 %v6403, %v6725
    %v6819 = vadd.f32 %v6404, %v6725
    %v6820 = vtanh.pop %v6812
    %v6821 = vtanh.pop %v6813
    %v6822 = vtanh.pop %v6814
    %v6823 = vtanh.pop %v6815
    %v6824 = vtanh.pop %v6816
    %v6825 = vtanh.pop %v6817
    %v6826 = vtanh.pop %v6818
    %v6827 = vtanh.pop %v6819
    %v6828 = vld [vmem:[#allocation16] sm:$0x1]
    %v6830 = vlaneseq
    %v6831 = vshrl.u32 %v6830, 7
    %v6832 = vsub.s32 0, %v6831
    %v6833 = vrot.slane %v6828, %v6832
    %v6835 = vmul.f32 %v6820, %v6833
    %v6836 = vmul.f32 %v6821, %v6833
    %v6837 = vmul.f32 %v6822, %v6833
    %v6838 = vmul.f32 %v6823, %v6833
    %v6839 = vmul.f32 %v6824, %v6833
    %v6840 = vmul.f32 %v6825, %v6833
    %v6841 = vmul.f32 %v6826, %v6833
    %v6842 = vmul.f32 %v6827, %v6833
    %6843 = vadd.xlane.f32.xlu0 %v6835
    %v6844 = vpop.xlane.xlu0 %6843
    %6845 = vadd.xlane.f32.xlu0 %v6836
    %v6846 = vpop.xlane.xlu0 %6845
    %6847 = vadd.xlane.f32.xlu0 %v6837
    %v6848 = vpop.xlane.xlu0 %6847
    %6849 = vadd.xlane.f32.xlu0 %v6838
    %v6850 = vpop.xlane.xlu0 %6849
    %6851 = vadd.xlane.f32.xlu0 %v6839
    %v6852 = vpop.xlane.xlu0 %6851
    %6853 = vadd.xlane.f32.xlu0 %v6840
    %v6854 = vpop.xlane.xlu0 %6853
    %6855 = vadd.xlane.f32.xlu0 %v6841
    %v6856 = vpop.xlane.xlu0 %6855
    %6857 = vadd.xlane.f32.xlu0 %v6842
    %v6858 = vpop.xlane.xlu0 %6857
    %v6859 = vmax.f32 %v6844, %v6852
    %v6860 = vmax.f32 %v6846, %v6854
    %v6861 = vmax.f32 %v6848, %v6856
    %v6862 = vmax.f32 %v6850, %v6858
    %v6863 = vmax.f32 %v6859, %v6860
    %v6864 = vmax.f32 %v6861, %v6862
    %v6865 = vmax.f32 %v6863, %v6864
    %v6866 = vsub.f32 %v6844, %v6865
    %v6867 = vsub.f32 %v6846, %v6865
    %v6868 = vsub.f32 %v6848, %v6865
    %v6869 = vsub.f32 %v6850, %v6865
    %v6870 = vsub.f32 %v6852, %v6865
    %v6871 = vsub.f32 %v6854, %v6865
    %v6872 = vsub.f32 %v6856, %v6865
    %v6873 = vsub.f32 %v6858, %v6865
    %v6874 = vmul.f32 %v6866, 1.442695
    %v6875 = vpow.pop %v6874
    %v6876 = vmul.f32 %v6867, 1.442695
    %v6877 = vpow.pop %v6876
    %v6878 = vmul.f32 %v6868, 1.442695
    %v6879 = vpow.pop %v6878
    %v6880 = vmul.f32 %v6869, 1.442695
    %v6881 = vpow.pop %v6880
    %v6882 = vmul.f32 %v6870, 1.442695
    %v6883 = vpow.pop %v6882
    %v6884 = vmul.f32 %v6871, 1.442695
    %v6885 = vpow.pop %v6884
    %v6886 = vmul.f32 %v6872, 1.442695
    %v6887 = vpow.pop %v6886
    %v6888 = vmul.f32 %v6873, 1.442695
    %v6889 = vpow.pop %v6888
    %v6890 = vadd.f32 %v6875, %v6877
    %v6891 = vadd.f32 %v6890, %v6879
    %v6892 = vadd.f32 %v6891, %v6881
    %v6893 = vadd.f32 %v6892, %v6883
    %v6894 = vadd.f32 %v6893, %v6885
    %v6895 = vadd.f32 %v6894, %v6887
    %v6896 = vadd.f32 %v6895, %v6889
    %v6897 = vrcp.pop %v6896
    %v6898 = vmul.f32 %v6875, %v6897
    %v6899 = vmul.f32 %v6877, %v6897
    %v6900 = vmul.f32 %v6879, %v6897
    %v6901 = vmul.f32 %v6881, %v6897
    %v6902 = vmul.f32 %v6883, %v6897
    %v6903 = vmul.f32 %v6885, %v6897
    %v6904 = vmul.f32 %v6887, %v6897
    %v6905 = vmul.f32 %v6889, %v6897
    %v6906 = vmul.f32 %v6898, %v6389
    %v6907 = vmul.f32 %v6899, %v6390
    %v6908 = vmul.f32 %v6900, %v6391
    %v6909 = vmul.f32 %v6901, %v6392
    %v6910 = vmul.f32 %v6902, %v6393
    %v6911 = vmul.f32 %v6903, %v6394
    %v6912 = vmul.f32 %v6904, %v6395
    %v6913 = vmul.f32 %v6905, %v6396
    %v6914 = vadd.f32 %v6906, %v6907
    %v6915 = vadd.f32 %v6914, %v6908
    %v6916 = vadd.f32 %v6915, %v6909
    %v6917 = vadd.f32 %v6916, %v6910
    %v6918 = vadd.f32 %v6917, %v6911
    %v6919 = vadd.f32 %v6918, %v6912
    %v6920 = vadd.f32 %v6919, %v6913
    %v6921 = vpack.c.bf16 %v6388, %v6388
    %v6922 = vpack.c.bf16 %v6920, %v6920
    %v6923 = vpack.c.bf16 %v6811, %v6811
    %v6924 = vld [vmem:[%s16] sm:$0xff]
    %v6925 = vld [vmem:[%s16 + $0x8] sm:$0xf]
    %v6926 = vld [vmem:[%s16 + $0xc] sm:$0xff]
    %v6927 = vld [vmem:[%s16 + $0x14] sm:$0xf]
    %v6928 = vld [vmem:[%s16 + $0x18] sm:$0xff]
    %v6929 = vld [vmem:[%s16 + $0x20] sm:$0xf]
    %v6930 = vld [vmem:[%s16 + $0x24] sm:$0xff]
    %v6931 = vld [vmem:[%s16 + $0x2c] sm:$0xf]
    %v6932 = vld [vmem:[%s16 + $0x30] sm:$0xff]
    %v6933 = vld [vmem:[%s16 + $0x38] sm:$0xf]
    %v6934 = vld [vmem:[%s16 + $0x3c] sm:$0xff]
    %v6935 = vld [vmem:[%s16 + $0x44] sm:$0xf]
    %v6936 = vld [vmem:[%s16 + $0x48] sm:$0xff]
    %v6937 = vld [vmem:[%s16 + $0x50] sm:$0xf]
    %v6938 = vld [vmem:[%s16 + $0x54] sm:$0xff]
    %v6939 = vld [vmem:[%s16 + $0x5c] sm:$0xf]
    %v6940 = vld [vmem:[%s16 + $0x60] sm:$0xff]
    %v6941 = vld [vmem:[%s16 + $0x68] sm:$0xf]
    %v6942 = vld [vmem:[%s16 + $0x6c] sm:$0xff]
    %v6943 = vld [vmem:[%s16 + $0x74] sm:$0xf]
    %v6944 = vld [vmem:[%s16 + $0x78] sm:$0xff]
    %v6945 = vld [vmem:[%s16 + $0x80] sm:$0xf]
    %v6946 = vld [vmem:[%s16 + $0x84] sm:$0xff]
    %v6947 = vld [vmem:[%s16 + $0x8c] sm:$0xf]
    %v6948 = vld [vmem:[%s16 + $0x90] sm:$0xff]
    %v6949 = vld [vmem:[%s16 + $0x98] sm:$0xf]
    %v6950 = vld [vmem:[%s16 + $0x9c] sm:$0xff]
    %v6951 = vld [vmem:[%s16 + $0xa4] sm:$0xf]
    %v6952 = vld [vmem:[%s16 + $0xa8] sm:$0xff]
    %v6953 = vld [vmem:[%s16 + $0xb0] sm:$0xf]
    %v6954 = vld [vmem:[%s16 + $0xb4] sm:$0xff]
    %v6955 = vld [vmem:[%s16 + $0xbc] sm:$0xf]
    %v6956 = vld [vmem:[%s16 + $0xc0] sm:$0xff]
    %v6957 = vld [vmem:[%s16 + $0xc8] sm:$0xf]
    %v6958 = vld [vmem:[%s16 + $0xcc] sm:$0xff]
    %v6959 = vld [vmem:[%s16 + $0xd4] sm:$0xf]
    %v6960 = vld [vmem:[%s16 + $0xd8] sm:$0xff]
    %v6961 = vld [vmem:[%s16 + $0xe0] sm:$0xf]
    %v6962 = vld [vmem:[%s16 + $0xe4] sm:$0xff]
    %v6963 = vld [vmem:[%s16 + $0xec] sm:$0xf]
    %v6964 = vld [vmem:[%s16 + $0xf0] sm:$0xff]
    %v6965 = vld [vmem:[%s16 + $0xf8] sm:$0xf]
    %v6966 = vld [vmem:[%s16 + $0xfc] sm:$0xff]
    %v6967 = vld [vmem:[%s16 + $0x104] sm:$0xf]
    %v6968 = vld [vmem:[%s16 + $0x108] sm:$0xff]
    %v6969 = vld [vmem:[%s16 + $0x110] sm:$0xf]
    %v6970 = vld [vmem:[%s16 + $0x114] sm:$0xff]
    %v6971 = vld [vmem:[%s16 + $0x11c] sm:$0xf]
    %v6972 = vld [vmem:[%s16 + $0x120] sm:$0xff]
    %v6973 = vld [vmem:[%s16 + $0x128] sm:$0xf]
    %v6974 = vld [vmem:[%s16 + $0x12c] sm:$0xff]
    %v6975 = vld [vmem:[%s16 + $0x134] sm:$0xf]
    %v6976 = vld [vmem:[%s16 + $0x138] sm:$0xff]
    %v6977 = vld [vmem:[%s16 + $0x140] sm:$0xf]
    %v6978 = vld [vmem:[%s16 + $0x144] sm:$0xff]
    %v6979 = vld [vmem:[%s16 + $0x14c] sm:$0xf]
    %v6980 = vld [vmem:[%s16 + $0x150] sm:$0xff]
    %v6981 = vld [vmem:[%s16 + $0x158] sm:$0xf]
    %v6982 = vld [vmem:[%s16 + $0x15c] sm:$0xff]
    %v6983 = vld [vmem:[%s16 + $0x164] sm:$0xf]
    %v6984 = vld [vmem:[%s16 + $0x168] sm:$0xff]
    %v6985 = vld [vmem:[%s16 + $0x170] sm:$0xf]
    %v6986 = vld [vmem:[%s16 + $0x174] sm:$0xff]
    %v6987 = vld [vmem:[%s16 + $0x17c] sm:$0xf]
    %v6988 = vld [vmem:[%s16 + $0x180] sm:$0xff]
    %v6989 = vld [vmem:[%s16 + $0x188] sm:$0xf]
    %v6990 = vld [vmem:[%s16 + $0x18c] sm:$0xff]
    %v6991 = vld [vmem:[%s16 + $0x194] sm:$0xf]
    %v6992 = vld [vmem:[%s16 + $0x198] sm:$0xff]
    %v6993 = vld [vmem:[%s16 + $0x1a0] sm:$0xf]
    %v6994 = vld [vmem:[%s16 + $0x1a4] sm:$0xff]
    %v6995 = vld [vmem:[%s16 + $0x1ac] sm:$0xf]
    %v6996 = vld [vmem:[%s16 + $0x1b0] sm:$0xff]
    %v6997 = vld [vmem:[%s16 + $0x1b8] sm:$0xf]
    %v6998 = vld [vmem:[%s16 + $0x1bc] sm:$0xff]
    %v6999 = vld [vmem:[%s16 + $0x1c4] sm:$0xf]
    %v7000 = vld [vmem:[%s16 + $0x1c8] sm:$0xff]
    %v7001 = vld [vmem:[%s16 + $0x1d0] sm:$0xf]
    %v7002 = vld [vmem:[%s16 + $0x1d4] sm:$0xff]
    %v7003 = vld [vmem:[%s16 + $0x1dc] sm:$0xf]
    %v7004 = vld [vmem:[%s16 + $0x1e0] sm:$0xff]
    %v7005 = vld [vmem:[%s16 + $0x1e8] sm:$0xf]
    %v7006 = vld [vmem:[%s16 + $0x1ec] sm:$0xff]
    %v7007 = vld [vmem:[%s16 + $0x1f4] sm:$0xf]
    %v7008 = vld [vmem:[%s16 + $0x1f8] sm:$0xff]
    %v7009 = vld [vmem:[%s16 + $0x200] sm:$0xf]
    %v7010 = vld [vmem:[%s16 + $0x204] sm:$0xff]
    %v7011 = vld [vmem:[%s16 + $0x20c] sm:$0xf]
    %v7012 = vld [vmem:[%s16 + $0x210] sm:$0xff]
    %v7013 = vld [vmem:[%s16 + $0x218] sm:$0xf]
    %v7014 = vld [vmem:[%s16 + $0x21c] sm:$0xff]
    %v7015 = vld [vmem:[%s16 + $0x224] sm:$0xf]
    %v7016 = vld [vmem:[%s16 + $0x228] sm:$0xff]
    %v7017 = vld [vmem:[%s16 + $0x230] sm:$0xf]
    %v7018 = vld [vmem:[%s16 + $0x234] sm:$0xff]
    %v7019 = vld [vmem:[%s16 + $0x23c] sm:$0xf]
    %v7020 = vld [vmem:[#allocation21] sm:$0x7]
    %v7022 = vlaneseq
    %v7023 = vshrl.u32 %v7022, 7
    %v7024 = vsub.s32 0, %v7023
    %v7025 = vrot.slane %v7020, %v7024
    %v7026 = vlaneseq
    %v7027 = vshrl.u32 %v7026, 7
    %v7028 = vsub.s32 1, %v7027
    %v7029 = vrot.slane %v7020, %v7028
    %v7030 = vlaneseq
    %v7031 = vshrl.u32 %v7030, 7
    %v7032 = vsub.s32 2, %v7031
    %v7033 = vrot.slane %v7020, %v7032
    %v7133 = vunpack.c.l.b16 %v6924
    %v7134 = vunpack.c.h.b16 %v6924
    %v7135 = vunpack.c.l.b16 %v6925
    %v7136 = vunpack.c.l.b16 %v6926
    %v7137 = vunpack.c.h.b16 %v6926
    %v7138 = vunpack.c.l.b16 %v6927
    %v7139 = vunpack.c.l.b16 %v6928
    %v7140 = vunpack.c.h.b16 %v6928
    %v7141 = vunpack.c.l.b16 %v6929
    %v7142 = vunpack.c.l.b16 %v6930
    %v7143 = vunpack.c.h.b16 %v6930
    %v7144 = vunpack.c.l.b16 %v6931
    %v7145 = vunpack.c.l.b16 %v6932
    %v7146 = vunpack.c.h.b16 %v6932
    %v7147 = vunpack.c.l.b16 %v6933
    %v7148 = vunpack.c.l.b16 %v6934
    %v7149 = vunpack.c.h.b16 %v6934
    %v7150 = vunpack.c.l.b16 %v6935
    %v7151 = vunpack.c.l.b16 %v6936
    %v7152 = vunpack.c.h.b16 %v6936
    %v7153 = vunpack.c.l.b16 %v6937
    %v7154 = vunpack.c.l.b16 %v6938
    %v7155 = vunpack.c.h.b16 %v6938
    %v7156 = vunpack.c.l.b16 %v6939
    %v7157 = vunpack.c.l.b16 %v6940
    %v7158 = vunpack.c.h.b16 %v6940
    %v7159 = vunpack.c.l.b16 %v6941
    %v7160 = vunpack.c.l.b16 %v6942
    %v7161 = vunpack.c.h.b16 %v6942
    %v7162 = vunpack.c.l.b16 %v6943
    %v7163 = vunpack.c.l.b16 %v6944
    %v7164 = vunpack.c.h.b16 %v6944
    %v7165 = vunpack.c.l.b16 %v6945
    %v7166 = vunpack.c.l.b16 %v6946
    %v7167 = vunpack.c.h.b16 %v6946
    %v7168 = vunpack.c.l.b16 %v6947
    %v7169 = vunpack.c.l.b16 %v6948
    %v7170 = vunpack.c.h.b16 %v6948
    %v7171 = vunpack.c.l.b16 %v6949
    %v7172 = vunpack.c.l.b16 %v6950
    %v7173 = vunpack.c.h.b16 %v6950
    %v7174 = vunpack.c.l.b16 %v6951
    %v7175 = vunpack.c.l.b16 %v6952
    %v7176 = vunpack.c.h.b16 %v6952
    %v7177 = vunpack.c.l.b16 %v6953
    %v7178 = vunpack.c.l.b16 %v6954
    %v7179 = vunpack.c.h.b16 %v6954
    %v7180 = vunpack.c.l.b16 %v6955
    %v7181 = vunpack.c.l.b16 %v6956
    %v7182 = vunpack.c.h.b16 %v6956
    %v7183 = vunpack.c.l.b16 %v6957
    %v7184 = vunpack.c.l.b16 %v6958
    %v7185 = vunpack.c.h.b16 %v6958
    %v7186 = vunpack.c.l.b16 %v6959
    %v7187 = vunpack.c.l.b16 %v6960
    %v7188 = vunpack.c.h.b16 %v6960
    %v7189 = vunpack.c.l.b16 %v6961
    %v7190 = vunpack.c.l.b16 %v6962
    %v7191 = vunpack.c.h.b16 %v6962
    %v7192 = vunpack.c.l.b16 %v6963
    %v7193 = vunpack.c.l.b16 %v6964
    %v7194 = vunpack.c.h.b16 %v6964
    %v7195 = vunpack.c.l.b16 %v6965
    %v7196 = vunpack.c.l.b16 %v6966
    %v7197 = vunpack.c.h.b16 %v6966
    %v7198 = vunpack.c.l.b16 %v6967
    %v7199 = vunpack.c.l.b16 %v6968
    %v7200 = vunpack.c.h.b16 %v6968
    %v7201 = vunpack.c.l.b16 %v6969
    %v7202 = vunpack.c.l.b16 %v6970
    %v7203 = vunpack.c.h.b16 %v6970
    %v7204 = vunpack.c.l.b16 %v6971
    %v7205 = vunpack.c.l.b16 %v6972
    %v7206 = vunpack.c.h.b16 %v6972
    %v7207 = vunpack.c.l.b16 %v6973
    %v7208 = vunpack.c.l.b16 %v6974
    %v7209 = vunpack.c.h.b16 %v6974
    %v7210 = vunpack.c.l.b16 %v6975
    %v7211 = vunpack.c.l.b16 %v6976
    %v7212 = vunpack.c.h.b16 %v6976
    %v7213 = vunpack.c.l.b16 %v6977
    %v7214 = vunpack.c.l.b16 %v6978
    %v7215 = vunpack.c.h.b16 %v6978
    %v7216 = vunpack.c.l.b16 %v6979
    %v7217 = vunpack.c.l.b16 %v6980
    %v7218 = vunpack.c.h.b16 %v6980
    %v7219 = vunpack.c.l.b16 %v6981
    %v7220 = vunpack.c.l.b16 %v6982
    %v7221 = vunpack.c.h.b16 %v6982
    %v7222 = vunpack.c.l.b16 %v6983
    %v7223 = vunpack.c.l.b16 %v6984
    %v7224 = vunpack.c.h.b16 %v6984
    %v7225 = vunpack.c.l.b16 %v6985
    %v7226 = vunpack.c.l.b16 %v6986
    %v7227 = vunpack.c.h.b16 %v6986
    %v7228 = vunpack.c.l.b16 %v6987
    %v7229 = vunpack.c.l.b16 %v6988
    %v7230 = vunpack.c.h.b16 %v6988
    %v7231 = vunpack.c.l.b16 %v6989
    %v7232 = vunpack.c.l.b16 %v6990
    %v7233 = vunpack.c.h.b16 %v6990
    %v7234 = vunpack.c.l.b16 %v6991
    %v7235 = vunpack.c.l.b16 %v6992
    %v7236 = vunpack.c.h.b16 %v6992
    %v7237 = vunpack.c.l.b16 %v6993
    %v7238 = vunpack.c.l.b16 %v6994
    %v7239 = vunpack.c.h.b16 %v6994
    %v7240 = vunpack.c.l.b16 %v6995
    %v7241 = vunpack.c.l.b16 %v6996
    %v7242 = vunpack.c.h.b16 %v6996
    %v7243 = vunpack.c.l.b16 %v6997
    %v7244 = vunpack.c.l.b16 %v6998
    %v7245 = vunpack.c.h.b16 %v6998
    %v7246 = vunpack.c.l.b16 %v6999
    %v7247 = vunpack.c.l.b16 %v7000
    %v7248 = vunpack.c.h.b16 %v7000
    %v7249 = vunpack.c.l.b16 %v7001
    %v7250 = vunpack.c.l.b16 %v7002
    %v7251 = vunpack.c.h.b16 %v7002
    %v7252 = vunpack.c.l.b16 %v7003
    %v7253 = vunpack.c.l.b16 %v7004
    %v7254 = vunpack.c.h.b16 %v7004
    %v7255 = vunpack.c.l.b16 %v7005
    %v7256 = vunpack.c.l.b16 %v7006
    %v7257 = vunpack.c.h.b16 %v7006
    %v7258 = vunpack.c.l.b16 %v7007
    %v7259 = vunpack.c.l.b16 %v7008
    %v7260 = vunpack.c.h.b16 %v7008
    %v7261 = vunpack.c.l.b16 %v7009
    %v7262 = vunpack.c.l.b16 %v7010
    %v7263 = vunpack.c.h.b16 %v7010
    %v7264 = vunpack.c.l.b16 %v7011
    %v7265 = vunpack.c.l.b16 %v7012
    %v7266 = vunpack.c.h.b16 %v7012
    %v7267 = vunpack.c.l.b16 %v7013
    %v7268 = vunpack.c.l.b16 %v7014
    %v7269 = vunpack.c.h.b16 %v7014
    %v7270 = vunpack.c.l.b16 %v7015
    %v7271 = vunpack.c.l.b16 %v7016
    %v7272 = vunpack.c.h.b16 %v7016
    %v7273 = vunpack.c.l.b16 %v7017
    %v7274 = vunpack.c.l.b16 %v7018
    %v7275 = vunpack.c.h.b16 %v7018
    %v7276 = vunpack.c.l.b16 %v7019
    %v7277 = vpack.c.b16 %v7136, %v7133
    %v7278 = vpack.c.b16 %v7137, %v7134
    %v7279 = vpack.c.b16 %v7138, %v7135
    %v7280 = vpack.c.b16 %v7142, %v7139
    %v7281 = vpack.c.b16 %v7143, %v7140
    %v7282 = vpack.c.b16 %v7144, %v7141
    %v7283 = vpack.c.b16 %v7148, %v7145
    %v7284 = vpack.c.b16 %v7149, %v7146
    %v7285 = vpack.c.b16 %v7150, %v7147
    %v7286 = vpack.c.b16 %v7154, %v7151
    %v7287 = vpack.c.b16 %v7155, %v7152
    %v7288 = vpack.c.b16 %v7156, %v7153
    %v7289 = vpack.c.b16 %v7160, %v7157
    %v7290 = vpack.c.b16 %v7161, %v7158
    %v7291 = vpack.c.b16 %v7162, %v7159
    %v7292 = vpack.c.b16 %v7166, %v7163
    %v7293 = vpack.c.b16 %v7167, %v7164
    %v7294 = vpack.c.b16 %v7168, %v7165
    %v7295 = vpack.c.b16 %v7172, %v7169
    %v7296 = vpack.c.b16 %v7173, %v7170
    %v7297 = vpack.c.b16 %v7174, %v7171
    %v7298 = vpack.c.b16 %v7178, %v7175
    %v7299 = vpack.c.b16 %v7179, %v7176
    %v7300 = vpack.c.b16 %v7180, %v7177
    %v7301 = vpack.c.b16 %v7184, %v7181
    %v7302 = vpack.c.b16 %v7185, %v7182
    %v7303 = vpack.c.b16 %v7186, %v7183
    %v7304 = vpack.c.b16 %v7190, %v7187
    %v7305 = vpack.c.b16 %v7191, %v7188
    %v7306 = vpack.c.b16 %v7192, %v7189
    %v7307 = vpack.c.b16 %v7196, %v7193
    %v7308 = vpack.c.b16 %v7197, %v7194
    %v7309 = vpack.c.b16 %v7198, %v7195
    %v7310 = vpack.c.b16 %v7202, %v7199
    %v7311 = vpack.c.b16 %v7203, %v7200
    %v7312 = vpack.c.b16 %v7204, %v7201
    %v7313 = vpack.c.b16 %v7208, %v7205
    %v7314 = vpack.c.b16 %v7209, %v7206
    %v7315 = vpack.c.b16 %v7210, %v7207
    %v7316 = vpack.c.b16 %v7214, %v7211
    %v7317 = vpack.c.b16 %v7215, %v7212
    %v7318 = vpack.c.b16 %v7216, %v7213
    %v7319 = vpack.c.b16 %v7220, %v7217
    %v7320 = vpack.c.b16 %v7221, %v7218
    %v7321 = vpack.c.b16 %v7222, %v7219
    %v7322 = vpack.c.b16 %v7226, %v7223
    %v7323 = vpack.c.b16 %v7227, %v7224
    %v7324 = vpack.c.b16 %v7228, %v7225
    %v7325 = vpack.c.b16 %v7232, %v7229
    %v7326 = vpack.c.b16 %v7233, %v7230
    %v7327 = vpack.c.b16 %v7234, %v7231
    %v7328 = vpack.c.b16 %v7238, %v7235
    %v7329 = vpack.c.b16 %v7239, %v7236
    %v7330 = vpack.c.b16 %v7240, %v7237
    %v7331 = vpack.c.b16 %v7244, %v7241
    %v7332 = vpack.c.b16 %v7245, %v7242
    %v7333 = vpack.c.b16 %v7246, %v7243
    %v7334 = vpack.c.b16 %v7250, %v7247
    %v7335 = vpack.c.b16 %v7251, %v7248
    %v7336 = vpack.c.b16 %v7252, %v7249
    %v7337 = vpack.c.b16 %v7256, %v7253
    %v7338 = vpack.c.b16 %v7257, %v7254
    %v7339 = vpack.c.b16 %v7258, %v7255
    %v7340 = vpack.c.b16 %v7262, %v7259
    %v7341 = vpack.c.b16 %v7263, %v7260
    %v7342 = vpack.c.b16 %v7264, %v7261
    %v7343 = vpack.c.b16 %v7268, %v7265
    %v7344 = vpack.c.b16 %v7269, %v7266
    %v7345 = vpack.c.b16 %v7270, %v7267
    %v7346 = vpack.c.b16 %v7274, %v7271
    %v7347 = vpack.c.b16 %v7275, %v7272
    %v7348 = vpack.c.b16 %v7276, %v7273
    %7421 = vmatprep.subr.bf16.mxu0 %v7278
    %7422 = vmatpush1.bf16.msra.mxu0 %v7277
    %7423 = vmatprep.subr.bf16.mxu0 %v7281
    %7424 = vmatpush1.bf16.msra.mxu0 %v7280
    %7425 = vmatprep.subr.bf16.mxu0 %v7284
    %7426 = vmatpush1.bf16.msra.mxu0 %v7283
    %7427 = vmatprep.subr.bf16.mxu0 %v7287
    %7428 = vmatpush1.bf16.msra.mxu0 %v7286
    %7429 = vmatprep.subr.bf16.mxu0 %v7290
    %7430 = vmatpush1.bf16.msra.mxu0 %v7289
    %7431 = vmatprep.subr.bf16.mxu0 %v7293
    %7432 = vmatpush1.bf16.msra.mxu0 %v7292
    %7433 = vmatprep.subr.bf16.mxu0 %v7296
    %7434 = vmatpush1.bf16.msra.mxu0 %v7295
    %7435 = vmatprep.subr.bf16.mxu0 %v7299
    %7436 = vmatpush1.bf16.msra.mxu0 %v7298
    %7437 = vmatprep.subr.bf16.mxu0 %v7302
    %7438 = vmatpush1.bf16.msra.mxu0 %v7301
    %7439 = vmatprep.subr.bf16.mxu0 %v7305
    %7440 = vmatpush1.bf16.msra.mxu0 %v7304
    %7441 = vmatprep.subr.bf16.mxu0 %v7308
    %7442 = vmatpush1.bf16.msra.mxu0 %v7307
    %7443 = vmatprep.subr.bf16.mxu0 %v7311
    %7444 = vmatpush1.bf16.msra.mxu0 %v7310
    %7445 = vmatprep.subr.bf16.mxu0 %v7314
    %7446 = vmatpush1.bf16.msra.mxu0 %v7313
    %7447 = vmatprep.subr.bf16.mxu0 %v7317
    %7448 = vmatpush1.bf16.msra.mxu0 %v7316
    %7449 = vmatprep.subr.bf16.mxu0 %v7320
    %7450 = vmatpush1.bf16.msra.mxu0 %v7319
    %7451 = vmatprep.subr.bf16.mxu0 %v7323
    %7452 = vmatpush1.bf16.msra.mxu0 %v7322
    %7453 = vmatprep.mubr.bf16.mxu0 %v6922
    %7454 = vmatmul.mubr.bf16.gmra.mrb[0].mxu0 %v6921
    %v7455 = vpop.f32.mrb[0].mxu0
    %v7456 = vadd.f32 %v7025, %v7455
    %v7457 = vpop.f32.mrb[0].mxu0
    %v7458 = vadd.f32 %v7029, %v7457
    %v7459 = vpop.f32.mrb[0].mxu0
    %v7460 = vpop.f32.mrb[0].mxu0
    %7461 = vdwg.mxu0
    %7462 = vmatprep.subr.bf16.mxu0 %v7326
    %7463 = vmatpush1.bf16.msra.mxu0 %v7325
    %7464 = vmatprep.subr.bf16.mxu0 %v7329
    %7465 = vmatpush1.bf16.msra.mxu0 %v7328
    %7466 = vmatprep.subr.bf16.mxu0 %v7332
    %7467 = vmatpush1.bf16.msra.mxu0 %v7331
    %7468 = vmatprep.subr.bf16.mxu0 %v7335
    %7469 = vmatpush1.bf16.msra.mxu0 %v7334
    %7470 = vmatprep.subr.bf16.mxu0 %v7338
    %7471 = vmatpush1.bf16.msra.mxu0 %v7337
    %7472 = vmatprep.subr.bf16.mxu0 %v7341
    %7473 = vmatpush1.bf16.msra.mxu0 %v7340
    %7474 = vmatprep.subr.bf16.mxu0 %v7344
    %7475 = vmatpush1.bf16.msra.mxu0 %v7343
    %7476 = vmatprep.subr.bf16.mxu0 %v7347
    %7477 = vmatpush1.bf16.msra.mxu0 %v7346
    %7478 = vmatprep.subr.bf16.mxu0 0
    %7479 = vmatpush1.bf16.msra.mxu0 0
    %7480 = vmatprep.subr.bf16.mxu0 0
    %7481 = vmatpush1.bf16.msra.mxu0 0
    %7482 = vmatprep.subr.bf16.mxu0 0
    %7483 = vmatpush1.bf16.msra.mxu0 0
    %7484 = vmatprep.subr.bf16.mxu0 0
    %7485 = vmatpush1.bf16.msra.mxu0 0
    %7486 = vmatprep.subr.bf16.mxu0 0
    %7487 = vmatpush1.bf16.msra.mxu0 0
    %7488 = vmatprep.subr.bf16.mxu0 0
    %7489 = vmatpush1.bf16.msra.mxu0 0
    %7490 = vmatprep.subr.bf16.mxu0 0
    %7491 = vmatpush1.bf16.msra.mxu0 0
    %7492 = vmatprep.subr.bf16.mxu0 0
    %7493 = vmatpush1.bf16.msra.mxu0 0
    %7494 = vmatprep.mubr.bf16.mxu0 0
    %7495 = vmatmul.mubr.bf16.gmra.mrb[0].mxu0 %v6923
    %v7496 = vpop.f32.mrb[0].mxu0
    %v7497 = vadd.f32 %v7456, %v7496
    %v7498 = vpop.f32.mrb[0].mxu0
    %v7499 = vadd.f32 %v7458, %v7498
    %v7500 = vpop.f32.mrb[0].mxu0
    %v7501 = vpop.f32.mrb[0].mxu0
    %7502 = vdwg.mxu0
    %7503 = vmatprep.subr.bf16.mxu0 0
    %7504 = vmatpush1.bf16.msra.mxu0 %v7279
    %7505 = vmatprep.subr.bf16.mxu0 0
    %7506 = vmatpush1.bf16.msra.mxu0 %v7282
    %7507 = vmatprep.subr.bf16.mxu0 0
    %7508 = vmatpush1.bf16.msra.mxu0 %v7285
    %7509 = vmatprep.subr.bf16.mxu0 0
    %7510 = vmatpush1.bf16.msra.mxu0 %v7288
    %7511 = vmatprep.subr.bf16.mxu0 0
    %7512 = vmatpush1.bf16.msra.mxu0 %v7291
    %7513 = vmatprep.subr.bf16.mxu0 0
    %7514 = vmatpush1.bf16.msra.mxu0 %v7294
    %7515 = vmatprep.subr.bf16.mxu0 0
    %7516 = vmatpush1.bf16.msra.mxu0 %v7297
    %7517 = vmatprep.subr.bf16.mxu0 0
    %7518 = vmatpush1.bf16.msra.mxu0 %v7300
    %7519 = vmatprep.subr.bf16.mxu0 0
    %7520 = vmatpush1.bf16.msra.mxu0 %v7303
    %7521 = vmatprep.subr.bf16.mxu0 0
    %7522 = vmatpush1.bf16.msra.mxu0 %v7306
    %7523 = vmatprep.subr.bf16.mxu0 0
    %7524 = vmatpush1.bf16.msra.mxu0 %v7309
    %7525 = vmatprep.subr.bf16.mxu0 0
    %7526 = vmatpush1.bf16.msra.mxu0 %v7312
    %7527 = vmatprep.subr.bf16.mxu0 0
    %7528 = vmatpush1.bf16.msra.mxu0 %v7315
    %7529 = vmatprep.subr.bf16.mxu0 0
    %7530 = vmatpush1.bf16.msra.mxu0 %v7318
    %7531 = vmatprep.subr.bf16.mxu0 0
    %7532 = vmatpush1.bf16.msra.mxu0 %v7321
    %7533 = vmatprep.subr.bf16.mxu0 0
    %7534 = vmatpush1.bf16.msra.mxu0 %v7324
    %7535 = vmatprep.mubr.bf16.mxu0 %v6922
    %7536 = vmatmul.mubr.bf16.gmra.mrb[0].mxu0 %v6921
    %v7537 = vpop.f32.mrb[0].mxu0
    %v7538 = vadd.f32 %v7033, %v7537
    %v7539 = vpop.f32.mrb[0].mxu0
    %v7540 = vpop.f32.mrb[0].mxu0
    %v7541 = vpop.f32.mrb[0].mxu0
    %7542 = vdwg.mxu0
    %7543 = vmatprep.subr.bf16.mxu0 0
    %7544 = vmatpush1.bf16.msra.mxu0 %v7327
    %7545 = vmatprep.subr.bf16.mxu0 0
    %7546 = vmatpush1.bf16.msra.mxu0 %v7330
    %7547 = vmatprep.subr.bf16.mxu0 0
    %7548 = vmatpush1.bf16.msra.mxu0 %v7333
    %7549 = vmatprep.subr.bf16.mxu0 0
    %7550 = vmatpush1.bf16.msra.mxu0 %v7336
    %7551 = vmatprep.subr.bf16.mxu0 0
    %7552 = vmatpush1.bf16.msra.mxu0 %v7339
    %7553 = vmatprep.subr.bf16.mxu0 0
    %7554 = vmatpush1.bf16.msra.mxu0 %v7342
    %7555 = vmatprep.subr.bf16.mxu0 0
    %7556 = vmatpush1.bf16.msra.mxu0 %v7345
    %7557 = vmatprep.subr.bf16.mxu0 0
    %7558 = vmatpush1.bf16.msra.mxu0 %v7348
    %7559 = vmatprep.subr.bf16.mxu0 0
    %7560 = vmatpush1.bf16.msra.mxu0 0
    %7561 = vmatprep.subr.bf16.mxu0 0
    %7562 = vmatpush1.bf16.msra.mxu0 0
    %7563 = vmatprep.subr.bf16.mxu0 0
    %7564 = vmatpush1.bf16.msra.mxu0 0
    %7565 = vmatprep.subr.bf16.mxu0 0
    %7566 = vmatpush1.bf16.msra.mxu0 0
    %7567 = vmatprep.subr.bf16.mxu0 0
    %7568 = vmatpush1.bf16.msra.mxu0 0
    %7569 = vmatprep.subr.bf16.mxu0 0
    %7570 = vmatpush1.bf16.msra.mxu0 0
    %7571 = vmatprep.subr.bf16.mxu0 0
    %7572 = vmatpush1.bf16.msra.mxu0 0
    %7573 = vmatprep.subr.bf16.mxu0 0
    %7574 = vmatpush1.bf16.msra.mxu0 0
    %7575 = vmatprep.mubr.bf16.mxu0 0
    %7576 = vmatmul.mubr.bf16.gmra.mrb[0].mxu0 %v6923
    %v7577 = vpop.f32.mrb[0].mxu0
    %v7578 = vadd.f32 %v7538, %v7577
    %v7579 = vpop.f32.mrb[0].mxu0
    %v7580 = vpop.f32.mrb[0].mxu0
    %v7581 = vpop.f32.mrb[0].mxu0
    %7582 = vdwg.mxu0
    %v7583 = vadd.f32 %v7497, %v6764
    %v7584 = vxor.u32 %v7583, 2147483648
    %v7585 = vmul.f32 %v7584, 1.442695
    %v7586 = vpow.pop %v7585
    %v7587 = vadd.f32 %v7586, 1.0
    %v7588 = vrcp.pop %v7587
    %v7589 = vmul.f32 1.0, %v7588
    %v7590 = vadd.f32 %v7499, %v6766
    %v7591 = vxor.u32 %v7590, 2147483648
    %v7592 = vmul.f32 %v7591, 1.442695
    %v7593 = vpow.pop %v7592
    %v7594 = vadd.f32 %v7593, 1.0
    %v7595 = vrcp.pop %v7594
    %v7596 = vmul.f32 1.0, %v7595
    %v7597 = vmul.f32 %v7589, %v6805
    %v7598 = vadd.f32 %v7578, %v7597
    %v7599 = vtanh.pop %v7598
    %v7600 = vsub.f32 1.0, %v7596
    %v7601 = vmul.f32 %v7600, %v7599
    %v7602 = vmul.f32 %v7596, %v5968
    %v7603 = vadd.f32 %v7601, %v7602
    %v7604 = vpack.c.bf16 %v7603, %v7603
    %v7605 = vld [vmem:[#allocation22] sm:$0xf]
    %v7606 = vld [vmem:[#allocation22 + $0x4] sm:$0xf]
    %v7607 = vld [vmem:[#allocation22 + $0x8] sm:$0xf]
    %v7608 = vld [vmem:[#allocation22 + $0xc] sm:$0xf]
    %v7609 = vld [vmem:[#allocation22 + $0x10] sm:$0xf]
    %v7610 = vld [vmem:[#allocation22 + $0x14] sm:$0xf]
    %v7611 = vld [vmem:[#allocation22 + $0x18] sm:$0xf]
    %v7612 = vld [vmem:[#allocation22 + $0x1c] sm:$0xf]
    %v7613 = vld [vmem:[#allocation22 + $0x20] sm:$0xf]
    %v7614 = vld [vmem:[#allocation22 + $0x24] sm:$0xf]
    %v7615 = vld [vmem:[#allocation22 + $0x28] sm:$0xf]
    %v7616 = vld [vmem:[#allocation22 + $0x2c] sm:$0xf]
    %v7617 = vld [vmem:[#allocation22 + $0x30] sm:$0xf]
    %v7618 = vld [vmem:[#allocation22 + $0x34] sm:$0xf]
    %v7619 = vld [vmem:[#allocation22 + $0x38] sm:$0xf]
    %v7620 = vld [vmem:[#allocation22 + $0x3c] sm:$0xf]
    %v7621 = vld [vmem:[#allocation22 + $0x40] sm:$0xf]
    %v7622 = vld [vmem:[#allocation22 + $0x44] sm:$0xf]
    %v7623 = vld [vmem:[#allocation22 + $0x48] sm:$0xf]
    %v7624 = vld [vmem:[#allocation22 + $0x4c] sm:$0xf]
    %v7625 = vld [vmem:[#allocation22 + $0x50] sm:$0xf]
    %v7626 = vld [vmem:[#allocation22 + $0x54] sm:$0xf]
    %v7627 = vld [vmem:[#allocation22 + $0x58] sm:$0xf]
    %v7628 = vld [vmem:[#allocation22 + $0x5c] sm:$0xf]
    %v7629 = vld [vmem:[#allocation22 + $0x60] sm:$0xf]
    %v7630 = vld [vmem:[#allocation22 + $0x64] sm:$0xf]
    %v7631 = vld [vmem:[#allocation22 + $0x68] sm:$0xf]
    %v7632 = vld [vmem:[#allocation22 + $0x6c] sm:$0xf]
    %v7633 = vld [vmem:[#allocation22 + $0x70] sm:$0xf]
    %v7634 = vld [vmem:[#allocation22 + $0x74] sm:$0xf]
    %v7635 = vld [vmem:[#allocation22 + $0x78] sm:$0xf]
    %v7636 = vld [vmem:[#allocation22 + $0x7c] sm:$0xf]
    %v7637 = vld [vmem:[#allocation22 + $0x80] sm:$0xf]
    %v7638 = vld [vmem:[#allocation22 + $0x84] sm:$0xf]
    %v7639 = vld [vmem:[#allocation22 + $0x88] sm:$0xf]
    %v7640 = vld [vmem:[#allocation22 + $0x8c] sm:$0xf]
    %v7641 = vld [vmem:[#allocation22 + $0x90] sm:$0xf]
    %v7642 = vld [vmem:[#allocation22 + $0x94] sm:$0xf]
    %v7643 = vld [vmem:[#allocation22 + $0x98] sm:$0xf]
    %v7644 = vld [vmem:[#allocation22 + $0x9c] sm:$0xf]
    %v7645 = vld [vmem:[#allocation22 + $0xa0] sm:$0xf]
    %v7646 = vld [vmem:[#allocation22 + $0xa4] sm:$0xf]
    %v7647 = vld [vmem:[#allocation22 + $0xa8] sm:$0xf]
    %v7648 = vld [vmem:[#allocation22 + $0xac] sm:$0xf]
    %v7649 = vld [vmem:[#allocation22 + $0xb0] sm:$0xf]
    %v7650 = vld [vmem:[#allocation22 + $0xb4] sm:$0xf]
    %v7651 = vld [vmem:[#allocation22 + $0xb8] sm:$0xf]
    %v7652 = vld [vmem:[#allocation22 + $0xbc] sm:$0xf]
    %v7653 = vld [vmem:[#allocation24] sm:$0x1]
    %v7655 = vlaneseq
    %v7656 = vshrl.u32 %v7655, 7
    %v7657 = vsub.s32 0, %v7656
    %v7658 = vrot.slane %v7653, %v7657
    %v7708 = vunpack.c.l.b16 %v7605
    %v7709 = vunpack.c.l.b16 %v7606
    %v7710 = vunpack.c.l.b16 %v7607
    %v7711 = vunpack.c.l.b16 %v7608
    %v7712 = vunpack.c.l.b16 %v7609
    %v7713 = vunpack.c.l.b16 %v7610
    %v7714 = vunpack.c.l.b16 %v7611
    %v7715 = vunpack.c.l.b16 %v7612
    %v7716 = vunpack.c.l.b16 %v7613
    %v7717 = vunpack.c.l.b16 %v7614
    %v7718 = vunpack.c.l.b16 %v7615
    %v7719 = vunpack.c.l.b16 %v7616
    %v7720 = vunpack.c.l.b16 %v7617
    %v7721 = vunpack.c.l.b16 %v7618
    %v7722 = vunpack.c.l.b16 %v7619
    %v7723 = vunpack.c.l.b16 %v7620
    %v7724 = vunpack.c.l.b16 %v7621
    %v7725 = vunpack.c.l.b16 %v7622
    %v7726 = vunpack.c.l.b16 %v7623
    %v7727 = vunpack.c.l.b16 %v7624
    %v7728 = vunpack.c.l.b16 %v7625
    %v7729 = vunpack.c.l.b16 %v7626
    %v7730 = vunpack.c.l.b16 %v7627
    %v7731 = vunpack.c.l.b16 %v7628
    %v7732 = vunpack.c.l.b16 %v7629
    %v7733 = vunpack.c.l.b16 %v7630
    %v7734 = vunpack.c.l.b16 %v7631
    %v7735 = vunpack.c.l.b16 %v7632
    %v7736 = vunpack.c.l.b16 %v7633
    %v7737 = vunpack.c.l.b16 %v7634
    %v7738 = vunpack.c.l.b16 %v7635
    %v7739 = vunpack.c.l.b16 %v7636
    %v7740 = vunpack.c.l.b16 %v7637
    %v7741 = vunpack.c.l.b16 %v7638
    %v7742 = vunpack.c.l.b16 %v7639
    %v7743 = vunpack.c.l.b16 %v7640
    %v7744 = vunpack.c.l.b16 %v7641
    %v7745 = vunpack.c.l.b16 %v7642
    %v7746 = vunpack.c.l.b16 %v7643
    %v7747 = vunpack.c.l.b16 %v7644
    %v7748 = vunpack.c.l.b16 %v7645
    %v7749 = vunpack.c.l.b16 %v7646
    %v7750 = vunpack.c.l.b16 %v7647
    %v7751 = vunpack.c.l.b16 %v7648
    %v7752 = vunpack.c.l.b16 %v7649
    %v7753 = vunpack.c.l.b16 %v7650
    %v7754 = vunpack.c.l.b16 %v7651
    %v7755 = vunpack.c.l.b16 %v7652
    %v7756 = vpack.c.b16 %v7709, %v7708
    %v7757 = vpack.c.b16 %v7711, %v7710
    %v7758 = vpack.c.b16 %v7713, %v7712
    %v7759 = vpack.c.b16 %v7715, %v7714
    %v7760 = vpack.c.b16 %v7717, %v7716
    %v7761 = vpack.c.b16 %v7719, %v7718
    %v7762 = vpack.c.b16 %v7721, %v7720
    %v7763 = vpack.c.b16 %v7723, %v7722
    %v7764 = vpack.c.b16 %v7725, %v7724
    %v7765 = vpack.c.b16 %v7727, %v7726
    %v7766 = vpack.c.b16 %v7729, %v7728
    %v7767 = vpack.c.b16 %v7731, %v7730
    %v7768 = vpack.c.b16 %v7733, %v7732
    %v7769 = vpack.c.b16 %v7735, %v7734
    %v7770 = vpack.c.b16 %v7737, %v7736
    %v7771 = vpack.c.b16 %v7739, %v7738
    %v7772 = vpack.c.b16 %v7741, %v7740
    %v7773 = vpack.c.b16 %v7743, %v7742
    %v7774 = vpack.c.b16 %v7745, %v7744
    %v7775 = vpack.c.b16 %v7747, %v7746
    %v7776 = vpack.c.b16 %v7749, %v7748
    %v7777 = vpack.c.b16 %v7751, %v7750
    %v7778 = vpack.c.b16 %v7753, %v7752
    %v7779 = vpack.c.b16 %v7755, %v7754
    %7804 = vmatprep.subr.bf16.mxu0 0
    %7805 = vmatpush1.bf16.msra.mxu0 %v7756
    %7806 = vmatprep.subr.bf16.mxu0 0
    %7807 = vmatpush1.bf16.msra.mxu0 %v7757
    %7808 = vmatprep.subr.bf16.mxu0 0
    %7809 = vmatpush1.bf16.msra.mxu0 %v7758
    %7810 = vmatprep.subr.bf16.mxu0 0
    %7811 = vmatpush1.bf16.msra.mxu0 %v7759
    %7812 = vmatprep.subr.bf16.mxu0 0
    %7813 = vmatpush1.bf16.msra.mxu0 %v7760
    %7814 = vmatprep.subr.bf16.mxu0 0
    %7815 = vmatpush1.bf16.msra.mxu0 %v7761
    %7816 = vmatprep.subr.bf16.mxu0 0
    %7817 = vmatpush1.bf16.msra.mxu0 %v7762
    %7818 = vmatprep.subr.bf16.mxu0 0
    %7819 = vmatpush1.bf16.msra.mxu0 %v7763
    %7820 = vmatprep.subr.bf16.mxu0 0
    %7821 = vmatpush1.bf16.msra.mxu0 %v7764
    %7822 = vmatprep.subr.bf16.mxu0 0
    %7823 = vmatpush1.bf16.msra.mxu0 %v7765
    %7824 = vmatprep.subr.bf16.mxu0 0
    %7825 = vmatpush1.bf16.msra.mxu0 %v7766
    %7826 = vmatprep.subr.bf16.mxu0 0
    %7827 = vmatpush1.bf16.msra.mxu0 %v7767
    %7828 = vmatprep.subr.bf16.mxu0 0
    %7829 = vmatpush1.bf16.msra.mxu0 %v7768
    %7830 = vmatprep.subr.bf16.mxu0 0
    %7831 = vmatpush1.bf16.msra.mxu0 %v7769
    %7832 = vmatprep.subr.bf16.mxu0 0
    %7833 = vmatpush1.bf16.msra.mxu0 %v7770
    %7834 = vmatprep.subr.bf16.mxu0 0
    %7835 = vmatpush1.bf16.msra.mxu0 %v7771
    %7836 = vmatprep.mubr.bf16.mxu0 %v6922
    %7837 = vmatmul.mubr.bf16.gmra.mrb[0].mxu0 %v7604
    %v7838 = vpop.f32.mrb[0].mxu0
    %v7839 = vadd.f32 %v7658, %v7838
    %v7840 = vpop.f32.mrb[0].mxu0
    %v7841 = vpop.f32.mrb[0].mxu0
    %v7842 = vpop.f32.mrb[0].mxu0
    %7843 = vdwg.mxu0
    %7844 = vmatprep.subr.bf16.mxu0 0
    %7845 = vmatpush1.bf16.msra.mxu0 %v7772
    %7846 = vmatprep.subr.bf16.mxu0 0
    %7847 = vmatpush1.bf16.msra.mxu0 %v7773
    %7848 = vmatprep.subr.bf16.mxu0 0
    %7849 = vmatpush1.bf16.msra.mxu0 %v7774
    %7850 = vmatprep.subr.bf16.mxu0 0
    %7851 = vmatpush1.bf16.msra.mxu0 %v7775
    %7852 = vmatprep.subr.bf16.mxu0 0
    %7853 = vmatpush1.bf16.msra.mxu0 %v7776
    %7854 = vmatprep.subr.bf16.mxu0 0
    %7855 = vmatpush1.bf16.msra.mxu0 %v7777
    %7856 = vmatprep.subr.bf16.mxu0 0
    %7857 = vmatpush1.bf16.msra.mxu0 %v7778
    %7858 = vmatprep.subr.bf16.mxu0 0
    %7859 = vmatpush1.bf16.msra.mxu0 %v7779
    %7860 = vmatprep.subr.bf16.mxu0 0
    %7861 = vmatpush1.bf16.msra.mxu0 0
    %7862 = vmatprep.subr.bf16.mxu0 0
    %7863 = vmatpush1.bf16.msra.mxu0 0
    %7864 = vmatprep.subr.bf16.mxu0 0
    %7865 = vmatpush1.bf16.msra.mxu0 0
    %7866 = vmatprep.subr.bf16.mxu0 0
    %7867 = vmatpush1.bf16.msra.mxu0 0
    %7868 = vmatprep.subr.bf16.mxu0 0
    %7869 = vmatpush1.bf16.msra.mxu0 0
    %7870 = vmatprep.subr.bf16.mxu0 0
    %7871 = vmatpush1.bf16.msra.mxu0 0
    %7872 = vmatprep.subr.bf16.mxu0 0
    %7873 = vmatpush1.bf16.msra.mxu0 0
    %7874 = vmatprep.subr.bf16.mxu0 0
    %7875 = vmatpush1.bf16.msra.mxu0 0
    %7876 = vmatprep.mubr.bf16.mxu0 0
    %7877 = vmatmul.mubr.bf16.gmra.mrb[0].mxu0 %v6921
    %v7878 = vpop.f32.mrb[0].mxu0
    %v7879 = vadd.f32 %v7839, %v7878
    %v7880 = vpop.f32.mrb[0].mxu0
    %v7881 = vpop.f32.mrb[0].mxu0
    %v7882 = vpop.f32.mrb[0].mxu0
    %7883 = vdwg.mxu0
    %s7884 = scalar_lea.vmem [#allocation25], 24
    %7885 = vst [vmem:[%s7884] sm:$0xff] %v7879
    %7886 = vmax.xlane.f32.xlu0 %v7879
    %v7887 = vpop.xlane.xlu0 %7886
    %vm7888 = vcmp.ge.f32.partialorder %v7879, %v7887
    %v7889 = vsel %vm7888, %v3116, 128
    %v7890 = vand.u32 %v7889, 65535
    %v7891 = vshra.s32 %v7889, 16
    %v7892 = vcvt.s32.f32 %v7890
    %v7893 = vcvt.s32.f32 %v7891
    %7894 = vmin.xlane.f32.xlu0 %v7893
    %v7895 = vpop.xlane.xlu0 %7894
    %vm7896 = vcmp.eq.f32.partialorder %v7893, %v7895
    %v7897 = vsel %vm7896, %v7892, inf
    %7898 = vmin.xlane.f32.xlu0 %v7897
    %v7899 = vpop.xlane.xlu0 %7898
    %v7900 = vcvt.f32.s32 %v7899
    %v7901 = vcvt.f32.s32 %v7895
    %v7902 = vshll.u32 %v7901, 16
    %v7903 = vadd.s32 %v7902, %v7900
    %vm7904 = vcmp.eq.s32.totalorder %v3116, %v7903
    %v7905 = vsel %vm7904, 1, 0
    %v7906 = vcvt.s32.f32 %v7905
    %v7907 = vpack.c.bf16 %v7906, %v7906
    %v7908 = vld [vmem:[%s20] sm:$0xf]
    %v7909 = vld [vmem:[%s20 + $0x4] sm:$0xf]
    %v7910 = vld [vmem:[%s20 + $0x8] sm:$0xf]
    %v7911 = vld [vmem:[%s20 + $0xc] sm:$0xf]
    %v7912 = vld [vmem:[%s20 + $0x10] sm:$0xf]
    %v7913 = vld [vmem:[%s20 + $0x14] sm:$0xf]
    %v7914 = vld [vmem:[%s20 + $0x18] sm:$0xf]
    %v7915 = vld [vmem:[%s20 + $0x1c] sm:$0xf]
    %v7916 = vld [vmem:[%s20 + $0x20] sm:$0xf]
    %v7917 = vld [vmem:[%s20 + $0x24] sm:$0xf]
    %v7918 = vld [vmem:[%s20 + $0x28] sm:$0xf]
    %v7919 = vld [vmem:[%s20 + $0x2c] sm:$0xf]
    %v7920 = vld [vmem:[%s20 + $0x30] sm:$0xf]
    %v7921 = vld [vmem:[%s20 + $0x34] sm:$0xf]
    %v7922 = vld [vmem:[%s20 + $0x38] sm:$0xf]
    %v7923 = vld [vmem:[%s20 + $0x3c] sm:$0xf]
    %v7940 = vunpack.c.l.b16 %v7908
    %v7941 = vunpack.c.l.b16 %v7909
    %v7942 = vunpack.c.l.b16 %v7910
    %v7943 = vunpack.c.l.b16 %v7911
    %v7944 = vunpack.c.l.b16 %v7912
    %v7945 = vunpack.c.l.b16 %v7913
    %v7946 = vunpack.c.l.b16 %v7914
    %v7947 = vunpack.c.l.b16 %v7915
    %v7948 = vunpack.c.l.b16 %v7916
    %v7949 = vunpack.c.l.b16 %v7917
    %v7950 = vunpack.c.l.b16 %v7918
    %v7951 = vunpack.c.l.b16 %v7919
    %v7952 = vunpack.c.l.b16 %v7920
    %v7953 = vunpack.c.l.b16 %v7921
    %v7954 = vunpack.c.l.b16 %v7922
    %v7955 = vunpack.c.l.b16 %v7923
    %v7956 = vpack.c.b16 %v7941, %v7940
    %v7957 = vpack.c.b16 %v7943, %v7942
    %v7958 = vpack.c.b16 %v7945, %v7944
    %v7959 = vpack.c.b16 %v7947, %v7946
    %v7960 = vpack.c.b16 %v7949, %v7948
    %v7961 = vpack.c.b16 %v7951, %v7950
    %v7962 = vpack.c.b16 %v7953, %v7952
    %v7963 = vpack.c.b16 %v7955, %v7954
    %7972 = vmatprep.subr.bf16.mxu0 0
    %7973 = vmatpush1.bf16.msra.mxu0 %v7956
    %7974 = vmatprep.subr.bf16.mxu0 0
    %7975 = vmatpush1.bf16.msra.mxu0 %v7957
    %7976 = vmatprep.subr.bf16.mxu0 0
    %7977 = vmatpush1.bf16.msra.mxu0 %v7958
    %7978 = vmatprep.subr.bf16.mxu0 0
    %7979 = vmatpush1.bf16.msra.mxu0 %v7959
    %7980 = vmatprep.subr.bf16.mxu0 0
    %7981 = vmatpush1.bf16.msra.mxu0 %v7960
    %7982 = vmatprep.subr.bf16.mxu0 0
    %7983 = vmatpush1.bf16.msra.mxu0 %v7961
    %7984 = vmatprep.subr.bf16.mxu0 0
    %7985 = vmatpush1.bf16.msra.mxu0 %v7962
    %7986 = vmatprep.subr.bf16.mxu0 0
    %7987 = vmatpush1.bf16.msra.mxu0 %v7963
    %7988 = vmatprep.subr.bf16.mxu0 0
    %7989 = vmatpush1.bf16.msra.mxu0 0
    %7990 = vmatprep.subr.bf16.mxu0 0
    %7991 = vmatpush1.bf16.msra.mxu0 0
    %7992 = vmatprep.subr.bf16.mxu0 0
    %7993 = vmatpush1.bf16.msra.mxu0 0
    %7994 = vmatprep.subr.bf16.mxu0 0
    %7995 = vmatpush1.bf16.msra.mxu0 0
    %7996 = vmatprep.subr.bf16.mxu0 0
    %7997 = vmatpush1.bf16.msra.mxu0 0
    %7998 = vmatprep.subr.bf16.mxu0 0
    %7999 = vmatpush1.bf16.msra.mxu0 0
    %8000 = vmatprep.subr.bf16.mxu0 0
    %8001 = vmatpush1.bf16.msra.mxu0 0
    %8002 = vmatprep.subr.bf16.mxu0 0
    %8003 = vmatpush1.bf16.msra.mxu0 0
    %8004 = vmatprep.mubr.bf16.mxu0 0
    %8005 = vmatmul.mubr.bf16.gmra.mrb[0].mxu0 %v7907
    %v8006 = vpop.f32.mrb[0].mxu0
    %v8007 = vadd.f32 0.0, %v8006
    %v8008 = vpop.f32.mrb[0].mxu0
    %v8009 = vpop.f32.mrb[0].mxu0
    %v8010 = vpop.f32.mrb[0].mxu0
    %8011 = vdwg.mxu0
    %s8012 = sld [smem:[#allocation6 + $0x3]]
    %p8013 = scmp.gt.s32.totalorder %s8012, 0
    %s8014 = scalar_select %p8013, 1, 0
    %s8015 = scvt.s32.f32 %s8014
    %s8016 = scalar_lea.vmem %s2, 24
    %v8017 = vld [vmem:[%s8016] sm:$0xff]
    %v8018 = vstv %s8015
    %v8019 = vmul.f32 %v8018, %v8017
    %s8020 = ssub.f32 1.0, %s8015
    %v8021 = vstv %s8020
    %v8022 = vmul.f32 %v8021, %v8007
    %v8023 = vadd.f32 %v8019, %v8022
    %v8024 = vld [vmem:[#allocation2] sm:$0xff]
    %v8025 = vld [vmem:[#allocation2 + $0x8] sm:$0xff]
    %v8026 = vld [vmem:[#allocation2 + $0x10] sm:$0xff]
    %v8027 = vld [vmem:[#allocation2 + $0x18] sm:$0xff]
    %v8028 = vld [vmem:[#allocation2 + $0x20] sm:$0xff]
    %v8029 = vld [vmem:[#allocation2 + $0x28] sm:$0xff]
    %v8030 = vld [vmem:[#allocation2 + $0x30] sm:$0xff]
    %v8031 = vld [vmem:[#allocation2 + $0x38] sm:$0xff]
    %v8032 = vld [vmem:[#allocation3] sm:$0xff]
    %v8033 = vld [vmem:[#allocation3 + $0x8] sm:$0xff]
    %v8034 = vld [vmem:[#allocation3 + $0x10] sm:$0xff]
    %v8035 = vld [vmem:[#allocation3 + $0x18] sm:$0xff]
    %v8036 = vld [vmem:[#allocation3 + $0x20] sm:$0xff]
    %v8037 = vld [vmem:[#allocation3 + $0x28] sm:$0xff]
    %v8038 = vld [vmem:[#allocation3 + $0x30] sm:$0xff]
    %v8039 = vld [vmem:[#allocation3 + $0x38] sm:$0xff]
    %v8040 = vld [vmem:[#allocation18] sm:$0xff]
    %v8041 = vld [vmem:[#allocation18 + $0x8] sm:$0xff]
    %v8042 = vld [vmem:[#allocation18 + $0x10] sm:$0xf]
    %v8043 = vld [vmem:[#allocation18 + $0x14] sm:$0xff]
    %v8044 = vld [vmem:[#allocation18 + $0x1c] sm:$0xff]
    %v8045 = vld [vmem:[#allocation18 + $0x24] sm:$0xf]
    %v8046 = vld [vmem:[#allocation18 + $0x28] sm:$0xff]
    %v8047 = vld [vmem:[#allocation18 + $0x30] sm:$0xff]
    %v8048 = vld [vmem:[#allocation18 + $0x38] sm:$0xf]
    %v8049 = vld [vmem:[#allocation18 + $0x3c] sm:$0xff]
    %v8050 = vld [vmem:[#allocation18 + $0x44] sm:$0xff]
    %v8051 = vld [vmem:[#allocation18 + $0x4c] sm:$0xf]
    %v8052 = vld [vmem:[#allocation18 + $0x50] sm:$0xff]
    %v8053 = vld [vmem:[#allocation18 + $0x58] sm:$0xff]
    %v8054 = vld [vmem:[#allocation18 + $0x60] sm:$0xf]
    %v8055 = vld [vmem:[#allocation18 + $0x64] sm:$0xff]
    %v8056 = vld [vmem:[#allocation18 + $0x6c] sm:$0xff]
    %v8057 = vld [vmem:[#allocation18 + $0x74] sm:$0xf]
    %v8058 = vld [vmem:[#allocation18 + $0x78] sm:$0xff]
    %v8059 = vld [vmem:[#allocation18 + $0x80] sm:$0xff]
    %v8060 = vld [vmem:[#allocation18 + $0x88] sm:$0xf]
    %v8061 = vld [vmem:[#allocation18 + $0x8c] sm:$0xff]
    %v8062 = vld [vmem:[#allocation18 + $0x94] sm:$0xff]
    %v8063 = vld [vmem:[#allocation18 + $0x9c] sm:$0xf]
    %v8064 = vld [vmem:[#allocation18 + $0xa0] sm:$0xff]
    %v8065 = vld [vmem:[#allocation18 + $0xa8] sm:$0xff]
    %v8066 = vld [vmem:[#allocation18 + $0xb0] sm:$0xf]
    %v8067 = vld [vmem:[#allocation18 + $0xb4] sm:$0xff]
    %v8068 = vld [vmem:[#allocation18 + $0xbc] sm:$0xff]
    %v8069 = vld [vmem:[#allocation18 + $0xc4] sm:$0xf]
    %v8070 = vld [vmem:[#allocation18 + $0xc8] sm:$0xff]
    %v8071 = vld [vmem:[#allocation18 + $0xd0] sm:$0xff]
    %v8072 = vld [vmem:[#allocation18 + $0xd8] sm:$0xf]
    %v8073 = vld [vmem:[#allocation18 + $0xdc] sm:$0xff]
    %v8074 = vld [vmem:[#allocation18 + $0xe4] sm:$0xff]
    %v8075 = vld [vmem:[#allocation18 + $0xec] sm:$0xf]
    %v8076 = vld [vmem:[#allocation18 + $0xf0] sm:$0xff]
    %v8077 = vld [vmem:[#allocation18 + $0xf8] sm:$0xff]
    %v8078 = vld [vmem:[#allocation18 + $0x100] sm:$0xf]
    %v8079 = vld [vmem:[#allocation18 + $0x104] sm:$0xff]
    %v8080 = vld [vmem:[#allocation18 + $0x10c] sm:$0xff]
    %v8081 = vld [vmem:[#allocation18 + $0x114] sm:$0xf]
    %v8082 = vld [vmem:[#allocation18 + $0x118] sm:$0xff]
    %v8083 = vld [vmem:[#allocation18 + $0x120] sm:$0xff]
    %v8084 = vld [vmem:[#allocation18 + $0x128] sm:$0xf]
    %v8085 = vld [vmem:[#allocation18 + $0x12c] sm:$0xff]
    %v8086 = vld [vmem:[#allocation18 + $0x134] sm:$0xff]
    %v8087 = vld [vmem:[#allocation18 + $0x13c] sm:$0xf]
    %v8088 = vld [vmem:[#allocation19] sm:$0x1f]
    %v8090 = vlaneseq
    %v8091 = vshrl.u32 %v8090, 7
    %v8092 = vsub.s32 0, %v8091
    %v8093 = vrot.slane %v8088, %v8092
    %v8094 = vlaneseq
    %v8095 = vshrl.u32 %v8094, 7
    %v8096 = vsub.s32 1, %v8095
    %v8097 = vrot.slane %v8088, %v8096
    %v8098 = vlaneseq
    %v8099 = vshrl.u32 %v8098, 7
    %v8100 = vsub.s32 2, %v8099
    %v8101 = vrot.slane %v8088, %v8100
    %v8102 = vlaneseq
    %v8103 = vshrl.u32 %v8102, 7
    %v8104 = vsub.s32 3, %v8103
    %v8105 = vrot.slane %v8088, %v8104
    %v8106 = vlaneseq
    %v8107 = vshrl.u32 %v8106, 7
    %v8108 = vsub.s32 4, %v8107
    %v8109 = vrot.slane %v8088, %v8108
    %v8163 = vunpack.c.l.b16 %v8040
    %v8164 = vunpack.c.h.b16 %v8040
    %v8165 = vunpack.c.l.b16 %v8041
    %v8166 = vunpack.c.h.b16 %v8041
    %v8167 = vunpack.c.l.b16 %v8042
    %v8168 = vunpack.c.l.b16 %v8043
    %v8169 = vunpack.c.h.b16 %v8043
    %v8170 = vunpack.c.l.b16 %v8044
    %v8171 = vunpack.c.h.b16 %v8044
    %v8172 = vunpack.c.l.b16 %v8045
    %v8173 = vunpack.c.l.b16 %v8046
    %v8174 = vunpack.c.h.b16 %v8046
    %v8175 = vunpack.c.l.b16 %v8047
    %v8176 = vunpack.c.h.b16 %v8047
    %v8177 = vunpack.c.l.b16 %v8048
    %v8178 = vunpack.c.l.b16 %v8049
    %v8179 = vunpack.c.h.b16 %v8049
    %v8180 = vunpack.c.l.b16 %v8050
    %v8181 = vunpack.c.h.b16 %v8050
    %v8182 = vunpack.c.l.b16 %v8051
    %v8183 = vunpack.c.l.b16 %v8052
    %v8184 = vunpack.c.h.b16 %v8052
    %v8185 = vunpack.c.l.b16 %v8053
    %v8186 = vunpack.c.h.b16 %v8053
    %v8187 = vunpack.c.l.b16 %v8054
    %v8188 = vunpack.c.l.b16 %v8055
    %v8189 = vunpack.c.h.b16 %v8055
    %v8190 = vunpack.c.l.b16 %v8056
    %v8191 = vunpack.c.h.b16 %v8056
    %v8192 = vunpack.c.l.b16 %v8057
    %v8193 = vunpack.c.l.b16 %v8058
    %v8194 = vunpack.c.h.b16 %v8058
    %v8195 = vunpack.c.l.b16 %v8059
    %v8196 = vunpack.c.h.b16 %v8059
    %v8197 = vunpack.c.l.b16 %v8060
    %v8198 = vunpack.c.l.b16 %v8061
    %v8199 = vunpack.c.h.b16 %v8061
    %v8200 = vunpack.c.l.b16 %v8062
    %v8201 = vunpack.c.h.b16 %v8062
    %v8202 = vunpack.c.l.b16 %v8063
    %v8203 = vunpack.c.l.b16 %v8064
    %v8204 = vunpack.c.h.b16 %v8064
    %v8205 = vunpack.c.l.b16 %v8065
    %v8206 = vunpack.c.h.b16 %v8065
    %v8207 = vunpack.c.l.b16 %v8066
    %v8208 = vunpack.c.l.b16 %v8067
    %v8209 = vunpack.c.h.b16 %v8067
    %v8210 = vunpack.c.l.b16 %v8068
    %v8211 = vunpack.c.h.b16 %v8068
    %v8212 = vunpack.c.l.b16 %v8069
    %v8213 = vunpack.c.l.b16 %v8070
    %v8214 = vunpack.c.h.b16 %v8070
    %v8215 = vunpack.c.l.b16 %v8071
    %v8216 = vunpack.c.h.b16 %v8071
    %v8217 = vunpack.c.l.b16 %v8072
    %v8218 = vunpack.c.l.b16 %v8073
    %v8219 = vunpack.c.h.b16 %v8073
    %v8220 = vunpack.c.l.b16 %v8074
    %v8221 = vunpack.c.h.b16 %v8074
    %v8222 = vunpack.c.l.b16 %v8075
    %v8223 = vunpack.c.l.b16 %v8076
    %v8224 = vunpack.c.h.b16 %v8076
    %v8225 = vunpack.c.l.b16 %v8077
    %v8226 = vunpack.c.h.b16 %v8077
    %v8227 = vunpack.c.l.b16 %v8078
    %v8228 = vunpack.c.l.b16 %v8079
    %v8229 = vunpack.c.h.b16 %v8079
    %v8230 = vunpack.c.l.b16 %v8080
    %v8231 = vunpack.c.h.b16 %v8080
    %v8232 = vunpack.c.l.b16 %v8081
    %v8233 = vunpack.c.l.b16 %v8082
    %v8234 = vunpack.c.h.b16 %v8082
    %v8235 = vunpack.c.l.b16 %v8083
    %v8236 = vunpack.c.h.b16 %v8083
    %v8237 = vunpack.c.l.b16 %v8084
    %v8238 = vunpack.c.l.b16 %v8085
    %v8239 = vunpack.c.h.b16 %v8085
    %v8240 = vunpack.c.l.b16 %v8086
    %v8241 = vunpack.c.h.b16 %v8086
    %v8242 = vunpack.c.l.b16 %v8087
    %v8243 = vpack.c.b16 %v8168, %v8163
    %v8244 = vpack.c.b16 %v8169, %v8164
    %v8245 = vpack.c.b16 %v8170, %v8165
    %v8246 = vpack.c.b16 %v8171, %v8166
    %v8247 = vpack.c.b16 %v8172, %v8167
    %v8248 = vpack.c.b16 %v8178, %v8173
    %v8249 = vpack.c.b16 %v8179, %v8174
    %v8250 = vpack.c.b16 %v8180, %v8175
    %v8251 = vpack.c.b16 %v8181, %v8176
    %v8252 = vpack.c.b16 %v8182, %v8177
    %v8253 = vpack.c.b16 %v8188, %v8183
    %v8254 = vpack.c.b16 %v8189, %v8184
    %v8255 = vpack.c.b16 %v8190, %v8185
    %v8256 = vpack.c.b16 %v8191, %v8186
    %v8257 = vpack.c.b16 %v8192, %v8187
    %v8258 = vpack.c.b16 %v8198, %v8193
    %v8259 = vpack.c.b16 %v8199, %v8194
    %v8260 = vpack.c.b16 %v8200, %v8195
    %v8261 = vpack.c.b16 %v8201, %v8196
    %v8262 = vpack.c.b16 %v8202, %v8197
    %v8263 = vpack.c.b16 %v8208, %v8203
    %v8264 = vpack.c.b16 %v8209, %v8204
    %v8265 = vpack.c.b16 %v8210, %v8205
    %v8266 = vpack.c.b16 %v8211, %v8206
    %v8267 = vpack.c.b16 %v8212, %v8207
    %v8268 = vpack.c.b16 %v8218, %v8213
    %v8269 = vpack.c.b16 %v8219, %v8214
    %v8270 = vpack.c.b16 %v8220, %v8215
    %v8271 = vpack.c.b16 %v8221, %v8216
    %v8272 = vpack.c.b16 %v8222, %v8217
    %v8273 = vpack.c.b16 %v8228, %v8223
    %v8274 = vpack.c.b16 %v8229, %v8224
    %v8275 = vpack.c.b16 %v8230, %v8225
    %v8276 = vpack.c.b16 %v8231, %v8226
    %v8277 = vpack.c.b16 %v8232, %v8227
    %v8278 = vpack.c.b16 %v8238, %v8233
    %v8279 = vpack.c.b16 %v8239, %v8234
    %v8280 = vpack.c.b16 %v8240, %v8235
    %v8281 = vpack.c.b16 %v8241, %v8236
    %v8282 = vpack.c.b16 %v8242, %v8237
    %8323 = vmatprep.subr.bf16.mxu0 %v8244
    %8324 = vmatpush1.bf16.msra.mxu0 %v8243
    %8325 = vmatprep.subr.bf16.mxu0 %v8249
    %8326 = vmatpush1.bf16.msra.mxu0 %v8248
    %8327 = vmatprep.subr.bf16.mxu0 %v8254
    %8328 = vmatpush1.bf16.msra.mxu0 %v8253
    %8329 = vmatprep.subr.bf16.mxu0 %v8259
    %8330 = vmatpush1.bf16.msra.mxu0 %v8258
    %8331 = vmatprep.subr.bf16.mxu0 %v8264
    %8332 = vmatpush1.bf16.msra.mxu0 %v8263
    %8333 = vmatprep.subr.bf16.mxu0 %v8269
    %8334 = vmatpush1.bf16.msra.mxu0 %v8268
    %8335 = vmatprep.subr.bf16.mxu0 %v8274
    %8336 = vmatpush1.bf16.msra.mxu0 %v8273
    %8337 = vmatprep.subr.bf16.mxu0 %v8279
    %8338 = vmatpush1.bf16.msra.mxu0 %v8278
    %8339 = vmatprep.subr.bf16.mxu0 0
    %8340 = vmatpush1.bf16.msra.mxu0 0
    %8341 = vmatprep.subr.bf16.mxu0 0
    %8342 = vmatpush1.bf16.msra.mxu0 0
    %8343 = vmatprep.subr.bf16.mxu0 0
    %8344 = vmatpush1.bf16.msra.mxu0 0
    %8345 = vmatprep.subr.bf16.mxu0 0
    %8346 = vmatpush1.bf16.msra.mxu0 0
    %8347 = vmatprep.subr.bf16.mxu0 0
    %8348 = vmatpush1.bf16.msra.mxu0 0
    %8349 = vmatprep.subr.bf16.mxu0 0
    %8350 = vmatpush1.bf16.msra.mxu0 0
    %8351 = vmatprep.subr.bf16.mxu0 0
    %8352 = vmatpush1.bf16.msra.mxu0 0
    %8353 = vmatprep.subr.bf16.mxu0 0
    %8354 = vmatpush1.bf16.msra.mxu0 0
    %8355 = vmatprep.mubr.bf16.mxu0 0
    %8356 = vmatmul.mubr.bf16.gmra.mrb[0].mxu0 %v7604
    %v8357 = vpop.f32.mrb[0].mxu0
    %v8358 = vadd.f32 %v8093, %v8357
    %v8359 = vpop.f32.mrb[0].mxu0
    %v8360 = vadd.f32 %v8097, %v8359
    %v8361 = vpop.f32.mrb[0].mxu0
    %v8362 = vpop.f32.mrb[0].mxu0
    %8363 = vdwg.mxu0
    %8364 = vmatprep.subr.bf16.mxu0 %v8246
    %8365 = vmatpush1.bf16.msra.mxu0 %v8245
    %8366 = vmatprep.subr.bf16.mxu0 %v8251
    %8367 = vmatpush1.bf16.msra.mxu0 %v8250
    %8368 = vmatprep.subr.bf16.mxu0 %v8256
    %8369 = vmatpush1.bf16.msra.mxu0 %v8255
    %8370 = vmatprep.subr.bf16.mxu0 %v8261
    %8371 = vmatpush1.bf16.msra.mxu0 %v8260
    %8372 = vmatprep.subr.bf16.mxu0 %v8266
    %8373 = vmatpush1.bf16.msra.mxu0 %v8265
    %8374 = vmatprep.subr.bf16.mxu0 %v8271
    %8375 = vmatpush1.bf16.msra.mxu0 %v8270
    %8376 = vmatprep.subr.bf16.mxu0 %v8276
    %8377 = vmatpush1.bf16.msra.mxu0 %v8275
    %8378 = vmatprep.subr.bf16.mxu0 %v8281
    %8379 = vmatpush1.bf16.msra.mxu0 %v8280
    %8380 = vmatprep.subr.bf16.mxu0 0
    %8381 = vmatpush1.bf16.msra.mxu0 0
    %8382 = vmatprep.subr.bf16.mxu0 0
    %8383 = vmatpush1.bf16.msra.mxu0 0
    %8384 = vmatprep.subr.bf16.mxu0 0
    %8385 = vmatpush1.bf16.msra.mxu0 0
    %8386 = vmatprep.subr.bf16.mxu0 0
    %8387 = vmatpush1.bf16.msra.mxu0 0
    %8388 = vmatprep.subr.bf16.mxu0 0
    %8389 = vmatpush1.bf16.msra.mxu0 0
    %8390 = vmatprep.subr.bf16.mxu0 0
    %8391 = vmatpush1.bf16.msra.mxu0 0
    %8392 = vmatprep.subr.bf16.mxu0 0
    %8393 = vmatpush1.bf16.msra.mxu0 0
    %8394 = vmatprep.subr.bf16.mxu0 0
    %8395 = vmatpush1.bf16.msra.mxu0 0
    %8396 = vmatprep.mubr.bf16.mxu0 0
    %8397 = vmatmul.mubr.bf16.gmra.mrb[0].mxu0 %v7604
    %v8398 = vpop.f32.mrb[0].mxu0
    %v8399 = vadd.f32 %v8101, %v8398
    %v8400 = vpop.f32.mrb[0].mxu0
    %v8401 = vadd.f32 %v8105, %v8400
    %v8402 = vpop.f32.mrb[0].mxu0
    %v8403 = vpop.f32.mrb[0].mxu0
    %8404 = vdwg.mxu0
    %8405 = vmatprep.subr.bf16.mxu0 0
    %8406 = vmatpush1.bf16.msra.mxu0 %v8247
    %8407 = vmatprep.subr.bf16.mxu0 0
    %8408 = vmatpush1.bf16.msra.mxu0 %v8252
    %8409 = vmatprep.subr.bf16.mxu0 0
    %8410 = vmatpush1.bf16.msra.mxu0 %v8257
    %8411 = vmatprep.subr.bf16.mxu0 0
    %8412 = vmatpush1.bf16.msra.mxu0 %v8262
    %8413 = vmatprep.subr.bf16.mxu0 0
    %8414 = vmatpush1.bf16.msra.mxu0 %v8267
    %8415 = vmatprep.subr.bf16.mxu0 0
    %8416 = vmatpush1.bf16.msra.mxu0 %v8272
    %8417 = vmatprep.subr.bf16.mxu0 0
    %8418 = vmatpush1.bf16.msra.mxu0 %v8277
    %8419 = vmatprep.subr.bf16.mxu0 0
    %8420 = vmatpush1.bf16.msra.mxu0 %v8282
    %8421 = vmatprep.subr.bf16.mxu0 0
    %8422 = vmatpush1.bf16.msra.mxu0 0
    %8423 = vmatprep.subr.bf16.mxu0 0
    %8424 = vmatpush1.bf16.msra.mxu0 0
    %8425 = vmatprep.subr.bf16.mxu0 0
    %8426 = vmatpush1.bf16.msra.mxu0 0
    %8427 = vmatprep.subr.bf16.mxu0 0
    %8428 = vmatpush1.bf16.msra.mxu0 0
    %8429 = vmatprep.subr.bf16.mxu0 0
    %8430 = vmatpush1.bf16.msra.mxu0 0
    %8431 = vmatprep.subr.bf16.mxu0 0
    %8432 = vmatpush1.bf16.msra.mxu0 0
    %8433 = vmatprep.subr.bf16.mxu0 0
    %8434 = vmatpush1.bf16.msra.mxu0 0
    %8435 = vmatprep.subr.bf16.mxu0 0
    %8436 = vmatpush1.bf16.msra.mxu0 0
    %8437 = vmatprep.mubr.bf16.mxu0 0
    %8438 = vmatmul.mubr.bf16.gmra.mrb[0].mxu0 %v7604
    %v8439 = vpop.f32.mrb[0].mxu0
    %v8440 = vadd.f32 %v8109, %v8439
    %v8441 = vpop.f32.mrb[0].mxu0
    %v8442 = vpop.f32.mrb[0].mxu0
    %v8443 = vpop.f32.mrb[0].mxu0
    %8444 = vdwg.mxu0
    %v8445 = vadd.f32 %v8358, %v2962
    %v8446 = vtanh.pop %v8445
    %v8447 = vadd.f32 %v8032, %v8360
    %v8448 = vadd.f32 %v8033, %v8360
    %v8449 = vadd.f32 %v8034, %v8360
    %v8450 = vadd.f32 %v8035, %v8360
    %v8451 = vadd.f32 %v8036, %v8360
    %v8452 = vadd.f32 %v8037, %v8360
    %v8453 = vadd.f32 %v8038, %v8360
    %v8454 = vadd.f32 %v8039, %v8360
    %v8455 = vtanh.pop %v8447
    %v8456 = vtanh.pop %v8448
    %v8457 = vtanh.pop %v8449
    %v8458 = vtanh.pop %v8450
    %v8459 = vtanh.pop %v8451
    %v8460 = vtanh.pop %v8452
    %v8461 = vtanh.pop %v8453
    %v8462 = vtanh.pop %v8454
    %v8463 = vld [vmem:[#allocation16] sm:$0x1]
    %v8465 = vlaneseq
    %v8466 = vshrl.u32 %v8465, 7
    %v8467 = vsub.s32 0, %v8466
    %v8468 = vrot.slane %v8463, %v8467
    %v8470 = vmul.f32 %v8455, %v8468
    %v8471 = vmul.f32 %v8456, %v8468
    %v8472 = vmul.f32 %v8457, %v8468
    %v8473 = vmul.f32 %v8458, %v8468
    %v8474 = vmul.f32 %v8459, %v8468
    %v8475 = vmul.f32 %v8460, %v8468
    %v8476 = vmul.f32 %v8461, %v8468
    %v8477 = vmul.f32 %v8462, %v8468
    %8478 = vadd.xlane.f32.xlu0 %v8470
    %v8479 = vpop.xlane.xlu0 %8478
    %8480 = vadd.xlane.f32.xlu0 %v8471
    %v8481 = vpop.xlane.xlu0 %8480
    %8482 = vadd.xlane.f32.xlu0 %v8472
    %v8483 = vpop.xlane.xlu0 %8482
    %8484 = vadd.xlane.f32.xlu0 %v8473
    %v8485 = vpop.xlane.xlu0 %8484
    %8486 = vadd.xlane.f32.xlu0 %v8474
    %v8487 = vpop.xlane.xlu0 %8486
    %8488 = vadd.xlane.f32.xlu0 %v8475
    %v8489 = vpop.xlane.xlu0 %8488
    %8490 = vadd.xlane.f32.xlu0 %v8476
    %v8491 = vpop.xlane.xlu0 %8490
    %8492 = vadd.xlane.f32.xlu0 %v8477
    %v8493 = vpop.xlane.xlu0 %8492
    %v8494 = vmax.f32 %v8479, %v8487
    %v8495 = vmax.f32 %v8481, %v8489
    %v8496 = vmax.f32 %v8483, %v8491
    %v8497 = vmax.f32 %v8485, %v8493
    %v8498 = vmax.f32 %v8494, %v8495
    %v8499 = vmax.f32 %v8496, %v8497
    %v8500 = vmax.f32 %v8498, %v8499
    %v8501 = vsub.f32 %v8479, %v8500
    %v8502 = vsub.f32 %v8481, %v8500
    %v8503 = vsub.f32 %v8483, %v8500
    %v8504 = vsub.f32 %v8485, %v8500
    %v8505 = vsub.f32 %v8487, %v8500
    %v8506 = vsub.f32 %v8489, %v8500
    %v8507 = vsub.f32 %v8491, %v8500
    %v8508 = vsub.f32 %v8493, %v8500
    %v8509 = vmul.f32 %v8501, 1.442695
    %v8510 = vpow.pop %v8509
    %v8511 = vmul.f32 %v8502, 1.442695
    %v8512 = vpow.pop %v8511
    %v8513 = vmul.f32 %v8503, 1.442695
    %v8514 = vpow.pop %v8513
    %v8515 = vmul.f32 %v8504, 1.442695
    %v8516 = vpow.pop %v8515
    %v8517 = vmul.f32 %v8505, 1.442695
    %v8518 = vpow.pop %v8517
    %v8519 = vmul.f32 %v8506, 1.442695
    %v8520 = vpow.pop %v8519
    %v8521 = vmul.f32 %v8507, 1.442695
    %v8522 = vpow.pop %v8521
    %v8523 = vmul.f32 %v8508, 1.442695
    %v8524 = vpow.pop %v8523
    %v8525 = vadd.f32 %v8510, %v8512
    %v8526 = vadd.f32 %v8525, %v8514
    %v8527 = vadd.f32 %v8526, %v8516
    %v8528 = vadd.f32 %v8527, %v8518
    %v8529 = vadd.f32 %v8528, %v8520
    %v8530 = vadd.f32 %v8529, %v8522
    %v8531 = vadd.f32 %v8530, %v8524
    %v8532 = vrcp.pop %v8531
    %v8533 = vmul.f32 %v8510, %v8532
    %v8534 = vmul.f32 %v8512, %v8532
    %v8535 = vmul.f32 %v8514, %v8532
    %v8536 = vmul.f32 %v8516, %v8532
    %v8537 = vmul.f32 %v8518, %v8532
    %v8538 = vmul.f32 %v8520, %v8532
    %v8539 = vmul.f32 %v8522, %v8532
    %v8540 = vmul.f32 %v8524, %v8532
    %v8541 = vmul.f32 %v8533, %v8024
    %v8542 = vmul.f32 %v8534, %v8025
    %v8543 = vmul.f32 %v8535, %v8026
    %v8544 = vmul.f32 %v8536, %v8027
    %v8545 = vmul.f32 %v8537, %v8028
    %v8546 = vmul.f32 %v8538, %v8029
    %v8547 = vmul.f32 %v8539, %v8030
    %v8548 = vmul.f32 %v8540, %v8031
    %v8549 = vadd.f32 %v8541, %v8542
    %v8550 = vadd.f32 %v8549, %v8543
    %v8551 = vadd.f32 %v8550, %v8544
    %v8552 = vadd.f32 %v8551, %v8545
    %v8553 = vadd.f32 %v8552, %v8546
    %v8554 = vadd.f32 %v8553, %v8547
    %v8555 = vadd.f32 %v8554, %v8548
    %v8556 = vpack.c.bf16 %v8023, %v8023
    %v8557 = vpack.c.bf16 %v8555, %v8555
    %v8558 = vpack.c.bf16 %v8446, %v8446
    %v8559 = vld [vmem:[%s16] sm:$0xff]
    %v8560 = vld [vmem:[%s16 + $0x8] sm:$0xf]
    %v8561 = vld [vmem:[%s16 + $0xc] sm:$0xff]
    %v8562 = vld [vmem:[%s16 + $0x14] sm:$0xf]
    %v8563 = vld [vmem:[%s16 + $0x18] sm:$0xff]
    %v8564 = vld [vmem:[%s16 + $0x20] sm:$0xf]
    %v8565 = vld [vmem:[%s16 + $0x24] sm:$0xff]
    %v8566 = vld [vmem:[%s16 + $0x2c] sm:$0xf]
    %v8567 = vld [vmem:[%s16 + $0x30] sm:$0xff]
    %v8568 = vld [vmem:[%s16 + $0x38] sm:$0xf]
    %v8569 = vld [vmem:[%s16 + $0x3c] sm:$0xff]
    %v8570 = vld [vmem:[%s16 + $0x44] sm:$0xf]
    %v8571 = vld [vmem:[%s16 + $0x48] sm:$0xff]
    %v8572 = vld [vmem:[%s16 + $0x50] sm:$0xf]
    %v8573 = vld [vmem:[%s16 + $0x54] sm:$0xff]
    %v8574 = vld [vmem:[%s16 + $0x5c] sm:$0xf]
    %v8575 = vld [vmem:[%s16 + $0x60] sm:$0xff]
    %v8576 = vld [vmem:[%s16 + $0x68] sm:$0xf]
    %v8577 = vld [vmem:[%s16 + $0x6c] sm:$0xff]
    %v8578 = vld [vmem:[%s16 + $0x74] sm:$0xf]
    %v8579 = vld [vmem:[%s16 + $0x78] sm:$0xff]
    %v8580 = vld [vmem:[%s16 + $0x80] sm:$0xf]
    %v8581 = vld [vmem:[%s16 + $0x84] sm:$0xff]
    %v8582 = vld [vmem:[%s16 + $0x8c] sm:$0xf]
    %v8583 = vld [vmem:[%s16 + $0x90] sm:$0xff]
    %v8584 = vld [vmem:[%s16 + $0x98] sm:$0xf]
    %v8585 = vld [vmem:[%s16 + $0x9c] sm:$0xff]
    %v8586 = vld [vmem:[%s16 + $0xa4] sm:$0xf]
    %v8587 = vld [vmem:[%s16 + $0xa8] sm:$0xff]
    %v8588 = vld [vmem:[%s16 + $0xb0] sm:$0xf]
    %v8589 = vld [vmem:[%s16 + $0xb4] sm:$0xff]
    %v8590 = vld [vmem:[%s16 + $0xbc] sm:$0xf]
    %v8591 = vld [vmem:[%s16 + $0xc0] sm:$0xff]
    %v8592 = vld [vmem:[%s16 + $0xc8] sm:$0xf]
    %v8593 = vld [vmem:[%s16 + $0xcc] sm:$0xff]
    %v8594 = vld [vmem:[%s16 + $0xd4] sm:$0xf]
    %v8595 = vld [vmem:[%s16 + $0xd8] sm:$0xff]
    %v8596 = vld [vmem:[%s16 + $0xe0] sm:$0xf]
    %v8597 = vld [vmem:[%s16 + $0xe4] sm:$0xff]
    %v8598 = vld [vmem:[%s16 + $0xec] sm:$0xf]
    %v8599 = vld [vmem:[%s16 + $0xf0] sm:$0xff]
    %v8600 = vld [vmem:[%s16 + $0xf8] sm:$0xf]
    %v8601 = vld [vmem:[%s16 + $0xfc] sm:$0xff]
    %v8602 = vld [vmem:[%s16 + $0x104] sm:$0xf]
    %v8603 = vld [vmem:[%s16 + $0x108] sm:$0xff]
    %v8604 = vld [vmem:[%s16 + $0x110] sm:$0xf]
    %v8605 = vld [vmem:[%s16 + $0x114] sm:$0xff]
    %v8606 = vld [vmem:[%s16 + $0x11c] sm:$0xf]
    %v8607 = vld [vmem:[%s16 + $0x120] sm:$0xff]
    %v8608 = vld [vmem:[%s16 + $0x128] sm:$0xf]
    %v8609 = vld [vmem:[%s16 + $0x12c] sm:$0xff]
    %v8610 = vld [vmem:[%s16 + $0x134] sm:$0xf]
    %v8611 = vld [vmem:[%s16 + $0x138] sm:$0xff]
    %v8612 = vld [vmem:[%s16 + $0x140] sm:$0xf]
    %v8613 = vld [vmem:[%s16 + $0x144] sm:$0xff]
    %v8614 = vld [vmem:[%s16 + $0x14c] sm:$0xf]
    %v8615 = vld [vmem:[%s16 + $0x150] sm:$0xff]
    %v8616 = vld [vmem:[%s16 + $0x158] sm:$0xf]
    %v8617 = vld [vmem:[%s16 + $0x15c] sm:$0xff]
    %v8618 = vld [vmem:[%s16 + $0x164] sm:$0xf]
    %v8619 = vld [vmem:[%s16 + $0x168] sm:$0xff]
    %v8620 = vld [vmem:[%s16 + $0x170] sm:$0xf]
    %v8621 = vld [vmem:[%s16 + $0x174] sm:$0xff]
    %v8622 = vld [vmem:[%s16 + $0x17c] sm:$0xf]
    %v8623 = vld [vmem:[%s16 + $0x180] sm:$0xff]
    %v8624 = vld [vmem:[%s16 + $0x188] sm:$0xf]
    %v8625 = vld [vmem:[%s16 + $0x18c] sm:$0xff]
    %v8626 = vld [vmem:[%s16 + $0x194] sm:$0xf]
    %v8627 = vld [vmem:[%s16 + $0x198] sm:$0xff]
    %v8628 = vld [vmem:[%s16 + $0x1a0] sm:$0xf]
    %v8629 = vld [vmem:[%s16 + $0x1a4] sm:$0xff]
    %v8630 = vld [vmem:[%s16 + $0x1ac] sm:$0xf]
    %v8631 = vld [vmem:[%s16 + $0x1b0] sm:$0xff]
    %v8632 = vld [vmem:[%s16 + $0x1b8] sm:$0xf]
    %v8633 = vld [vmem:[%s16 + $0x1bc] sm:$0xff]
    %v8634 = vld [vmem:[%s16 + $0x1c4] sm:$0xf]
    %v8635 = vld [vmem:[%s16 + $0x1c8] sm:$0xff]
    %v8636 = vld [vmem:[%s16 + $0x1d0] sm:$0xf]
    %v8637 = vld [vmem:[%s16 + $0x1d4] sm:$0xff]
    %v8638 = vld [vmem:[%s16 + $0x1dc] sm:$0xf]
    %v8639 = vld [vmem:[%s16 + $0x1e0] sm:$0xff]
    %v8640 = vld [vmem:[%s16 + $0x1e8] sm:$0xf]
    %v8641 = vld [vmem:[%s16 + $0x1ec] sm:$0xff]
    %v8642 = vld [vmem:[%s16 + $0x1f4] sm:$0xf]
    %v8643 = vld [vmem:[%s16 + $0x1f8] sm:$0xff]
    %v8644 = vld [vmem:[%s16 + $0x200] sm:$0xf]
    %v8645 = vld [vmem:[%s16 + $0x204] sm:$0xff]
    %v8646 = vld [vmem:[%s16 + $0x20c] sm:$0xf]
    %v8647 = vld [vmem:[%s16 + $0x210] sm:$0xff]
    %v8648 = vld [vmem:[%s16 + $0x218] sm:$0xf]
    %v8649 = vld [vmem:[%s16 + $0x21c] sm:$0xff]
    %v8650 = vld [vmem:[%s16 + $0x224] sm:$0xf]
    %v8651 = vld [vmem:[%s16 + $0x228] sm:$0xff]
    %v8652 = vld [vmem:[%s16 + $0x230] sm:$0xf]
    %v8653 = vld [vmem:[%s16 + $0x234] sm:$0xff]
    %v8654 = vld [vmem:[%s16 + $0x23c] sm:$0xf]
    %v8655 = vld [vmem:[#allocation21] sm:$0x7]
    %v8657 = vlaneseq
    %v8658 = vshrl.u32 %v8657, 7
    %v8659 = vsub.s32 0, %v8658
    %v8660 = vrot.slane %v8655, %v8659
    %v8661 = vlaneseq
    %v8662 = vshrl.u32 %v8661, 7
    %v8663 = vsub.s32 1, %v8662
    %v8664 = vrot.slane %v8655, %v8663
    %v8665 = vlaneseq
    %v8666 = vshrl.u32 %v8665, 7
    %v8667 = vsub.s32 2, %v8666
    %v8668 = vrot.slane %v8655, %v8667
    %v8768 = vunpack.c.l.b16 %v8559
    %v8769 = vunpack.c.h.b16 %v8559
    %v8770 = vunpack.c.l.b16 %v8560
    %v8771 = vunpack.c.l.b16 %v8561
    %v8772 = vunpack.c.h.b16 %v8561
    %v8773 = vunpack.c.l.b16 %v8562
    %v8774 = vunpack.c.l.b16 %v8563
    %v8775 = vunpack.c.h.b16 %v8563
    %v8776 = vunpack.c.l.b16 %v8564
    %v8777 = vunpack.c.l.b16 %v8565
    %v8778 = vunpack.c.h.b16 %v8565
    %v8779 = vunpack.c.l.b16 %v8566
    %v8780 = vunpack.c.l.b16 %v8567
    %v8781 = vunpack.c.h.b16 %v8567
    %v8782 = vunpack.c.l.b16 %v8568
    %v8783 = vunpack.c.l.b16 %v8569
    %v8784 = vunpack.c.h.b16 %v8569
    %v8785 = vunpack.c.l.b16 %v8570
    %v8786 = vunpack.c.l.b16 %v8571
    %v8787 = vunpack.c.h.b16 %v8571
    %v8788 = vunpack.c.l.b16 %v8572
    %v8789 = vunpack.c.l.b16 %v8573
    %v8790 = vunpack.c.h.b16 %v8573
    %v8791 = vunpack.c.l.b16 %v8574
    %v8792 = vunpack.c.l.b16 %v8575
    %v8793 = vunpack.c.h.b16 %v8575
    %v8794 = vunpack.c.l.b16 %v8576
    %v8795 = vunpack.c.l.b16 %v8577
    %v8796 = vunpack.c.h.b16 %v8577
    %v8797 = vunpack.c.l.b16 %v8578
    %v8798 = vunpack.c.l.b16 %v8579
    %v8799 = vunpack.c.h.b16 %v8579
    %v8800 = vunpack.c.l.b16 %v8580
    %v8801 = vunpack.c.l.b16 %v8581
    %v8802 = vunpack.c.h.b16 %v8581
    %v8803 = vunpack.c.l.b16 %v8582
    %v8804 = vunpack.c.l.b16 %v8583
    %v8805 = vunpack.c.h.b16 %v8583
    %v8806 = vunpack.c.l.b16 %v8584
    %v8807 = vunpack.c.l.b16 %v8585
    %v8808 = vunpack.c.h.b16 %v8585
    %v8809 = vunpack.c.l.b16 %v8586
    %v8810 = vunpack.c.l.b16 %v8587
    %v8811 = vunpack.c.h.b16 %v8587
    %v8812 = vunpack.c.l.b16 %v8588
    %v8813 = vunpack.c.l.b16 %v8589
    %v8814 = vunpack.c.h.b16 %v8589
    %v8815 = vunpack.c.l.b16 %v8590
    %v8816 = vunpack.c.l.b16 %v8591
    %v8817 = vunpack.c.h.b16 %v8591
    %v8818 = vunpack.c.l.b16 %v8592
    %v8819 = vunpack.c.l.b16 %v8593
    %v8820 = vunpack.c.h.b16 %v8593
    %v8821 = vunpack.c.l.b16 %v8594
    %v8822 = vunpack.c.l.b16 %v8595
    %v8823 = vunpack.c.h.b16 %v8595
    %v8824 = vunpack.c.l.b16 %v8596
    %v8825 = vunpack.c.l.b16 %v8597
    %v8826 = vunpack.c.h.b16 %v8597
    %v8827 = vunpack.c.l.b16 %v8598
    %v8828 = vunpack.c.l.b16 %v8599
    %v8829 = vunpack.c.h.b16 %v8599
    %v8830 = vunpack.c.l.b16 %v8600
    %v8831 = vunpack.c.l.b16 %v8601
    %v8832 = vunpack.c.h.b16 %v8601
    %v8833 = vunpack.c.l.b16 %v8602
    %v8834 = vunpack.c.l.b16 %v8603
    %v8835 = vunpack.c.h.b16 %v8603
    %v8836 = vunpack.c.l.b16 %v8604
    %v8837 = vunpack.c.l.b16 %v8605
    %v8838 = vunpack.c.h.b16 %v8605
    %v8839 = vunpack.c.l.b16 %v8606
    %v8840 = vunpack.c.l.b16 %v8607
    %v8841 = vunpack.c.h.b16 %v8607
    %v8842 = vunpack.c.l.b16 %v8608
    %v8843 = vunpack.c.l.b16 %v8609
    %v8844 = vunpack.c.h.b16 %v8609
    %v8845 = vunpack.c.l.b16 %v8610
    %v8846 = vunpack.c.l.b16 %v8611
    %v8847 = vunpack.c.h.b16 %v8611
    %v8848 = vunpack.c.l.b16 %v8612
    %v8849 = vunpack.c.l.b16 %v8613
    %v8850 = vunpack.c.h.b16 %v8613
    %v8851 = vunpack.c.l.b16 %v8614
    %v8852 = vunpack.c.l.b16 %v8615
    %v8853 = vunpack.c.h.b16 %v8615
    %v8854 = vunpack.c.l.b16 %v8616
    %v8855 = vunpack.c.l.b16 %v8617
    %v8856 = vunpack.c.h.b16 %v8617
    %v8857 = vunpack.c.l.b16 %v8618
    %v8858 = vunpack.c.l.b16 %v8619
    %v8859 = vunpack.c.h.b16 %v8619
    %v8860 = vunpack.c.l.b16 %v8620
    %v8861 = vunpack.c.l.b16 %v8621
    %v8862 = vunpack.c.h.b16 %v8621
    %v8863 = vunpack.c.l.b16 %v8622
    %v8864 = vunpack.c.l.b16 %v8623
    %v8865 = vunpack.c.h.b16 %v8623
    %v8866 = vunpack.c.l.b16 %v8624
    %v8867 = vunpack.c.l.b16 %v8625
    %v8868 = vunpack.c.h.b16 %v8625
    %v8869 = vunpack.c.l.b16 %v8626
    %v8870 = vunpack.c.l.b16 %v8627
    %v8871 = vunpack.c.h.b16 %v8627
    %v8872 = vunpack.c.l.b16 %v8628
    %v8873 = vunpack.c.l.b16 %v8629
    %v8874 = vunpack.c.h.b16 %v8629
    %v8875 = vunpack.c.l.b16 %v8630
    %v8876 = vunpack.c.l.b16 %v8631
    %v8877 = vunpack.c.h.b16 %v8631
    %v8878 = vunpack.c.l.b16 %v8632
    %v8879 = vunpack.c.l.b16 %v8633
    %v8880 = vunpack.c.h.b16 %v8633
    %v8881 = vunpack.c.l.b16 %v8634
    %v8882 = vunpack.c.l.b16 %v8635
    %v8883 = vunpack.c.h.b16 %v8635
    %v8884 = vunpack.c.l.b16 %v8636
    %v8885 = vunpack.c.l.b16 %v8637
    %v8886 = vunpack.c.h.b16 %v8637
    %v8887 = vunpack.c.l.b16 %v8638
    %v8888 = vunpack.c.l.b16 %v8639
    %v8889 = vunpack.c.h.b16 %v8639
    %v8890 = vunpack.c.l.b16 %v8640
    %v8891 = vunpack.c.l.b16 %v8641
    %v8892 = vunpack.c.h.b16 %v8641
    %v8893 = vunpack.c.l.b16 %v8642
    %v8894 = vunpack.c.l.b16 %v8643
    %v8895 = vunpack.c.h.b16 %v8643
    %v8896 = vunpack.c.l.b16 %v8644
    %v8897 = vunpack.c.l.b16 %v8645
    %v8898 = vunpack.c.h.b16 %v8645
    %v8899 = vunpack.c.l.b16 %v8646
    %v8900 = vunpack.c.l.b16 %v8647
    %v8901 = vunpack.c.h.b16 %v8647
    %v8902 = vunpack.c.l.b16 %v8648
    %v8903 = vunpack.c.l.b16 %v8649
    %v8904 = vunpack.c.h.b16 %v8649
    %v8905 = vunpack.c.l.b16 %v8650
    %v8906 = vunpack.c.l.b16 %v8651
    %v8907 = vunpack.c.h.b16 %v8651
    %v8908 = vunpack.c.l.b16 %v8652
    %v8909 = vunpack.c.l.b16 %v8653
    %v8910 = vunpack.c.h.b16 %v8653
    %v8911 = vunpack.c.l.b16 %v8654
    %v8912 = vpack.c.b16 %v8771, %v8768
    %v8913 = vpack.c.b16 %v8772, %v8769
    %v8914 = vpack.c.b16 %v8773, %v8770
    %v8915 = vpack.c.b16 %v8777, %v8774
    %v8916 = vpack.c.b16 %v8778, %v8775
    %v8917 = vpack.c.b16 %v8779, %v8776
    %v8918 = vpack.c.b16 %v8783, %v8780
    %v8919 = vpack.c.b16 %v8784, %v8781
    %v8920 = vpack.c.b16 %v8785, %v8782
    %v8921 = vpack.c.b16 %v8789, %v8786
    %v8922 = vpack.c.b16 %v8790, %v8787
    %v8923 = vpack.c.b16 %v8791, %v8788
    %v8924 = vpack.c.b16 %v8795, %v8792
    %v8925 = vpack.c.b16 %v8796, %v8793
    %v8926 = vpack.c.b16 %v8797, %v8794
    %v8927 = vpack.c.b16 %v8801, %v8798
    %v8928 = vpack.c.b16 %v8802, %v8799
    %v8929 = vpack.c.b16 %v8803, %v8800
    %v8930 = vpack.c.b16 %v8807, %v8804
    %v8931 = vpack.c.b16 %v8808, %v8805
    %v8932 = vpack.c.b16 %v8809, %v8806
    %v8933 = vpack.c.b16 %v8813, %v8810
    %v8934 = vpack.c.b16 %v8814, %v8811
    %v8935 = vpack.c.b16 %v8815, %v8812
    %v8936 = vpack.c.b16 %v8819, %v8816
    %v8937 = vpack.c.b16 %v8820, %v8817
    %v8938 = vpack.c.b16 %v8821, %v8818
    %v8939 = vpack.c.b16 %v8825, %v8822
    %v8940 = vpack.c.b16 %v8826, %v8823
    %v8941 = vpack.c.b16 %v8827, %v8824
    %v8942 = vpack.c.b16 %v8831, %v8828
    %v8943 = vpack.c.b16 %v8832, %v8829
    %v8944 = vpack.c.b16 %v8833, %v8830
    %v8945 = vpack.c.b16 %v8837, %v8834
    %v8946 = vpack.c.b16 %v8838, %v8835
    %v8947 = vpack.c.b16 %v8839, %v8836
    %v8948 = vpack.c.b16 %v8843, %v8840
    %v8949 = vpack.c.b16 %v8844, %v8841
    %v8950 = vpack.c.b16 %v8845, %v8842
    %v8951 = vpack.c.b16 %v8849, %v8846
    %v8952 = vpack.c.b16 %v8850, %v8847
    %v8953 = vpack.c.b16 %v8851, %v8848
    %v8954 = vpack.c.b16 %v8855, %v8852
    %v8955 = vpack.c.b16 %v8856, %v8853
    %v8956 = vpack.c.b16 %v8857, %v8854
    %v8957 = vpack.c.b16 %v8861, %v8858
    %v8958 = vpack.c.b16 %v8862, %v8859
    %v8959 = vpack.c.b16 %v8863, %v8860
    %v8960 = vpack.c.b16 %v8867, %v8864
    %v8961 = vpack.c.b16 %v8868, %v8865
    %v8962 = vpack.c.b16 %v8869, %v8866
    %v8963 = vpack.c.b16 %v8873, %v8870
    %v8964 = vpack.c.b16 %v8874, %v8871
    %v8965 = vpack.c.b16 %v8875, %v8872
    %v8966 = vpack.c.b16 %v8879, %v8876
    %v8967 = vpack.c.b16 %v8880, %v8877
    %v8968 = vpack.c.b16 %v8881, %v8878
    %v8969 = vpack.c.b16 %v8885, %v8882
    %v8970 = vpack.c.b16 %v8886, %v8883
    %v8971 = vpack.c.b16 %v8887, %v8884
    %v8972 = vpack.c.b16 %v8891, %v8888
    %v8973 = vpack.c.b16 %v8892, %v8889
    %v8974 = vpack.c.b16 %v8893, %v8890
    %v8975 = vpack.c.b16 %v8897, %v8894
    %v8976 = vpack.c.b16 %v8898, %v8895
    %v8977 = vpack.c.b16 %v8899, %v8896
    %v8978 = vpack.c.b16 %v8903, %v8900
    %v8979 = vpack.c.b16 %v8904, %v8901
    %v8980 = vpack.c.b16 %v8905, %v8902
    %v8981 = vpack.c.b16 %v8909, %v8906
    %v8982 = vpack.c.b16 %v8910, %v8907
    %v8983 = vpack.c.b16 %v8911, %v8908
    %9056 = vmatprep.subr.bf16.mxu0 %v8913
    %9057 = vmatpush1.bf16.msra.mxu0 %v8912
    %9058 = vmatprep.subr.bf16.mxu0 %v8916
    %9059 = vmatpush1.bf16.msra.mxu0 %v8915
    %9060 = vmatprep.subr.bf16.mxu0 %v8919
    %9061 = vmatpush1.bf16.msra.mxu0 %v8918
    %9062 = vmatprep.subr.bf16.mxu0 %v8922
    %9063 = vmatpush1.bf16.msra.mxu0 %v8921
    %9064 = vmatprep.subr.bf16.mxu0 %v8925
    %9065 = vmatpush1.bf16.msra.mxu0 %v8924
    %9066 = vmatprep.subr.bf16.mxu0 %v8928
    %9067 = vmatpush1.bf16.msra.mxu0 %v8927
    %9068 = vmatprep.subr.bf16.mxu0 %v8931
    %9069 = vmatpush1.bf16.msra.mxu0 %v8930
    %9070 = vmatprep.subr.bf16.mxu0 %v8934
    %9071 = vmatpush1.bf16.msra.mxu0 %v8933
    %9072 = vmatprep.subr.bf16.mxu0 %v8937
    %9073 = vmatpush1.bf16.msra.mxu0 %v8936
    %9074 = vmatprep.subr.bf16.mxu0 %v8940
    %9075 = vmatpush1.bf16.msra.mxu0 %v8939
    %9076 = vmatprep.subr.bf16.mxu0 %v8943
    %9077 = vmatpush1.bf16.msra.mxu0 %v8942
    %9078 = vmatprep.subr.bf16.mxu0 %v8946
    %9079 = vmatpush1.bf16.msra.mxu0 %v8945
    %9080 = vmatprep.subr.bf16.mxu0 %v8949
    %9081 = vmatpush1.bf16.msra.mxu0 %v8948
    %9082 = vmatprep.subr.bf16.mxu0 %v8952
    %9083 = vmatpush1.bf16.msra.mxu0 %v8951
    %9084 = vmatprep.subr.bf16.mxu0 %v8955
    %9085 = vmatpush1.bf16.msra.mxu0 %v8954
    %9086 = vmatprep.subr.bf16.mxu0 %v8958
    %9087 = vmatpush1.bf16.msra.mxu0 %v8957
    %9088 = vmatprep.mubr.bf16.mxu0 %v8557
    %9089 = vmatmul.mubr.bf16.gmra.mrb[0].mxu0 %v8556
    %v9090 = vpop.f32.mrb[0].mxu0
    %v9091 = vadd.f32 %v8660, %v9090
    %v9092 = vpop.f32.mrb[0].mxu0
    %v9093 = vadd.f32 %v8664, %v9092
    %v9094 = vpop.f32.mrb[0].mxu0
    %v9095 = vpop.f32.mrb[0].mxu0
    %9096 = vdwg.mxu0
    %9097 = vmatprep.subr.bf16.mxu0 %v8961
    %9098 = vmatpush1.bf16.msra.mxu0 %v8960
    %9099 = vmatprep.subr.bf16.mxu0 %v8964
    %9100 = vmatpush1.bf16.msra.mxu0 %v8963
    %9101 = vmatprep.subr.bf16.mxu0 %v8967
    %9102 = vmatpush1.bf16.msra.mxu0 %v8966
    %9103 = vmatprep.subr.bf16.mxu0 %v8970
    %9104 = vmatpush1.bf16.msra.mxu0 %v8969
    %9105 = vmatprep.subr.bf16.mxu0 %v8973
    %9106 = vmatpush1.bf16.msra.mxu0 %v8972
    %9107 = vmatprep.subr.bf16.mxu0 %v8976
    %9108 = vmatpush1.bf16.msra.mxu0 %v8975
    %9109 = vmatprep.subr.bf16.mxu0 %v8979
    %9110 = vmatpush1.bf16.msra.mxu0 %v8978
    %9111 = vmatprep.subr.bf16.mxu0 %v8982
    %9112 = vmatpush1.bf16.msra.mxu0 %v8981
    %9113 = vmatprep.subr.bf16.mxu0 0
    %9114 = vmatpush1.bf16.msra.mxu0 0
    %9115 = vmatprep.subr.bf16.mxu0 0
    %9116 = vmatpush1.bf16.msra.mxu0 0
    %9117 = vmatprep.subr.bf16.mxu0 0
    %9118 = vmatpush1.bf16.msra.mxu0 0
    %9119 = vmatprep.subr.bf16.mxu0 0
    %9120 = vmatpush1.bf16.msra.mxu0 0
    %9121 = vmatprep.subr.bf16.mxu0 0
    %9122 = vmatpush1.bf16.msra.mxu0 0
    %9123 = vmatprep.subr.bf16.mxu0 0
    %9124 = vmatpush1.bf16.msra.mxu0 0
    %9125 = vmatprep.subr.bf16.mxu0 0
    %9126 = vmatpush1.bf16.msra.mxu0 0
    %9127 = vmatprep.subr.bf16.mxu0 0
    %9128 = vmatpush1.bf16.msra.mxu0 0
    %9129 = vmatprep.mubr.bf16.mxu0 0
    %9130 = vmatmul.mubr.bf16.gmra.mrb[0].mxu0 %v8558
    %v9131 = vpop.f32.mrb[0].mxu0
    %v9132 = vadd.f32 %v9091, %v9131
    %v9133 = vpop.f32.mrb[0].mxu0
    %v9134 = vadd.f32 %v9093, %v9133
    %v9135 = vpop.f32.mrb[0].mxu0
    %v9136 = vpop.f32.mrb[0].mxu0
    %9137 = vdwg.mxu0
    %9138 = vmatprep.subr.bf16.mxu0 0
    %9139 = vmatpush1.bf16.msra.mxu0 %v8914
    %9140 = vmatprep.subr.bf16.mxu0 0
    %9141 = vmatpush1.bf16.msra.mxu0 %v8917
    %9142 = vmatprep.subr.bf16.mxu0 0
    %9143 = vmatpush1.bf16.msra.mxu0 %v8920
    %9144 = vmatprep.subr.bf16.mxu0 0
    %9145 = vmatpush1.bf16.msra.mxu0 %v8923
    %9146 = vmatprep.subr.bf16.mxu0 0
    %9147 = vmatpush1.bf16.msra.mxu0 %v8926
    %9148 = vmatprep.subr.bf16.mxu0 0
    %9149 = vmatpush1.bf16.msra.mxu0 %v8929
    %9150 = vmatprep.subr.bf16.mxu0 0
    %9151 = vmatpush1.bf16.msra.mxu0 %v8932
    %9152 = vmatprep.subr.bf16.mxu0 0
    %9153 = vmatpush1.bf16.msra.mxu0 %v8935
    %9154 = vmatprep.subr.bf16.mxu0 0
    %9155 = vmatpush1.bf16.msra.mxu0 %v8938
    %9156 = vmatprep.subr.bf16.mxu0 0
    %9157 = vmatpush1.bf16.msra.mxu0 %v8941
    %9158 = vmatprep.subr.bf16.mxu0 0
    %9159 = vmatpush1.bf16.msra.mxu0 %v8944
    %9160 = vmatprep.subr.bf16.mxu0 0
    %9161 = vmatpush1.bf16.msra.mxu0 %v8947
    %9162 = vmatprep.subr.bf16.mxu0 0
    %9163 = vmatpush1.bf16.msra.mxu0 %v8950
    %9164 = vmatprep.subr.bf16.mxu0 0
    %9165 = vmatpush1.bf16.msra.mxu0 %v8953
    %9166 = vmatprep.subr.bf16.mxu0 0
    %9167 = vmatpush1.bf16.msra.mxu0 %v8956
    %9168 = vmatprep.subr.bf16.mxu0 0
    %9169 = vmatpush1.bf16.msra.mxu0 %v8959
    %9170 = vmatprep.mubr.bf16.mxu0 %v8557
    %9171 = vmatmul.mubr.bf16.gmra.mrb[0].mxu0 %v8556
    %v9172 = vpop.f32.mrb[0].mxu0
    %v9173 = vadd.f32 %v8668, %v9172
    %v9174 = vpop.f32.mrb[0].mxu0
    %v9175 = vpop.f32.mrb[0].mxu0
    %v9176 = vpop.f32.mrb[0].mxu0
    %9177 = vdwg.mxu0
    %9178 = vmatprep.subr.bf16.mxu0 0
    %9179 = vmatpush1.bf16.msra.mxu0 %v8962
    %9180 = vmatprep.subr.bf16.mxu0 0
    %9181 = vmatpush1.bf16.msra.mxu0 %v8965
    %9182 = vmatprep.subr.bf16.mxu0 0
    %9183 = vmatpush1.bf16.msra.mxu0 %v8968
    %9184 = vmatprep.subr.bf16.mxu0 0
    %9185 = vmatpush1.bf16.msra.mxu0 %v8971
    %9186 = vmatprep.subr.bf16.mxu0 0
    %9187 = vmatpush1.bf16.msra.mxu0 %v8974
    %9188 = vmatprep.subr.bf16.mxu0 0
    %9189 = vmatpush1.bf16.msra.mxu0 %v8977
    %9190 = vmatprep.subr.bf16.mxu0 0
    %9191 = vmatpush1.bf16.msra.mxu0 %v8980
    %9192 = vmatprep.subr.bf16.mxu0 0
    %9193 = vmatpush1.bf16.msra.mxu0 %v8983
    %9194 = vmatprep.subr.bf16.mxu0 0
    %9195 = vmatpush1.bf16.msra.mxu0 0
    %9196 = vmatprep.subr.bf16.mxu0 0
    %9197 = vmatpush1.bf16.msra.mxu0 0
    %9198 = vmatprep.subr.bf16.mxu0 0
    %9199 = vmatpush1.bf16.msra.mxu0 0
    %9200 = vmatprep.subr.bf16.mxu0 0
    %9201 = vmatpush1.bf16.msra.mxu0 0
    %9202 = vmatprep.subr.bf16.mxu0 0
    %9203 = vmatpush1.bf16.msra.mxu0 0
    %9204 = vmatprep.subr.bf16.mxu0 0
    %9205 = vmatpush1.bf16.msra.mxu0 0
    %9206 = vmatprep.subr.bf16.mxu0 0
    %9207 = vmatpush1.bf16.msra.mxu0 0
    %9208 = vmatprep.subr.bf16.mxu0 0
    %9209 = vmatpush1.bf16.msra.mxu0 0
    %9210 = vmatprep.mubr.bf16.mxu0 0
    %9211 = vmatmul.mubr.bf16.gmra.mrb[0].mxu0 %v8558
    %v9212 = vpop.f32.mrb[0].mxu0
    %v9213 = vadd.f32 %v9173, %v9212
    %v9214 = vpop.f32.mrb[0].mxu0
    %v9215 = vpop.f32.mrb[0].mxu0
    %v9216 = vpop.f32.mrb[0].mxu0
    %9217 = vdwg.mxu0
    %v9218 = vadd.f32 %v9132, %v8399
    %v9219 = vxor.u32 %v9218, 2147483648
    %v9220 = vmul.f32 %v9219, 1.442695
    %v9221 = vpow.pop %v9220
    %v9222 = vadd.f32 %v9221, 1.0
    %v9223 = vrcp.pop %v9222
    %v9224 = vmul.f32 1.0, %v9223
    %v9225 = vadd.f32 %v9134, %v8401
    %v9226 = vxor.u32 %v9225, 2147483648
    %v9227 = vmul.f32 %v9226, 1.442695
    %v9228 = vpow.pop %v9227
    %v9229 = vadd.f32 %v9228, 1.0
    %v9230 = vrcp.pop %v9229
    %v9231 = vmul.f32 1.0, %v9230
    %v9232 = vmul.f32 %v9224, %v8440
    %v9233 = vadd.f32 %v9213, %v9232
    %v9234 = vtanh.pop %v9233
    %v9235 = vsub.f32 1.0, %v9231
    %v9236 = vmul.f32 %v9235, %v9234
    %v9237 = vmul.f32 %v9231, %v7603
    %v9238 = vadd.f32 %v9236, %v9237
    %v9239 = vpack.c.bf16 %v9238, %v9238
    %v9240 = vld [vmem:[#allocation22] sm:$0xf]
    %v9241 = vld [vmem:[#allocation22 + $0x4] sm:$0xf]
    %v9242 = vld [vmem:[#allocation22 + $0x8] sm:$0xf]
    %v9243 = vld [vmem:[#allocation22 + $0xc] sm:$0xf]
    %v9244 = vld [vmem:[#allocation22 + $0x10] sm:$0xf]
    %v9245 = vld [vmem:[#allocation22 + $0x14] sm:$0xf]
    %v9246 = vld [vmem:[#allocation22 + $0x18] sm:$0xf]
    %v9247 = vld [vmem:[#allocation22 + $0x1c] sm:$0xf]
    %v9248 = vld [vmem:[#allocation22 + $0x20] sm:$0xf]
    %v9249 = vld [vmem:[#allocation22 + $0x24] sm:$0xf]
    %v9250 = vld [vmem:[#allocation22 + $0x28] sm:$0xf]
    %v9251 = vld [vmem:[#allocation22 + $0x2c] sm:$0xf]
    %v9252 = vld [vmem:[#allocation22 + $0x30] sm:$0xf]
    %v9253 = vld [vmem:[#allocation22 + $0x34] sm:$0xf]
    %v9254 = vld [vmem:[#allocation22 + $0x38] sm:$0xf]
    %v9255 = vld [vmem:[#allocation22 + $0x3c] sm:$0xf]
    %v9256 = vld [vmem:[#allocation22 + $0x40] sm:$0xf]
    %v9257 = vld [vmem:[#allocation22 + $0x44] sm:$0xf]
    %v9258 = vld [vmem:[#allocation22 + $0x48] sm:$0xf]
    %v9259 = vld [vmem:[#allocation22 + $0x4c] sm:$0xf]
    %v9260 = vld [vmem:[#allocation22 + $0x50] sm:$0xf]
    %v9261 = vld [vmem:[#allocation22 + $0x54] sm:$0xf]
    %v9262 = vld [vmem:[#allocation22 + $0x58] sm:$0xf]
    %v9263 = vld [vmem:[#allocation22 + $0x5c] sm:$0xf]
    %v9264 = vld [vmem:[#allocation22 + $0x60] sm:$0xf]
    %v9265 = vld [vmem:[#allocation22 + $0x64] sm:$0xf]
    %v9266 = vld [vmem:[#allocation22 + $0x68] sm:$0xf]
    %v9267 = vld [vmem:[#allocation22 + $0x6c] sm:$0xf]
    %v9268 = vld [vmem:[#allocation22 + $0x70] sm:$0xf]
    %v9269 = vld [vmem:[#allocation22 + $0x74] sm:$0xf]
    %v9270 = vld [vmem:[#allocation22 + $0x78] sm:$0xf]
    %v9271 = vld [vmem:[#allocation22 + $0x7c] sm:$0xf]
    %v9272 = vld [vmem:[#allocation22 + $0x80] sm:$0xf]
    %v9273 = vld [vmem:[#allocation22 + $0x84] sm:$0xf]
    %v9274 = vld [vmem:[#allocation22 + $0x88] sm:$0xf]
    %v9275 = vld [vmem:[#allocation22 + $0x8c] sm:$0xf]
    %v9276 = vld [vmem:[#allocation22 + $0x90] sm:$0xf]
    %v9277 = vld [vmem:[#allocation22 + $0x94] sm:$0xf]
    %v9278 = vld [vmem:[#allocation22 + $0x98] sm:$0xf]
    %v9279 = vld [vmem:[#allocation22 + $0x9c] sm:$0xf]
    %v9280 = vld [vmem:[#allocation22 + $0xa0] sm:$0xf]
    %v9281 = vld [vmem:[#allocation22 + $0xa4] sm:$0xf]
    %v9282 = vld [vmem:[#allocation22 + $0xa8] sm:$0xf]
    %v9283 = vld [vmem:[#allocation22 + $0xac] sm:$0xf]
    %v9284 = vld [vmem:[#allocation22 + $0xb0] sm:$0xf]
    %v9285 = vld [vmem:[#allocation22 + $0xb4] sm:$0xf]
    %v9286 = vld [vmem:[#allocation22 + $0xb8] sm:$0xf]
    %v9287 = vld [vmem:[#allocation22 + $0xbc] sm:$0xf]
    %v9288 = vld [vmem:[#allocation24] sm:$0x1]
    %v9290 = vlaneseq
    %v9291 = vshrl.u32 %v9290, 7
    %v9292 = vsub.s32 0, %v9291
    %v9293 = vrot.slane %v9288, %v9292
    %v9343 = vunpack.c.l.b16 %v9240
    %v9344 = vunpack.c.l.b16 %v9241
    %v9345 = vunpack.c.l.b16 %v9242
    %v9346 = vunpack.c.l.b16 %v9243
    %v9347 = vunpack.c.l.b16 %v9244
    %v9348 = vunpack.c.l.b16 %v9245
    %v9349 = vunpack.c.l.b16 %v9246
    %v9350 = vunpack.c.l.b16 %v9247
    %v9351 = vunpack.c.l.b16 %v9248
    %v9352 = vunpack.c.l.b16 %v9249
    %v9353 = vunpack.c.l.b16 %v9250
    %v9354 = vunpack.c.l.b16 %v9251
    %v9355 = vunpack.c.l.b16 %v9252
    %v9356 = vunpack.c.l.b16 %v9253
    %v9357 = vunpack.c.l.b16 %v9254
    %v9358 = vunpack.c.l.b16 %v9255
    %v9359 = vunpack.c.l.b16 %v9256
    %v9360 = vunpack.c.l.b16 %v9257
    %v9361 = vunpack.c.l.b16 %v9258
    %v9362 = vunpack.c.l.b16 %v9259
    %v9363 = vunpack.c.l.b16 %v9260
    %v9364 = vunpack.c.l.b16 %v9261
    %v9365 = vunpack.c.l.b16 %v9262
    %v9366 = vunpack.c.l.b16 %v9263
    %v9367 = vunpack.c.l.b16 %v9264
    %v9368 = vunpack.c.l.b16 %v9265
    %v9369 = vunpack.c.l.b16 %v9266
    %v9370 = vunpack.c.l.b16 %v9267
    %v9371 = vunpack.c.l.b16 %v9268
    %v9372 = vunpack.c.l.b16 %v9269
    %v9373 = vunpack.c.l.b16 %v9270
    %v9374 = vunpack.c.l.b16 %v9271
    %v9375 = vunpack.c.l.b16 %v9272
    %v9376 = vunpack.c.l.b16 %v9273
    %v9377 = vunpack.c.l.b16 %v9274
    %v9378 = vunpack.c.l.b16 %v9275
    %v9379 = vunpack.c.l.b16 %v9276
    %v9380 = vunpack.c.l.b16 %v9277
    %v9381 = vunpack.c.l.b16 %v9278
    %v9382 = vunpack.c.l.b16 %v9279
    %v9383 = vunpack.c.l.b16 %v9280
    %v9384 = vunpack.c.l.b16 %v9281
    %v9385 = vunpack.c.l.b16 %v9282
    %v9386 = vunpack.c.l.b16 %v9283
    %v9387 = vunpack.c.l.b16 %v9284
    %v9388 = vunpack.c.l.b16 %v9285
    %v9389 = vunpack.c.l.b16 %v9286
    %v9390 = vunpack.c.l.b16 %v9287
    %v9391 = vpack.c.b16 %v9344, %v9343
    %v9392 = vpack.c.b16 %v9346, %v9345
    %v9393 = vpack.c.b16 %v9348, %v9347
    %v9394 = vpack.c.b16 %v9350, %v9349
    %v9395 = vpack.c.b16 %v9352, %v9351
    %v9396 = vpack.c.b16 %v9354, %v9353
    %v9397 = vpack.c.b16 %v9356, %v9355
    %v9398 = vpack.c.b16 %v9358, %v9357
    %v9399 = vpack.c.b16 %v9360, %v9359
    %v9400 = vpack.c.b16 %v9362, %v9361
    %v9401 = vpack.c.b16 %v9364, %v9363
    %v9402 = vpack.c.b16 %v9366, %v9365
    %v9403 = vpack.c.b16 %v9368, %v9367
    %v9404 = vpack.c.b16 %v9370, %v9369
    %v9405 = vpack.c.b16 %v9372, %v9371
    %v9406 = vpack.c.b16 %v9374, %v9373
    %v9407 = vpack.c.b16 %v9376, %v9375
    %v9408 = vpack.c.b16 %v9378, %v9377
    %v9409 = vpack.c.b16 %v9380, %v9379
    %v9410 = vpack.c.b16 %v9382, %v9381
    %v9411 = vpack.c.b16 %v9384, %v9383
    %v9412 = vpack.c.b16 %v9386, %v9385
    %v9413 = vpack.c.b16 %v9388, %v9387
    %v9414 = vpack.c.b16 %v9390, %v9389
    %9439 = vmatprep.subr.bf16.mxu0 0
    %9440 = vmatpush1.bf16.msra.mxu0 %v9391
    %9441 = vmatprep.subr.bf16.mxu0 0
    %9442 = vmatpush1.bf16.msra.mxu0 %v9392
    %9443 = vmatprep.subr.bf16.mxu0 0
    %9444 = vmatpush1.bf16.msra.mxu0 %v9393
    %9445 = vmatprep.subr.bf16.mxu0 0
    %9446 = vmatpush1.bf16.msra.mxu0 %v9394
    %9447 = vmatprep.subr.bf16.mxu0 0
    %9448 = vmatpush1.bf16.msra.mxu0 %v9395
    %9449 = vmatprep.subr.bf16.mxu0 0
    %9450 = vmatpush1.bf16.msra.mxu0 %v9396
    %9451 = vmatprep.subr.bf16.mxu0 0
    %9452 = vmatpush1.bf16.msra.mxu0 %v9397
    %9453 = vmatprep.subr.bf16.mxu0 0
    %9454 = vmatpush1.bf16.msra.mxu0 %v9398
    %9455 = vmatprep.subr.bf16.mxu0 0
    %9456 = vmatpush1.bf16.msra.mxu0 %v9399
    %9457 = vmatprep.subr.bf16.mxu0 0
    %9458 = vmatpush1.bf16.msra.mxu0 %v9400
    %9459 = vmatprep.subr.bf16.mxu0 0
    %9460 = vmatpush1.bf16.msra.mxu0 %v9401
    %9461 = vmatprep.subr.bf16.mxu0 0
    %9462 = vmatpush1.bf16.msra.mxu0 %v9402
    %9463 = vmatprep.subr.bf16.mxu0 0
    %9464 = vmatpush1.bf16.msra.mxu0 %v9403
    %9465 = vmatprep.subr.bf16.mxu0 0
    %9466 = vmatpush1.bf16.msra.mxu0 %v9404
    %9467 = vmatprep.subr.bf16.mxu0 0
    %9468 = vmatpush1.bf16.msra.mxu0 %v9405
    %9469 = vmatprep.subr.bf16.mxu0 0
    %9470 = vmatpush1.bf16.msra.mxu0 %v9406
    %9471 = vmatprep.mubr.bf16.mxu0 %v8557
    %9472 = vmatmul.mubr.bf16.gmra.mrb[0].mxu0 %v9239
    %v9473 = vpop.f32.mrb[0].mxu0
    %v9474 = vadd.f32 %v9293, %v9473
    %v9475 = vpop.f32.mrb[0].mxu0
    %v9476 = vpop.f32.mrb[0].mxu0
    %v9477 = vpop.f32.mrb[0].mxu0
    %9478 = vdwg.mxu0
    %9479 = vmatprep.subr.bf16.mxu0 0
    %9480 = vmatpush1.bf16.msra.mxu0 %v9407
    %9481 = vmatprep.subr.bf16.mxu0 0
    %9482 = vmatpush1.bf16.msra.mxu0 %v9408
    %9483 = vmatprep.subr.bf16.mxu0 0
    %9484 = vmatpush1.bf16.msra.mxu0 %v9409
    %9485 = vmatprep.subr.bf16.mxu0 0
    %9486 = vmatpush1.bf16.msra.mxu0 %v9410
    %9487 = vmatprep.subr.bf16.mxu0 0
    %9488 = vmatpush1.bf16.msra.mxu0 %v9411
    %9489 = vmatprep.subr.bf16.mxu0 0
    %9490 = vmatpush1.bf16.msra.mxu0 %v9412
    %9491 = vmatprep.subr.bf16.mxu0 0
    %9492 = vmatpush1.bf16.msra.mxu0 %v9413
    %9493 = vmatprep.subr.bf16.mxu0 0
    %9494 = vmatpush1.bf16.msra.mxu0 %v9414
    %9495 = vmatprep.subr.bf16.mxu0 0
    %9496 = vmatpush1.bf16.msra.mxu0 0
    %9497 = vmatprep.subr.bf16.mxu0 0
    %9498 = vmatpush1.bf16.msra.mxu0 0
    %9499 = vmatprep.subr.bf16.mxu0 0
    %9500 = vmatpush1.bf16.msra.mxu0 0
    %9501 = vmatprep.subr.bf16.mxu0 0
    %9502 = vmatpush1.bf16.msra.mxu0 0
    %9503 = vmatprep.subr.bf16.mxu0 0
    %9504 = vmatpush1.bf16.msra.mxu0 0
    %9505 = vmatprep.subr.bf16.mxu0 0
    %9506 = vmatpush1.bf16.msra.mxu0 0
    %9507 = vmatprep.subr.bf16.mxu0 0
    %9508 = vmatpush1.bf16.msra.mxu0 0
    %9509 = vmatprep.subr.bf16.mxu0 0
    %9510 = vmatpush1.bf16.msra.mxu0 0
    %9511 = vmatprep.mubr.bf16.mxu0 0
    %9512 = vmatmul.mubr.bf16.gmra.mrb[0].mxu0 %v8556
    %v9513 = vpop.f32.mrb[0].mxu0
    %v9514 = vadd.f32 %v9474, %v9513
    %v9515 = vpop.f32.mrb[0].mxu0
    %v9516 = vpop.f32.mrb[0].mxu0
    %v9517 = vpop.f32.mrb[0].mxu0
    %9518 = vdwg.mxu0
    %s9519 = scalar_lea.vmem [#allocation25], 32
    %9520 = vst [vmem:[%s9519] sm:$0xff] %v9514
    %9521 = vmax.xlane.f32.xlu0 %v9514
    %v9522 = vpop.xlane.xlu0 %9521
    %vm9523 = vcmp.ge.f32.partialorder %v9514, %v9522
    %v9524 = vsel %vm9523, %v3116, 128
    %v9525 = vand.u32 %v9524, 65535
    %v9526 = vshra.s32 %v9524, 16
    %v9527 = vcvt.s32.f32 %v9525
    %v9528 = vcvt.s32.f32 %v9526
    %9529 = vmin.xlane.f32.xlu0 %v9528
    %v9530 = vpop.xlane.xlu0 %9529
    %vm9531 = vcmp.eq.f32.partialorder %v9528, %v9530
    %v9532 = vsel %vm9531, %v9527, inf
    %9533 = vmin.xlane.f32.xlu0 %v9532
    %v9534 = vpop.xlane.xlu0 %9533
    %v9535 = vcvt.f32.s32 %v9534
    %v9536 = vcvt.f32.s32 %v9530
    %v9537 = vshll.u32 %v9536, 16
    %v9538 = vadd.s32 %v9537, %v9535
    %vm9539 = vcmp.eq.s32.totalorder %v3116, %v9538
    %v9540 = vsel %vm9539, 1, 0
    %v9541 = vcvt.s32.f32 %v9540
    %v9542 = vpack.c.bf16 %v9541, %v9541
    %v9543 = vld [vmem:[%s20] sm:$0xf]
    %v9544 = vld [vmem:[%s20 + $0x4] sm:$0xf]
    %v9545 = vld [vmem:[%s20 + $0x8] sm:$0xf]
    %v9546 = vld [vmem:[%s20 + $0xc] sm:$0xf]
    %v9547 = vld [vmem:[%s20 + $0x10] sm:$0xf]
    %v9548 = vld [vmem:[%s20 + $0x14] sm:$0xf]
    %v9549 = vld [vmem:[%s20 + $0x18] sm:$0xf]
    %v9550 = vld [vmem:[%s20 + $0x1c] sm:$0xf]
    %v9551 = vld [vmem:[%s20 + $0x20] sm:$0xf]
    %v9552 = vld [vmem:[%s20 + $0x24] sm:$0xf]
    %v9553 = vld [vmem:[%s20 + $0x28] sm:$0xf]
    %v9554 = vld [vmem:[%s20 + $0x2c] sm:$0xf]
    %v9555 = vld [vmem:[%s20 + $0x30] sm:$0xf]
    %v9556 = vld [vmem:[%s20 + $0x34] sm:$0xf]
    %v9557 = vld [vmem:[%s20 + $0x38] sm:$0xf]
    %v9558 = vld [vmem:[%s20 + $0x3c] sm:$0xf]
    %v9575 = vunpack.c.l.b16 %v9543
    %v9576 = vunpack.c.l.b16 %v9544
    %v9577 = vunpack.c.l.b16 %v9545
    %v9578 = vunpack.c.l.b16 %v9546
    %v9579 = vunpack.c.l.b16 %v9547
    %v9580 = vunpack.c.l.b16 %v9548
    %v9581 = vunpack.c.l.b16 %v9549
    %v9582 = vunpack.c.l.b16 %v9550
    %v9583 = vunpack.c.l.b16 %v9551
    %v9584 = vunpack.c.l.b16 %v9552
    %v9585 = vunpack.c.l.b16 %v9553
    %v9586 = vunpack.c.l.b16 %v9554
    %v9587 = vunpack.c.l.b16 %v9555
    %v9588 = vunpack.c.l.b16 %v9556
    %v9589 = vunpack.c.l.b16 %v9557
    %v9590 = vunpack.c.l.b16 %v9558
    %v9591 = vpack.c.b16 %v9576, %v9575
    %v9592 = vpack.c.b16 %v9578, %v9577
    %v9593 = vpack.c.b16 %v9580, %v9579
    %v9594 = vpack.c.b16 %v9582, %v9581
    %v9595 = vpack.c.b16 %v9584, %v9583
    %v9596 = vpack.c.b16 %v9586, %v9585
    %v9597 = vpack.c.b16 %v9588, %v9587
    %v9598 = vpack.c.b16 %v9590, %v9589
    %9607 = vmatprep.subr.bf16.mxu0 0
    %9608 = vmatpush1.bf16.msra.mxu0 %v9591
    %9609 = vmatprep.subr.bf16.mxu0 0
    %9610 = vmatpush1.bf16.msra.mxu0 %v9592
    %9611 = vmatprep.subr.bf16.mxu0 0
    %9612 = vmatpush1.bf16.msra.mxu0 %v9593
    %9613 = vmatprep.subr.bf16.mxu0 0
    %9614 = vmatpush1.bf16.msra.mxu0 %v9594
    %9615 = vmatprep.subr.bf16.mxu0 0
    %9616 = vmatpush1.bf16.msra.mxu0 %v9595
    %9617 = vmatprep.subr.bf16.mxu0 0
    %9618 = vmatpush1.bf16.msra.mxu0 %v9596
    %9619 = vmatprep.subr.bf16.mxu0 0
    %9620 = vmatpush1.bf16.msra.mxu0 %v9597
    %9621 = vmatprep.subr.bf16.mxu0 0
    %9622 = vmatpush1.bf16.msra.mxu0 %v9598
    %9623 = vmatprep.subr.bf16.mxu0 0
    %9624 = vmatpush1.bf16.msra.mxu0 0
    %9625 = vmatprep.subr.bf16.mxu0 0
    %9626 = vmatpush1.bf16.msra.mxu0 0
    %9627 = vmatprep.subr.bf16.mxu0 0
    %9628 = vmatpush1.bf16.msra.mxu0 0
    %9629 = vmatprep.subr.bf16.mxu0 0
    %9630 = vmatpush1.bf16.msra.mxu0 0
    %9631 = vmatprep.subr.bf16.mxu0 0
    %9632 = vmatpush1.bf16.msra.mxu0 0
    %9633 = vmatprep.subr.bf16.mxu0 0
    %9634 = vmatpush1.bf16.msra.mxu0 0
    %9635 = vmatprep.subr.bf16.mxu0 0
    %9636 = vmatpush1.bf16.msra.mxu0 0
    %9637 = vmatprep.subr.bf16.mxu0 0
    %9638 = vmatpush1.bf16.msra.mxu0 0
    %9639 = vmatprep.mubr.bf16.mxu0 0
    %9640 = vmatmul.mubr.bf16.gmra.mrb[0].mxu0 %v9542
    %v9641 = vpop.f32.mrb[0].mxu0
    %v9642 = vadd.f32 0.0, %v9641
    %v9643 = vpop.f32.mrb[0].mxu0
    %v9644 = vpop.f32.mrb[0].mxu0
    %v9645 = vpop.f32.mrb[0].mxu0
    %9646 = vdwg.mxu0
    %s9647 = sld [smem:[#allocation6 + $0x4]]
    %p9648 = scmp.gt.s32.totalorder %s9647, 0
    %s9649 = scalar_select %p9648, 1, 0
    %s9650 = scvt.s32.f32 %s9649
    %s9651 = scalar_lea.vmem %s2, 32
    %v9652 = vld [vmem:[%s9651] sm:$0xff]
    %v9653 = vstv %s9650
    %v9654 = vmul.f32 %v9653, %v9652
    %s9655 = ssub.f32 1.0, %s9650
    %v9656 = vstv %s9655
    %v9657 = vmul.f32 %v9656, %v9642
    %v9658 = vadd.f32 %v9654, %v9657
    %v9659 = vld [vmem:[#allocation2] sm:$0xff]
    %v9660 = vld [vmem:[#allocation2 + $0x8] sm:$0xff]
    %v9661 = vld [vmem:[#allocation2 + $0x10] sm:$0xff]
    %v9662 = vld [vmem:[#allocation2 + $0x18] sm:$0xff]
    %v9663 = vld [vmem:[#allocation2 + $0x20] sm:$0xff]
    %v9664 = vld [vmem:[#allocation2 + $0x28] sm:$0xff]
    %v9665 = vld [vmem:[#allocation2 + $0x30] sm:$0xff]
    %v9666 = vld [vmem:[#allocation2 + $0x38] sm:$0xff]
    %v9667 = vld [vmem:[#allocation3] sm:$0xff]
    %v9668 = vld [vmem:[#allocation3 + $0x8] sm:$0xff]
    %v9669 = vld [vmem:[#allocation3 + $0x10] sm:$0xff]
    %v9670 = vld [vmem:[#allocation3 + $0x18] sm:$0xff]
    %v9671 = vld [vmem:[#allocation3 + $0x20] sm:$0xff]
    %v9672 = vld [vmem:[#allocation3 + $0x28] sm:$0xff]
    %v9673 = vld [vmem:[#allocation3 + $0x30] sm:$0xff]
    %v9674 = vld [vmem:[#allocation3 + $0x38] sm:$0xff]
    %v9675 = vld [vmem:[#allocation18] sm:$0xff]
    %v9676 = vld [vmem:[#allocation18 + $0x8] sm:$0xff]
    %v9677 = vld [vmem:[#allocation18 + $0x10] sm:$0xf]
    %v9678 = vld [vmem:[#allocation18 + $0x14] sm:$0xff]
    %v9679 = vld [vmem:[#allocation18 + $0x1c] sm:$0xff]
    %v9680 = vld [vmem:[#allocation18 + $0x24] sm:$0xf]
    %v9681 = vld [vmem:[#allocation18 + $0x28] sm:$0xff]
    %v9682 = vld [vmem:[#allocation18 + $0x30] sm:$0xff]
    %v9683 = vld [vmem:[#allocation18 + $0x38] sm:$0xf]
    %v9684 = vld [vmem:[#allocation18 + $0x3c] sm:$0xff]
    %v9685 = vld [vmem:[#allocation18 + $0x44] sm:$0xff]
    %v9686 = vld [vmem:[#allocation18 + $0x4c] sm:$0xf]
    %v9687 = vld [vmem:[#allocation18 + $0x50] sm:$0xff]
    %v9688 = vld [vmem:[#allocation18 + $0x58] sm:$0xff]
    %v9689 = vld [vmem:[#allocation18 + $0x60] sm:$0xf]
    %v9690 = vld [vmem:[#allocation18 + $0x64] sm:$0xff]
    %v9691 = vld [vmem:[#allocation18 + $0x6c] sm:$0xff]
    %v9692 = vld [vmem:[#allocation18 + $0x74] sm:$0xf]
    %v9693 = vld [vmem:[#allocation18 + $0x78] sm:$0xff]
    %v9694 = vld [vmem:[#allocation18 + $0x80] sm:$0xff]
    %v9695 = vld [vmem:[#allocation18 + $0x88] sm:$0xf]
    %v9696 = vld [vmem:[#allocation18 + $0x8c] sm:$0xff]
    %v9697 = vld [vmem:[#allocation18 + $0x94] sm:$0xff]
    %v9698 = vld [vmem:[#allocation18 + $0x9c] sm:$0xf]
    %v9699 = vld [vmem:[#allocation18 + $0xa0] sm:$0xff]
    %v9700 = vld [vmem:[#allocation18 + $0xa8] sm:$0xff]
    %v9701 = vld [vmem:[#allocation18 + $0xb0] sm:$0xf]
    %v9702 = vld [vmem:[#allocation18 + $0xb4] sm:$0xff]
    %v9703 = vld [vmem:[#allocation18 + $0xbc] sm:$0xff]
    %v9704 = vld [vmem:[#allocation18 + $0xc4] sm:$0xf]
    %v9705 = vld [vmem:[#allocation18 + $0xc8] sm:$0xff]
    %v9706 = vld [vmem:[#allocation18 + $0xd0] sm:$0xff]
    %v9707 = vld [vmem:[#allocation18 + $0xd8] sm:$0xf]
    %v9708 = vld [vmem:[#allocation18 + $0xdc] sm:$0xff]
    %v9709 = vld [vmem:[#allocation18 + $0xe4] sm:$0xff]
    %v9710 = vld [vmem:[#allocation18 + $0xec] sm:$0xf]
    %v9711 = vld [vmem:[#allocation18 + $0xf0] sm:$0xff]
    %v9712 = vld [vmem:[#allocation18 + $0xf8] sm:$0xff]
    %v9713 = vld [vmem:[#allocation18 + $0x100] sm:$0xf]
    %v9714 = vld [vmem:[#allocation18 + $0x104] sm:$0xff]
    %v9715 = vld [vmem:[#allocation18 + $0x10c] sm:$0xff]
    %v9716 = vld [vmem:[#allocation18 + $0x114] sm:$0xf]
    %v9717 = vld [vmem:[#allocation18 + $0x118] sm:$0xff]
    %v9718 = vld [vmem:[#allocation18 + $0x120] sm:$0xff]
    %v9719 = vld [vmem:[#allocation18 + $0x128] sm:$0xf]
    %v9720 = vld [vmem:[#allocation18 + $0x12c] sm:$0xff]
    %v9721 = vld [vmem:[#allocation18 + $0x134] sm:$0xff]
    %v9722 = vld [vmem:[#allocation18 + $0x13c] sm:$0xf]
    %v9723 = vld [vmem:[#allocation19] sm:$0x1f]
    %v9725 = vlaneseq
    %v9726 = vshrl.u32 %v9725, 7
    %v9727 = vsub.s32 0, %v9726
    %v9728 = vrot.slane %v9723, %v9727
    %v9729 = vlaneseq
    %v9730 = vshrl.u32 %v9729, 7
    %v9731 = vsub.s32 1, %v9730
    %v9732 = vrot.slane %v9723, %v9731
    %v9733 = vlaneseq
    %v9734 = vshrl.u32 %v9733, 7
    %v9735 = vsub.s32 2, %v9734
    %v9736 = vrot.slane %v9723, %v9735
    %v9737 = vlaneseq
    %v9738 = vshrl.u32 %v9737, 7
    %v9739 = vsub.s32 3, %v9738
    %v9740 = vrot.slane %v9723, %v9739
    %v9741 = vlaneseq
    %v9742 = vshrl.u32 %v9741, 7
    %v9743 = vsub.s32 4, %v9742
    %v9744 = vrot.slane %v9723, %v9743
    %v9798 = vunpack.c.l.b16 %v9675
    %v9799 = vunpack.c.h.b16 %v9675
    %v9800 = vunpack.c.l.b16 %v9676
    %v9801 = vunpack.c.h.b16 %v9676
    %v9802 = vunpack.c.l.b16 %v9677
    %v9803 = vunpack.c.l.b16 %v9678
    %v9804 = vunpack.c.h.b16 %v9678
    %v9805 = vunpack.c.l.b16 %v9679
    %v9806 = vunpack.c.h.b16 %v9679
    %v9807 = vunpack.c.l.b16 %v9680
    %v9808 = vunpack.c.l.b16 %v9681
    %v9809 = vunpack.c.h.b16 %v9681
    %v9810 = vunpack.c.l.b16 %v9682
    %v9811 = vunpack.c.h.b16 %v9682
    %v9812 = vunpack.c.l.b16 %v9683
    %v9813 = vunpack.c.l.b16 %v9684
    %v9814 = vunpack.c.h.b16 %v9684
    %v9815 = vunpack.c.l.b16 %v9685
    %v9816 = vunpack.c.h.b16 %v9685
    %v9817 = vunpack.c.l.b16 %v9686
    %v9818 = vunpack.c.l.b16 %v9687
    %v9819 = vunpack.c.h.b16 %v9687
    %v9820 = vunpack.c.l.b16 %v9688
    %v9821 = vunpack.c.h.b16 %v9688
    %v9822 = vunpack.c.l.b16 %v9689
    %v9823 = vunpack.c.l.b16 %v9690
    %v9824 = vunpack.c.h.b16 %v9690
    %v9825 = vunpack.c.l.b16 %v9691
    %v9826 = vunpack.c.h.b16 %v9691
    %v9827 = vunpack.c.l.b16 %v9692
    %v9828 = vunpack.c.l.b16 %v9693
    %v9829 = vunpack.c.h.b16 %v9693
    %v9830 = vunpack.c.l.b16 %v9694
    %v9831 = vunpack.c.h.b16 %v9694
    %v9832 = vunpack.c.l.b16 %v9695
    %v9833 = vunpack.c.l.b16 %v9696
    %v9834 = vunpack.c.h.b16 %v9696
    %v9835 = vunpack.c.l.b16 %v9697
    %v9836 = vunpack.c.h.b16 %v9697
    %v9837 = vunpack.c.l.b16 %v9698
    %v9838 = vunpack.c.l.b16 %v9699
    %v9839 = vunpack.c.h.b16 %v9699
    %v9840 = vunpack.c.l.b16 %v9700
    %v9841 = vunpack.c.h.b16 %v9700
    %v9842 = vunpack.c.l.b16 %v9701
    %v9843 = vunpack.c.l.b16 %v9702
    %v9844 = vunpack.c.h.b16 %v9702
    %v9845 = vunpack.c.l.b16 %v9703
    %v9846 = vunpack.c.h.b16 %v9703
    %v9847 = vunpack.c.l.b16 %v9704
    %v9848 = vunpack.c.l.b16 %v9705
    %v9849 = vunpack.c.h.b16 %v9705
    %v9850 = vunpack.c.l.b16 %v9706
    %v9851 = vunpack.c.h.b16 %v9706
    %v9852 = vunpack.c.l.b16 %v9707
    %v9853 = vunpack.c.l.b16 %v9708
    %v9854 = vunpack.c.h.b16 %v9708
    %v9855 = vunpack.c.l.b16 %v9709
    %v9856 = vunpack.c.h.b16 %v9709
    %v9857 = vunpack.c.l.b16 %v9710
    %v9858 = vunpack.c.l.b16 %v9711
    %v9859 = vunpack.c.h.b16 %v9711
    %v9860 = vunpack.c.l.b16 %v9712
    %v9861 = vunpack.c.h.b16 %v9712
    %v9862 = vunpack.c.l.b16 %v9713
    %v9863 = vunpack.c.l.b16 %v9714
    %v9864 = vunpack.c.h.b16 %v9714
    %v9865 = vunpack.c.l.b16 %v9715
    %v9866 = vunpack.c.h.b16 %v9715
    %v9867 = vunpack.c.l.b16 %v9716
    %v9868 = vunpack.c.l.b16 %v9717
    %v9869 = vunpack.c.h.b16 %v9717
    %v9870 = vunpack.c.l.b16 %v9718
    %v9871 = vunpack.c.h.b16 %v9718
    %v9872 = vunpack.c.l.b16 %v9719
    %v9873 = vunpack.c.l.b16 %v9720
    %v9874 = vunpack.c.h.b16 %v9720
    %v9875 = vunpack.c.l.b16 %v9721
    %v9876 = vunpack.c.h.b16 %v9721
    %v9877 = vunpack.c.l.b16 %v9722
    %v9878 = vpack.c.b16 %v9803, %v9798
    %v9879 = vpack.c.b16 %v9804, %v9799
    %v9880 = vpack.c.b16 %v9805, %v9800
    %v9881 = vpack.c.b16 %v9806, %v9801
    %v9882 = vpack.c.b16 %v9807, %v9802
    %v9883 = vpack.c.b16 %v9813, %v9808
    %v9884 = vpack.c.b16 %v9814, %v9809
    %v9885 = vpack.c.b16 %v9815, %v9810
    %v9886 = vpack.c.b16 %v9816, %v9811
    %v9887 = vpack.c.b16 %v9817, %v9812
    %v9888 = vpack.c.b16 %v9823, %v9818
    %v9889 = vpack.c.b16 %v9824, %v9819
    %v9890 = vpack.c.b16 %v9825, %v9820
    %v9891 = vpack.c.b16 %v9826, %v9821
    %v9892 = vpack.c.b16 %v9827, %v9822
    %v9893 = vpack.c.b16 %v9833, %v9828
    %v9894 = vpack.c.b16 %v9834, %v9829
    %v9895 = vpack.c.b16 %v9835, %v9830
    %v9896 = vpack.c.b16 %v9836, %v9831
    %v9897 = vpack.c.b16 %v9837, %v9832
    %v9898 = vpack.c.b16 %v9843, %v9838
    %v9899 = vpack.c.b16 %v9844, %v9839
    %v9900 = vpack.c.b16 %v9845, %v9840
    %v9901 = vpack.c.b16 %v9846, %v9841
    %v9902 = vpack.c.b16 %v9847, %v9842
    %v9903 = vpack.c.b16 %v9853, %v9848
    %v9904 = vpack.c.b16 %v9854, %v9849
    %v9905 = vpack.c.b16 %v9855, %v9850
    %v9906 = vpack.c.b16 %v9856, %v9851
    %v9907 = vpack.c.b16 %v9857, %v9852
    %v9908 = vpack.c.b16 %v9863, %v9858
    %v9909 = vpack.c.b16 %v9864, %v9859
    %v9910 = vpack.c.b16 %v9865, %v9860
    %v9911 = vpack.c.b16 %v9866, %v9861
    %v9912 = vpack.c.b16 %v9867, %v9862
    %v9913 = vpack.c.b16 %v9873, %v9868
    %v9914 = vpack.c.b16 %v9874, %v9869
    %v9915 = vpack.c.b16 %v9875, %v9870
    %v9916 = vpack.c.b16 %v9876, %v9871
    %v9917 = vpack.c.b16 %v9877, %v9872
    %9958 = vmatprep.subr.bf16.mxu0 %v9879
    %9959 = vmatpush1.bf16.msra.mxu0 %v9878
    %9960 = vmatprep.subr.bf16.mxu0 %v9884
    %9961 = vmatpush1.bf16.msra.mxu0 %v9883
    %9962 = vmatprep.subr.bf16.mxu0 %v9889
    %9963 = vmatpush1.bf16.msra.mxu0 %v9888
    %9964 = vmatprep.subr.bf16.mxu0 %v9894
    %9965 = vmatpush1.bf16.msra.mxu0 %v9893
    %9966 = vmatprep.subr.bf16.mxu0 %v9899
    %9967 = vmatpush1.bf16.msra.mxu0 %v9898
    %9968 = vmatprep.subr.bf16.mxu0 %v9904
    %9969 = vmatpush1.bf16.msra.mxu0 %v9903
    %9970 = vmatprep.subr.bf16.mxu0 %v9909
    %9971 = vmatpush1.bf16.msra.mxu0 %v9908
    %9972 = vmatprep.subr.bf16.mxu0 %v9914
    %9973 = vmatpush1.bf16.msra.mxu0 %v9913
    %9974 = vmatprep.subr.bf16.mxu0 0
    %9975 = vmatpush1.bf16.msra.mxu0 0
    %9976 = vmatprep.subr.bf16.mxu0 0
    %9977 = vmatpush1.bf16.msra.mxu0 0
    %9978 = vmatprep.subr.bf16.mxu0 0
    %9979 = vmatpush1.bf16.msra.mxu0 0
    %9980 = vmatprep.subr.bf16.mxu0 0
    %9981 = vmatpush1.bf16.msra.mxu0 0
    %9982 = vmatprep.subr.bf16.mxu0 0
    %9983 = vmatpush1.bf16.msra.mxu0 0
    %9984 = vmatprep.subr.bf16.mxu0 0
    %9985 = vmatpush1.bf16.msra.mxu0 0
    %9986 = vmatprep.subr.bf16.mxu0 0
    %9987 = vmatpush1.bf16.msra.mxu0 0
    %9988 = vmatprep.subr.bf16.mxu0 0
    %9989 = vmatpush1.bf16.msra.mxu0 0
    %9990 = vmatprep.mubr.bf16.mxu0 0
    %9991 = vmatmul.mubr.bf16.gmra.mrb[0].mxu0 %v9239
    %v9992 = vpop.f32.mrb[0].mxu0
    %v9993 = vadd.f32 %v9728, %v9992
    %v9994 = vpop.f32.mrb[0].mxu0
    %v9995 = vadd.f32 %v9732, %v9994
    %v9996 = vpop.f32.mrb[0].mxu0
    %v9997 = vpop.f32.mrb[0].mxu0
    %9998 = vdwg.mxu0
    %9999 = vmatprep.subr.bf16.mxu0 %v9881
    %10000 = vmatpush1.bf16.msra.mxu0 %v9880
    %10001 = vmatprep.subr.bf16.mxu0 %v9886
    %10002 = vmatpush1.bf16.msra.mxu0 %v9885
    %10003 = vmatprep.subr.bf16.mxu0 %v9891
    %10004 = vmatpush1.bf16.msra.mxu0 %v9890
    %10005 = vmatprep.subr.bf16.mxu0 %v9896
    %10006 = vmatpush1.bf16.msra.mxu0 %v9895
    %10007 = vmatprep.subr.bf16.mxu0 %v9901
    %10008 = vmatpush1.bf16.msra.mxu0 %v9900
    %10009 = vmatprep.subr.bf16.mxu0 %v9906
    %10010 = vmatpush1.bf16.msra.mxu0 %v9905
    %10011 = vmatprep.subr.bf16.mxu0 %v9911
    %10012 = vmatpush1.bf16.msra.mxu0 %v9910
    %10013 = vmatprep.subr.bf16.mxu0 %v9916
    %10014 = vmatpush1.bf16.msra.mxu0 %v9915
    %10015 = vmatprep.subr.bf16.mxu0 0
    %10016 = vmatpush1.bf16.msra.mxu0 0
    %10017 = vmatprep.subr.bf16.mxu0 0
    %10018 = vmatpush1.bf16.msra.mxu0 0
    %10019 = vmatprep.subr.bf16.mxu0 0
    %10020 = vmatpush1.bf16.msra.mxu0 0
    %10021 = vmatprep.subr.bf16.mxu0 0
    %10022 = vmatpush1.bf16.msra.mxu0 0
    %10023 = vmatprep.subr.bf16.mxu0 0
    %10024 = vmatpush1.bf16.msra.mxu0 0
    %10025 = vmatprep.subr.bf16.mxu0 0
    %10026 = vmatpush1.bf16.msra.mxu0 0
    %10027 = vmatprep.subr.bf16.mxu0 0
    %10028 = vmatpush1.bf16.msra.mxu0 0
    %10029 = vmatprep.subr.bf16.mxu0 0
    %10030 = vmatpush1.bf16.msra.mxu0 0
    %10031 = vmatprep.mubr.bf16.mxu0 0
    %10032 = vmatmul.mubr.bf16.gmra.mrb[0].mxu0 %v9239
    %v10033 = vpop.f32.mrb[0].mxu0
    %v10034 = vadd.f32 %v9736, %v10033
    %v10035 = vpop.f32.mrb[0].mxu0
    %v10036 = vadd.f32 %v9740, %v10035
    %v10037 = vpop.f32.mrb[0].mxu0
    %v10038 = vpop.f32.mrb[0].mxu0
    %10039 = vdwg.mxu0
    %10040 = vmatprep.subr.bf16.mxu0 0
    %10041 = vmatpush1.bf16.msra.mxu0 %v9882
    %10042 = vmatprep.subr.bf16.mxu0 0
    %10043 = vmatpush1.bf16.msra.mxu0 %v9887
    %10044 = vmatprep.subr.bf16.mxu0 0
    %10045 = vmatpush1.bf16.msra.mxu0 %v9892
    %10046 = vmatprep.subr.bf16.mxu0 0
    %10047 = vmatpush1.bf16.msra.mxu0 %v9897
    %10048 = vmatprep.subr.bf16.mxu0 0
    %10049 = vmatpush1.bf16.msra.mxu0 %v9902
    %10050 = vmatprep.subr.bf16.mxu0 0
    %10051 = vmatpush1.bf16.msra.mxu0 %v9907
    %10052 = vmatprep.subr.bf16.mxu0 0
    %10053 = vmatpush1.bf16.msra.mxu0 %v9912
    %10054 = vmatprep.subr.bf16.mxu0 0
    %10055 = vmatpush1.bf16.msra.mxu0 %v9917
    %10056 = vmatprep.subr.bf16.mxu0 0
    %10057 = vmatpush1.bf16.msra.mxu0 0
    %10058 = vmatprep.subr.bf16.mxu0 0
    %10059 = vmatpush1.bf16.msra.mxu0 0
    %10060 = vmatprep.subr.bf16.mxu0 0
    %10061 = vmatpush1.bf16.msra.mxu0 0
    %10062 = vmatprep.subr.bf16.mxu0 0
    %10063 = vmatpush1.bf16.msra.mxu0 0
    %10064 = vmatprep.subr.bf16.mxu0 0
    %10065 = vmatpush1.bf16.msra.mxu0 0
    %10066 = vmatprep.subr.bf16.mxu0 0
    %10067 = vmatpush1.bf16.msra.mxu0 0
    %10068 = vmatprep.subr.bf16.mxu0 0
    %10069 = vmatpush1.bf16.msra.mxu0 0
    %10070 = vmatprep.subr.bf16.mxu0 0
    %10071 = vmatpush1.bf16.msra.mxu0 0
    %10072 = vmatprep.mubr.bf16.mxu0 0
    %10073 = vmatmul.mubr.bf16.gmra.mrb[0].mxu0 %v9239
    %v10074 = vpop.f32.mrb[0].mxu0
    %v10075 = vadd.f32 %v9744, %v10074
    %v10076 = vpop.f32.mrb[0].mxu0
    %v10077 = vpop.f32.mrb[0].mxu0
    %v10078 = vpop.f32.mrb[0].mxu0
    %10079 = vdwg.mxu0
    %v10080 = vadd.f32 %v9993, %v2962
    %v10081 = vtanh.pop %v10080
    %v10082 = vadd.f32 %v9667, %v9995
    %v10083 = vadd.f32 %v9668, %v9995
    %v10084 = vadd.f32 %v9669, %v9995
    %v10085 = vadd.f32 %v9670, %v9995
    %v10086 = vadd.f32 %v9671, %v9995
    %v10087 = vadd.f32 %v9672, %v9995
    %v10088 = vadd.f32 %v9673, %v9995
    %v10089 = vadd.f32 %v9674, %v9995
    %v10090 = vtanh.pop %v10082
    %v10091 = vtanh.pop %v10083
    %v10092 = vtanh.pop %v10084
    %v10093 = vtanh.pop %v10085
    %v10094 = vtanh.pop %v10086
    %v10095 = vtanh.pop %v10087
    %v10096 = vtanh.pop %v10088
    %v10097 = vtanh.pop %v10089
    %v10098 = vld [vmem:[#allocation16] sm:$0x1]
    %v10100 = vlaneseq
    %v10101 = vshrl.u32 %v10100, 7
    %v10102 = vsub.s32 0, %v10101
    %v10103 = vrot.slane %v10098, %v10102
    %v10105 = vmul.f32 %v10090, %v10103
    %v10106 = vmul.f32 %v10091, %v10103
    %v10107 = vmul.f32 %v10092, %v10103
    %v10108 = vmul.f32 %v10093, %v10103
    %v10109 = vmul.f32 %v10094, %v10103
    %v10110 = vmul.f32 %v10095, %v10103
    %v10111 = vmul.f32 %v10096, %v10103
    %v10112 = vmul.f32 %v10097, %v10103
    %10113 = vadd.xlane.f32.xlu0 %v10105
    %v10114 = vpop.xlane.xlu0 %10113
    %10115 = vadd.xlane.f32.xlu0 %v10106
    %v10116 = vpop.xlane.xlu0 %10115
    %10117 = vadd.xlane.f32.xlu0 %v10107
    %v10118 = vpop.xlane.xlu0 %10117
    %10119 = vadd.xlane.f32.xlu0 %v10108
    %v10120 = vpop.xlane.xlu0 %10119
    %10121 = vadd.xlane.f32.xlu0 %v10109
    %v10122 = vpop.xlane.xlu0 %10121
    %10123 = vadd.xlane.f32.xlu0 %v10110
    %v10124 = vpop.xlane.xlu0 %10123
    %10125 = vadd.xlane.f32.xlu0 %v10111
    %v10126 = vpop.xlane.xlu0 %10125
    %10127 = vadd.xlane.f32.xlu0 %v10112
    %v10128 = vpop.xlane.xlu0 %10127
    %v10129 = vmax.f32 %v10114, %v10122
    %v10130 = vmax.f32 %v10116, %v10124
    %v10131 = vmax.f32 %v10118, %v10126
    %v10132 = vmax.f32 %v10120, %v10128
    %v10133 = vmax.f32 %v10129, %v10130
    %v10134 = vmax.f32 %v10131, %v10132
    %v10135 = vmax.f32 %v10133, %v10134
    %v10136 = vsub.f32 %v10114, %v10135
    %v10137 = vsub.f32 %v10116, %v10135
    %v10138 = vsub.f32 %v10118, %v10135
    %v10139 = vsub.f32 %v10120, %v10135
    %v10140 = vsub.f32 %v10122, %v10135
    %v10141 = vsub.f32 %v10124, %v10135
    %v10142 = vsub.f32 %v10126, %v10135
    %v10143 = vsub.f32 %v10128, %v10135
    %v10144 = vmul.f32 %v10136, 1.442695
    %v10145 = vpow.pop %v10144
    %v10146 = vmul.f32 %v10137, 1.442695
    %v10147 = vpow.pop %v10146
    %v10148 = vmul.f32 %v10138, 1.442695
    %v10149 = vpow.pop %v10148
    %v10150 = vmul.f32 %v10139, 1.442695
    %v10151 = vpow.pop %v10150
    %v10152 = vmul.f32 %v10140, 1.442695
    %v10153 = vpow.pop %v10152
    %v10154 = vmul.f32 %v10141, 1.442695
    %v10155 = vpow.pop %v10154
    %v10156 = vmul.f32 %v10142, 1.442695
    %v10157 = vpow.pop %v10156
    %v10158 = vmul.f32 %v10143, 1.442695
    %v10159 = vpow.pop %v10158
    %v10160 = vadd.f32 %v10145, %v10147
    %v10161 = vadd.f32 %v10160, %v10149
    %v10162 = vadd.f32 %v10161, %v10151
    %v10163 = vadd.f32 %v10162, %v10153
    %v10164 = vadd.f32 %v10163, %v10155
    %v10165 = vadd.f32 %v10164, %v10157
    %v10166 = vadd.f32 %v10165, %v10159
    %v10167 = vrcp.pop %v10166
    %v10168 = vmul.f32 %v10145, %v10167
    %v10169 = vmul.f32 %v10147, %v10167
    %v10170 = vmul.f32 %v10149, %v10167
    %v10171 = vmul.f32 %v10151, %v10167
    %v10172 = vmul.f32 %v10153, %v10167
    %v10173 = vmul.f32 %v10155, %v10167
    %v10174 = vmul.f32 %v10157, %v10167
    %v10175 = vmul.f32 %v10159, %v10167
    %v10176 = vmul.f32 %v10168, %v9659
    %v10177 = vmul.f32 %v10169, %v9660
    %v10178 = vmul.f32 %v10170, %v9661
    %v10179 = vmul.f32 %v10171, %v9662
    %v10180 = vmul.f32 %v10172, %v9663
    %v10181 = vmul.f32 %v10173, %v9664
    %v10182 = vmul.f32 %v10174, %v9665
    %v10183 = vmul.f32 %v10175, %v9666
    %v10184 = vadd.f32 %v10176, %v10177
    %v10185 = vadd.f32 %v10184, %v10178
    %v10186 = vadd.f32 %v10185, %v10179
    %v10187 = vadd.f32 %v10186, %v10180
    %v10188 = vadd.f32 %v10187, %v10181
    %v10189 = vadd.f32 %v10188, %v10182
    %v10190 = vadd.f32 %v10189, %v10183
    %v10191 = vpack.c.bf16 %v9658, %v9658
    %v10192 = vpack.c.bf16 %v10190, %v10190
    %v10193 = vpack.c.bf16 %v10081, %v10081
    %v10194 = vld [vmem:[%s16] sm:$0xff]
    %v10195 = vld [vmem:[%s16 + $0x8] sm:$0xf]
    %v10196 = vld [vmem:[%s16 + $0xc] sm:$0xff]
    %v10197 = vld [vmem:[%s16 + $0x14] sm:$0xf]
    %v10198 = vld [vmem:[%s16 + $0x18] sm:$0xff]
    %v10199 = vld [vmem:[%s16 + $0x20] sm:$0xf]
    %v10200 = vld [vmem:[%s16 + $0x24] sm:$0xff]
    %v10201 = vld [vmem:[%s16 + $0x2c] sm:$0xf]
    %v10202 = vld [vmem:[%s16 + $0x30] sm:$0xff]
    %v10203 = vld [vmem:[%s16 + $0x38] sm:$0xf]
    %v10204 = vld [vmem:[%s16 + $0x3c] sm:$0xff]
    %v10205 = vld [vmem:[%s16 + $0x44] sm:$0xf]
    %v10206 = vld [vmem:[%s16 + $0x48] sm:$0xff]
    %v10207 = vld [vmem:[%s16 + $0x50] sm:$0xf]
    %v10208 = vld [vmem:[%s16 + $0x54] sm:$0xff]
    %v10209 = vld [vmem:[%s16 + $0x5c] sm:$0xf]
    %v10210 = vld [vmem:[%s16 + $0x60] sm:$0xff]
    %v10211 = vld [vmem:[%s16 + $0x68] sm:$0xf]
    %v10212 = vld [vmem:[%s16 + $0x6c] sm:$0xff]
    %v10213 = vld [vmem:[%s16 + $0x74] sm:$0xf]
    %v10214 = vld [vmem:[%s16 + $0x78] sm:$0xff]
    %v10215 = vld [vmem:[%s16 + $0x80] sm:$0xf]
    %v10216 = vld [vmem:[%s16 + $0x84] sm:$0xff]
    %v10217 = vld [vmem:[%s16 + $0x8c] sm:$0xf]
    %v10218 = vld [vmem:[%s16 + $0x90] sm:$0xff]
    %v10219 = vld [vmem:[%s16 + $0x98] sm:$0xf]
    %v10220 = vld [vmem:[%s16 + $0x9c] sm:$0xff]
    %v10221 = vld [vmem:[%s16 + $0xa4] sm:$0xf]
    %v10222 = vld [vmem:[%s16 + $0xa8] sm:$0xff]
    %v10223 = vld [vmem:[%s16 + $0xb0] sm:$0xf]
    %v10224 = vld [vmem:[%s16 + $0xb4] sm:$0xff]
    %v10225 = vld [vmem:[%s16 + $0xbc] sm:$0xf]
    %v10226 = vld [vmem:[%s16 + $0xc0] sm:$0xff]
    %v10227 = vld [vmem:[%s16 + $0xc8] sm:$0xf]
    %v10228 = vld [vmem:[%s16 + $0xcc] sm:$0xff]
    %v10229 = vld [vmem:[%s16 + $0xd4] sm:$0xf]
    %v10230 = vld [vmem:[%s16 + $0xd8] sm:$0xff]
    %v10231 = vld [vmem:[%s16 + $0xe0] sm:$0xf]
    %v10232 = vld [vmem:[%s16 + $0xe4] sm:$0xff]
    %v10233 = vld [vmem:[%s16 + $0xec] sm:$0xf]
    %v10234 = vld [vmem:[%s16 + $0xf0] sm:$0xff]
    %v10235 = vld [vmem:[%s16 + $0xf8] sm:$0xf]
    %v10236 = vld [vmem:[%s16 + $0xfc] sm:$0xff]
    %v10237 = vld [vmem:[%s16 + $0x104] sm:$0xf]
    %v10238 = vld [vmem:[%s16 + $0x108] sm:$0xff]
    %v10239 = vld [vmem:[%s16 + $0x110] sm:$0xf]
    %v10240 = vld [vmem:[%s16 + $0x114] sm:$0xff]
    %v10241 = vld [vmem:[%s16 + $0x11c] sm:$0xf]
    %v10242 = vld [vmem:[%s16 + $0x120] sm:$0xff]
    %v10243 = vld [vmem:[%s16 + $0x128] sm:$0xf]
    %v10244 = vld [vmem:[%s16 + $0x12c] sm:$0xff]
    %v10245 = vld [vmem:[%s16 + $0x134] sm:$0xf]
    %v10246 = vld [vmem:[%s16 + $0x138] sm:$0xff]
    %v10247 = vld [vmem:[%s16 + $0x140] sm:$0xf]
    %v10248 = vld [vmem:[%s16 + $0x144] sm:$0xff]
    %v10249 = vld [vmem:[%s16 + $0x14c] sm:$0xf]
    %v10250 = vld [vmem:[%s16 + $0x150] sm:$0xff]
    %v10251 = vld [vmem:[%s16 + $0x158] sm:$0xf]
    %v10252 = vld [vmem:[%s16 + $0x15c] sm:$0xff]
    %v10253 = vld [vmem:[%s16 + $0x164] sm:$0xf]
    %v10254 = vld [vmem:[%s16 + $0x168] sm:$0xff]
    %v10255 = vld [vmem:[%s16 + $0x170] sm:$0xf]
    %v10256 = vld [vmem:[%s16 + $0x174] sm:$0xff]
    %v10257 = vld [vmem:[%s16 + $0x17c] sm:$0xf]
    %v10258 = vld [vmem:[%s16 + $0x180] sm:$0xff]
    %v10259 = vld [vmem:[%s16 + $0x188] sm:$0xf]
    %v10260 = vld [vmem:[%s16 + $0x18c] sm:$0xff]
    %v10261 = vld [vmem:[%s16 + $0x194] sm:$0xf]
    %v10262 = vld [vmem:[%s16 + $0x198] sm:$0xff]
    %v10263 = vld [vmem:[%s16 + $0x1a0] sm:$0xf]
    %v10264 = vld [vmem:[%s16 + $0x1a4] sm:$0xff]
    %v10265 = vld [vmem:[%s16 + $0x1ac] sm:$0xf]
    %v10266 = vld [vmem:[%s16 + $0x1b0] sm:$0xff]
    %v10267 = vld [vmem:[%s16 + $0x1b8] sm:$0xf]
    %v10268 = vld [vmem:[%s16 + $0x1bc] sm:$0xff]
    %v10269 = vld [vmem:[%s16 + $0x1c4] sm:$0xf]
    %v10270 = vld [vmem:[%s16 + $0x1c8] sm:$0xff]
    %v10271 = vld [vmem:[%s16 + $0x1d0] sm:$0xf]
    %v10272 = vld [vmem:[%s16 + $0x1d4] sm:$0xff]
    %v10273 = vld [vmem:[%s16 + $0x1dc] sm:$0xf]
    %v10274 = vld [vmem:[%s16 + $0x1e0] sm:$0xff]
    %v10275 = vld [vmem:[%s16 + $0x1e8] sm:$0xf]
    %v10276 = vld [vmem:[%s16 + $0x1ec] sm:$0xff]
    %v10277 = vld [vmem:[%s16 + $0x1f4] sm:$0xf]
    %v10278 = vld [vmem:[%s16 + $0x1f8] sm:$0xff]
    %v10279 = vld [vmem:[%s16 + $0x200] sm:$0xf]
    %v10280 = vld [vmem:[%s16 + $0x204] sm:$0xff]
    %v10281 = vld [vmem:[%s16 + $0x20c] sm:$0xf]
    %v10282 = vld [vmem:[%s16 + $0x210] sm:$0xff]
    %v10283 = vld [vmem:[%s16 + $0x218] sm:$0xf]
    %v10284 = vld [vmem:[%s16 + $0x21c] sm:$0xff]
    %v10285 = vld [vmem:[%s16 + $0x224] sm:$0xf]
    %v10286 = vld [vmem:[%s16 + $0x228] sm:$0xff]
    %v10287 = vld [vmem:[%s16 + $0x230] sm:$0xf]
    %v10288 = vld [vmem:[%s16 + $0x234] sm:$0xff]
    %v10289 = vld [vmem:[%s16 + $0x23c] sm:$0xf]
    %v10290 = vld [vmem:[#allocation21] sm:$0x7]
    %v10292 = vlaneseq
    %v10293 = vshrl.u32 %v10292, 7
    %v10294 = vsub.s32 0, %v10293
    %v10295 = vrot.slane %v10290, %v10294
    %v10296 = vlaneseq
    %v10297 = vshrl.u32 %v10296, 7
    %v10298 = vsub.s32 1, %v10297
    %v10299 = vrot.slane %v10290, %v10298
    %v10300 = vlaneseq
    %v10301 = vshrl.u32 %v10300, 7
    %v10302 = vsub.s32 2, %v10301
    %v10303 = vrot.slane %v10290, %v10302
    %v10403 = vunpack.c.l.b16 %v10194
    %v10404 = vunpack.c.h.b16 %v10194
    %v10405 = vunpack.c.l.b16 %v10195
    %v10406 = vunpack.c.l.b16 %v10196
    %v10407 = vunpack.c.h.b16 %v10196
    %v10408 = vunpack.c.l.b16 %v10197
    %v10409 = vunpack.c.l.b16 %v10198
    %v10410 = vunpack.c.h.b16 %v10198
    %v10411 = vunpack.c.l.b16 %v10199
    %v10412 = vunpack.c.l.b16 %v10200
    %v10413 = vunpack.c.h.b16 %v10200
    %v10414 = vunpack.c.l.b16 %v10201
    %v10415 = vunpack.c.l.b16 %v10202
    %v10416 = vunpack.c.h.b16 %v10202
    %v10417 = vunpack.c.l.b16 %v10203
    %v10418 = vunpack.c.l.b16 %v10204
    %v10419 = vunpack.c.h.b16 %v10204
    %v10420 = vunpack.c.l.b16 %v10205
    %v10421 = vunpack.c.l.b16 %v10206
    %v10422 = vunpack.c.h.b16 %v10206
    %v10423 = vunpack.c.l.b16 %v10207
    %v10424 = vunpack.c.l.b16 %v10208
    %v10425 = vunpack.c.h.b16 %v10208
    %v10426 = vunpack.c.l.b16 %v10209
    %v10427 = vunpack.c.l.b16 %v10210
    %v10428 = vunpack.c.h.b16 %v10210
    %v10429 = vunpack.c.l.b16 %v10211
    %v10430 = vunpack.c.l.b16 %v10212
    %v10431 = vunpack.c.h.b16 %v10212
    %v10432 = vunpack.c.l.b16 %v10213
    %v10433 = vunpack.c.l.b16 %v10214
    %v10434 = vunpack.c.h.b16 %v10214
    %v10435 = vunpack.c.l.b16 %v10215
    %v10436 = vunpack.c.l.b16 %v10216
    %v10437 = vunpack.c.h.b16 %v10216
    %v10438 = vunpack.c.l.b16 %v10217
    %v10439 = vunpack.c.l.b16 %v10218
    %v10440 = vunpack.c.h.b16 %v10218
    %v10441 = vunpack.c.l.b16 %v10219
    %v10442 = vunpack.c.l.b16 %v10220
    %v10443 = vunpack.c.h.b16 %v10220
    %v10444 = vunpack.c.l.b16 %v10221
    %v10445 = vunpack.c.l.b16 %v10222
    %v10446 = vunpack.c.h.b16 %v10222
    %v10447 = vunpack.c.l.b16 %v10223
    %v10448 = vunpack.c.l.b16 %v10224
    %v10449 = vunpack.c.h.b16 %v10224
    %v10450 = vunpack.c.l.b16 %v10225
    %v10451 = vunpack.c.l.b16 %v10226
    %v10452 = vunpack.c.h.b16 %v10226
    %v10453 = vunpack.c.l.b16 %v10227
    %v10454 = vunpack.c.l.b16 %v10228
    %v10455 = vunpack.c.h.b16 %v10228
    %v10456 = vunpack.c.l.b16 %v10229
    %v10457 = vunpack.c.l.b16 %v10230
    %v10458 = vunpack.c.h.b16 %v10230
    %v10459 = vunpack.c.l.b16 %v10231
    %v10460 = vunpack.c.l.b16 %v10232
    %v10461 = vunpack.c.h.b16 %v10232
    %v10462 = vunpack.c.l.b16 %v10233
    %v10463 = vunpack.c.l.b16 %v10234
    %v10464 = vunpack.c.h.b16 %v10234
    %v10465 = vunpack.c.l.b16 %v10235
    %v10466 = vunpack.c.l.b16 %v10236
    %v10467 = vunpack.c.h.b16 %v10236
    %v10468 = vunpack.c.l.b16 %v10237
    %v10469 = vunpack.c.l.b16 %v10238
    %v10470 = vunpack.c.h.b16 %v10238
    %v10471 = vunpack.c.l.b16 %v10239
    %v10472 = vunpack.c.l.b16 %v10240
    %v10473 = vunpack.c.h.b16 %v10240
    %v10474 = vunpack.c.l.b16 %v10241
    %v10475 = vunpack.c.l.b16 %v10242
    %v10476 = vunpack.c.h.b16 %v10242
    %v10477 = vunpack.c.l.b16 %v10243
    %v10478 = vunpack.c.l.b16 %v10244
    %v10479 = vunpack.c.h.b16 %v10244
    %v10480 = vunpack.c.l.b16 %v10245
    %v10481 = vunpack.c.l.b16 %v10246
    %v10482 = vunpack.c.h.b16 %v10246
    %v10483 = vunpack.c.l.b16 %v10247
    %v10484 = vunpack.c.l.b16 %v10248
    %v10485 = vunpack.c.h.b16 %v10248
    %v10486 = vunpack.c.l.b16 %v10249
    %v10487 = vunpack.c.l.b16 %v10250
    %v10488 = vunpack.c.h.b16 %v10250
    %v10489 = vunpack.c.l.b16 %v10251
    %v10490 = vunpack.c.l.b16 %v10252
    %v10491 = vunpack.c.h.b16 %v10252
    %v10492 = vunpack.c.l.b16 %v10253
    %v10493 = vunpack.c.l.b16 %v10254
    %v10494 = vunpack.c.h.b16 %v10254
    %v10495 = vunpack.c.l.b16 %v10255
    %v10496 = vunpack.c.l.b16 %v10256
    %v10497 = vunpack.c.h.b16 %v10256
    %v10498 = vunpack.c.l.b16 %v10257
    %v10499 = vunpack.c.l.b16 %v10258
    %v10500 = vunpack.c.h.b16 %v10258
    %v10501 = vunpack.c.l.b16 %v10259
    %v10502 = vunpack.c.l.b16 %v10260
    %v10503 = vunpack.c.h.b16 %v10260
    %v10504 = vunpack.c.l.b16 %v10261
    %v10505 = vunpack.c.l.b16 %v10262
    %v10506 = vunpack.c.h.b16 %v10262
    %v10507 = vunpack.c.l.b16 %v10263
    %v10508 = vunpack.c.l.b16 %v10264
    %v10509 = vunpack.c.h.b16 %v10264
    %v10510 = vunpack.c.l.b16 %v10265
    %v10511 = vunpack.c.l.b16 %v10266
    %v10512 = vunpack.c.h.b16 %v10266
    %v10513 = vunpack.c.l.b16 %v10267
    %v10514 = vunpack.c.l.b16 %v10268
    %v10515 = vunpack.c.h.b16 %v10268
    %v10516 = vunpack.c.l.b16 %v10269
    %v10517 = vunpack.c.l.b16 %v10270
    %v10518 = vunpack.c.h.b16 %v10270
    %v10519 = vunpack.c.l.b16 %v10271
    %v10520 = vunpack.c.l.b16 %v10272
    %v10521 = vunpack.c.h.b16 %v10272
    %v10522 = vunpack.c.l.b16 %v10273
    %v10523 = vunpack.c.l.b16 %v10274
    %v10524 = vunpack.c.h.b16 %v10274
    %v10525 = vunpack.c.l.b16 %v10275
    %v10526 = vunpack.c.l.b16 %v10276
    %v10527 = vunpack.c.h.b16 %v10276
    %v10528 = vunpack.c.l.b16 %v10277
    %v10529 = vunpack.c.l.b16 %v10278
    %v10530 = vunpack.c.h.b16 %v10278
    %v10531 = vunpack.c.l.b16 %v10279
    %v10532 = vunpack.c.l.b16 %v10280
    %v10533 = vunpack.c.h.b16 %v10280
    %v10534 = vunpack.c.l.b16 %v10281
    %v10535 = vunpack.c.l.b16 %v10282
    %v10536 = vunpack.c.h.b16 %v10282
    %v10537 = vunpack.c.l.b16 %v10283
    %v10538 = vunpack.c.l.b16 %v10284
    %v10539 = vunpack.c.h.b16 %v10284
    %v10540 = vunpack.c.l.b16 %v10285
    %v10541 = vunpack.c.l.b16 %v10286
    %v10542 = vunpack.c.h.b16 %v10286
    %v10543 = vunpack.c.l.b16 %v10287
    %v10544 = vunpack.c.l.b16 %v10288
    %v10545 = vunpack.c.h.b16 %v10288
    %v10546 = vunpack.c.l.b16 %v10289
    %v10547 = vpack.c.b16 %v10406, %v10403
    %v10548 = vpack.c.b16 %v10407, %v10404
    %v10549 = vpack.c.b16 %v10408, %v10405
    %v10550 = vpack.c.b16 %v10412, %v10409
    %v10551 = vpack.c.b16 %v10413, %v10410
    %v10552 = vpack.c.b16 %v10414, %v10411
    %v10553 = vpack.c.b16 %v10418, %v10415
    %v10554 = vpack.c.b16 %v10419, %v10416
    %v10555 = vpack.c.b16 %v10420, %v10417
    %v10556 = vpack.c.b16 %v10424, %v10421
    %v10557 = vpack.c.b16 %v10425, %v10422
    %v10558 = vpack.c.b16 %v10426, %v10423
    %v10559 = vpack.c.b16 %v10430, %v10427
    %v10560 = vpack.c.b16 %v10431, %v10428
    %v10561 = vpack.c.b16 %v10432, %v10429
    %v10562 = vpack.c.b16 %v10436, %v10433
    %v10563 = vpack.c.b16 %v10437, %v10434
    %v10564 = vpack.c.b16 %v10438, %v10435
    %v10565 = vpack.c.b16 %v10442, %v10439
    %v10566 = vpack.c.b16 %v10443, %v10440
    %v10567 = vpack.c.b16 %v10444, %v10441
    %v10568 = vpack.c.b16 %v10448, %v10445
    %v10569 = vpack.c.b16 %v10449, %v10446
    %v10570 = vpack.c.b16 %v10450, %v10447
    %v10571 = vpack.c.b16 %v10454, %v10451
    %v10572 = vpack.c.b16 %v10455, %v10452
    %v10573 = vpack.c.b16 %v10456, %v10453
    %v10574 = vpack.c.b16 %v10460, %v10457
    %v10575 = vpack.c.b16 %v10461, %v10458
    %v10576 = vpack.c.b16 %v10462, %v10459
    %v10577 = vpack.c.b16 %v10466, %v10463
    %v10578 = vpack.c.b16 %v10467, %v10464
    %v10579 = vpack.c.b16 %v10468, %v10465
    %v10580 = vpack.c.b16 %v10472, %v10469
    %v10581 = vpack.c.b16 %v10473, %v10470
    %v10582 = vpack.c.b16 %v10474, %v10471
    %v10583 = vpack.c.b16 %v10478, %v10475
    %v10584 = vpack.c.b16 %v10479, %v10476
    %v10585 = vpack.c.b16 %v10480, %v10477
    %v10586 = vpack.c.b16 %v10484, %v10481
    %v10587 = vpack.c.b16 %v10485, %v10482
    %v10588 = vpack.c.b16 %v10486, %v10483
    %v10589 = vpack.c.b16 %v10490, %v10487
    %v10590 = vpack.c.b16 %v10491, %v10488
    %v10591 = vpack.c.b16 %v10492, %v10489
    %v10592 = vpack.c.b16 %v10496, %v10493
    %v10593 = vpack.c.b16 %v10497, %v10494
    %v10594 = vpack.c.b16 %v10498, %v10495
    %v10595 = vpack.c.b16 %v10502, %v10499
    %v10596 = vpack.c.b16 %v10503, %v10500
    %v10597 = vpack.c.b16 %v10504, %v10501
    %v10598 = vpack.c.b16 %v10508, %v10505
    %v10599 = vpack.c.b16 %v10509, %v10506
    %v10600 = vpack.c.b16 %v10510, %v10507
    %v10601 = vpack.c.b16 %v10514, %v10511
    %v10602 = vpack.c.b16 %v10515, %v10512
    %v10603 = vpack.c.b16 %v10516, %v10513
    %v10604 = vpack.c.b16 %v10520, %v10517
    %v10605 = vpack.c.b16 %v10521, %v10518
    %v10606 = vpack.c.b16 %v10522, %v10519
    %v10607 = vpack.c.b16 %v10526, %v10523
    %v10608 = vpack.c.b16 %v10527, %v10524
    %v10609 = vpack.c.b16 %v10528, %v10525
    %v10610 = vpack.c.b16 %v10532, %v10529
    %v10611 = vpack.c.b16 %v10533, %v10530
    %v10612 = vpack.c.b16 %v10534, %v10531
    %v10613 = vpack.c.b16 %v10538, %v10535
    %v10614 = vpack.c.b16 %v10539, %v10536
    %v10615 = vpack.c.b16 %v10540, %v10537
    %v10616 = vpack.c.b16 %v10544, %v10541
    %v10617 = vpack.c.b16 %v10545, %v10542
    %v10618 = vpack.c.b16 %v10546, %v10543
    %10691 = vmatprep.subr.bf16.mxu0 %v10548
    %10692 = vmatpush1.bf16.msra.mxu0 %v10547
    %10693 = vmatprep.subr.bf16.mxu0 %v10551
    %10694 = vmatpush1.bf16.msra.mxu0 %v10550
    %10695 = vmatprep.subr.bf16.mxu0 %v10554
    %10696 = vmatpush1.bf16.msra.mxu0 %v10553
    %10697 = vmatprep.subr.bf16.mxu0 %v10557
    %10698 = vmatpush1.bf16.msra.mxu0 %v10556
    %10699 = vmatprep.subr.bf16.mxu0 %v10560
    %10700 = vmatpush1.bf16.msra.mxu0 %v10559
    %10701 = vmatprep.subr.bf16.mxu0 %v10563
    %10702 = vmatpush1.bf16.msra.mxu0 %v10562
    %10703 = vmatprep.subr.bf16.mxu0 %v10566
    %10704 = vmatpush1.bf16.msra.mxu0 %v10565
    %10705 = vmatprep.subr.bf16.mxu0 %v10569
    %10706 = vmatpush1.bf16.msra.mxu0 %v10568
    %10707 = vmatprep.subr.bf16.mxu0 %v10572
    %10708 = vmatpush1.bf16.msra.mxu0 %v10571
    %10709 = vmatprep.subr.bf16.mxu0 %v10575
    %10710 = vmatpush1.bf16.msra.mxu0 %v10574
    %10711 = vmatprep.subr.bf16.mxu0 %v10578
    %10712 = vmatpush1.bf16.msra.mxu0 %v10577
    %10713 = vmatprep.subr.bf16.mxu0 %v10581
    %10714 = vmatpush1.bf16.msra.mxu0 %v10580
    %10715 = vmatprep.subr.bf16.mxu0 %v10584
    %10716 = vmatpush1.bf16.msra.mxu0 %v10583
    %10717 = vmatprep.subr.bf16.mxu0 %v10587
    %10718 = vmatpush1.bf16.msra.mxu0 %v10586
    %10719 = vmatprep.subr.bf16.mxu0 %v10590
    %10720 = vmatpush1.bf16.msra.mxu0 %v10589
    %10721 = vmatprep.subr.bf16.mxu0 %v10593
    %10722 = vmatpush1.bf16.msra.mxu0 %v10592
    %10723 = vmatprep.mubr.bf16.mxu0 %v10192
    %10724 = vmatmul.mubr.bf16.gmra.mrb[0].mxu0 %v10191
    %v10725 = vpop.f32.mrb[0].mxu0
    %v10726 = vadd.f32 %v10295, %v10725
    %v10727 = vpop.f32.mrb[0].mxu0
    %v10728 = vadd.f32 %v10299, %v10727
    %v10729 = vpop.f32.mrb[0].mxu0
    %v10730 = vpop.f32.mrb[0].mxu0
    %10731 = vdwg.mxu0
    %10732 = vmatprep.subr.bf16.mxu0 %v10596
    %10733 = vmatpush1.bf16.msra.mxu0 %v10595
    %10734 = vmatprep.subr.bf16.mxu0 %v10599
    %10735 = vmatpush1.bf16.msra.mxu0 %v10598
    %10736 = vmatprep.subr.bf16.mxu0 %v10602
    %10737 = vmatpush1.bf16.msra.mxu0 %v10601
    %10738 = vmatprep.subr.bf16.mxu0 %v10605
    %10739 = vmatpush1.bf16.msra.mxu0 %v10604
    %10740 = vmatprep.subr.bf16.mxu0 %v10608
    %10741 = vmatpush1.bf16.msra.mxu0 %v10607
    %10742 = vmatprep.subr.bf16.mxu0 %v10611
    %10743 = vmatpush1.bf16.msra.mxu0 %v10610
    %10744 = vmatprep.subr.bf16.mxu0 %v10614
    %10745 = vmatpush1.bf16.msra.mxu0 %v10613
    %10746 = vmatprep.subr.bf16.mxu0 %v10617
    %10747 = vmatpush1.bf16.msra.mxu0 %v10616
    %10748 = vmatprep.subr.bf16.mxu0 0
    %10749 = vmatpush1.bf16.msra.mxu0 0
    %10750 = vmatprep.subr.bf16.mxu0 0
    %10751 = vmatpush1.bf16.msra.mxu0 0
    %10752 = vmatprep.subr.bf16.mxu0 0
    %10753 = vmatpush1.bf16.msra.mxu0 0
    %10754 = vmatprep.subr.bf16.mxu0 0
    %10755 = vmatpush1.bf16.msra.mxu0 0
    %10756 = vmatprep.subr.bf16.mxu0 0
    %10757 = vmatpush1.bf16.msra.mxu0 0
    %10758 = vmatprep.subr.bf16.mxu0 0
    %10759 = vmatpush1.bf16.msra.mxu0 0
    %10760 = vmatprep.subr.bf16.mxu0 0
    %10761 = vmatpush1.bf16.msra.mxu0 0
    %10762 = vmatprep.subr.bf16.mxu0 0
    %10763 = vmatpush1.bf16.msra.mxu0 0
    %10764 = vmatprep.mubr.bf16.mxu0 0
    %10765 = vmatmul.mubr.bf16.gmra.mrb[0].mxu0 %v10193
    %v10766 = vpop.f32.mrb[0].mxu0
    %v10767 = vadd.f32 %v10726, %v10766
    %v10768 = vpop.f32.mrb[0].mxu0
    %v10769 = vadd.f32 %v10728, %v10768
    %v10770 = vpop.f32.mrb[0].mxu0
    %v10771 = vpop.f32.mrb[0].mxu0
    %10772 = vdwg.mxu0
    %10773 = vmatprep.subr.bf16.mxu0 0
    %10774 = vmatpush1.bf16.msra.mxu0 %v10549
    %10775 = vmatprep.subr.bf16.mxu0 0
    %10776 = vmatpush1.bf16.msra.mxu0 %v10552
    %10777 = vmatprep.subr.bf16.mxu0 0
    %10778 = vmatpush1.bf16.msra.mxu0 %v10555
    %10779 = vmatprep.subr.bf16.mxu0 0
    %10780 = vmatpush1.bf16.msra.mxu0 %v10558
    %10781 = vmatprep.subr.bf16.mxu0 0
    %10782 = vmatpush1.bf16.msra.mxu0 %v10561
    %10783 = vmatprep.subr.bf16.mxu0 0
    %10784 = vmatpush1.bf16.msra.mxu0 %v10564
    %10785 = vmatprep.subr.bf16.mxu0 0
    %10786 = vmatpush1.bf16.msra.mxu0 %v10567
    %10787 = vmatprep.subr.bf16.mxu0 0
    %10788 = vmatpush1.bf16.msra.mxu0 %v10570
    %10789 = vmatprep.subr.bf16.mxu0 0
    %10790 = vmatpush1.bf16.msra.mxu0 %v10573
    %10791 = vmatprep.subr.bf16.mxu0 0
    %10792 = vmatpush1.bf16.msra.mxu0 %v10576
    %10793 = vmatprep.subr.bf16.mxu0 0
    %10794 = vmatpush1.bf16.msra.mxu0 %v10579
    %10795 = vmatprep.subr.bf16.mxu0 0
    %10796 = vmatpush1.bf16.msra.mxu0 %v10582
    %10797 = vmatprep.subr.bf16.mxu0 0
    %10798 = vmatpush1.bf16.msra.mxu0 %v10585
    %10799 = vmatprep.subr.bf16.mxu0 0
    %10800 = vmatpush1.bf16.msra.mxu0 %v10588
    %10801 = vmatprep.subr.bf16.mxu0 0
    %10802 = vmatpush1.bf16.msra.mxu0 %v10591
    %10803 = vmatprep.subr.bf16.mxu0 0
    %10804 = vmatpush1.bf16.msra.mxu0 %v10594
    %10805 = vmatprep.mubr.bf16.mxu0 %v10192
    %10806 = vmatmul.mubr.bf16.gmra.mrb[0].mxu0 %v10191
    %v10807 = vpop.f32.mrb[0].mxu0
    %v10808 = vadd.f32 %v10303, %v10807
    %v10809 = vpop.f32.mrb[0].mxu0
    %v10810 = vpop.f32.mrb[0].mxu0
    %v10811 = vpop.f32.mrb[0].mxu0
    %10812 = vdwg.mxu0
    %10813 = vmatprep.subr.bf16.mxu0 0
    %10814 = vmatpush1.bf16.msra.mxu0 %v10597
    %10815 = vmatprep.subr.bf16.mxu0 0
    %10816 = vmatpush1.bf16.msra.mxu0 %v10600
    %10817 = vmatprep.subr.bf16.mxu0 0
    %10818 = vmatpush1.bf16.msra.mxu0 %v10603
    %10819 = vmatprep.subr.bf16.mxu0 0
    %10820 = vmatpush1.bf16.msra.mxu0 %v10606
    %10821 = vmatprep.subr.bf16.mxu0 0
    %10822 = vmatpush1.bf16.msra.mxu0 %v10609
    %10823 = vmatprep.subr.bf16.mxu0 0
    %10824 = vmatpush1.bf16.msra.mxu0 %v10612
    %10825 = vmatprep.subr.bf16.mxu0 0
    %10826 = vmatpush1.bf16.msra.mxu0 %v10615
    %10827 = vmatprep.subr.bf16.mxu0 0
    %10828 = vmatpush1.bf16.msra.mxu0 %v10618
    %10829 = vmatprep.subr.bf16.mxu0 0
    %10830 = vmatpush1.bf16.msra.mxu0 0
    %10831 = vmatprep.subr.bf16.mxu0 0
    %10832 = vmatpush1.bf16.msra.mxu0 0
    %10833 = vmatprep.subr.bf16.mxu0 0
    %10834 = vmatpush1.bf16.msra.mxu0 0
    %10835 = vmatprep.subr.bf16.mxu0 0
    %10836 = vmatpush1.bf16.msra.mxu0 0
    %10837 = vmatprep.subr.bf16.mxu0 0
    %10838 = vmatpush1.bf16.msra.mxu0 0
    %10839 = vmatprep.subr.bf16.mxu0 0
    %10840 = vmatpush1.bf16.msra.mxu0 0
    %10841 = vmatprep.subr.bf16.mxu0 0
    %10842 = vmatpush1.bf16.msra.mxu0 0
    %10843 = vmatprep.subr.bf16.mxu0 0
    %10844 = vmatpush1.bf16.msra.mxu0 0
    %10845 = vmatprep.mubr.bf16.mxu0 0
    %10846 = vmatmul.mubr.bf16.gmra.mrb[0].mxu0 %v10193
    %v10847 = vpop.f32.mrb[0].mxu0
    %v10848 = vadd.f32 %v10808, %v10847
    %v10849 = vpop.f32.mrb[0].mxu0
    %v10850 = vpop.f32.mrb[0].mxu0
    %v10851 = vpop.f32.mrb[0].mxu0
    %10852 = vdwg.mxu0
    %v10853 = vadd.f32 %v10767, %v10034
    %v10854 = vxor.u32 %v10853, 2147483648
    %v10855 = vmul.f32 %v10854, 1.442695
    %v10856 = vpow.pop %v10855
    %v10857 = vadd.f32 %v10856, 1.0
    %v10858 = vrcp.pop %v10857
    %v10859 = vmul.f32 1.0, %v10858
    %v10860 = vadd.f32 %v10769, %v10036
    %v10861 = vxor.u32 %v10860, 2147483648
    %v10862 = vmul.f32 %v10861, 1.442695
    %v10863 = vpow.pop %v10862
    %v10864 = vadd.f32 %v10863, 1.0
    %v10865 = vrcp.pop %v10864
    %v10866 = vmul.f32 1.0, %v10865
    %v10867 = vmul.f32 %v10859, %v10075
    %v10868 = vadd.f32 %v10848, %v10867
    %v10869 = vtanh.pop %v10868
    %v10870 = vsub.f32 1.0, %v10866
    %v10871 = vmul.f32 %v10870, %v10869
    %v10872 = vmul.f32 %v10866, %v9238
    %v10873 = vadd.f32 %v10871, %v10872
    %v10874 = vpack.c.bf16 %v10873, %v10873
    %v10875 = vld [vmem:[#allocation22] sm:$0xf]
    %v10876 = vld [vmem:[#allocation22 + $0x4] sm:$0xf]
    %v10877 = vld [vmem:[#allocation22 + $0x8] sm:$0xf]
    %v10878 = vld [vmem:[#allocation22 + $0xc] sm:$0xf]
    %v10879 = vld [vmem:[#allocation22 + $0x10] sm:$0xf]
    %v10880 = vld [vmem:[#allocation22 + $0x14] sm:$0xf]
    %v10881 = vld [vmem:[#allocation22 + $0x18] sm:$0xf]
    %v10882 = vld [vmem:[#allocation22 + $0x1c] sm:$0xf]
    %v10883 = vld [vmem:[#allocation22 + $0x20] sm:$0xf]
    %v10884 = vld [vmem:[#allocation22 + $0x24] sm:$0xf]
    %v10885 = vld [vmem:[#allocation22 + $0x28] sm:$0xf]
    %v10886 = vld [vmem:[#allocation22 + $0x2c] sm:$0xf]
    %v10887 = vld [vmem:[#allocation22 + $0x30] sm:$0xf]
    %v10888 = vld [vmem:[#allocation22 + $0x34] sm:$0xf]
    %v10889 = vld [vmem:[#allocation22 + $0x38] sm:$0xf]
    %v10890 = vld [vmem:[#allocation22 + $0x3c] sm:$0xf]
    %v10891 = vld [vmem:[#allocation22 + $0x40] sm:$0xf]
    %v10892 = vld [vmem:[#allocation22 + $0x44] sm:$0xf]
    %v10893 = vld [vmem:[#allocation22 + $0x48] sm:$0xf]
    %v10894 = vld [vmem:[#allocation22 + $0x4c] sm:$0xf]
    %v10895 = vld [vmem:[#allocation22 + $0x50] sm:$0xf]
    %v10896 = vld [vmem:[#allocation22 + $0x54] sm:$0xf]
    %v10897 = vld [vmem:[#allocation22 + $0x58] sm:$0xf]
    %v10898 = vld [vmem:[#allocation22 + $0x5c] sm:$0xf]
    %v10899 = vld [vmem:[#allocation22 + $0x60] sm:$0xf]
    %v10900 = vld [vmem:[#allocation22 + $0x64] sm:$0xf]
    %v10901 = vld [vmem:[#allocation22 + $0x68] sm:$0xf]
    %v10902 = vld [vmem:[#allocation22 + $0x6c] sm:$0xf]
    %v10903 = vld [vmem:[#allocation22 + $0x70] sm:$0xf]
    %v10904 = vld [vmem:[#allocation22 + $0x74] sm:$0xf]
    %v10905 = vld [vmem:[#allocation22 + $0x78] sm:$0xf]
    %v10906 = vld [vmem:[#allocation22 + $0x7c] sm:$0xf]
    %v10907 = vld [vmem:[#allocation22 + $0x80] sm:$0xf]
    %v10908 = vld [vmem:[#allocation22 + $0x84] sm:$0xf]
    %v10909 = vld [vmem:[#allocation22 + $0x88] sm:$0xf]
    %v10910 = vld [vmem:[#allocation22 + $0x8c] sm:$0xf]
    %v10911 = vld [vmem:[#allocation22 + $0x90] sm:$0xf]
    %v10912 = vld [vmem:[#allocation22 + $0x94] sm:$0xf]
    %v10913 = vld [vmem:[#allocation22 + $0x98] sm:$0xf]
    %v10914 = vld [vmem:[#allocation22 + $0x9c] sm:$0xf]
    %v10915 = vld [vmem:[#allocation22 + $0xa0] sm:$0xf]
    %v10916 = vld [vmem:[#allocation22 + $0xa4] sm:$0xf]
    %v10917 = vld [vmem:[#allocation22 + $0xa8] sm:$0xf]
    %v10918 = vld [vmem:[#allocation22 + $0xac] sm:$0xf]
    %v10919 = vld [vmem:[#allocation22 + $0xb0] sm:$0xf]
    %v10920 = vld [vmem:[#allocation22 + $0xb4] sm:$0xf]
    %v10921 = vld [vmem:[#allocation22 + $0xb8] sm:$0xf]
    %v10922 = vld [vmem:[#allocation22 + $0xbc] sm:$0xf]
    %v10923 = vld [vmem:[#allocation24] sm:$0x1]
    %v10925 = vlaneseq
    %v10926 = vshrl.u32 %v10925, 7
    %v10927 = vsub.s32 0, %v10926
    %v10928 = vrot.slane %v10923, %v10927
    %v10978 = vunpack.c.l.b16 %v10875
    %v10979 = vunpack.c.l.b16 %v10876
    %v10980 = vunpack.c.l.b16 %v10877
    %v10981 = vunpack.c.l.b16 %v10878
    %v10982 = vunpack.c.l.b16 %v10879
    %v10983 = vunpack.c.l.b16 %v10880
    %v10984 = vunpack.c.l.b16 %v10881
    %v10985 = vunpack.c.l.b16 %v10882
    %v10986 = vunpack.c.l.b16 %v10883
    %v10987 = vunpack.c.l.b16 %v10884
    %v10988 = vunpack.c.l.b16 %v10885
    %v10989 = vunpack.c.l.b16 %v10886
    %v10990 = vunpack.c.l.b16 %v10887
    %v10991 = vunpack.c.l.b16 %v10888
    %v10992 = vunpack.c.l.b16 %v10889
    %v10993 = vunpack.c.l.b16 %v10890
    %v10994 = vunpack.c.l.b16 %v10891
    %v10995 = vunpack.c.l.b16 %v10892
    %v10996 = vunpack.c.l.b16 %v10893
    %v10997 = vunpack.c.l.b16 %v10894
    %v10998 = vunpack.c.l.b16 %v10895
    %v10999 = vunpack.c.l.b16 %v10896
    %v11000 = vunpack.c.l.b16 %v10897
    %v11001 = vunpack.c.l.b16 %v10898
    %v11002 = vunpack.c.l.b16 %v10899
    %v11003 = vunpack.c.l.b16 %v10900
    %v11004 = vunpack.c.l.b16 %v10901
    %v11005 = vunpack.c.l.b16 %v10902
    %v11006 = vunpack.c.l.b16 %v10903
    %v11007 = vunpack.c.l.b16 %v10904
    %v11008 = vunpack.c.l.b16 %v10905
    %v11009 = vunpack.c.l.b16 %v10906
    %v11010 = vunpack.c.l.b16 %v10907
    %v11011 = vunpack.c.l.b16 %v10908
    %v11012 = vunpack.c.l.b16 %v10909
    %v11013 = vunpack.c.l.b16 %v10910
    %v11014 = vunpack.c.l.b16 %v10911
    %v11015 = vunpack.c.l.b16 %v10912
    %v11016 = vunpack.c.l.b16 %v10913
    %v11017 = vunpack.c.l.b16 %v10914
    %v11018 = vunpack.c.l.b16 %v10915
    %v11019 = vunpack.c.l.b16 %v10916
    %v11020 = vunpack.c.l.b16 %v10917
    %v11021 = vunpack.c.l.b16 %v10918
    %v11022 = vunpack.c.l.b16 %v10919
    %v11023 = vunpack.c.l.b16 %v10920
    %v11024 = vunpack.c.l.b16 %v10921
    %v11025 = vunpack.c.l.b16 %v10922
    %v11026 = vpack.c.b16 %v10979, %v10978
    %v11027 = vpack.c.b16 %v10981, %v10980
    %v11028 = vpack.c.b16 %v10983, %v10982
    %v11029 = vpack.c.b16 %v10985, %v10984
    %v11030 = vpack.c.b16 %v10987, %v10986
    %v11031 = vpack.c.b16 %v10989, %v10988
    %v11032 = vpack.c.b16 %v10991, %v10990
    %v11033 = vpack.c.b16 %v10993, %v10992
    %v11034 = vpack.c.b16 %v10995, %v10994
    %v11035 = vpack.c.b16 %v10997, %v10996
    %v11036 = vpack.c.b16 %v10999, %v10998
    %v11037 = vpack.c.b16 %v11001, %v11000
    %v11038 = vpack.c.b16 %v11003, %v11002
    %v11039 = vpack.c.b16 %v11005, %v11004
    %v11040 = vpack.c.b16 %v11007, %v11006
    %v11041 = vpack.c.b16 %v11009, %v11008
    %v11042 = vpack.c.b16 %v11011, %v11010
    %v11043 = vpack.c.b16 %v11013, %v11012
    %v11044 = vpack.c.b16 %v11015, %v11014
    %v11045 = vpack.c.b16 %v11017, %v11016
    %v11046 = vpack.c.b16 %v11019, %v11018
    %v11047 = vpack.c.b16 %v11021, %v11020
    %v11048 = vpack.c.b16 %v11023, %v11022
    %v11049 = vpack.c.b16 %v11025, %v11024
    %11074 = vmatprep.subr.bf16.mxu0 0
    %11075 = vmatpush1.bf16.msra.mxu0 %v11026
    %11076 = vmatprep.subr.bf16.mxu0 0
    %11077 = vmatpush1.bf16.msra.mxu0 %v11027
    %11078 = vmatprep.subr.bf16.mxu0 0
    %11079 = vmatpush1.bf16.msra.mxu0 %v11028
    %11080 = vmatprep.subr.bf16.mxu0 0
    %11081 = vmatpush1.bf16.msra.mxu0 %v11029
    %11082 = vmatprep.subr.bf16.mxu0 0
    %11083 = vmatpush1.bf16.msra.mxu0 %v11030
    %11084 = vmatprep.subr.bf16.mxu0 0
    %11085 = vmatpush1.bf16.msra.mxu0 %v11031
    %11086 = vmatprep.subr.bf16.mxu0 0
    %11087 = vmatpush1.bf16.msra.mxu0 %v11032
    %11088 = vmatprep.subr.bf16.mxu0 0
    %11089 = vmatpush1.bf16.msra.mxu0 %v11033
    %11090 = vmatprep.subr.bf16.mxu0 0
    %11091 = vmatpush1.bf16.msra.mxu0 %v11034
    %11092 = vmatprep.subr.bf16.mxu0 0
    %11093 = vmatpush1.bf16.msra.mxu0 %v11035
    %11094 = vmatprep.subr.bf16.mxu0 0
    %11095 = vmatpush1.bf16.msra.mxu0 %v11036
    %11096 = vmatprep.subr.bf16.mxu0 0
    %11097 = vmatpush1.bf16.msra.mxu0 %v11037
    %11098 = vmatprep.subr.bf16.mxu0 0
    %11099 = vmatpush1.bf16.msra.mxu0 %v11038
    %11100 = vmatprep.subr.bf16.mxu0 0
    %11101 = vmatpush1.bf16.msra.mxu0 %v11039
    %11102 = vmatprep.subr.bf16.mxu0 0
    %11103 = vmatpush1.bf16.msra.mxu0 %v11040
    %11104 = vmatprep.subr.bf16.mxu0 0
    %11105 = vmatpush1.bf16.msra.mxu0 %v11041
    %11106 = vmatprep.mubr.bf16.mxu0 %v10192
    %11107 = vmatmul.mubr.bf16.gmra.mrb[0].mxu0 %v10874
    %v11108 = vpop.f32.mrb[0].mxu0
    %v11109 = vadd.f32 %v10928, %v11108
    %v11110 = vpop.f32.mrb[0].mxu0
    %v11111 = vpop.f32.mrb[0].mxu0
    %v11112 = vpop.f32.mrb[0].mxu0
    %11113 = vdwg.mxu0
    %11114 = vmatprep.subr.bf16.mxu0 0
    %11115 = vmatpush1.bf16.msra.mxu0 %v11042
    %11116 = vmatprep.subr.bf16.mxu0 0
    %11117 = vmatpush1.bf16.msra.mxu0 %v11043
    %11118 = vmatprep.subr.bf16.mxu0 0
    %11119 = vmatpush1.bf16.msra.mxu0 %v11044
    %11120 = vmatprep.subr.bf16.mxu0 0
    %11121 = vmatpush1.bf16.msra.mxu0 %v11045
    %11122 = vmatprep.subr.bf16.mxu0 0
    %11123 = vmatpush1.bf16.msra.mxu0 %v11046
    %11124 = vmatprep.subr.bf16.mxu0 0
    %11125 = vmatpush1.bf16.msra.mxu0 %v11047
    %11126 = vmatprep.subr.bf16.mxu0 0
    %11127 = vmatpush1.bf16.msra.mxu0 %v11048
    %11128 = vmatprep.subr.bf16.mxu0 0
    %11129 = vmatpush1.bf16.msra.mxu0 %v11049
    %11130 = vmatprep.subr.bf16.mxu0 0
    %11131 = vmatpush1.bf16.msra.mxu0 0
    %11132 = vmatprep.subr.bf16.mxu0 0
    %11133 = vmatpush1.bf16.msra.mxu0 0
    %11134 = vmatprep.subr.bf16.mxu0 0
    %11135 = vmatpush1.bf16.msra.mxu0 0
    %11136 = vmatprep.subr.bf16.mxu0 0
    %11137 = vmatpush1.bf16.msra.mxu0 0
    %11138 = vmatprep.subr.bf16.mxu0 0
    %11139 = vmatpush1.bf16.msra.mxu0 0
    %11140 = vmatprep.subr.bf16.mxu0 0
    %11141 = vmatpush1.bf16.msra.mxu0 0
    %11142 = vmatprep.subr.bf16.mxu0 0
    %11143 = vmatpush1.bf16.msra.mxu0 0
    %11144 = vmatprep.subr.bf16.mxu0 0
    %11145 = vmatpush1.bf16.msra.mxu0 0
    %11146 = vmatprep.mubr.bf16.mxu0 0
    %11147 = vmatmul.mubr.bf16.gmra.mrb[0].mxu0 %v10191
    %v11148 = vpop.f32.mrb[0].mxu0
    %v11149 = vadd.f32 %v11109, %v11148
    %v11150 = vpop.f32.mrb[0].mxu0
    %v11151 = vpop.f32.mrb[0].mxu0
    %v11152 = vpop.f32.mrb[0].mxu0
    %11153 = vdwg.mxu0
    %s11154 = scalar_lea.vmem [#allocation25], 40
    %11155 = vst [vmem:[%s11154] sm:$0xff] %v11149
    // Predicated region
    $region126: #{_ptf_jax.1} parent=1 // pred_check
      _
    $region127: #{_ptf_jax.1} parent=1 // pred_check_branch
      %11157 = sbr.rel (0) target = $region129
    $region128: #{_ptf_jax.1} parent=1 // pred_region
      %s11159 = ssub.s32 768, 768
      %11160 = vsyncadd [#allocation9], %s11159
      %s11161 = sshll.u32 [#allocation25], 4
      %s11162 = int_to_ptr.vmem [resolvable:$true] %s11161
      %11167 = dma.vmem_to_hbm [thread:$0]  %s11162, 768, %s21, [#allocation9], 128, 128, 8
    $region129: #{_ptf_jax.1} parent=1 // pred_fallthru
      _
    // Predicated region
    $region130: #{_ptf_jax.1} parent=1 // pred_check
      _
    $region131: #{_ptf_jax.1} parent=1 // pred_check_branch
      %11169 = sbr.rel (0) target = $region133
    $region132: #{_ptf_jax.1} parent=1 // pred_region
      %11170 = dma.done [#allocation9], 768
    $region133: #{_ptf_jax.1} parent=1 // pred_fallthru
      _
    %11171 = vsyncpa [#allocation8], 1
    %11172 = vsyncpa [#allocation11], 1
    %11173 = vsyncpa [#allocation14], 1
    %11174 = vsyncpa [#allocation17], 1
    %11175 = vsyncpa [#allocation20], 1
    %11176 = vsyncpa [#allocation23], 1
    %11177 = vsyncpa [#allocation9], 1

</llo_original>
